<compile_context>
chip_gen: v6e
topology: v6e:2x2x1
jax: 0.10.0
libtpu: 0.0.40
codegen_flags: <defaults>
</compile_context>

<pallas_src>
import functools
import math

import jax
import jax.numpy as jnp
from jax import lax
from jax.experimental import pallas as pl
from jax.experimental.pallas import tpu as pltpu

BN_EPS = 1e-5


# ---------------------------------------------------------------------------
# Pallas kernel: the whole ConvBlock (all units) fused, one batch element/step
# ---------------------------------------------------------------------------

def _convblock_kernel(x_ref, w_ref, bss_ref, o_ref, xpad_ref, slab_ref,
                      *, H, W, C, n_layers):
    """Fused [Conv3x3 -> ReLU -> BN(folded)] * n_layers for one image.

    x_ref   : (1, H, W, C)    f32   NHWC input image tile
    w_ref   : (L, 9*C, C)     bf16  stacked conv weights, im2col row order
                                    (row index = (3*di + dj)*C + cin)
    bss_ref : (L, 3, C)       f32   rows = [conv bias, BN scale, BN shift]
    o_ref   : (1, H, W, C)    f32   output tile
    xpad_ref: (H+2, W+2, C)   f32   VMEM scratch: zero-padded activation
    slab_ref: (H*W, 9*C)      bf16  VMEM scratch: im2col slab
    """
    # In-kernel zero padding: memset the buffer (halo stays zero for the whole
    # grid step), then fill the interior with the input image.
    xpad_ref[...] = jnp.zeros_like(xpad_ref)
    xpad_ref[1:H + 1, 1:W + 1, :] = x_ref[0]

    for layer in range(n_layers):
        # Assemble the im2col slab fully in VMEM: column block t = 3*di + dj
        # holds the (di, dj)-shifted H x W window of the padded activation.
        # No im2col matrix ever touches HBM.
        for di in range(3):
            for dj in range(3):
                t = 3 * di + dj
                win = xpad_ref[di:di + H, dj:dj + W, :].reshape(H * W, C)
                slab_ref[:, t * C:(t + 1) * C] = win.astype(slab_ref.dtype)

        # One MXU matmul per layer: (H*W, 9C) x (9C, C), f32 accumulation.
        acc = jnp.dot(slab_ref[...], w_ref[layer],
                      preferred_element_type=jnp.float32)

        bss = bss_ref[layer]                                # (3, C) f32
        z = jnp.maximum(acc + bss[0:1, :], 0.0)             # Conv(+bias)->ReLU
        y = z * bss[1:2, :] + bss[2:3, :]                   # -> folded BN

        if layer < n_layers - 1:
            # Intermediate activation never leaves VMEM: write it back into
            # the padded buffer's interior.  In-place is safe because the slab
            # already snapshotted this layer's input; the halo stays zero.
            xpad_ref[1:H + 1, 1:W + 1, :] = y.reshape(H, W, C)
        else:
            o_ref[...] = y.reshape(1, H, W, C).astype(o_ref.dtype)


def convblock_pallas(x_nhwc, w_all, bss_all):
    """x_nhwc: (N, H, W, C) f32; w_all: (L, 9C, C) bf16; bss_all: (L, 3, C) f32."""
    N, H, W, C = x_nhwc.shape
    L = w_all.shape[0]
    kern = functools.partial(_convblock_kernel, H=H, W=W, C=C, n_layers=L)

    flops = 2 * N * L * (H * W) * (9 * C) * C
    bytes_accessed = (N * H * W * C * 4 * 2          # input + output
                      + L * 9 * C * C * 2            # bf16 weights
                      + L * 3 * C * 4)               # bias/scale/shift

    return pl.pallas_call(
        kern,
        out_shape=jax.ShapeDtypeStruct((N, H, W, C), jnp.float32),
        grid_spec=pltpu.PrefetchScalarGridSpec(
            num_scalar_prefetch=0,
            grid=(N,),  # batch-parallel: keeps both TCs busy on v7x
            in_specs=[
                pl.BlockSpec((1, H, W, C), lambda n: (n, 0, 0, 0)),
                pl.BlockSpec((L, 9 * C, C), lambda n: (0, 0, 0)),
                pl.BlockSpec((L, 3, C), lambda n: (0, 0, 0)),
            ],
            out_specs=pl.BlockSpec((1, H, W, C), lambda n: (n, 0, 0, 0)),
            scratch_shapes=[
                pltpu.VMEM((H + 2, W + 2, C), jnp.float32),   # padded act
                pltpu.VMEM((H * W, 9 * C), jnp.bfloat16),     # im2col slab
            ]),
        compiler_params=pltpu.CompilerParams(
            dimension_semantics=("parallel",)),
        cost_estimate=pl.CostEstimate(flops=flops, transcendentals=0,
                                      bytes_accessed=bytes_accessed),
    )(x_nhwc, w_all, bss_all)


# ---------------------------------------------------------------------------
# ConvBlock forward (mirrors the PyTorch module, eval mode)
# ---------------------------------------------------------------------------

def convblock_forward(params, x_nchw):
    x = jnp.transpose(x_nchw, (0, 2, 3, 1))                  # NCHW -> NHWC
    out = convblock_pallas(x, params["w_all"], params["bss_all"])
    return jnp.transpose(out, (0, 3, 1, 2))                  # NHWC -> NCHW


# ---------------------------------------------------------------------------
# Deterministic synthetic parameters (PyTorch convention, pre-packed)
# ---------------------------------------------------------------------------

class KeyGen:
    def __init__(self, seed=0):
        self._key = jax.random.PRNGKey(seed)

    def __call__(self):
        self._key, k = jax.random.split(self._key)
        return k


def init_convblock_params(kg, channels, size):
    w_rows, bss_rows = [], []
    for _ in range(size):
        fan = channels * 9
        w = jax.random.normal(kg(), (channels, channels, 3, 3),
                              jnp.float32) / math.sqrt(fan)   # (Cout,Cin,kh,kw)
        b = 0.01 * jax.random.normal(kg(), (channels,), jnp.float32)
        gamma = 1.0 + 0.1 * jax.random.normal(kg(), (channels,), jnp.float32)
        beta = 0.05 * jax.random.normal(kg(), (channels,), jnp.float32)
        mean = 0.1 * jax.random.normal(kg(), (channels,), jnp.float32)
        var = jax.random.uniform(kg(), (channels,), jnp.float32,
                                 minval=0.5, maxval=1.5)
        scale = gamma / jnp.sqrt(var + BN_EPS)
        shift = beta - mean * scale
        # im2col weight rows: (kh, kw, Cin, Cout) flattened -> (9*Cin, Cout);
        # matches slab column order (tap-major, cin-minor).
        w_rows.append(jnp.transpose(w, (2, 3, 1, 0)).reshape(9 * channels,
                                                             channels))
        bss_rows.append(jnp.stack([b, scale, shift], axis=0))
    return {"w_all": jnp.stack(w_rows, 0).astype(jnp.bfloat16),   # (L,9C,C)
            "bss_all": jnp.stack(bss_rows, 0).astype(jnp.float32)}  # (L,3,C)


# ---------------------------------------------------------------------------
# Pure-JAX reference (same bf16-operand / f32-accumulate numerics)
# ---------------------------------------------------------------------------

def reference_forward(params, x_nchw):
    w_all, bss_all = params["w_all"], params["bss_all"]
    L, _, C = w_all.shape
    x = jnp.transpose(x_nchw, (0, 2, 3, 1))                  # NHWC, f32
    for layer in range(L):
        w_hwio = w_all[layer].reshape(3, 3, C, C)            # bf16 HWIO
        y = lax.conv_general_dilated(
            x.astype(jnp.bfloat16), w_hwio, window_strides=(1, 1),
            padding=((1, 1), (1, 1)),
            dimension_numbers=("NHWC", "HWIO", "NHWC"),
            preferred_element_type=jnp.float32)
        bss = bss_all[layer]
        x = jnp.maximum(y + bss[0], 0.0) * bss[1] + bss[2]   # stays f32
    return jnp.transpose(x, (0, 3, 1, 2))


if __name__ == "__main__":
    batch, channels, height, width, size = 2, 32, 16, 16, 2

    kg = KeyGen(0)
    params = init_convblock_params(kg, channels, size)
    x = jax.random.normal(jax.random.PRNGKey(0),
                          (batch, channels, height, width), jnp.float32)

    fwd = jax.jit(convblock_forward)
    out = jax.block_until_ready(fwd(params, x))
    assert out.shape == (batch, channels, height, width), out.shape
    assert bool(jnp.all(jnp.isfinite(out)))

    ref = jax.block_until_ready(jax.jit(reference_forward)(params, x))
    max_err = float(jnp.max(jnp.abs(out - ref)))
    assert bool(jnp.allclose(out, ref, rtol=2e-2, atol=2e-2)), max_err

    print("KERNEL_OK")
</pallas_src>

<mosaic_0001>
module attributes {stable_mosaic.version = 11 : i64} {
  func.func @_convblock_kernel(%arg0: i32, %arg1: memref<1x16x16x32xf32, #tpu.memory_space<vmem>>, %arg2: memref<2x288x32xbf16, #tpu.memory_space<vmem>>, %arg3: memref<2x3x32xf32, #tpu.memory_space<vmem>>, %arg4: memref<1x16x16x32xf32, #tpu.memory_space<vmem>>, %arg5: memref<18x18x32xf32, #tpu.memory_space<vmem>>, %arg6: memref<256x288xbf16, #tpu.memory_space<vmem>>) attributes {dimension_semantics = [#tpu.dimension_semantics<parallel>], iteration_bounds = array<i64: 2>, scalar_prefetch = 0 : i64, scratch_operands = 2 : i64, tpu.core_type = #tpu.core_type<tc>, window_params = [{transform_indices = @transform_0, window_bounds = array<i64: 1, 16, 16, 32>}, {pipeline_mode = #tpu.pipeline_mode<synchronous>, transform_indices = @transform_1, window_bounds = array<i64: 2, 288, 32>}, {pipeline_mode = #tpu.pipeline_mode<synchronous>, transform_indices = @transform_2, window_bounds = array<i64: 2, 3, 32>}, {transform_indices = @transform_3, window_bounds = array<i64: 1, 16, 16, 32>}]} {
    %cst = arith.constant 0.000000e+00 : f32
    %0 = vector.broadcast %cst : f32 to vector<18x18x32xf32>
    %c0 = arith.constant 0 : index
    %c0_0 = arith.constant 0 : index
    %c0_1 = arith.constant 0 : index
    %1 = vector.load %arg5[%c0, %c0_0, %c0_1] : memref<18x18x32xf32, #tpu.memory_space<vmem>>, vector<18x18x32xf32>
    tpu.vector_store %arg5[%c0, %c0_0, %c0_1], %0 {strides = array<i32>} : memref<18x18x32xf32, #tpu.memory_space<vmem>>, vector<18x18x32xf32>,
    %c0_2 = arith.constant 0 : index
    %c0_3 = arith.constant 0 : index
    %c0_4 = arith.constant 0 : index
    %c0_5 = arith.constant 0 : index
    %2 = vector.load %arg1[%c0_2, %c0_3, %c0_4, %c0_5] : memref<1x16x16x32xf32, #tpu.memory_space<vmem>>, vector<1x16x16x32xf32>
    %3 = vector.shape_cast %2 : vector<1x16x16x32xf32> to vector<16x16x32xf32>
    %c1 = arith.constant 1 : index
    %c1_6 = arith.constant 1 : index
    %c0_7 = arith.constant 0 : index
    %4 = vector.load %arg5[%c1, %c1_6, %c0_7] : memref<18x18x32xf32, #tpu.memory_space<vmem>>, vector<16x16x32xf32>
    tpu.vector_store %arg5[%c1, %c1_6, %c0_7], %3 {strides = array<i32>} : memref<18x18x32xf32, #tpu.memory_space<vmem>>, vector<16x16x32xf32>,
    %c0_8 = arith.constant 0 : index
    %c0_9 = arith.constant 0 : index
    %c0_10 = arith.constant 0 : index
    %5 = vector.load %arg5[%c0_8, %c0_9, %c0_10] : memref<18x18x32xf32, #tpu.memory_space<vmem>>, vector<16x16x32xf32>
    %6 = vector.shape_cast %5 : vector<16x16x32xf32> to vector<256x32xf32>
    %7 = arith.truncf %6 : vector<256x32xf32> to vector<256x32xbf16>
    %c0_11 = arith.constant 0 : index
    %c0_12 = arith.constant 0 : index
    %8 = vector.load %arg6[%c0_11, %c0_12] : memref<256x288xbf16, #tpu.memory_space<vmem>>, vector<256x32xbf16>
    tpu.vector_store %arg6[%c0_11, %c0_12], %7 {strides = array<i32>} : memref<256x288xbf16, #tpu.memory_space<vmem>>, vector<256x32xbf16>,
    %c0_13 = arith.constant 0 : index
    %c1_14 = arith.constant 1 : index
    %c0_15 = arith.constant 0 : index
    %9 = vector.load %arg5[%c0_13, %c1_14, %c0_15] : memref<18x18x32xf32, #tpu.memory_space<vmem>>, vector<16x16x32xf32>
    %10 = vector.shape_cast %9 : vector<16x16x32xf32> to vector<256x32xf32>
    %11 = arith.truncf %10 : vector<256x32xf32> to vector<256x32xbf16>
    %c0_16 = arith.constant 0 : index
    %c32 = arith.constant 32 : index
    %12 = vector.load %arg6[%c0_16, %c32] : memref<256x288xbf16, #tpu.memory_space<vmem>>, vector<256x32xbf16>
    tpu.vector_store %arg6[%c0_16, %c32], %11 {strides = array<i32>} : memref<256x288xbf16, #tpu.memory_space<vmem>>, vector<256x32xbf16>,
    %c0_17 = arith.constant 0 : index
    %c2 = arith.constant 2 : index
    %c0_18 = arith.constant 0 : index
    %13 = vector.load %arg5[%c0_17, %c2, %c0_18] : memref<18x18x32xf32, #tpu.memory_space<vmem>>, vector<16x16x32xf32>
    %14 = vector.shape_cast %13 : vector<16x16x32xf32> to vector<256x32xf32>
    %15 = arith.truncf %14 : vector<256x32xf32> to vector<256x32xbf16>
    %c0_19 = arith.constant 0 : index
    %c64 = arith.constant 64 : index
    %16 = vector.load %arg6[%c0_19, %c64] : memref<256x288xbf16, #tpu.memory_space<vmem>>, vector<256x32xbf16>
    tpu.vector_store %arg6[%c0_19, %c64], %15 {strides = array<i32>} : memref<256x288xbf16, #tpu.memory_space<vmem>>, vector<256x32xbf16>,
    %c1_20 = arith.constant 1 : index
    %c0_21 = arith.constant 0 : index
    %c0_22 = arith.constant 0 : index
    %17 = vector.load %arg5[%c1_20, %c0_21, %c0_22] : memref<18x18x32xf32, #tpu.memory_space<vmem>>, vector<16x16x32xf32>
    %18 = vector.shape_cast %17 : vector<16x16x32xf32> to vector<256x32xf32>
    %19 = arith.truncf %18 : vector<256x32xf32> to vector<256x32xbf16>
    %c0_23 = arith.constant 0 : index
    %c96 = arith.constant 96 : index
    %20 = vector.load %arg6[%c0_23, %c96] : memref<256x288xbf16, #tpu.memory_space<vmem>>, vector<256x32xbf16>
    tpu.vector_store %arg6[%c0_23, %c96], %19 {strides = array<i32>} : memref<256x288xbf16, #tpu.memory_space<vmem>>, vector<256x32xbf16>,
    %c1_24 = arith.constant 1 : index
    %c1_25 = arith.constant 1 : index
    %c0_26 = arith.constant 0 : index
    %21 = vector.load %arg5[%c1_24, %c1_25, %c0_26] : memref<18x18x32xf32, #tpu.memory_space<vmem>>, vector<16x16x32xf32>
    %22 = vector.shape_cast %21 : vector<16x16x32xf32> to vector<256x32xf32>
    %23 = arith.truncf %22 : vector<256x32xf32> to vector<256x32xbf16>
    %c0_27 = arith.constant 0 : index
    %c128 = arith.constant 128 : index
    %24 = vector.load %arg6[%c0_27, %c128] : memref<256x288xbf16, #tpu.memory_space<vmem>>, vector<256x32xbf16>
    tpu.vector_store %arg6[%c0_27, %c128], %23 {strides = array<i32>} : memref<256x288xbf16, #tpu.memory_space<vmem>>, vector<256x32xbf16>,
    %c1_28 = arith.constant 1 : index
    %c2_29 = arith.constant 2 : index
    %c0_30 = arith.constant 0 : index
    %25 = vector.load %arg5[%c1_28, %c2_29, %c0_30] : memref<18x18x32xf32, #tpu.memory_space<vmem>>, vector<16x16x32xf32>
    %26 = vector.shape_cast %25 : vector<16x16x32xf32> to vector<256x32xf32>
    %27 = arith.truncf %26 : vector<256x32xf32> to vector<256x32xbf16>
    %c0_31 = arith.constant 0 : index
    %c160 = arith.constant 160 : index
    %28 = vector.load %arg6[%c0_31, %c160] : memref<256x288xbf16, #tpu.memory_space<vmem>>, vector<256x32xbf16>
    tpu.vector_store %arg6[%c0_31, %c160], %27 {strides = array<i32>} : memref<256x288xbf16, #tpu.memory_space<vmem>>, vector<256x32xbf16>,
    %c2_32 = arith.constant 2 : index
    %c0_33 = arith.constant 0 : index
    %c0_34 = arith.constant 0 : index
    %29 = vector.load %arg5[%c2_32, %c0_33, %c0_34] : memref<18x18x32xf32, #tpu.memory_space<vmem>>, vector<16x16x32xf32>
    %30 = vector.shape_cast %29 : vector<16x16x32xf32> to vector<256x32xf32>
    %31 = arith.truncf %30 : vector<256x32xf32> to vector<256x32xbf16>
    %c0_35 = arith.constant 0 : index
    %c192 = arith.constant 192 : index
    %32 = vector.load %arg6[%c0_35, %c192] : memref<256x288xbf16, #tpu.memory_space<vmem>>, vector<256x32xbf16>
    tpu.vector_store %arg6[%c0_35, %c192], %31 {strides = array<i32>} : memref<256x288xbf16, #tpu.memory_space<vmem>>, vector<256x32xbf16>,
    %c2_36 = arith.constant 2 : index
    %c1_37 = arith.constant 1 : index
    %c0_38 = arith.constant 0 : index
    %33 = vector.load %arg5[%c2_36, %c1_37, %c0_38] : memref<18x18x32xf32, #tpu.memory_space<vmem>>, vector<16x16x32xf32>
    %34 = vector.shape_cast %33 : vector<16x16x32xf32> to vector<256x32xf32>
    %35 = arith.truncf %34 : vector<256x32xf32> to vector<256x32xbf16>
    %c0_39 = arith.constant 0 : index
    %c224 = arith.constant 224 : index
    %36 = vector.load %arg6[%c0_39, %c224] : memref<256x288xbf16, #tpu.memory_space<vmem>>, vector<256x32xbf16>
    tpu.vector_store %arg6[%c0_39, %c224], %35 {strides = array<i32>} : memref<256x288xbf16, #tpu.memory_space<vmem>>, vector<256x32xbf16>,
    %c2_40 = arith.constant 2 : index
    %c2_41 = arith.constant 2 : index
    %c0_42 = arith.constant 0 : index
    %37 = vector.load %arg5[%c2_40, %c2_41, %c0_42] : memref<18x18x32xf32, #tpu.memory_space<vmem>>, vector<16x16x32xf32>
    %38 = vector.shape_cast %37 : vector<16x16x32xf32> to vector<256x32xf32>
    %39 = arith.truncf %38 : vector<256x32xf32> to vector<256x32xbf16>
    %c0_43 = arith.constant 0 : index
    %c256 = arith.constant 256 : index
    %40 = vector.load %arg6[%c0_43, %c256] : memref<256x288xbf16, #tpu.memory_space<vmem>>, vector<256x32xbf16>
    tpu.vector_store %arg6[%c0_43, %c256], %39 {strides = array<i32>} : memref<256x288xbf16, #tpu.memory_space<vmem>>, vector<256x32xbf16>,
    %c0_44 = arith.constant 0 : index
    %c0_45 = arith.constant 0 : index
    %41 = vector.load %arg6[%c0_44, %c0_45] : memref<256x288xbf16, #tpu.memory_space<vmem>>, vector<256x288xbf16>
    %c0_46 = arith.constant 0 : index
    %c0_47 = arith.constant 0 : index
    %c0_48 = arith.constant 0 : index
    %42 = vector.load %arg2[%c0_46, %c0_47, %c0_48] : memref<2x288x32xbf16, #tpu.memory_space<vmem>>, vector<1x288x32xbf16>
    %43 = vector.shape_cast %42 : vector<1x288x32xbf16> to vector<288x32xbf16>
    %cst_49 = arith.constant dense<0.000000e+00> : vector<256x32xf32>
    %44 = tpu.matmul %41, %43, %cst_49 {dimension_numbers = #tpu.dot_dimension_numbers<[1], [0], [0], [1], [0, 0, 1, 1], [], []>} : vector<256x288xbf16>, vector<288x32xbf16>, vector<256x32xf32> -> vector<256x32xf32>
    %c0_50 = arith.constant 0 : index
    %c0_51 = arith.constant 0 : index
    %c0_52 = arith.constant 0 : index
    %45 = vector.load %arg3[%c0_50, %c0_51, %c0_52] : memref<2x3x32xf32, #tpu.memory_space<vmem>>, vector<1x3x32xf32>
    %46 = vector.shape_cast %45 : vector<1x3x32xf32> to vector<3x32xf32>
    %47 = vector.extract_strided_slice %46 {offsets = [0, 0], sizes = [1, 32], strides = [1, 1]} : vector<3x32xf32> to vector<1x32xf32>
    %48 = vector.broadcast %47 : vector<1x32xf32> to vector<256x32xf32>
    %49 = arith.addf %44, %48 : vector<256x32xf32>
    %cst_53 = arith.constant 0.000000e+00 : f32
    %50 = vector.broadcast %cst_53 : f32 to vector<256x32xf32>
    %51 = arith.maximumf %49, %50 : vector<256x32xf32>
    %52 = vector.extract_strided_slice %46 {offsets = [1, 0], sizes = [1, 32], strides = [1, 1]} : vector<3x32xf32> to vector<1x32xf32>
    %53 = vector.broadcast %52 : vector<1x32xf32> to vector<256x32xf32>
    %54 = arith.mulf %51, %53 : vector<256x32xf32>
    %55 = vector.extract_strided_slice %46 {offsets = [2, 0], sizes = [1, 32], strides = [1, 1]} : vector<3x32xf32> to vector<1x32xf32>
    %56 = vector.broadcast %55 : vector<1x32xf32> to vector<256x32xf32>
    %57 = arith.addf %54, %56 : vector<256x32xf32>
    %58 = vector.shape_cast %57 : vector<256x32xf32> to vector<16x16x32xf32>
    %c1_54 = arith.constant 1 : index
    %c1_55 = arith.constant 1 : index
    %c0_56 = arith.constant 0 : index
    %59 = vector.load %arg5[%c1_54, %c1_55, %c0_56] : memref<18x18x32xf32, #tpu.memory_space<vmem>>, vector<16x16x32xf32>
    tpu.vector_store %arg5[%c1_54, %c1_55, %c0_56], %58 {strides = array<i32>} : memref<18x18x32xf32, #tpu.memory_space<vmem>>, vector<16x16x32xf32>,
    %c0_57 = arith.constant 0 : index
    %c0_58 = arith.constant 0 : index
    %c0_59 = arith.constant 0 : index
    %60 = vector.load %arg5[%c0_57, %c0_58, %c0_59] : memref<18x18x32xf32, #tpu.memory_space<vmem>>, vector<16x16x32xf32>
    %61 = vector.shape_cast %60 : vector<16x16x32xf32> to vector<256x32xf32>
    %62 = arith.truncf %61 : vector<256x32xf32> to vector<256x32xbf16>
    %c0_60 = arith.constant 0 : index
    %c0_61 = arith.constant 0 : index
    %63 = vector.load %arg6[%c0_60, %c0_61] : memref<256x288xbf16, #tpu.memory_space<vmem>>, vector<256x32xbf16>
    tpu.vector_store %arg6[%c0_60, %c0_61], %62 {strides = array<i32>} : memref<256x288xbf16, #tpu.memory_space<vmem>>, vector<256x32xbf16>,
    %c0_62 = arith.constant 0 : index
    %c1_63 = arith.constant 1 : index
    %c0_64 = arith.constant 0 : index
    %64 = vector.load %arg5[%c0_62, %c1_63, %c0_64] : memref<18x18x32xf32, #tpu.memory_space<vmem>>, vector<16x16x32xf32>
    %65 = vector.shape_cast %64 : vector<16x16x32xf32> to vector<256x32xf32>
    %66 = arith.truncf %65 : vector<256x32xf32> to vector<256x32xbf16>
    %c0_65 = arith.constant 0 : index
    %c32_66 = arith.constant 32 : index
    %67 = vector.load %arg6[%c0_65, %c32_66] : memref<256x288xbf16, #tpu.memory_space<vmem>>, vector<256x32xbf16>
    tpu.vector_store %arg6[%c0_65, %c32_66], %66 {strides = array<i32>} : memref<256x288xbf16, #tpu.memory_space<vmem>>, vector<256x32xbf16>,
    %c0_67 = arith.constant 0 : index
    %c2_68 = arith.constant 2 : index
    %c0_69 = arith.constant 0 : index
    %68 = vector.load %arg5[%c0_67, %c2_68, %c0_69] : memref<18x18x32xf32, #tpu.memory_space<vmem>>, vector<16x16x32xf32>
    %69 = vector.shape_cast %68 : vector<16x16x32xf32> to vector<256x32xf32>
    %70 = arith.truncf %69 : vector<256x32xf32> to vector<256x32xbf16>
    %c0_70 = arith.constant 0 : index
    %c64_71 = arith.constant 64 : index
    %71 = vector.load %arg6[%c0_70, %c64_71] : memref<256x288xbf16, #tpu.memory_space<vmem>>, vector<256x32xbf16>
    tpu.vector_store %arg6[%c0_70, %c64_71], %70 {strides = array<i32>} : memref<256x288xbf16, #tpu.memory_space<vmem>>, vector<256x32xbf16>,
    %c1_72 = arith.constant 1 : index
    %c0_73 = arith.constant 0 : index
    %c0_74 = arith.constant 0 : index
    %72 = vector.load %arg5[%c1_72, %c0_73, %c0_74] : memref<18x18x32xf32, #tpu.memory_space<vmem>>, vector<16x16x32xf32>
    %73 = vector.shape_cast %72 : vector<16x16x32xf32> to vector<256x32xf32>
    %74 = arith.truncf %73 : vector<256x32xf32> to vector<256x32xbf16>
    %c0_75 = arith.constant 0 : index
    %c96_76 = arith.constant 96 : index
    %75 = vector.load %arg6[%c0_75, %c96_76] : memref<256x288xbf16, #tpu.memory_space<vmem>>, vector<256x32xbf16>
    tpu.vector_store %arg6[%c0_75, %c96_76], %74 {strides = array<i32>} : memref<256x288xbf16, #tpu.memory_space<vmem>>, vector<256x32xbf16>,
    %c1_77 = arith.constant 1 : index
    %c1_78 = arith.constant 1 : index
    %c0_79 = arith.constant 0 : index
    %76 = vector.load %arg5[%c1_77, %c1_78, %c0_79] : memref<18x18x32xf32, #tpu.memory_space<vmem>>, vector<16x16x32xf32>
    %77 = vector.shape_cast %76 : vector<16x16x32xf32> to vector<256x32xf32>
    %78 = arith.truncf %77 : vector<256x32xf32> to vector<256x32xbf16>
    %c0_80 = arith.constant 0 : index
    %c128_81 = arith.constant 128 : index
    %79 = vector.load %arg6[%c0_80, %c128_81] : memref<256x288xbf16, #tpu.memory_space<vmem>>, vector<256x32xbf16>
    tpu.vector_store %arg6[%c0_80, %c128_81], %78 {strides = array<i32>} : memref<256x288xbf16, #tpu.memory_space<vmem>>, vector<256x32xbf16>,
    %c1_82 = arith.constant 1 : index
    %c2_83 = arith.constant 2 : index
    %c0_84 = arith.constant 0 : index
    %80 = vector.load %arg5[%c1_82, %c2_83, %c0_84] : memref<18x18x32xf32, #tpu.memory_space<vmem>>, vector<16x16x32xf32>
    %81 = vector.shape_cast %80 : vector<16x16x32xf32> to vector<256x32xf32>
    %82 = arith.truncf %81 : vector<256x32xf32> to vector<256x32xbf16>
    %c0_85 = arith.constant 0 : index
    %c160_86 = arith.constant 160 : index
    %83 = vector.load %arg6[%c0_85, %c160_86] : memref<256x288xbf16, #tpu.memory_space<vmem>>, vector<256x32xbf16>
    tpu.vector_store %arg6[%c0_85, %c160_86], %82 {strides = array<i32>} : memref<256x288xbf16, #tpu.memory_space<vmem>>, vector<256x32xbf16>,
    %c2_87 = arith.constant 2 : index
    %c0_88 = arith.constant 0 : index
    %c0_89 = arith.constant 0 : index
    %84 = vector.load %arg5[%c2_87, %c0_88, %c0_89] : memref<18x18x32xf32, #tpu.memory_space<vmem>>, vector<16x16x32xf32>
    %85 = vector.shape_cast %84 : vector<16x16x32xf32> to vector<256x32xf32>
    %86 = arith.truncf %85 : vector<256x32xf32> to vector<256x32xbf16>
    %c0_90 = arith.constant 0 : index
    %c192_91 = arith.constant 192 : index
    %87 = vector.load %arg6[%c0_90, %c192_91] : memref<256x288xbf16, #tpu.memory_space<vmem>>, vector<256x32xbf16>
    tpu.vector_store %arg6[%c0_90, %c192_91], %86 {strides = array<i32>} : memref<256x288xbf16, #tpu.memory_space<vmem>>, vector<256x32xbf16>,
    %c2_92 = arith.constant 2 : index
    %c1_93 = arith.constant 1 : index
    %c0_94 = arith.constant 0 : index
    %88 = vector.load %arg5[%c2_92, %c1_93, %c0_94] : memref<18x18x32xf32, #tpu.memory_space<vmem>>, vector<16x16x32xf32>
    %89 = vector.shape_cast %88 : vector<16x16x32xf32> to vector<256x32xf32>
    %90 = arith.truncf %89 : vector<256x32xf32> to vector<256x32xbf16>
    %c0_95 = arith.constant 0 : index
    %c224_96 = arith.constant 224 : index
    %91 = vector.load %arg6[%c0_95, %c224_96] : memref<256x288xbf16, #tpu.memory_space<vmem>>, vector<256x32xbf16>
    tpu.vector_store %arg6[%c0_95, %c224_96], %90 {strides = array<i32>} : memref<256x288xbf16, #tpu.memory_space<vmem>>, vector<256x32xbf16>,
    %c2_97 = arith.constant 2 : index
    %c2_98 = arith.constant 2 : index
    %c0_99 = arith.constant 0 : index
    %92 = vector.load %arg5[%c2_97, %c2_98, %c0_99] : memref<18x18x32xf32, #tpu.memory_space<vmem>>, vector<16x16x32xf32>
    %93 = vector.shape_cast %92 : vector<16x16x32xf32> to vector<256x32xf32>
    %94 = arith.truncf %93 : vector<256x32xf32> to vector<256x32xbf16>
    %c0_100 = arith.constant 0 : index
    %c256_101 = arith.constant 256 : index
    %95 = vector.load %arg6[%c0_100, %c256_101] : memref<256x288xbf16, #tpu.memory_space<vmem>>, vector<256x32xbf16>
    tpu.vector_store %arg6[%c0_100, %c256_101], %94 {strides = array<i32>} : memref<256x288xbf16, #tpu.memory_space<vmem>>, vector<256x32xbf16>,
    %c0_102 = arith.constant 0 : index
    %c0_103 = arith.constant 0 : index
    %96 = vector.load %arg6[%c0_102, %c0_103] : memref<256x288xbf16, #tpu.memory_space<vmem>>, vector<256x288xbf16>
    %c1_104 = arith.constant 1 : index
    %c0_105 = arith.constant 0 : index
    %c0_106 = arith.constant 0 : index
    %97 = vector.load %arg2[%c1_104, %c0_105, %c0_106] : memref<2x288x32xbf16, #tpu.memory_space<vmem>>, vector<1x288x32xbf16>
    %98 = vector.shape_cast %97 : vector<1x288x32xbf16> to vector<288x32xbf16>
    %cst_107 = arith.constant dense<0.000000e+00> : vector<256x32xf32>
    %99 = tpu.matmul %96, %98, %cst_107 {dimension_numbers = #tpu.dot_dimension_numbers<[1], [0], [0], [1], [0, 0, 1, 1], [], []>} : vector<256x288xbf16>, vector<288x32xbf16>, vector<256x32xf32> -> vector<256x32xf32>
    %c1_108 = arith.constant 1 : index
    %c0_109 = arith.constant 0 : index
    %c0_110 = arith.constant 0 : index
    %100 = vector.load %arg3[%c1_108, %c0_109, %c0_110] : memref<2x3x32xf32, #tpu.memory_space<vmem>>, vector<1x3x32xf32>
    %101 = vector.shape_cast %100 : vector<1x3x32xf32> to vector<3x32xf32>
    %102 = vector.extract_strided_slice %101 {offsets = [0, 0], sizes = [1, 32], strides = [1, 1]} : vector<3x32xf32> to vector<1x32xf32>
    %103 = vector.broadcast %102 : vector<1x32xf32> to vector<256x32xf32>
    %104 = arith.addf %99, %103 : vector<256x32xf32>
    %cst_111 = arith.constant 0.000000e+00 : f32
    %105 = vector.broadcast %cst_111 : f32 to vector<256x32xf32>
    %106 = arith.maximumf %104, %105 : vector<256x32xf32>
    %107 = vector.extract_strided_slice %101 {offsets = [1, 0], sizes = [1, 32], strides = [1, 1]} : vector<3x32xf32> to vector<1x32xf32>
    %108 = vector.broadcast %107 : vector<1x32xf32> to vector<256x32xf32>
    %109 = arith.mulf %106, %108 : vector<256x32xf32>
    %110 = vector.extract_strided_slice %101 {offsets = [2, 0], sizes = [1, 32], strides = [1, 1]} : vector<3x32xf32> to vector<1x32xf32>
    %111 = vector.broadcast %110 : vector<1x32xf32> to vector<256x32xf32>
    %112 = arith.addf %109, %111 : vector<256x32xf32>
    %113 = vector.shape_cast %112 : vector<256x32xf32> to vector<1x16x16x32xf32>
    %c0_112 = arith.constant 0 : index
    %c0_113 = arith.constant 0 : index
    %c0_114 = arith.constant 0 : index
    %c0_115 = arith.constant 0 : index
    %114 = vector.load %arg4[%c0_112, %c0_113, %c0_114, %c0_115] : memref<1x16x16x32xf32, #tpu.memory_space<vmem>>, vector<1x16x16x32xf32>
    tpu.vector_store %arg4[%c0_112, %c0_113, %c0_114, %c0_115], %113 {strides = array<i32>} : memref<1x16x16x32xf32, #tpu.memory_space<vmem>>, vector<1x16x16x32xf32>,
    return
  }
  func.func @transform_0(%arg0: i32) -> (i32, i32, i32, i32) {
    %c0_i32 = arith.constant 0 : i32
    %c0_i32_0 = arith.constant 0 : i32
    %c0_i32_1 = arith.constant 0 : i32
    %c0_i32_2 = arith.constant 0 : i32
    return %arg0, %c0_i32, %c0_i32_0, %c0_i32_1 : i32, i32, i32, i32
  }
  func.func @transform_1(%arg0: i32) -> (i32, i32, i32) {
    %c0_i32 = arith.constant 0 : i32
    %c0_i32_0 = arith.constant 0 : i32
    %c0_i32_1 = arith.constant 0 : i32
    %c0_i32_2 = arith.constant 0 : i32
    return %c0_i32, %c0_i32_0, %c0_i32_1 : i32, i32, i32
  }
  func.func @transform_2(%arg0: i32) -> (i32, i32, i32) {
    %c0_i32 = arith.constant 0 : i32
    %c0_i32_0 = arith.constant 0 : i32
    %c0_i32_1 = arith.constant 0 : i32
    %c0_i32_2 = arith.constant 0 : i32
    return %c0_i32, %c0_i32_0, %c0_i32_1 : i32, i32, i32
  }
  func.func @transform_3(%arg0: i32) -> (i32, i32, i32, i32) {
    %c0_i32 = arith.constant 0 : i32
    %c0_i32_0 = arith.constant 0 : i32
    %c0_i32_1 = arith.constant 0 : i32
    %c0_i32_2 = arith.constant 0 : i32
    return %arg0, %c0_i32, %c0_i32_0, %c0_i32_1 : i32, i32, i32, i32
  }
}

</mosaic_0001>

<llo_original>
// kernel: convblock_forward.1
$region0: #{convblock_forward.1}
  #allocation0 [shape = 'u32[]', space=smem, size = 0x4, offset = 0x4, fixed_abs, tag = 'smem constant byte address 0x4 - core index']
  #allocation1 [shape = 'u32[144,128]{1,0:T(1,128)}', space=vmem, size = 0x12000, scoped, tag = 'internal scratch']
  #allocation2 [shape = 'f32[18,18,32]{2,1,0:T(8,128)}', space=vmem, size = 0x36000, scoped, tag = 'scratch operand']
  #allocation3 [shape = 'bf16[256,288]{1,0:T(8,128)(2,1)}', space=vmem, size = 0x30000, scoped, tag = 'scratch operand']
  %s0 = inlined_call_operand.hbm [shape: f32[2,16,16,32], index: 0, kind: input, shape index: {}]
  %s1 = inlined_call_operand.vmem [shape: bf16[2,288,32], index: 1, kind: input, shape index: {}]
  %s2 = inlined_call_operand.vmem [shape: f32[2,3,32], index: 2, kind: input, shape index: {}]
  %s3 = inlined_call_operand.hbm [shape: f32[2,16,16,32], index: 3, kind: output, shape index: {}]
  %s4 = sld [smem:[#allocation0]]
  $region49: #{convblock_forward.1} parent=0
    _
  %s6 = ssub.s32 1, %s4
  %s7 = scalar_select 0, %s6, %s4
  $region1: #{convblock_forward.1} parent=0
    #allocation4 [shape = 'u8[262144]{0}', space=vmem, size = 0x40000, scoped, tag = 'input window, operand 0']
    #allocation5 [shape = 's32[2]{0}', space=sflag, size = 0x8, scoped, tag = 'scoped memory for convblock_forward.1']
    #allocation6 [shape = 's32[2]{0}', space=sflag, size = 0x8, scoped, tag = 'scoped memory for convblock_forward.1']
    #allocation7 [shape = 'u8[262144]{0}', space=vmem, size = 0x40000, scoped, tag = 'output window, operand 0']
    %8 = vsyncpa [#allocation5], 0
    %s9 = scalar_lea.sflag [#allocation5], 1
    %10 = vsyncpa %s9, 0
    %11 = vsyncpa [#allocation6], 0
    %s12 = scalar_lea.sflag [#allocation6], 1
    %13 = vsyncpa %s12, 0
    loop: start=0, step=1, limit=4
    $region2: #{convblock_forward.1} parent=1 // loop_pre_header
      _
    $region3: #{convblock_forward.1} parent=1 // loop_header
      %s15 = sphi 0, %s19
      %p16 = scmp.ge.s32.totalorder %s15, 4
      %s25 = sphi 0, %s27
      %s28 = sphi 0, %s25
      %s29 = sphi 0, %s28
      %s45 = sphi 0, %s29
      %s49 = sphi 0, %s49
      %s51 = sphi 0, %s49
      %s52 = sphi 0, %s51
      %s66 = sphi 0, %s52
      %s70 = sphi 0, %s70
      %s72 = sphi 0, %s70
      %s73 = sphi 0, %s72
      %s87 = sphi 0, %s73
      %s93 = sphi 0, %s95
      %s96 = sphi 0, %s93
      %s97 = sphi 0, %s96
      %s113 = sphi 0, %s97
    $region4: #{convblock_forward.1} parent=1 // loop_header_branch
      %18 = sbr.rel (%p16) target = $region8
    $region5: #{convblock_forward.1} parent=1 // loop_body
      %s20 = ssub.s32 %s15, 1
      %s21 = ssub.s32 %s15, 2
      %s22 = sadd.s32 %s15, 1
      %s23 = ssub.s32 %s15, %s22
      %p24 = scmp.eq.s32.totalorder %s23, 0
      %s26 = sadd.s32 %s25, 1
      %s27 = scalar_select %p24, %s25, %s26
      %p30 = pneg %p24
      %p31 = scmp.eq.s32.totalorder %s15, 1
      %p32 = por %p30, %p31
      %p33 = scmp.ne.s32.totalorder %s25, %s28
      %p34 = scmp.eq.s32.totalorder %s15, 0
      %p35 = por %p33, %p34
      %p36 = scmp.ne.s32.totalorder %s25, %s28
      %p37 = scmp.eq.s32.totalorder %s20, 1
      %p38 = por %p36, %p37
      %p39 = scmp.ne.s32.totalorder %s28, %s29
      %p40 = scmp.eq.s32.totalorder %s20, 0
      %p41 = por %p39, %p40
      %p42 = scmp.ne.s32.totalorder %s28, %s29
      %p43 = scmp.eq.s32.totalorder %s21, 1
      %p44 = por %p42, %p43
      %p46 = scmp.ne.s32.totalorder %s29, %s45
      %p47 = scmp.eq.s32.totalorder %s21, 0
      %p48 = por %p46, %p47
      %s50 = sadd.s32 %s49, 1
      %p53 = scmp.eq.s32.totalorder %s15, 1
      %p54 = scmp.ne.s32.totalorder %s49, %s51
      %p55 = scmp.eq.s32.totalorder %s15, 0
      %p56 = por %p54, %p55
      %p57 = scmp.ne.s32.totalorder %s49, %s51
      %p58 = scmp.eq.s32.totalorder %s20, 1
      %p59 = por %p57, %p58
      %p60 = scmp.ne.s32.totalorder %s51, %s52
      %p61 = scmp.eq.s32.totalorder %s20, 0
      %p62 = por %p60, %p61
      %p63 = scmp.ne.s32.totalorder %s51, %s52
      %p64 = scmp.eq.s32.totalorder %s21, 1
      %p65 = por %p63, %p64
      %p67 = scmp.ne.s32.totalorder %s52, %s66
      %p68 = scmp.eq.s32.totalorder %s21, 0
      %p69 = por %p67, %p68
      %s71 = sadd.s32 %s70, 1
      %p74 = scmp.eq.s32.totalorder %s15, 1
      %p75 = scmp.ne.s32.totalorder %s70, %s72
      %p76 = scmp.eq.s32.totalorder %s15, 0
      %p77 = por %p75, %p76
      %p78 = scmp.ne.s32.totalorder %s70, %s72
      %p79 = scmp.eq.s32.totalorder %s20, 1
      %p80 = por %p78, %p79
      %p81 = scmp.ne.s32.totalorder %s72, %s73
      %p82 = scmp.eq.s32.totalorder %s20, 0
      %p83 = por %p81, %p82
      %p84 = scmp.ne.s32.totalorder %s72, %s73
      %p85 = scmp.eq.s32.totalorder %s21, 1
      %p86 = por %p84, %p85
      %p88 = scmp.ne.s32.totalorder %s73, %s87
      %p89 = scmp.eq.s32.totalorder %s21, 0
      %p90 = por %p88, %p89
      %s91 = ssub.s32 %s15, %s22
      %p92 = scmp.eq.s32.totalorder %s91, 0
      %s94 = sadd.s32 %s93, 1
      %s95 = scalar_select %p92, %s93, %s94
      %p98 = pneg %p92
      %p99 = scmp.eq.s32.totalorder %s15, 1
      %p100 = por %p98, %p99
      %p101 = scmp.ne.s32.totalorder %s93, %s96
      %p102 = scmp.eq.s32.totalorder %s15, 0
      %p103 = por %p101, %p102
      %p104 = scmp.ne.s32.totalorder %s93, %s96
      %p105 = scmp.eq.s32.totalorder %s20, 1
      %p106 = por %p104, %p105
      %p107 = scmp.ne.s32.totalorder %s96, %s97
      %p108 = scmp.eq.s32.totalorder %s20, 0
      %p109 = por %p107, %p108
      %p110 = scmp.ne.s32.totalorder %s96, %s97
      %p111 = scmp.eq.s32.totalorder %s21, 1
      %p112 = por %p110, %p111
      %p114 = scmp.ne.s32.totalorder %s97, %s113
      %p115 = scmp.eq.s32.totalorder %s21, 0
      %p116 = por %p114, %p115
      %p117 = scmp.le.s32.totalorder 1, %s15
      %p118 = scmp.lt.s32.totalorder %s15, 3
      %p119 = pnand %p117, %p118
      %p120 = pneg %p119
      // Predicated region
      $region9: #{convblock_forward.1} parent=5 // pred_check
        _
      $region10: #{convblock_forward.1} parent=5 // pred_check_branch
        %122 = sbr.rel (%p119) target = $region12
      $region11: #{convblock_forward.1} parent=5 // pred_region
        %s123 = ssub.s32 %s15, 1
        // Predicated region
        $region13: #{convblock_forward.1} parent=11 // pred_check
          %p124 = pneg %p62
        $region14: #{convblock_forward.1} parent=11 // pred_check_branch
          %126 = sbr.rel (%p124) target = $region16
        $region15: #{convblock_forward.1} parent=11 // pred_region
          _
        $region16: #{convblock_forward.1} parent=11 // pred_fallthru
          _
        // Predicated region
        $region17: #{convblock_forward.1} parent=11 // pred_check
          %p127 = pneg %p83
        $region18: #{convblock_forward.1} parent=11 // pred_check_branch
          %129 = sbr.rel (%p127) target = $region20
        $region19: #{convblock_forward.1} parent=11 // pred_region
          _
        $region20: #{convblock_forward.1} parent=11 // pred_fallthru
          _
      $region12: #{convblock_forward.1} parent=5 // pred_fallthru
        _
      %p130 = scmp.lt.s32.totalorder %s15, 2
      // Predicated region
      $region21: #{convblock_forward.1} parent=5 // pred_check
        %p131 = pneg %p130
      $region22: #{convblock_forward.1} parent=5 // pred_check_branch
        %133 = sbr.rel (%p131) target = $region24
      $region23: #{convblock_forward.1} parent=5 // pred_region
        // Predicated region
        $region25: #{convblock_forward.1} parent=23 // pred_check
          %p134 = pneg %p35
        $region26: #{convblock_forward.1} parent=23 // pred_check_branch
          %136 = sbr.rel (%p134) target = $region28
        $region27: #{convblock_forward.1} parent=23 // pred_region
          %s137 = sand.u32 %s25, 1
          %s138 = scalar_lea.sflag [#allocation5], %s137
          %s139 = sand.u32 %s25, 1
          %s140 = smul.addr %s139, 256
          %s141 = scalar_lea.vmem [#allocation4], %s140
          %s143 = ssub.s32 4096, 4096
          %144 = vsyncadd %s138, %s143
          %s145 = smul.addr %s15, 32
          %s146 = smul.addr %s145, 128
          %s147 = scalar_lea.hbm %s0, %s146
          %s148 = sshll.u32 %s141, 4
          %s149 = int_to_ptr.vmem [resolvable:$true] %s148
          %154 = dma.hbm_to_vmem [thread:$0]  %s147, 4096, %s149, %s138, 128, 128, 8
        $region28: #{convblock_forward.1} parent=23 // pred_fallthru
          _
      $region24: #{convblock_forward.1} parent=5 // pred_fallthru
        _
      %p155 = scmp.le.s32.totalorder 1, %s15
      %p156 = scmp.lt.s32.totalorder %s15, 3
      %p157 = pnand %p155, %p156
      %p158 = pneg %p157
      // Predicated region
      $region29: #{convblock_forward.1} parent=5 // pred_check
        _
      $region30: #{convblock_forward.1} parent=5 // pred_check_branch
        %160 = sbr.rel (%p157) target = $region32
      $region31: #{convblock_forward.1} parent=5 // pred_region
        %s161 = ssub.s32 %s15, 1
        %s162 = sand.u32 %s28, 1
        %s163 = scalar_lea.sflag [#allocation5], %s162
        %s164 = sand.u32 %s28, 1
        %s165 = smul.addr %s164, 256
        %s166 = scalar_lea.vmem [#allocation4], %s165
        // Predicated region
        $region33: #{convblock_forward.1} parent=31 // pred_check
          %p167 = pneg %p41
        $region34: #{convblock_forward.1} parent=31 // pred_check_branch
          %169 = sbr.rel (%p167) target = $region36
        $region35: #{convblock_forward.1} parent=31 // pred_region
          %170 = dma.done %s163, 4096
        $region36: #{convblock_forward.1} parent=31 // pred_fallthru
          _
        %s171 = sand.u32 %s28, 1
        %s172 = scalar_lea.sflag [#allocation5], %s171
        %s173 = sand.u32 %s28, 1
        %s174 = smul.addr %s173, 256
        %s175 = scalar_lea.vmem [#allocation4], %s174
        %p176 = pneg %p41
        %p177 = pneg %p38
        %p178 = pneg %p62
        %p179 = pneg %p59
        %p180 = pneg %p83
        %p181 = pneg %p80
        %p182 = pneg %p109
        %p183 = pneg %p106
        %s184 = sand.u32 %s96, 1
        %s185 = scalar_lea.sflag [#allocation6], %s184
        %s186 = sand.u32 %s96, 1
        %s187 = smul.addr %s186, 256
        %s188 = scalar_lea.vmem [#allocation7], %s187
        %vm190 = vcmask 261120
        %191 = vst.msk [vmem:[#allocation2] sm:$0xff] %vm190, 0.0
        %192 = vst.msk [vmem:[#allocation2 + $0x8] sm:$0xff] %vm190, 0.0
        %vm193 = vcmask 254976
        %194 = vst.msk [vmem:[#allocation2 + $0x10] sm:$0x3] %vm193, 0.0
        %195 = vst.msk [vmem:[#allocation2 + $0x18] sm:$0xff] %vm190, 0.0
        %196 = vst.msk [vmem:[#allocation2 + $0x20] sm:$0xff] %vm190, 0.0
        %197 = vst.msk [vmem:[#allocation2 + $0x28] sm:$0x3] %vm193, 0.0
        %198 = vst.msk [vmem:[#allocation2 + $0x30] sm:$0xff] %vm190, 0.0
        %199 = vst.msk [vmem:[#allocation2 + $0x38] sm:$0xff] %vm190, 0.0
        %200 = vst.msk [vmem:[#allocation2 + $0x40] sm:$0x3] %vm193, 0.0
        %201 = vst.msk [vmem:[#allocation2 + $0x48] sm:$0xff] %vm190, 0.0
        %202 = vst.msk [vmem:[#allocation2 + $0x50] sm:$0xff] %vm190, 0.0
        %203 = vst.msk [vmem:[#allocation2 + $0x58] sm:$0x3] %vm193, 0.0
        %204 = vst.msk [vmem:[#allocation2 + $0x60] sm:$0xff] %vm190, 0.0
        %205 = vst.msk [vmem:[#allocation2 + $0x68] sm:$0xff] %vm190, 0.0
        %206 = vst.msk [vmem:[#allocation2 + $0x70] sm:$0x3] %vm193, 0.0
        %207 = vst.msk [vmem:[#allocation2 + $0x78] sm:$0xff] %vm190, 0.0
        %208 = vst.msk [vmem:[#allocation2 + $0x80] sm:$0xff] %vm190, 0.0
        %209 = vst.msk [vmem:[#allocation2 + $0x88] sm:$0x3] %vm193, 0.0
        %210 = vst.msk [vmem:[#allocation2 + $0x90] sm:$0xff] %vm190, 0.0
        %211 = vst.msk [vmem:[#allocation2 + $0x98] sm:$0xff] %vm190, 0.0
        %212 = vst.msk [vmem:[#allocation2 + $0xa0] sm:$0x3] %vm193, 0.0
        %213 = vst.msk [vmem:[#allocation2 + $0xa8] sm:$0xff] %vm190, 0.0
        %214 = vst.msk [vmem:[#allocation2 + $0xb0] sm:$0xff] %vm190, 0.0
        %215 = vst.msk [vmem:[#allocation2 + $0xb8] sm:$0x3] %vm193, 0.0
        %216 = vst.msk [vmem:[#allocation2 + $0xc0] sm:$0xff] %vm190, 0.0
        %217 = vst.msk [vmem:[#allocation2 + $0xc8] sm:$0xff] %vm190, 0.0
        %218 = vst.msk [vmem:[#allocation2 + $0xd0] sm:$0x3] %vm193, 0.0
        %219 = vst.msk [vmem:[#allocation2 + $0xd8] sm:$0xff] %vm190, 0.0
        %220 = vst.msk [vmem:[#allocation2 + $0xe0] sm:$0xff] %vm190, 0.0
        %221 = vst.msk [vmem:[#allocation2 + $0xe8] sm:$0x3] %vm193, 0.0
        %222 = vst.msk [vmem:[#allocation2 + $0xf0] sm:$0xff] %vm190, 0.0
        %223 = vst.msk [vmem:[#allocation2 + $0xf8] sm:$0xff] %vm190, 0.0
        %224 = vst.msk [vmem:[#allocation2 + $0x100] sm:$0x3] %vm193, 0.0
        %225 = vst.msk [vmem:[#allocation2 + $0x108] sm:$0xff] %vm190, 0.0
        %226 = vst.msk [vmem:[#allocation2 + $0x110] sm:$0xff] %vm190, 0.0
        %227 = vst.msk [vmem:[#allocation2 + $0x118] sm:$0x3] %vm193, 0.0
        %228 = vst.msk [vmem:[#allocation2 + $0x120] sm:$0xff] %vm190, 0.0
        %229 = vst.msk [vmem:[#allocation2 + $0x128] sm:$0xff] %vm190, 0.0
        %230 = vst.msk [vmem:[#allocation2 + $0x130] sm:$0x3] %vm193, 0.0
        %231 = vst.msk [vmem:[#allocation2 + $0x138] sm:$0xff] %vm190, 0.0
        %232 = vst.msk [vmem:[#allocation2 + $0x140] sm:$0xff] %vm190, 0.0
        %233 = vst.msk [vmem:[#allocation2 + $0x148] sm:$0x3] %vm193, 0.0
        %234 = vst.msk [vmem:[#allocation2 + $0x150] sm:$0xff] %vm190, 0.0
        %235 = vst.msk [vmem:[#allocation2 + $0x158] sm:$0xff] %vm190, 0.0
        %236 = vst.msk [vmem:[#allocation2 + $0x160] sm:$0x3] %vm193, 0.0
        %237 = vst.msk [vmem:[#allocation2 + $0x168] sm:$0xff] %vm190, 0.0
        %238 = vst.msk [vmem:[#allocation2 + $0x170] sm:$0xff] %vm190, 0.0
        %239 = vst.msk [vmem:[#allocation2 + $0x178] sm:$0x3] %vm193, 0.0
        %240 = vst.msk [vmem:[#allocation2 + $0x180] sm:$0xff] %vm190, 0.0
        %241 = vst.msk [vmem:[#allocation2 + $0x188] sm:$0xff] %vm190, 0.0
        %242 = vst.msk [vmem:[#allocation2 + $0x190] sm:$0x3] %vm193, 0.0
        %243 = vst.msk [vmem:[#allocation2 + $0x198] sm:$0xff] %vm190, 0.0
        %244 = vst.msk [vmem:[#allocation2 + $0x1a0] sm:$0xff] %vm190, 0.0
        %245 = vst.msk [vmem:[#allocation2 + $0x1a8] sm:$0x3] %vm193, 0.0
        %v246 = vld [vmem:[%s166] sm:$0xff]
        %v247 = vld [vmem:[%s166 + $0x8] sm:$0xff]
        %v248 = vld [vmem:[%s166 + $0x10] sm:$0xff]
        %v249 = vld [vmem:[%s166 + $0x18] sm:$0xff]
        %v250 = vld [vmem:[%s166 + $0x20] sm:$0xff]
        %v251 = vld [vmem:[%s166 + $0x28] sm:$0xff]
        %v252 = vld [vmem:[%s166 + $0x30] sm:$0xff]
        %v253 = vld [vmem:[%s166 + $0x38] sm:$0xff]
        %v254 = vld [vmem:[%s166 + $0x40] sm:$0xff]
        %v255 = vld [vmem:[%s166 + $0x48] sm:$0xff]
        %v256 = vld [vmem:[%s166 + $0x50] sm:$0xff]
        %v257 = vld [vmem:[%s166 + $0x58] sm:$0xff]
        %v258 = vld [vmem:[%s166 + $0x60] sm:$0xff]
        %v259 = vld [vmem:[%s166 + $0x68] sm:$0xff]
        %v260 = vld [vmem:[%s166 + $0x70] sm:$0xff]
        %v261 = vld [vmem:[%s166 + $0x78] sm:$0xff]
        %v262 = vld [vmem:[%s166 + $0x80] sm:$0xff]
        %v263 = vld [vmem:[%s166 + $0x88] sm:$0xff]
        %v264 = vld [vmem:[%s166 + $0x90] sm:$0xff]
        %v265 = vld [vmem:[%s166 + $0x98] sm:$0xff]
        %v266 = vld [vmem:[%s166 + $0xa0] sm:$0xff]
        %v267 = vld [vmem:[%s166 + $0xa8] sm:$0xff]
        %v268 = vld [vmem:[%s166 + $0xb0] sm:$0xff]
        %v269 = vld [vmem:[%s166 + $0xb8] sm:$0xff]
        %v270 = vld [vmem:[%s166 + $0xc0] sm:$0xff]
        %v271 = vld [vmem:[%s166 + $0xc8] sm:$0xff]
        %v272 = vld [vmem:[%s166 + $0xd0] sm:$0xff]
        %v273 = vld [vmem:[%s166 + $0xd8] sm:$0xff]
        %v274 = vld [vmem:[%s166 + $0xe0] sm:$0xff]
        %v275 = vld [vmem:[%s166 + $0xe8] sm:$0xff]
        %v276 = vld [vmem:[%s166 + $0xf0] sm:$0xff]
        %v277 = vld [vmem:[%s166 + $0xf8] sm:$0xff]
        %s278 = scalar_lea.vmem [#allocation2], 24
        %279 = vst.msk [vmem:[%s278 + $0x1] sm:$0xff] %vm190, %v246
        %280 = vst.msk [vmem:[%s278 + $0x9] sm:$0xff] %vm190, %v247
        %281 = vst.msk [vmem:[%s278 + $0x19] sm:$0xff] %vm190, %v248
        %282 = vst.msk [vmem:[%s278 + $0x21] sm:$0xff] %vm190, %v249
        %283 = vst.msk [vmem:[%s278 + $0x31] sm:$0xff] %vm190, %v250
        %284 = vst.msk [vmem:[%s278 + $0x39] sm:$0xff] %vm190, %v251
        %285 = vst.msk [vmem:[%s278 + $0x49] sm:$0xff] %vm190, %v252
        %286 = vst.msk [vmem:[%s278 + $0x51] sm:$0xff] %vm190, %v253
        %287 = vst.msk [vmem:[%s278 + $0x61] sm:$0xff] %vm190, %v254
        %288 = vst.msk [vmem:[%s278 + $0x69] sm:$0xff] %vm190, %v255
        %289 = vst.msk [vmem:[%s278 + $0x79] sm:$0xff] %vm190, %v256
        %290 = vst.msk [vmem:[%s278 + $0x81] sm:$0xff] %vm190, %v257
        %291 = vst.msk [vmem:[%s278 + $0x91] sm:$0xff] %vm190, %v258
        %292 = vst.msk [vmem:[%s278 + $0x99] sm:$0xff] %vm190, %v259
        %293 = vst.msk [vmem:[%s278 + $0xa9] sm:$0xff] %vm190, %v260
        %294 = vst.msk [vmem:[%s278 + $0xb1] sm:$0xff] %vm190, %v261
        %295 = vst.msk [vmem:[%s278 + $0xc1] sm:$0xff] %vm190, %v262
        %296 = vst.msk [vmem:[%s278 + $0xc9] sm:$0xff] %vm190, %v263
        %297 = vst.msk [vmem:[%s278 + $0xd9] sm:$0xff] %vm190, %v264
        %298 = vst.msk [vmem:[%s278 + $0xe1] sm:$0xff] %vm190, %v265
        %299 = vst.msk [vmem:[%s278 + $0xf1] sm:$0xff] %vm190, %v266
        %300 = vst.msk [vmem:[%s278 + $0xf9] sm:$0xff] %vm190, %v267
        %301 = vst.msk [vmem:[%s278 + $0x109] sm:$0xff] %vm190, %v268
        %302 = vst.msk [vmem:[%s278 + $0x111] sm:$0xff] %vm190, %v269
        %303 = vst.msk [vmem:[%s278 + $0x121] sm:$0xff] %vm190, %v270
        %304 = vst.msk [vmem:[%s278 + $0x129] sm:$0xff] %vm190, %v271
        %305 = vst.msk [vmem:[%s278 + $0x139] sm:$0xff] %vm190, %v272
        %306 = vst.msk [vmem:[%s278 + $0x141] sm:$0xff] %vm190, %v273
        %307 = vst.msk [vmem:[%s278 + $0x151] sm:$0xff] %vm190, %v274
        %308 = vst.msk [vmem:[%s278 + $0x159] sm:$0xff] %vm190, %v275
        %309 = vst.msk [vmem:[%s278 + $0x169] sm:$0xff] %vm190, %v276
        %310 = vst.msk [vmem:[%s278 + $0x171] sm:$0xff] %vm190, %v277
        %v311 = vld [vmem:[#allocation2] sm:$0xff]
        %v312 = vld [vmem:[#allocation2 + $0x8] sm:$0xff]
        %v313 = vld [vmem:[#allocation2 + $0x18] sm:$0xff]
        %v314 = vld [vmem:[#allocation2 + $0x20] sm:$0xff]
        %v315 = vld [vmem:[#allocation2 + $0x30] sm:$0xff]
        %v316 = vld [vmem:[#allocation2 + $0x38] sm:$0xff]
        %v317 = vld [vmem:[#allocation2 + $0x48] sm:$0xff]
        %v318 = vld [vmem:[#allocation2 + $0x50] sm:$0xff]
        %v319 = vld [vmem:[#allocation2 + $0x60] sm:$0xff]
        %v320 = vld [vmem:[#allocation2 + $0x68] sm:$0xff]
        %v321 = vld [vmem:[#allocation2 + $0x78] sm:$0xff]
        %v322 = vld [vmem:[#allocation2 + $0x80] sm:$0xff]
        %v323 = vld [vmem:[#allocation2 + $0x90] sm:$0xff]
        %v324 = vld [vmem:[#allocation2 + $0x98] sm:$0xff]
        %v325 = vld [vmem:[#allocation2 + $0xa8] sm:$0xff]
        %v326 = vld [vmem:[#allocation2 + $0xb0] sm:$0xff]
        %v327 = vld [vmem:[#allocation2 + $0xc0] sm:$0xff]
        %v328 = vld [vmem:[#allocation2 + $0xc8] sm:$0xff]
        %v329 = vld [vmem:[#allocation2 + $0xd8] sm:$0xff]
        %v330 = vld [vmem:[#allocation2 + $0xe0] sm:$0xff]
        %v331 = vld [vmem:[#allocation2 + $0xf0] sm:$0xff]
        %v332 = vld [vmem:[#allocation2 + $0xf8] sm:$0xff]
        %v333 = vld [vmem:[#allocation2 + $0x108] sm:$0xff]
        %v334 = vld [vmem:[#allocation2 + $0x110] sm:$0xff]
        %v335 = vld [vmem:[#allocation2 + $0x120] sm:$0xff]
        %v336 = vld [vmem:[#allocation2 + $0x128] sm:$0xff]
        %v337 = vld [vmem:[#allocation2 + $0x138] sm:$0xff]
        %v338 = vld [vmem:[#allocation2 + $0x140] sm:$0xff]
        %v339 = vld [vmem:[#allocation2 + $0x150] sm:$0xff]
        %v340 = vld [vmem:[#allocation2 + $0x158] sm:$0xff]
        %v341 = vld [vmem:[#allocation2 + $0x168] sm:$0xff]
        %v342 = vld [vmem:[#allocation2 + $0x170] sm:$0xff]
        %v343 = vpack.c.bf16 %v312, %v311
        %v344 = vpack.c.bf16 %v314, %v313
        %v345 = vpack.c.bf16 %v316, %v315
        %v346 = vpack.c.bf16 %v318, %v317
        %v347 = vpack.c.bf16 %v320, %v319
        %v348 = vpack.c.bf16 %v322, %v321
        %v349 = vpack.c.bf16 %v324, %v323
        %v350 = vpack.c.bf16 %v326, %v325
        %v351 = vpack.c.bf16 %v328, %v327
        %v352 = vpack.c.bf16 %v330, %v329
        %v353 = vpack.c.bf16 %v332, %v331
        %v354 = vpack.c.bf16 %v334, %v333
        %v355 = vpack.c.bf16 %v336, %v335
        %v356 = vpack.c.bf16 %v338, %v337
        %v357 = vpack.c.bf16 %v340, %v339
        %v358 = vpack.c.bf16 %v342, %v341
        %v375 = vunpack.c.l.b16 %v343
        %v376 = vunpack.c.h.b16 %v343
        %v377 = vunpack.c.l.b16 %v344
        %v378 = vunpack.c.h.b16 %v344
        %v379 = vunpack.c.l.b16 %v345
        %v380 = vunpack.c.h.b16 %v345
        %v381 = vunpack.c.l.b16 %v346
        %v382 = vunpack.c.h.b16 %v346
        %v383 = vunpack.c.l.b16 %v347
        %v384 = vunpack.c.h.b16 %v347
        %v385 = vunpack.c.l.b16 %v348
        %v386 = vunpack.c.h.b16 %v348
        %v387 = vunpack.c.l.b16 %v349
        %v388 = vunpack.c.h.b16 %v349
        %v389 = vunpack.c.l.b16 %v350
        %v390 = vunpack.c.h.b16 %v350
        %v391 = vunpack.c.l.b16 %v351
        %v392 = vunpack.c.h.b16 %v351
        %v393 = vunpack.c.l.b16 %v352
        %v394 = vunpack.c.h.b16 %v352
        %v395 = vunpack.c.l.b16 %v353
        %v396 = vunpack.c.h.b16 %v353
        %v397 = vunpack.c.l.b16 %v354
        %v398 = vunpack.c.h.b16 %v354
        %v399 = vunpack.c.l.b16 %v355
        %v400 = vunpack.c.h.b16 %v355
        %v401 = vunpack.c.l.b16 %v356
        %v402 = vunpack.c.h.b16 %v356
        %v403 = vunpack.c.l.b16 %v357
        %v404 = vunpack.c.h.b16 %v357
        %v405 = vunpack.c.l.b16 %v358
        %v406 = vunpack.c.h.b16 %v358
        %v407 = vpack.c.b16 %v375, %v375
        %v408 = vpack.c.b16 %v376, %v376
        %v409 = vpack.c.b16 %v377, %v377
        %v410 = vpack.c.b16 %v378, %v378
        %v411 = vpack.c.b16 %v379, %v379
        %v412 = vpack.c.b16 %v380, %v380
        %v413 = vpack.c.b16 %v381, %v381
        %v414 = vpack.c.b16 %v382, %v382
        %v415 = vpack.c.b16 %v383, %v383
        %v416 = vpack.c.b16 %v384, %v384
        %v417 = vpack.c.b16 %v385, %v385
        %v418 = vpack.c.b16 %v386, %v386
        %v419 = vpack.c.b16 %v387, %v387
        %v420 = vpack.c.b16 %v388, %v388
        %v421 = vpack.c.b16 %v389, %v389
        %v422 = vpack.c.b16 %v390, %v390
        %v423 = vpack.c.b16 %v391, %v391
        %v424 = vpack.c.b16 %v392, %v392
        %v425 = vpack.c.b16 %v393, %v393
        %v426 = vpack.c.b16 %v394, %v394
        %v427 = vpack.c.b16 %v395, %v395
        %v428 = vpack.c.b16 %v396, %v396
        %v429 = vpack.c.b16 %v397, %v397
        %v430 = vpack.c.b16 %v398, %v398
        %v431 = vpack.c.b16 %v399, %v399
        %v432 = vpack.c.b16 %v400, %v400
        %v433 = vpack.c.b16 %v401, %v401
        %v434 = vpack.c.b16 %v402, %v402
        %v435 = vpack.c.b16 %v403, %v403
        %v436 = vpack.c.b16 %v404, %v404
        %v437 = vpack.c.b16 %v405, %v405
        %v438 = vpack.c.b16 %v406, %v406
        %vm471 = vcmask 257024
        %472 = vst.msk [vmem:[#allocation3] sm:$0xf] %vm471, %v407
        %473 = vst.msk [vmem:[#allocation3 + $0xc] sm:$0xf] %vm471, %v408
        %474 = vst.msk [vmem:[#allocation3 + $0x18] sm:$0xf] %vm471, %v409
        %475 = vst.msk [vmem:[#allocation3 + $0x24] sm:$0xf] %vm471, %v410
        %476 = vst.msk [vmem:[#allocation3 + $0x30] sm:$0xf] %vm471, %v411
        %477 = vst.msk [vmem:[#allocation3 + $0x3c] sm:$0xf] %vm471, %v412
        %478 = vst.msk [vmem:[#allocation3 + $0x48] sm:$0xf] %vm471, %v413
        %479 = vst.msk [vmem:[#allocation3 + $0x54] sm:$0xf] %vm471, %v414
        %480 = vst.msk [vmem:[#allocation3 + $0x60] sm:$0xf] %vm471, %v415
        %481 = vst.msk [vmem:[#allocation3 + $0x6c] sm:$0xf] %vm471, %v416
        %482 = vst.msk [vmem:[#allocation3 + $0x78] sm:$0xf] %vm471, %v417
        %483 = vst.msk [vmem:[#allocation3 + $0x84] sm:$0xf] %vm471, %v418
        %484 = vst.msk [vmem:[#allocation3 + $0x90] sm:$0xf] %vm471, %v419
        %485 = vst.msk [vmem:[#allocation3 + $0x9c] sm:$0xf] %vm471, %v420
        %486 = vst.msk [vmem:[#allocation3 + $0xa8] sm:$0xf] %vm471, %v421
        %487 = vst.msk [vmem:[#allocation3 + $0xb4] sm:$0xf] %vm471, %v422
        %488 = vst.msk [vmem:[#allocation3 + $0xc0] sm:$0xf] %vm471, %v423
        %489 = vst.msk [vmem:[#allocation3 + $0xcc] sm:$0xf] %vm471, %v424
        %490 = vst.msk [vmem:[#allocation3 + $0xd8] sm:$0xf] %vm471, %v425
        %491 = vst.msk [vmem:[#allocation3 + $0xe4] sm:$0xf] %vm471, %v426
        %492 = vst.msk [vmem:[#allocation3 + $0xf0] sm:$0xf] %vm471, %v427
        %493 = vst.msk [vmem:[#allocation3 + $0xfc] sm:$0xf] %vm471, %v428
        %494 = vst.msk [vmem:[#allocation3 + $0x108] sm:$0xf] %vm471, %v429
        %495 = vst.msk [vmem:[#allocation3 + $0x114] sm:$0xf] %vm471, %v430
        %496 = vst.msk [vmem:[#allocation3 + $0x120] sm:$0xf] %vm471, %v431
        %497 = vst.msk [vmem:[#allocation3 + $0x12c] sm:$0xf] %vm471, %v432
        %498 = vst.msk [vmem:[#allocation3 + $0x138] sm:$0xf] %vm471, %v433
        %499 = vst.msk [vmem:[#allocation3 + $0x144] sm:$0xf] %vm471, %v434
        %500 = vst.msk [vmem:[#allocation3 + $0x150] sm:$0xf] %vm471, %v435
        %501 = vst.msk [vmem:[#allocation3 + $0x15c] sm:$0xf] %vm471, %v436
        %502 = vst.msk [vmem:[#allocation3 + $0x168] sm:$0xf] %vm471, %v437
        %503 = vst.msk [vmem:[#allocation3 + $0x174] sm:$0xf] %vm471, %v438
        %v504 = vld [vmem:[#allocation2 + $0x1] sm:$0xff]
        %v505 = vld [vmem:[#allocation2 + $0x9] sm:$0xff]
        %v506 = vld [vmem:[#allocation2 + $0x19] sm:$0xff]
        %v507 = vld [vmem:[#allocation2 + $0x21] sm:$0xff]
        %v508 = vld [vmem:[#allocation2 + $0x31] sm:$0xff]
        %v509 = vld [vmem:[#allocation2 + $0x39] sm:$0xff]
        %v510 = vld [vmem:[#allocation2 + $0x49] sm:$0xff]
        %v511 = vld [vmem:[#allocation2 + $0x51] sm:$0xff]
        %v512 = vld [vmem:[#allocation2 + $0x61] sm:$0xff]
        %v513 = vld [vmem:[#allocation2 + $0x69] sm:$0xff]
        %v514 = vld [vmem:[#allocation2 + $0x79] sm:$0xff]
        %v515 = vld [vmem:[#allocation2 + $0x81] sm:$0xff]
        %v516 = vld [vmem:[#allocation2 + $0x91] sm:$0xff]
        %v517 = vld [vmem:[#allocation2 + $0x99] sm:$0xff]
        %v518 = vld [vmem:[#allocation2 + $0xa9] sm:$0xff]
        %v519 = vld [vmem:[#allocation2 + $0xb1] sm:$0xff]
        %v520 = vld [vmem:[#allocation2 + $0xc1] sm:$0xff]
        %v521 = vld [vmem:[#allocation2 + $0xc9] sm:$0xff]
        %v522 = vld [vmem:[#allocation2 + $0xd9] sm:$0xff]
        %v523 = vld [vmem:[#allocation2 + $0xe1] sm:$0xff]
        %v524 = vld [vmem:[#allocation2 + $0xf1] sm:$0xff]
        %v525 = vld [vmem:[#allocation2 + $0xf9] sm:$0xff]
        %v526 = vld [vmem:[#allocation2 + $0x109] sm:$0xff]
        %v527 = vld [vmem:[#allocation2 + $0x111] sm:$0xff]
        %v528 = vld [vmem:[#allocation2 + $0x121] sm:$0xff]
        %v529 = vld [vmem:[#allocation2 + $0x129] sm:$0xff]
        %v530 = vld [vmem:[#allocation2 + $0x139] sm:$0xff]
        %v531 = vld [vmem:[#allocation2 + $0x141] sm:$0xff]
        %v532 = vld [vmem:[#allocation2 + $0x151] sm:$0xff]
        %v533 = vld [vmem:[#allocation2 + $0x159] sm:$0xff]
        %v534 = vld [vmem:[#allocation2 + $0x169] sm:$0xff]
        %v535 = vld [vmem:[#allocation2 + $0x171] sm:$0xff]
        %v536 = vpack.c.bf16 %v505, %v504
        %v537 = vpack.c.bf16 %v507, %v506
        %v538 = vpack.c.bf16 %v509, %v508
        %v539 = vpack.c.bf16 %v511, %v510
        %v540 = vpack.c.bf16 %v513, %v512
        %v541 = vpack.c.bf16 %v515, %v514
        %v542 = vpack.c.bf16 %v517, %v516
        %v543 = vpack.c.bf16 %v519, %v518
        %v544 = vpack.c.bf16 %v521, %v520
        %v545 = vpack.c.bf16 %v523, %v522
        %v546 = vpack.c.bf16 %v525, %v524
        %v547 = vpack.c.bf16 %v527, %v526
        %v548 = vpack.c.bf16 %v529, %v528
        %v549 = vpack.c.bf16 %v531, %v530
        %v550 = vpack.c.bf16 %v533, %v532
        %v551 = vpack.c.bf16 %v535, %v534
        %v568 = vunpack.c.l.b16 %v536
        %v569 = vunpack.c.h.b16 %v536
        %v570 = vunpack.c.l.b16 %v537
        %v571 = vunpack.c.h.b16 %v537
        %v572 = vunpack.c.l.b16 %v538
        %v573 = vunpack.c.h.b16 %v538
        %v574 = vunpack.c.l.b16 %v539
        %v575 = vunpack.c.h.b16 %v539
        %v576 = vunpack.c.l.b16 %v540
        %v577 = vunpack.c.h.b16 %v540
        %v578 = vunpack.c.l.b16 %v541
        %v579 = vunpack.c.h.b16 %v541
        %v580 = vunpack.c.l.b16 %v542
        %v581 = vunpack.c.h.b16 %v542
        %v582 = vunpack.c.l.b16 %v543
        %v583 = vunpack.c.h.b16 %v543
        %v584 = vunpack.c.l.b16 %v544
        %v585 = vunpack.c.h.b16 %v544
        %v586 = vunpack.c.l.b16 %v545
        %v587 = vunpack.c.h.b16 %v545
        %v588 = vunpack.c.l.b16 %v546
        %v589 = vunpack.c.h.b16 %v546
        %v590 = vunpack.c.l.b16 %v547
        %v591 = vunpack.c.h.b16 %v547
        %v592 = vunpack.c.l.b16 %v548
        %v593 = vunpack.c.h.b16 %v548
        %v594 = vunpack.c.l.b16 %v549
        %v595 = vunpack.c.h.b16 %v549
        %v596 = vunpack.c.l.b16 %v550
        %v597 = vunpack.c.h.b16 %v550
        %v598 = vunpack.c.l.b16 %v551
        %v599 = vunpack.c.h.b16 %v551
        %v600 = vpack.c.b16 %v568, %v568
        %v601 = vpack.c.b16 %v569, %v569
        %v602 = vpack.c.b16 %v570, %v570
        %v603 = vpack.c.b16 %v571, %v571
        %v604 = vpack.c.b16 %v572, %v572
        %v605 = vpack.c.b16 %v573, %v573
        %v606 = vpack.c.b16 %v574, %v574
        %v607 = vpack.c.b16 %v575, %v575
        %v608 = vpack.c.b16 %v576, %v576
        %v609 = vpack.c.b16 %v577, %v577
        %v610 = vpack.c.b16 %v578, %v578
        %v611 = vpack.c.b16 %v579, %v579
        %v612 = vpack.c.b16 %v580, %v580
        %v613 = vpack.c.b16 %v581, %v581
        %v614 = vpack.c.b16 %v582, %v582
        %v615 = vpack.c.b16 %v583, %v583
        %v616 = vpack.c.b16 %v584, %v584
        %v617 = vpack.c.b16 %v585, %v585
        %v618 = vpack.c.b16 %v586, %v586
        %v619 = vpack.c.b16 %v587, %v587
        %v620 = vpack.c.b16 %v588, %v588
        %v621 = vpack.c.b16 %v589, %v589
        %v622 = vpack.c.b16 %v590, %v590
        %v623 = vpack.c.b16 %v591, %v591
        %v624 = vpack.c.b16 %v592, %v592
        %v625 = vpack.c.b16 %v593, %v593
        %v626 = vpack.c.b16 %v594, %v594
        %v627 = vpack.c.b16 %v595, %v595
        %v628 = vpack.c.b16 %v596, %v596
        %v629 = vpack.c.b16 %v597, %v597
        %v630 = vpack.c.b16 %v598, %v598
        %v631 = vpack.c.b16 %v599, %v599
        %632 = vrot.lane.b32.xlu0 %v600, 32
        %v633 = vpop.permute.xlu0 %632
        %634 = vrot.lane.b32.xlu0 %v601, 32
        %v635 = vpop.permute.xlu0 %634
        %636 = vrot.lane.b32.xlu0 %v602, 32
        %v637 = vpop.permute.xlu0 %636
        %638 = vrot.lane.b32.xlu0 %v603, 32
        %v639 = vpop.permute.xlu0 %638
        %640 = vrot.lane.b32.xlu0 %v604, 32
        %v641 = vpop.permute.xlu0 %640
        %642 = vrot.lane.b32.xlu0 %v605, 32
        %v643 = vpop.permute.xlu0 %642
        %644 = vrot.lane.b32.xlu0 %v606, 32
        %v645 = vpop.permute.xlu0 %644
        %646 = vrot.lane.b32.xlu0 %v607, 32
        %v647 = vpop.permute.xlu0 %646
        %648 = vrot.lane.b32.xlu0 %v608, 32
        %v649 = vpop.permute.xlu0 %648
        %650 = vrot.lane.b32.xlu0 %v609, 32
        %v651 = vpop.permute.xlu0 %650
        %652 = vrot.lane.b32.xlu0 %v610, 32
        %v653 = vpop.permute.xlu0 %652
        %654 = vrot.lane.b32.xlu0 %v611, 32
        %v655 = vpop.permute.xlu0 %654
        %656 = vrot.lane.b32.xlu0 %v612, 32
        %v657 = vpop.permute.xlu0 %656
        %658 = vrot.lane.b32.xlu0 %v613, 32
        %v659 = vpop.permute.xlu0 %658
        %660 = vrot.lane.b32.xlu0 %v614, 32
        %v661 = vpop.permute.xlu0 %660
        %662 = vrot.lane.b32.xlu0 %v615, 32
        %v663 = vpop.permute.xlu0 %662
        %664 = vrot.lane.b32.xlu0 %v616, 32
        %v665 = vpop.permute.xlu0 %664
        %666 = vrot.lane.b32.xlu0 %v617, 32
        %v667 = vpop.permute.xlu0 %666
        %668 = vrot.lane.b32.xlu0 %v618, 32
        %v669 = vpop.permute.xlu0 %668
        %670 = vrot.lane.b32.xlu0 %v619, 32
        %v671 = vpop.permute.xlu0 %670
        %672 = vrot.lane.b32.xlu0 %v620, 32
        %v673 = vpop.permute.xlu0 %672
        %674 = vrot.lane.b32.xlu0 %v621, 32
        %v675 = vpop.permute.xlu0 %674
        %676 = vrot.lane.b32.xlu0 %v622, 32
        %v677 = vpop.permute.xlu0 %676
        %678 = vrot.lane.b32.xlu0 %v623, 32
        %v679 = vpop.permute.xlu0 %678
        %680 = vrot.lane.b32.xlu0 %v624, 32
        %v681 = vpop.permute.xlu0 %680
        %682 = vrot.lane.b32.xlu0 %v625, 32
        %v683 = vpop.permute.xlu0 %682
        %684 = vrot.lane.b32.xlu0 %v626, 32
        %v685 = vpop.permute.xlu0 %684
        %686 = vrot.lane.b32.xlu0 %v627, 32
        %v687 = vpop.permute.xlu0 %686
        %688 = vrot.lane.b32.xlu0 %v628, 32
        %v689 = vpop.permute.xlu0 %688
        %690 = vrot.lane.b32.xlu0 %v629, 32
        %v691 = vpop.permute.xlu0 %690
        %692 = vrot.lane.b32.xlu0 %v630, 32
        %v693 = vpop.permute.xlu0 %692
        %694 = vrot.lane.b32.xlu0 %v631, 32
        %v695 = vpop.permute.xlu0 %694
        %vm728 = vcmask 519424
        %729 = vst.msk [vmem:[#allocation3] sm:$0xf] %vm728, %v633
        %730 = vst.msk [vmem:[#allocation3 + $0xc] sm:$0xf] %vm728, %v635
        %731 = vst.msk [vmem:[#allocation3 + $0x18] sm:$0xf] %vm728, %v637
        %732 = vst.msk [vmem:[#allocation3 + $0x24] sm:$0xf] %vm728, %v639
        %733 = vst.msk [vmem:[#allocation3 + $0x30] sm:$0xf] %vm728, %v641
        %734 = vst.msk [vmem:[#allocation3 + $0x3c] sm:$0xf] %vm728, %v643
        %735 = vst.msk [vmem:[#allocation3 + $0x48] sm:$0xf] %vm728, %v645
        %736 = vst.msk [vmem:[#allocation3 + $0x54] sm:$0xf] %vm728, %v647
        %737 = vst.msk [vmem:[#allocation3 + $0x60] sm:$0xf] %vm728, %v649
        %738 = vst.msk [vmem:[#allocation3 + $0x6c] sm:$0xf] %vm728, %v651
        %739 = vst.msk [vmem:[#allocation3 + $0x78] sm:$0xf] %vm728, %v653
        %740 = vst.msk [vmem:[#allocation3 + $0x84] sm:$0xf] %vm728, %v655
        %741 = vst.msk [vmem:[#allocation3 + $0x90] sm:$0xf] %vm728, %v657
        %742 = vst.msk [vmem:[#allocation3 + $0x9c] sm:$0xf] %vm728, %v659
        %743 = vst.msk [vmem:[#allocation3 + $0xa8] sm:$0xf] %vm728, %v661
        %744 = vst.msk [vmem:[#allocation3 + $0xb4] sm:$0xf] %vm728, %v663
        %745 = vst.msk [vmem:[#allocation3 + $0xc0] sm:$0xf] %vm728, %v665
        %746 = vst.msk [vmem:[#allocation3 + $0xcc] sm:$0xf] %vm728, %v667
        %747 = vst.msk [vmem:[#allocation3 + $0xd8] sm:$0xf] %vm728, %v669
        %748 = vst.msk [vmem:[#allocation3 + $0xe4] sm:$0xf] %vm728, %v671
        %749 = vst.msk [vmem:[#allocation3 + $0xf0] sm:$0xf] %vm728, %v673
        %750 = vst.msk [vmem:[#allocation3 + $0xfc] sm:$0xf] %vm728, %v675
        %751 = vst.msk [vmem:[#allocation3 + $0x108] sm:$0xf] %vm728, %v677
        %752 = vst.msk [vmem:[#allocation3 + $0x114] sm:$0xf] %vm728, %v679
        %753 = vst.msk [vmem:[#allocation3 + $0x120] sm:$0xf] %vm728, %v681
        %754 = vst.msk [vmem:[#allocation3 + $0x12c] sm:$0xf] %vm728, %v683
        %755 = vst.msk [vmem:[#allocation3 + $0x138] sm:$0xf] %vm728, %v685
        %756 = vst.msk [vmem:[#allocation3 + $0x144] sm:$0xf] %vm728, %v687
        %757 = vst.msk [vmem:[#allocation3 + $0x150] sm:$0xf] %vm728, %v689
        %758 = vst.msk [vmem:[#allocation3 + $0x15c] sm:$0xf] %vm728, %v691
        %759 = vst.msk [vmem:[#allocation3 + $0x168] sm:$0xf] %vm728, %v693
        %760 = vst.msk [vmem:[#allocation3 + $0x174] sm:$0xf] %vm728, %v695
        %v761 = vld [vmem:[#allocation2 + $0x2] sm:$0xff]
        %v762 = vld [vmem:[#allocation2 + $0xa] sm:$0xff]
        %v763 = vld [vmem:[#allocation2 + $0x1a] sm:$0xff]
        %v764 = vld [vmem:[#allocation2 + $0x22] sm:$0xff]
        %v765 = vld [vmem:[#allocation2 + $0x32] sm:$0xff]
        %v766 = vld [vmem:[#allocation2 + $0x3a] sm:$0xff]
        %v767 = vld [vmem:[#allocation2 + $0x4a] sm:$0xff]
        %v768 = vld [vmem:[#allocation2 + $0x52] sm:$0xff]
        %v769 = vld [vmem:[#allocation2 + $0x62] sm:$0xff]
        %v770 = vld [vmem:[#allocation2 + $0x6a] sm:$0xff]
        %v771 = vld [vmem:[#allocation2 + $0x7a] sm:$0xff]
        %v772 = vld [vmem:[#allocation2 + $0x82] sm:$0xff]
        %v773 = vld [vmem:[#allocation2 + $0x92] sm:$0xff]
        %v774 = vld [vmem:[#allocation2 + $0x9a] sm:$0xff]
        %v775 = vld [vmem:[#allocation2 + $0xaa] sm:$0xff]
        %v776 = vld [vmem:[#allocation2 + $0xb2] sm:$0xff]
        %v777 = vld [vmem:[#allocation2 + $0xc2] sm:$0xff]
        %v778 = vld [vmem:[#allocation2 + $0xca] sm:$0xff]
        %v779 = vld [vmem:[#allocation2 + $0xda] sm:$0xff]
        %v780 = vld [vmem:[#allocation2 + $0xe2] sm:$0xff]
        %v781 = vld [vmem:[#allocation2 + $0xf2] sm:$0xff]
        %v782 = vld [vmem:[#allocation2 + $0xfa] sm:$0xff]
        %v783 = vld [vmem:[#allocation2 + $0x10a] sm:$0xff]
        %v784 = vld [vmem:[#allocation2 + $0x112] sm:$0xff]
        %v785 = vld [vmem:[#allocation2 + $0x122] sm:$0xff]
        %v786 = vld [vmem:[#allocation2 + $0x12a] sm:$0xff]
        %v787 = vld [vmem:[#allocation2 + $0x13a] sm:$0xff]
        %v788 = vld [vmem:[#allocation2 + $0x142] sm:$0xff]
        %v789 = vld [vmem:[#allocation2 + $0x152] sm:$0xff]
        %v790 = vld [vmem:[#allocation2 + $0x15a] sm:$0xff]
        %v791 = vld [vmem:[#allocation2 + $0x16a] sm:$0xff]
        %v792 = vld [vmem:[#allocation2 + $0x172] sm:$0xff]
        %v793 = vpack.c.bf16 %v762, %v761
        %v794 = vpack.c.bf16 %v764, %v763
        %v795 = vpack.c.bf16 %v766, %v765
        %v796 = vpack.c.bf16 %v768, %v767
        %v797 = vpack.c.bf16 %v770, %v769
        %v798 = vpack.c.bf16 %v772, %v771
        %v799 = vpack.c.bf16 %v774, %v773
        %v800 = vpack.c.bf16 %v776, %v775
        %v801 = vpack.c.bf16 %v778, %v777
        %v802 = vpack.c.bf16 %v780, %v779
        %v803 = vpack.c.bf16 %v782, %v781
        %v804 = vpack.c.bf16 %v784, %v783
        %v805 = vpack.c.bf16 %v786, %v785
        %v806 = vpack.c.bf16 %v788, %v787
        %v807 = vpack.c.bf16 %v790, %v789
        %v808 = vpack.c.bf16 %v792, %v791
        %v825 = vunpack.c.l.b16 %v793
        %v826 = vunpack.c.h.b16 %v793
        %v827 = vunpack.c.l.b16 %v794
        %v828 = vunpack.c.h.b16 %v794
        %v829 = vunpack.c.l.b16 %v795
        %v830 = vunpack.c.h.b16 %v795
        %v831 = vunpack.c.l.b16 %v796
        %v832 = vunpack.c.h.b16 %v796
        %v833 = vunpack.c.l.b16 %v797
        %v834 = vunpack.c.h.b16 %v797
        %v835 = vunpack.c.l.b16 %v798
        %v836 = vunpack.c.h.b16 %v798
        %v837 = vunpack.c.l.b16 %v799
        %v838 = vunpack.c.h.b16 %v799
        %v839 = vunpack.c.l.b16 %v800
        %v840 = vunpack.c.h.b16 %v800
        %v841 = vunpack.c.l.b16 %v801
        %v842 = vunpack.c.h.b16 %v801
        %v843 = vunpack.c.l.b16 %v802
        %v844 = vunpack.c.h.b16 %v802
        %v845 = vunpack.c.l.b16 %v803
        %v846 = vunpack.c.h.b16 %v803
        %v847 = vunpack.c.l.b16 %v804
        %v848 = vunpack.c.h.b16 %v804
        %v849 = vunpack.c.l.b16 %v805
        %v850 = vunpack.c.h.b16 %v805
        %v851 = vunpack.c.l.b16 %v806
        %v852 = vunpack.c.h.b16 %v806
        %v853 = vunpack.c.l.b16 %v807
        %v854 = vunpack.c.h.b16 %v807
        %v855 = vunpack.c.l.b16 %v808
        %v856 = vunpack.c.h.b16 %v808
        %v857 = vpack.c.b16 %v825, %v825
        %v858 = vpack.c.b16 %v826, %v826
        %v859 = vpack.c.b16 %v827, %v827
        %v860 = vpack.c.b16 %v828, %v828
        %v861 = vpack.c.b16 %v829, %v829
        %v862 = vpack.c.b16 %v830, %v830
        %v863 = vpack.c.b16 %v831, %v831
        %v864 = vpack.c.b16 %v832, %v832
        %v865 = vpack.c.b16 %v833, %v833
        %v866 = vpack.c.b16 %v834, %v834
        %v867 = vpack.c.b16 %v835, %v835
        %v868 = vpack.c.b16 %v836, %v836
        %v869 = vpack.c.b16 %v837, %v837
        %v870 = vpack.c.b16 %v838, %v838
        %v871 = vpack.c.b16 %v839, %v839
        %v872 = vpack.c.b16 %v840, %v840
        %v873 = vpack.c.b16 %v841, %v841
        %v874 = vpack.c.b16 %v842, %v842
        %v875 = vpack.c.b16 %v843, %v843
        %v876 = vpack.c.b16 %v844, %v844
        %v877 = vpack.c.b16 %v845, %v845
        %v878 = vpack.c.b16 %v846, %v846
        %v879 = vpack.c.b16 %v847, %v847
        %v880 = vpack.c.b16 %v848, %v848
        %v881 = vpack.c.b16 %v849, %v849
        %v882 = vpack.c.b16 %v850, %v850
        %v883 = vpack.c.b16 %v851, %v851
        %v884 = vpack.c.b16 %v852, %v852
        %v885 = vpack.c.b16 %v853, %v853
        %v886 = vpack.c.b16 %v854, %v854
        %v887 = vpack.c.b16 %v855, %v855
        %v888 = vpack.c.b16 %v856, %v856
        %889 = vrot.lane.b32.xlu0 %v857, 64
        %v890 = vpop.permute.xlu0 %889
        %891 = vrot.lane.b32.xlu0 %v858, 64
        %v892 = vpop.permute.xlu0 %891
        %893 = vrot.lane.b32.xlu0 %v859, 64
        %v894 = vpop.permute.xlu0 %893
        %895 = vrot.lane.b32.xlu0 %v860, 64
        %v896 = vpop.permute.xlu0 %895
        %897 = vrot.lane.b32.xlu0 %v861, 64
        %v898 = vpop.permute.xlu0 %897
        %899 = vrot.lane.b32.xlu0 %v862, 64
        %v900 = vpop.permute.xlu0 %899
        %901 = vrot.lane.b32.xlu0 %v863, 64
        %v902 = vpop.permute.xlu0 %901
        %903 = vrot.lane.b32.xlu0 %v864, 64
        %v904 = vpop.permute.xlu0 %903
        %905 = vrot.lane.b32.xlu0 %v865, 64
        %v906 = vpop.permute.xlu0 %905
        %907 = vrot.lane.b32.xlu0 %v866, 64
        %v908 = vpop.permute.xlu0 %907
        %909 = vrot.lane.b32.xlu0 %v867, 64
        %v910 = vpop.permute.xlu0 %909
        %911 = vrot.lane.b32.xlu0 %v868, 64
        %v912 = vpop.permute.xlu0 %911
        %913 = vrot.lane.b32.xlu0 %v869, 64
        %v914 = vpop.permute.xlu0 %913
        %915 = vrot.lane.b32.xlu0 %v870, 64
        %v916 = vpop.permute.xlu0 %915
        %917 = vrot.lane.b32.xlu0 %v871, 64
        %v918 = vpop.permute.xlu0 %917
        %919 = vrot.lane.b32.xlu0 %v872, 64
        %v920 = vpop.permute.xlu0 %919
        %921 = vrot.lane.b32.xlu0 %v873, 64
        %v922 = vpop.permute.xlu0 %921
        %923 = vrot.lane.b32.xlu0 %v874, 64
        %v924 = vpop.permute.xlu0 %923
        %925 = vrot.lane.b32.xlu0 %v875, 64
        %v926 = vpop.permute.xlu0 %925
        %927 = vrot.lane.b32.xlu0 %v876, 64
        %v928 = vpop.permute.xlu0 %927
        %929 = vrot.lane.b32.xlu0 %v877, 64
        %v930 = vpop.permute.xlu0 %929
        %931 = vrot.lane.b32.xlu0 %v878, 64
        %v932 = vpop.permute.xlu0 %931
        %933 = vrot.lane.b32.xlu0 %v879, 64
        %v934 = vpop.permute.xlu0 %933
        %935 = vrot.lane.b32.xlu0 %v880, 64
        %v936 = vpop.permute.xlu0 %935
        %937 = vrot.lane.b32.xlu0 %v881, 64
        %v938 = vpop.permute.xlu0 %937
        %939 = vrot.lane.b32.xlu0 %v882, 64
        %v940 = vpop.permute.xlu0 %939
        %941 = vrot.lane.b32.xlu0 %v883, 64
        %v942 = vpop.permute.xlu0 %941
        %943 = vrot.lane.b32.xlu0 %v884, 64
        %v944 = vpop.permute.xlu0 %943
        %945 = vrot.lane.b32.xlu0 %v885, 64
        %v946 = vpop.permute.xlu0 %945
        %947 = vrot.lane.b32.xlu0 %v886, 64
        %v948 = vpop.permute.xlu0 %947
        %949 = vrot.lane.b32.xlu0 %v887, 64
        %v950 = vpop.permute.xlu0 %949
        %951 = vrot.lane.b32.xlu0 %v888, 64
        %v952 = vpop.permute.xlu0 %951
        %vm985 = vcmask 781824
        %986 = vst.msk [vmem:[#allocation3] sm:$0xf] %vm985, %v890
        %987 = vst.msk [vmem:[#allocation3 + $0xc] sm:$0xf] %vm985, %v892
        %988 = vst.msk [vmem:[#allocation3 + $0x18] sm:$0xf] %vm985, %v894
        %989 = vst.msk [vmem:[#allocation3 + $0x24] sm:$0xf] %vm985, %v896
        %990 = vst.msk [vmem:[#allocation3 + $0x30] sm:$0xf] %vm985, %v898
        %991 = vst.msk [vmem:[#allocation3 + $0x3c] sm:$0xf] %vm985, %v900
        %992 = vst.msk [vmem:[#allocation3 + $0x48] sm:$0xf] %vm985, %v902
        %993 = vst.msk [vmem:[#allocation3 + $0x54] sm:$0xf] %vm985, %v904
        %994 = vst.msk [vmem:[#allocation3 + $0x60] sm:$0xf] %vm985, %v906
        %995 = vst.msk [vmem:[#allocation3 + $0x6c] sm:$0xf] %vm985, %v908
        %996 = vst.msk [vmem:[#allocation3 + $0x78] sm:$0xf] %vm985, %v910
        %997 = vst.msk [vmem:[#allocation3 + $0x84] sm:$0xf] %vm985, %v912
        %998 = vst.msk [vmem:[#allocation3 + $0x90] sm:$0xf] %vm985, %v914
        %999 = vst.msk [vmem:[#allocation3 + $0x9c] sm:$0xf] %vm985, %v916
        %1000 = vst.msk [vmem:[#allocation3 + $0xa8] sm:$0xf] %vm985, %v918
        %1001 = vst.msk [vmem:[#allocation3 + $0xb4] sm:$0xf] %vm985, %v920
        %1002 = vst.msk [vmem:[#allocation3 + $0xc0] sm:$0xf] %vm985, %v922
        %1003 = vst.msk [vmem:[#allocation3 + $0xcc] sm:$0xf] %vm985, %v924
        %1004 = vst.msk [vmem:[#allocation3 + $0xd8] sm:$0xf] %vm985, %v926
        %1005 = vst.msk [vmem:[#allocation3 + $0xe4] sm:$0xf] %vm985, %v928
        %1006 = vst.msk [vmem:[#allocation3 + $0xf0] sm:$0xf] %vm985, %v930
        %1007 = vst.msk [vmem:[#allocation3 + $0xfc] sm:$0xf] %vm985, %v932
        %1008 = vst.msk [vmem:[#allocation3 + $0x108] sm:$0xf] %vm985, %v934
        %1009 = vst.msk [vmem:[#allocation3 + $0x114] sm:$0xf] %vm985, %v936
        %1010 = vst.msk [vmem:[#allocation3 + $0x120] sm:$0xf] %vm985, %v938
        %1011 = vst.msk [vmem:[#allocation3 + $0x12c] sm:$0xf] %vm985, %v940
        %1012 = vst.msk [vmem:[#allocation3 + $0x138] sm:$0xf] %vm985, %v942
        %1013 = vst.msk [vmem:[#allocation3 + $0x144] sm:$0xf] %vm985, %v944
        %1014 = vst.msk [vmem:[#allocation3 + $0x150] sm:$0xf] %vm985, %v946
        %1015 = vst.msk [vmem:[#allocation3 + $0x15c] sm:$0xf] %vm985, %v948
        %1016 = vst.msk [vmem:[#allocation3 + $0x168] sm:$0xf] %vm985, %v950
        %1017 = vst.msk [vmem:[#allocation3 + $0x174] sm:$0xf] %vm985, %v952
        %v1018 = vld [vmem:[%s278] sm:$0xff]
        %v1019 = vld [vmem:[%s278 + $0x8] sm:$0xff]
        %v1020 = vld [vmem:[%s278 + $0x18] sm:$0xff]
        %v1021 = vld [vmem:[%s278 + $0x20] sm:$0xff]
        %v1022 = vld [vmem:[%s278 + $0x30] sm:$0xff]
        %v1023 = vld [vmem:[%s278 + $0x38] sm:$0xff]
        %v1024 = vld [vmem:[%s278 + $0x48] sm:$0xff]
        %v1025 = vld [vmem:[%s278 + $0x50] sm:$0xff]
        %v1026 = vld [vmem:[%s278 + $0x60] sm:$0xff]
        %v1027 = vld [vmem:[%s278 + $0x68] sm:$0xff]
        %v1028 = vld [vmem:[%s278 + $0x78] sm:$0xff]
        %v1029 = vld [vmem:[%s278 + $0x80] sm:$0xff]
        %v1030 = vld [vmem:[%s278 + $0x90] sm:$0xff]
        %v1031 = vld [vmem:[%s278 + $0x98] sm:$0xff]
        %v1032 = vld [vmem:[%s278 + $0xa8] sm:$0xff]
        %v1033 = vld [vmem:[%s278 + $0xb0] sm:$0xff]
        %v1034 = vld [vmem:[%s278 + $0xc0] sm:$0xff]
        %v1035 = vld [vmem:[%s278 + $0xc8] sm:$0xff]
        %v1036 = vld [vmem:[%s278 + $0xd8] sm:$0xff]
        %v1037 = vld [vmem:[%s278 + $0xe0] sm:$0xff]
        %v1038 = vld [vmem:[%s278 + $0xf0] sm:$0xff]
        %v1039 = vld [vmem:[%s278 + $0xf8] sm:$0xff]
        %v1040 = vld [vmem:[%s278 + $0x108] sm:$0xff]
        %v1041 = vld [vmem:[%s278 + $0x110] sm:$0xff]
        %v1042 = vld [vmem:[%s278 + $0x120] sm:$0xff]
        %v1043 = vld [vmem:[%s278 + $0x128] sm:$0xff]
        %v1044 = vld [vmem:[%s278 + $0x138] sm:$0xff]
        %v1045 = vld [vmem:[%s278 + $0x140] sm:$0xff]
        %v1046 = vld [vmem:[%s278 + $0x150] sm:$0xff]
        %v1047 = vld [vmem:[%s278 + $0x158] sm:$0xff]
        %v1048 = vld [vmem:[%s278 + $0x168] sm:$0xff]
        %v1049 = vld [vmem:[%s278 + $0x170] sm:$0xff]
        %v1050 = vpack.c.bf16 %v1019, %v1018
        %v1051 = vpack.c.bf16 %v1021, %v1020
        %v1052 = vpack.c.bf16 %v1023, %v1022
        %v1053 = vpack.c.bf16 %v1025, %v1024
        %v1054 = vpack.c.bf16 %v1027, %v1026
        %v1055 = vpack.c.bf16 %v1029, %v1028
        %v1056 = vpack.c.bf16 %v1031, %v1030
        %v1057 = vpack.c.bf16 %v1033, %v1032
        %v1058 = vpack.c.bf16 %v1035, %v1034
        %v1059 = vpack.c.bf16 %v1037, %v1036
        %v1060 = vpack.c.bf16 %v1039, %v1038
        %v1061 = vpack.c.bf16 %v1041, %v1040
        %v1062 = vpack.c.bf16 %v1043, %v1042
        %v1063 = vpack.c.bf16 %v1045, %v1044
        %v1064 = vpack.c.bf16 %v1047, %v1046
        %v1065 = vpack.c.bf16 %v1049, %v1048
        %v1082 = vunpack.c.l.b16 %v1050
        %v1083 = vunpack.c.h.b16 %v1050
        %v1084 = vunpack.c.l.b16 %v1051
        %v1085 = vunpack.c.h.b16 %v1051
        %v1086 = vunpack.c.l.b16 %v1052
        %v1087 = vunpack.c.h.b16 %v1052
        %v1088 = vunpack.c.l.b16 %v1053
        %v1089 = vunpack.c.h.b16 %v1053
        %v1090 = vunpack.c.l.b16 %v1054
        %v1091 = vunpack.c.h.b16 %v1054
        %v1092 = vunpack.c.l.b16 %v1055
        %v1093 = vunpack.c.h.b16 %v1055
        %v1094 = vunpack.c.l.b16 %v1056
        %v1095 = vunpack.c.h.b16 %v1056
        %v1096 = vunpack.c.l.b16 %v1057
        %v1097 = vunpack.c.h.b16 %v1057
        %v1098 = vunpack.c.l.b16 %v1058
        %v1099 = vunpack.c.h.b16 %v1058
        %v1100 = vunpack.c.l.b16 %v1059
        %v1101 = vunpack.c.h.b16 %v1059
        %v1102 = vunpack.c.l.b16 %v1060
        %v1103 = vunpack.c.h.b16 %v1060
        %v1104 = vunpack.c.l.b16 %v1061
        %v1105 = vunpack.c.h.b16 %v1061
        %v1106 = vunpack.c.l.b16 %v1062
        %v1107 = vunpack.c.h.b16 %v1062
        %v1108 = vunpack.c.l.b16 %v1063
        %v1109 = vunpack.c.h.b16 %v1063
        %v1110 = vunpack.c.l.b16 %v1064
        %v1111 = vunpack.c.h.b16 %v1064
        %v1112 = vunpack.c.l.b16 %v1065
        %v1113 = vunpack.c.h.b16 %v1065
        %v1114 = vpack.c.b16 %v1082, %v1082
        %v1115 = vpack.c.b16 %v1083, %v1083
        %v1116 = vpack.c.b16 %v1084, %v1084
        %v1117 = vpack.c.b16 %v1085, %v1085
        %v1118 = vpack.c.b16 %v1086, %v1086
        %v1119 = vpack.c.b16 %v1087, %v1087
        %v1120 = vpack.c.b16 %v1088, %v1088
        %v1121 = vpack.c.b16 %v1089, %v1089
        %v1122 = vpack.c.b16 %v1090, %v1090
        %v1123 = vpack.c.b16 %v1091, %v1091
        %v1124 = vpack.c.b16 %v1092, %v1092
        %v1125 = vpack.c.b16 %v1093, %v1093
        %v1126 = vpack.c.b16 %v1094, %v1094
        %v1127 = vpack.c.b16 %v1095, %v1095
        %v1128 = vpack.c.b16 %v1096, %v1096
        %v1129 = vpack.c.b16 %v1097, %v1097
        %v1130 = vpack.c.b16 %v1098, %v1098
        %v1131 = vpack.c.b16 %v1099, %v1099
        %v1132 = vpack.c.b16 %v1100, %v1100
        %v1133 = vpack.c.b16 %v1101, %v1101
        %v1134 = vpack.c.b16 %v1102, %v1102
        %v1135 = vpack.c.b16 %v1103, %v1103
        %v1136 = vpack.c.b16 %v1104, %v1104
        %v1137 = vpack.c.b16 %v1105, %v1105
        %v1138 = vpack.c.b16 %v1106, %v1106
        %v1139 = vpack.c.b16 %v1107, %v1107
        %v1140 = vpack.c.b16 %v1108, %v1108
        %v1141 = vpack.c.b16 %v1109, %v1109
        %v1142 = vpack.c.b16 %v1110, %v1110
        %v1143 = vpack.c.b16 %v1111, %v1111
        %v1144 = vpack.c.b16 %v1112, %v1112
        %v1145 = vpack.c.b16 %v1113, %v1113
        %1146 = vrot.lane.b32.xlu0 %v1114, 96
        %v1147 = vpop.permute.xlu0 %1146
        %1148 = vrot.lane.b32.xlu0 %v1115, 96
        %v1149 = vpop.permute.xlu0 %1148
        %1150 = vrot.lane.b32.xlu0 %v1116, 96
        %v1151 = vpop.permute.xlu0 %1150
        %1152 = vrot.lane.b32.xlu0 %v1117, 96
        %v1153 = vpop.permute.xlu0 %1152
        %1154 = vrot.lane.b32.xlu0 %v1118, 96
        %v1155 = vpop.permute.xlu0 %1154
        %1156 = vrot.lane.b32.xlu0 %v1119, 96
        %v1157 = vpop.permute.xlu0 %1156
        %1158 = vrot.lane.b32.xlu0 %v1120, 96
        %v1159 = vpop.permute.xlu0 %1158
        %1160 = vrot.lane.b32.xlu0 %v1121, 96
        %v1161 = vpop.permute.xlu0 %1160
        %1162 = vrot.lane.b32.xlu0 %v1122, 96
        %v1163 = vpop.permute.xlu0 %1162
        %1164 = vrot.lane.b32.xlu0 %v1123, 96
        %v1165 = vpop.permute.xlu0 %1164
        %1166 = vrot.lane.b32.xlu0 %v1124, 96
        %v1167 = vpop.permute.xlu0 %1166
        %1168 = vrot.lane.b32.xlu0 %v1125, 96
        %v1169 = vpop.permute.xlu0 %1168
        %1170 = vrot.lane.b32.xlu0 %v1126, 96
        %v1171 = vpop.permute.xlu0 %1170
        %1172 = vrot.lane.b32.xlu0 %v1127, 96
        %v1173 = vpop.permute.xlu0 %1172
        %1174 = vrot.lane.b32.xlu0 %v1128, 96
        %v1175 = vpop.permute.xlu0 %1174
        %1176 = vrot.lane.b32.xlu0 %v1129, 96
        %v1177 = vpop.permute.xlu0 %1176
        %1178 = vrot.lane.b32.xlu0 %v1130, 96
        %v1179 = vpop.permute.xlu0 %1178
        %1180 = vrot.lane.b32.xlu0 %v1131, 96
        %v1181 = vpop.permute.xlu0 %1180
        %1182 = vrot.lane.b32.xlu0 %v1132, 96
        %v1183 = vpop.permute.xlu0 %1182
        %1184 = vrot.lane.b32.xlu0 %v1133, 96
        %v1185 = vpop.permute.xlu0 %1184
        %1186 = vrot.lane.b32.xlu0 %v1134, 96
        %v1187 = vpop.permute.xlu0 %1186
        %1188 = vrot.lane.b32.xlu0 %v1135, 96
        %v1189 = vpop.permute.xlu0 %1188
        %1190 = vrot.lane.b32.xlu0 %v1136, 96
        %v1191 = vpop.permute.xlu0 %1190
        %1192 = vrot.lane.b32.xlu0 %v1137, 96
        %v1193 = vpop.permute.xlu0 %1192
        %1194 = vrot.lane.b32.xlu0 %v1138, 96
        %v1195 = vpop.permute.xlu0 %1194
        %1196 = vrot.lane.b32.xlu0 %v1139, 96
        %v1197 = vpop.permute.xlu0 %1196
        %1198 = vrot.lane.b32.xlu0 %v1140, 96
        %v1199 = vpop.permute.xlu0 %1198
        %1200 = vrot.lane.b32.xlu0 %v1141, 96
        %v1201 = vpop.permute.xlu0 %1200
        %1202 = vrot.lane.b32.xlu0 %v1142, 96
        %v1203 = vpop.permute.xlu0 %1202
        %1204 = vrot.lane.b32.xlu0 %v1143, 96
        %v1205 = vpop.permute.xlu0 %1204
        %1206 = vrot.lane.b32.xlu0 %v1144, 96
        %v1207 = vpop.permute.xlu0 %1206
        %1208 = vrot.lane.b32.xlu0 %v1145, 96
        %v1209 = vpop.permute.xlu0 %1208
        %vm1242 = vcmask 1044224
        %1243 = vst.msk [vmem:[#allocation3] sm:$0xf] %vm1242, %v1147
        %1244 = vst.msk [vmem:[#allocation3 + $0xc] sm:$0xf] %vm1242, %v1149
        %1245 = vst.msk [vmem:[#allocation3 + $0x18] sm:$0xf] %vm1242, %v1151
        %1246 = vst.msk [vmem:[#allocation3 + $0x24] sm:$0xf] %vm1242, %v1153
        %1247 = vst.msk [vmem:[#allocation3 + $0x30] sm:$0xf] %vm1242, %v1155
        %1248 = vst.msk [vmem:[#allocation3 + $0x3c] sm:$0xf] %vm1242, %v1157
        %1249 = vst.msk [vmem:[#allocation3 + $0x48] sm:$0xf] %vm1242, %v1159
        %1250 = vst.msk [vmem:[#allocation3 + $0x54] sm:$0xf] %vm1242, %v1161
        %1251 = vst.msk [vmem:[#allocation3 + $0x60] sm:$0xf] %vm1242, %v1163
        %1252 = vst.msk [vmem:[#allocation3 + $0x6c] sm:$0xf] %vm1242, %v1165
        %1253 = vst.msk [vmem:[#allocation3 + $0x78] sm:$0xf] %vm1242, %v1167
        %1254 = vst.msk [vmem:[#allocation3 + $0x84] sm:$0xf] %vm1242, %v1169
        %1255 = vst.msk [vmem:[#allocation3 + $0x90] sm:$0xf] %vm1242, %v1171
        %1256 = vst.msk [vmem:[#allocation3 + $0x9c] sm:$0xf] %vm1242, %v1173
        %1257 = vst.msk [vmem:[#allocation3 + $0xa8] sm:$0xf] %vm1242, %v1175
        %1258 = vst.msk [vmem:[#allocation3 + $0xb4] sm:$0xf] %vm1242, %v1177
        %1259 = vst.msk [vmem:[#allocation3 + $0xc0] sm:$0xf] %vm1242, %v1179
        %1260 = vst.msk [vmem:[#allocation3 + $0xcc] sm:$0xf] %vm1242, %v1181
        %1261 = vst.msk [vmem:[#allocation3 + $0xd8] sm:$0xf] %vm1242, %v1183
        %1262 = vst.msk [vmem:[#allocation3 + $0xe4] sm:$0xf] %vm1242, %v1185
        %1263 = vst.msk [vmem:[#allocation3 + $0xf0] sm:$0xf] %vm1242, %v1187
        %1264 = vst.msk [vmem:[#allocation3 + $0xfc] sm:$0xf] %vm1242, %v1189
        %1265 = vst.msk [vmem:[#allocation3 + $0x108] sm:$0xf] %vm1242, %v1191
        %1266 = vst.msk [vmem:[#allocation3 + $0x114] sm:$0xf] %vm1242, %v1193
        %1267 = vst.msk [vmem:[#allocation3 + $0x120] sm:$0xf] %vm1242, %v1195
        %1268 = vst.msk [vmem:[#allocation3 + $0x12c] sm:$0xf] %vm1242, %v1197
        %1269 = vst.msk [vmem:[#allocation3 + $0x138] sm:$0xf] %vm1242, %v1199
        %1270 = vst.msk [vmem:[#allocation3 + $0x144] sm:$0xf] %vm1242, %v1201
        %1271 = vst.msk [vmem:[#allocation3 + $0x150] sm:$0xf] %vm1242, %v1203
        %1272 = vst.msk [vmem:[#allocation3 + $0x15c] sm:$0xf] %vm1242, %v1205
        %1273 = vst.msk [vmem:[#allocation3 + $0x168] sm:$0xf] %vm1242, %v1207
        %1274 = vst.msk [vmem:[#allocation3 + $0x174] sm:$0xf] %vm1242, %v1209
        %v1275 = vld [vmem:[%s278 + $0x1] sm:$0xff]
        %v1276 = vld [vmem:[%s278 + $0x9] sm:$0xff]
        %v1277 = vld [vmem:[%s278 + $0x19] sm:$0xff]
        %v1278 = vld [vmem:[%s278 + $0x21] sm:$0xff]
        %v1279 = vld [vmem:[%s278 + $0x31] sm:$0xff]
        %v1280 = vld [vmem:[%s278 + $0x39] sm:$0xff]
        %v1281 = vld [vmem:[%s278 + $0x49] sm:$0xff]
        %v1282 = vld [vmem:[%s278 + $0x51] sm:$0xff]
        %v1283 = vld [vmem:[%s278 + $0x61] sm:$0xff]
        %v1284 = vld [vmem:[%s278 + $0x69] sm:$0xff]
        %v1285 = vld [vmem:[%s278 + $0x79] sm:$0xff]
        %v1286 = vld [vmem:[%s278 + $0x81] sm:$0xff]
        %v1287 = vld [vmem:[%s278 + $0x91] sm:$0xff]
        %v1288 = vld [vmem:[%s278 + $0x99] sm:$0xff]
        %v1289 = vld [vmem:[%s278 + $0xa9] sm:$0xff]
        %v1290 = vld [vmem:[%s278 + $0xb1] sm:$0xff]
        %v1291 = vld [vmem:[%s278 + $0xc1] sm:$0xff]
        %v1292 = vld [vmem:[%s278 + $0xc9] sm:$0xff]
        %v1293 = vld [vmem:[%s278 + $0xd9] sm:$0xff]
        %v1294 = vld [vmem:[%s278 + $0xe1] sm:$0xff]
        %v1295 = vld [vmem:[%s278 + $0xf1] sm:$0xff]
        %v1296 = vld [vmem:[%s278 + $0xf9] sm:$0xff]
        %v1297 = vld [vmem:[%s278 + $0x109] sm:$0xff]
        %v1298 = vld [vmem:[%s278 + $0x111] sm:$0xff]
        %v1299 = vld [vmem:[%s278 + $0x121] sm:$0xff]
        %v1300 = vld [vmem:[%s278 + $0x129] sm:$0xff]
        %v1301 = vld [vmem:[%s278 + $0x139] sm:$0xff]
        %v1302 = vld [vmem:[%s278 + $0x141] sm:$0xff]
        %v1303 = vld [vmem:[%s278 + $0x151] sm:$0xff]
        %v1304 = vld [vmem:[%s278 + $0x159] sm:$0xff]
        %v1305 = vld [vmem:[%s278 + $0x169] sm:$0xff]
        %v1306 = vld [vmem:[%s278 + $0x171] sm:$0xff]
        %v1307 = vpack.c.bf16 %v1276, %v1275
        %v1308 = vpack.c.bf16 %v1278, %v1277
        %v1309 = vpack.c.bf16 %v1280, %v1279
        %v1310 = vpack.c.bf16 %v1282, %v1281
        %v1311 = vpack.c.bf16 %v1284, %v1283
        %v1312 = vpack.c.bf16 %v1286, %v1285
        %v1313 = vpack.c.bf16 %v1288, %v1287
        %v1314 = vpack.c.bf16 %v1290, %v1289
        %v1315 = vpack.c.bf16 %v1292, %v1291
        %v1316 = vpack.c.bf16 %v1294, %v1293
        %v1317 = vpack.c.bf16 %v1296, %v1295
        %v1318 = vpack.c.bf16 %v1298, %v1297
        %v1319 = vpack.c.bf16 %v1300, %v1299
        %v1320 = vpack.c.bf16 %v1302, %v1301
        %v1321 = vpack.c.bf16 %v1304, %v1303
        %v1322 = vpack.c.bf16 %v1306, %v1305
        %v1339 = vunpack.c.l.b16 %v1307
        %v1340 = vunpack.c.h.b16 %v1307
        %v1341 = vunpack.c.l.b16 %v1308
        %v1342 = vunpack.c.h.b16 %v1308
        %v1343 = vunpack.c.l.b16 %v1309
        %v1344 = vunpack.c.h.b16 %v1309
        %v1345 = vunpack.c.l.b16 %v1310
        %v1346 = vunpack.c.h.b16 %v1310
        %v1347 = vunpack.c.l.b16 %v1311
        %v1348 = vunpack.c.h.b16 %v1311
        %v1349 = vunpack.c.l.b16 %v1312
        %v1350 = vunpack.c.h.b16 %v1312
        %v1351 = vunpack.c.l.b16 %v1313
        %v1352 = vunpack.c.h.b16 %v1313
        %v1353 = vunpack.c.l.b16 %v1314
        %v1354 = vunpack.c.h.b16 %v1314
        %v1355 = vunpack.c.l.b16 %v1315
        %v1356 = vunpack.c.h.b16 %v1315
        %v1357 = vunpack.c.l.b16 %v1316
        %v1358 = vunpack.c.h.b16 %v1316
        %v1359 = vunpack.c.l.b16 %v1317
        %v1360 = vunpack.c.h.b16 %v1317
        %v1361 = vunpack.c.l.b16 %v1318
        %v1362 = vunpack.c.h.b16 %v1318
        %v1363 = vunpack.c.l.b16 %v1319
        %v1364 = vunpack.c.h.b16 %v1319
        %v1365 = vunpack.c.l.b16 %v1320
        %v1366 = vunpack.c.h.b16 %v1320
        %v1367 = vunpack.c.l.b16 %v1321
        %v1368 = vunpack.c.h.b16 %v1321
        %v1369 = vunpack.c.l.b16 %v1322
        %v1370 = vunpack.c.h.b16 %v1322
        %v1371 = vpack.c.b16 %v1339, %v1339
        %v1372 = vpack.c.b16 %v1340, %v1340
        %v1373 = vpack.c.b16 %v1341, %v1341
        %v1374 = vpack.c.b16 %v1342, %v1342
        %v1375 = vpack.c.b16 %v1343, %v1343
        %v1376 = vpack.c.b16 %v1344, %v1344
        %v1377 = vpack.c.b16 %v1345, %v1345
        %v1378 = vpack.c.b16 %v1346, %v1346
        %v1379 = vpack.c.b16 %v1347, %v1347
        %v1380 = vpack.c.b16 %v1348, %v1348
        %v1381 = vpack.c.b16 %v1349, %v1349
        %v1382 = vpack.c.b16 %v1350, %v1350
        %v1383 = vpack.c.b16 %v1351, %v1351
        %v1384 = vpack.c.b16 %v1352, %v1352
        %v1385 = vpack.c.b16 %v1353, %v1353
        %v1386 = vpack.c.b16 %v1354, %v1354
        %v1387 = vpack.c.b16 %v1355, %v1355
        %v1388 = vpack.c.b16 %v1356, %v1356
        %v1389 = vpack.c.b16 %v1357, %v1357
        %v1390 = vpack.c.b16 %v1358, %v1358
        %v1391 = vpack.c.b16 %v1359, %v1359
        %v1392 = vpack.c.b16 %v1360, %v1360
        %v1393 = vpack.c.b16 %v1361, %v1361
        %v1394 = vpack.c.b16 %v1362, %v1362
        %v1395 = vpack.c.b16 %v1363, %v1363
        %v1396 = vpack.c.b16 %v1364, %v1364
        %v1397 = vpack.c.b16 %v1365, %v1365
        %v1398 = vpack.c.b16 %v1366, %v1366
        %v1399 = vpack.c.b16 %v1367, %v1367
        %v1400 = vpack.c.b16 %v1368, %v1368
        %v1401 = vpack.c.b16 %v1369, %v1369
        %v1402 = vpack.c.b16 %v1370, %v1370
        %1435 = vst.msk [vmem:[#allocation3 + $0x4] sm:$0xf] %vm471, %v1371
        %1436 = vst.msk [vmem:[#allocation3 + $0x10] sm:$0xf] %vm471, %v1372
        %1437 = vst.msk [vmem:[#allocation3 + $0x1c] sm:$0xf] %vm471, %v1373
        %1438 = vst.msk [vmem:[#allocation3 + $0x28] sm:$0xf] %vm471, %v1374
        %1439 = vst.msk [vmem:[#allocation3 + $0x34] sm:$0xf] %vm471, %v1375
        %1440 = vst.msk [vmem:[#allocation3 + $0x40] sm:$0xf] %vm471, %v1376
        %1441 = vst.msk [vmem:[#allocation3 + $0x4c] sm:$0xf] %vm471, %v1377
        %1442 = vst.msk [vmem:[#allocation3 + $0x58] sm:$0xf] %vm471, %v1378
        %1443 = vst.msk [vmem:[#allocation3 + $0x64] sm:$0xf] %vm471, %v1379
        %1444 = vst.msk [vmem:[#allocation3 + $0x70] sm:$0xf] %vm471, %v1380
        %1445 = vst.msk [vmem:[#allocation3 + $0x7c] sm:$0xf] %vm471, %v1381
        %1446 = vst.msk [vmem:[#allocation3 + $0x88] sm:$0xf] %vm471, %v1382
        %1447 = vst.msk [vmem:[#allocation3 + $0x94] sm:$0xf] %vm471, %v1383
        %1448 = vst.msk [vmem:[#allocation3 + $0xa0] sm:$0xf] %vm471, %v1384
        %1449 = vst.msk [vmem:[#allocation3 + $0xac] sm:$0xf] %vm471, %v1385
        %1450 = vst.msk [vmem:[#allocation3 + $0xb8] sm:$0xf] %vm471, %v1386
        %1451 = vst.msk [vmem:[#allocation3 + $0xc4] sm:$0xf] %vm471, %v1387
        %1452 = vst.msk [vmem:[#allocation3 + $0xd0] sm:$0xf] %vm471, %v1388
        %1453 = vst.msk [vmem:[#allocation3 + $0xdc] sm:$0xf] %vm471, %v1389
        %1454 = vst.msk [vmem:[#allocation3 + $0xe8] sm:$0xf] %vm471, %v1390
        %1455 = vst.msk [vmem:[#allocation3 + $0xf4] sm:$0xf] %vm471, %v1391
        %1456 = vst.msk [vmem:[#allocation3 + $0x100] sm:$0xf] %vm471, %v1392
        %1457 = vst.msk [vmem:[#allocation3 + $0x10c] sm:$0xf] %vm471, %v1393
        %1458 = vst.msk [vmem:[#allocation3 + $0x118] sm:$0xf] %vm471, %v1394
        %1459 = vst.msk [vmem:[#allocation3 + $0x124] sm:$0xf] %vm471, %v1395
        %1460 = vst.msk [vmem:[#allocation3 + $0x130] sm:$0xf] %vm471, %v1396
        %1461 = vst.msk [vmem:[#allocation3 + $0x13c] sm:$0xf] %vm471, %v1397
        %1462 = vst.msk [vmem:[#allocation3 + $0x148] sm:$0xf] %vm471, %v1398
        %1463 = vst.msk [vmem:[#allocation3 + $0x154] sm:$0xf] %vm471, %v1399
        %1464 = vst.msk [vmem:[#allocation3 + $0x160] sm:$0xf] %vm471, %v1400
        %1465 = vst.msk [vmem:[#allocation3 + $0x16c] sm:$0xf] %vm471, %v1401
        %1466 = vst.msk [vmem:[#allocation3 + $0x178] sm:$0xf] %vm471, %v1402
        %v1467 = vld [vmem:[%s278 + $0x2] sm:$0xff]
        %v1468 = vld [vmem:[%s278 + $0xa] sm:$0xff]
        %v1469 = vld [vmem:[%s278 + $0x1a] sm:$0xff]
        %v1470 = vld [vmem:[%s278 + $0x22] sm:$0xff]
        %v1471 = vld [vmem:[%s278 + $0x32] sm:$0xff]
        %v1472 = vld [vmem:[%s278 + $0x3a] sm:$0xff]
        %v1473 = vld [vmem:[%s278 + $0x4a] sm:$0xff]
        %v1474 = vld [vmem:[%s278 + $0x52] sm:$0xff]
        %v1475 = vld [vmem:[%s278 + $0x62] sm:$0xff]
        %v1476 = vld [vmem:[%s278 + $0x6a] sm:$0xff]
        %v1477 = vld [vmem:[%s278 + $0x7a] sm:$0xff]
        %v1478 = vld [vmem:[%s278 + $0x82] sm:$0xff]
        %v1479 = vld [vmem:[%s278 + $0x92] sm:$0xff]
        %v1480 = vld [vmem:[%s278 + $0x9a] sm:$0xff]
        %v1481 = vld [vmem:[%s278 + $0xaa] sm:$0xff]
        %v1482 = vld [vmem:[%s278 + $0xb2] sm:$0xff]
        %v1483 = vld [vmem:[%s278 + $0xc2] sm:$0xff]
        %v1484 = vld [vmem:[%s278 + $0xca] sm:$0xff]
        %v1485 = vld [vmem:[%s278 + $0xda] sm:$0xff]
        %v1486 = vld [vmem:[%s278 + $0xe2] sm:$0xff]
        %v1487 = vld [vmem:[%s278 + $0xf2] sm:$0xff]
        %v1488 = vld [vmem:[%s278 + $0xfa] sm:$0xff]
        %v1489 = vld [vmem:[%s278 + $0x10a] sm:$0xff]
        %v1490 = vld [vmem:[%s278 + $0x112] sm:$0xff]
        %v1491 = vld [vmem:[%s278 + $0x122] sm:$0xff]
        %v1492 = vld [vmem:[%s278 + $0x12a] sm:$0xff]
        %v1493 = vld [vmem:[%s278 + $0x13a] sm:$0xff]
        %v1494 = vld [vmem:[%s278 + $0x142] sm:$0xff]
        %v1495 = vld [vmem:[%s278 + $0x152] sm:$0xff]
        %v1496 = vld [vmem:[%s278 + $0x15a] sm:$0xff]
        %v1497 = vld [vmem:[%s278 + $0x16a] sm:$0xff]
        %v1498 = vld [vmem:[%s278 + $0x172] sm:$0xff]
        %v1499 = vpack.c.bf16 %v1468, %v1467
        %v1500 = vpack.c.bf16 %v1470, %v1469
        %v1501 = vpack.c.bf16 %v1472, %v1471
        %v1502 = vpack.c.bf16 %v1474, %v1473
        %v1503 = vpack.c.bf16 %v1476, %v1475
        %v1504 = vpack.c.bf16 %v1478, %v1477
        %v1505 = vpack.c.bf16 %v1480, %v1479
        %v1506 = vpack.c.bf16 %v1482, %v1481
        %v1507 = vpack.c.bf16 %v1484, %v1483
        %v1508 = vpack.c.bf16 %v1486, %v1485
        %v1509 = vpack.c.bf16 %v1488, %v1487
        %v1510 = vpack.c.bf16 %v1490, %v1489
        %v1511 = vpack.c.bf16 %v1492, %v1491
        %v1512 = vpack.c.bf16 %v1494, %v1493
        %v1513 = vpack.c.bf16 %v1496, %v1495
        %v1514 = vpack.c.bf16 %v1498, %v1497
        %v1531 = vunpack.c.l.b16 %v1499
        %v1532 = vunpack.c.h.b16 %v1499
        %v1533 = vunpack.c.l.b16 %v1500
        %v1534 = vunpack.c.h.b16 %v1500
        %v1535 = vunpack.c.l.b16 %v1501
        %v1536 = vunpack.c.h.b16 %v1501
        %v1537 = vunpack.c.l.b16 %v1502
        %v1538 = vunpack.c.h.b16 %v1502
        %v1539 = vunpack.c.l.b16 %v1503
        %v1540 = vunpack.c.h.b16 %v1503
        %v1541 = vunpack.c.l.b16 %v1504
        %v1542 = vunpack.c.h.b16 %v1504
        %v1543 = vunpack.c.l.b16 %v1505
        %v1544 = vunpack.c.h.b16 %v1505
        %v1545 = vunpack.c.l.b16 %v1506
        %v1546 = vunpack.c.h.b16 %v1506
        %v1547 = vunpack.c.l.b16 %v1507
        %v1548 = vunpack.c.h.b16 %v1507
        %v1549 = vunpack.c.l.b16 %v1508
        %v1550 = vunpack.c.h.b16 %v1508
        %v1551 = vunpack.c.l.b16 %v1509
        %v1552 = vunpack.c.h.b16 %v1509
        %v1553 = vunpack.c.l.b16 %v1510
        %v1554 = vunpack.c.h.b16 %v1510
        %v1555 = vunpack.c.l.b16 %v1511
        %v1556 = vunpack.c.h.b16 %v1511
        %v1557 = vunpack.c.l.b16 %v1512
        %v1558 = vunpack.c.h.b16 %v1512
        %v1559 = vunpack.c.l.b16 %v1513
        %v1560 = vunpack.c.h.b16 %v1513
        %v1561 = vunpack.c.l.b16 %v1514
        %v1562 = vunpack.c.h.b16 %v1514
        %v1563 = vpack.c.b16 %v1531, %v1531
        %v1564 = vpack.c.b16 %v1532, %v1532
        %v1565 = vpack.c.b16 %v1533, %v1533
        %v1566 = vpack.c.b16 %v1534, %v1534
        %v1567 = vpack.c.b16 %v1535, %v1535
        %v1568 = vpack.c.b16 %v1536, %v1536
        %v1569 = vpack.c.b16 %v1537, %v1537
        %v1570 = vpack.c.b16 %v1538, %v1538
        %v1571 = vpack.c.b16 %v1539, %v1539
        %v1572 = vpack.c.b16 %v1540, %v1540
        %v1573 = vpack.c.b16 %v1541, %v1541
        %v1574 = vpack.c.b16 %v1542, %v1542
        %v1575 = vpack.c.b16 %v1543, %v1543
        %v1576 = vpack.c.b16 %v1544, %v1544
        %v1577 = vpack.c.b16 %v1545, %v1545
        %v1578 = vpack.c.b16 %v1546, %v1546
        %v1579 = vpack.c.b16 %v1547, %v1547
        %v1580 = vpack.c.b16 %v1548, %v1548
        %v1581 = vpack.c.b16 %v1549, %v1549
        %v1582 = vpack.c.b16 %v1550, %v1550
        %v1583 = vpack.c.b16 %v1551, %v1551
        %v1584 = vpack.c.b16 %v1552, %v1552
        %v1585 = vpack.c.b16 %v1553, %v1553
        %v1586 = vpack.c.b16 %v1554, %v1554
        %v1587 = vpack.c.b16 %v1555, %v1555
        %v1588 = vpack.c.b16 %v1556, %v1556
        %v1589 = vpack.c.b16 %v1557, %v1557
        %v1590 = vpack.c.b16 %v1558, %v1558
        %v1591 = vpack.c.b16 %v1559, %v1559
        %v1592 = vpack.c.b16 %v1560, %v1560
        %v1593 = vpack.c.b16 %v1561, %v1561
        %v1594 = vpack.c.b16 %v1562, %v1562
        %1595 = vrot.lane.b32.xlu0 %v1563, 32
        %v1596 = vpop.permute.xlu0 %1595
        %1597 = vrot.lane.b32.xlu0 %v1564, 32
        %v1598 = vpop.permute.xlu0 %1597
        %1599 = vrot.lane.b32.xlu0 %v1565, 32
        %v1600 = vpop.permute.xlu0 %1599
        %1601 = vrot.lane.b32.xlu0 %v1566, 32
        %v1602 = vpop.permute.xlu0 %1601
        %1603 = vrot.lane.b32.xlu0 %v1567, 32
        %v1604 = vpop.permute.xlu0 %1603
        %1605 = vrot.lane.b32.xlu0 %v1568, 32
        %v1606 = vpop.permute.xlu0 %1605
        %1607 = vrot.lane.b32.xlu0 %v1569, 32
        %v1608 = vpop.permute.xlu0 %1607
        %1609 = vrot.lane.b32.xlu0 %v1570, 32
        %v1610 = vpop.permute.xlu0 %1609
        %1611 = vrot.lane.b32.xlu0 %v1571, 32
        %v1612 = vpop.permute.xlu0 %1611
        %1613 = vrot.lane.b32.xlu0 %v1572, 32
        %v1614 = vpop.permute.xlu0 %1613
        %1615 = vrot.lane.b32.xlu0 %v1573, 32
        %v1616 = vpop.permute.xlu0 %1615
        %1617 = vrot.lane.b32.xlu0 %v1574, 32
        %v1618 = vpop.permute.xlu0 %1617
        %1619 = vrot.lane.b32.xlu0 %v1575, 32
        %v1620 = vpop.permute.xlu0 %1619
        %1621 = vrot.lane.b32.xlu0 %v1576, 32
        %v1622 = vpop.permute.xlu0 %1621
        %1623 = vrot.lane.b32.xlu0 %v1577, 32
        %v1624 = vpop.permute.xlu0 %1623
        %1625 = vrot.lane.b32.xlu0 %v1578, 32
        %v1626 = vpop.permute.xlu0 %1625
        %1627 = vrot.lane.b32.xlu0 %v1579, 32
        %v1628 = vpop.permute.xlu0 %1627
        %1629 = vrot.lane.b32.xlu0 %v1580, 32
        %v1630 = vpop.permute.xlu0 %1629
        %1631 = vrot.lane.b32.xlu0 %v1581, 32
        %v1632 = vpop.permute.xlu0 %1631
        %1633 = vrot.lane.b32.xlu0 %v1582, 32
        %v1634 = vpop.permute.xlu0 %1633
        %1635 = vrot.lane.b32.xlu0 %v1583, 32
        %v1636 = vpop.permute.xlu0 %1635
        %1637 = vrot.lane.b32.xlu0 %v1584, 32
        %v1638 = vpop.permute.xlu0 %1637
        %1639 = vrot.lane.b32.xlu0 %v1585, 32
        %v1640 = vpop.permute.xlu0 %1639
        %1641 = vrot.lane.b32.xlu0 %v1586, 32
        %v1642 = vpop.permute.xlu0 %1641
        %1643 = vrot.lane.b32.xlu0 %v1587, 32
        %v1644 = vpop.permute.xlu0 %1643
        %1645 = vrot.lane.b32.xlu0 %v1588, 32
        %v1646 = vpop.permute.xlu0 %1645
        %1647 = vrot.lane.b32.xlu0 %v1589, 32
        %v1648 = vpop.permute.xlu0 %1647
        %1649 = vrot.lane.b32.xlu0 %v1590, 32
        %v1650 = vpop.permute.xlu0 %1649
        %1651 = vrot.lane.b32.xlu0 %v1591, 32
        %v1652 = vpop.permute.xlu0 %1651
        %1653 = vrot.lane.b32.xlu0 %v1592, 32
        %v1654 = vpop.permute.xlu0 %1653
        %1655 = vrot.lane.b32.xlu0 %v1593, 32
        %v1656 = vpop.permute.xlu0 %1655
        %1657 = vrot.lane.b32.xlu0 %v1594, 32
        %v1658 = vpop.permute.xlu0 %1657
        %1691 = vst.msk [vmem:[#allocation3 + $0x4] sm:$0xf] %vm728, %v1596
        %1692 = vst.msk [vmem:[#allocation3 + $0x10] sm:$0xf] %vm728, %v1598
        %1693 = vst.msk [vmem:[#allocation3 + $0x1c] sm:$0xf] %vm728, %v1600
        %1694 = vst.msk [vmem:[#allocation3 + $0x28] sm:$0xf] %vm728, %v1602
        %1695 = vst.msk [vmem:[#allocation3 + $0x34] sm:$0xf] %vm728, %v1604
        %1696 = vst.msk [vmem:[#allocation3 + $0x40] sm:$0xf] %vm728, %v1606
        %1697 = vst.msk [vmem:[#allocation3 + $0x4c] sm:$0xf] %vm728, %v1608
        %1698 = vst.msk [vmem:[#allocation3 + $0x58] sm:$0xf] %vm728, %v1610
        %1699 = vst.msk [vmem:[#allocation3 + $0x64] sm:$0xf] %vm728, %v1612
        %1700 = vst.msk [vmem:[#allocation3 + $0x70] sm:$0xf] %vm728, %v1614
        %1701 = vst.msk [vmem:[#allocation3 + $0x7c] sm:$0xf] %vm728, %v1616
        %1702 = vst.msk [vmem:[#allocation3 + $0x88] sm:$0xf] %vm728, %v1618
        %1703 = vst.msk [vmem:[#allocation3 + $0x94] sm:$0xf] %vm728, %v1620
        %1704 = vst.msk [vmem:[#allocation3 + $0xa0] sm:$0xf] %vm728, %v1622
        %1705 = vst.msk [vmem:[#allocation3 + $0xac] sm:$0xf] %vm728, %v1624
        %1706 = vst.msk [vmem:[#allocation3 + $0xb8] sm:$0xf] %vm728, %v1626
        %1707 = vst.msk [vmem:[#allocation3 + $0xc4] sm:$0xf] %vm728, %v1628
        %1708 = vst.msk [vmem:[#allocation3 + $0xd0] sm:$0xf] %vm728, %v1630
        %1709 = vst.msk [vmem:[#allocation3 + $0xdc] sm:$0xf] %vm728, %v1632
        %1710 = vst.msk [vmem:[#allocation3 + $0xe8] sm:$0xf] %vm728, %v1634
        %1711 = vst.msk [vmem:[#allocation3 + $0xf4] sm:$0xf] %vm728, %v1636
        %1712 = vst.msk [vmem:[#allocation3 + $0x100] sm:$0xf] %vm728, %v1638
        %1713 = vst.msk [vmem:[#allocation3 + $0x10c] sm:$0xf] %vm728, %v1640
        %1714 = vst.msk [vmem:[#allocation3 + $0x118] sm:$0xf] %vm728, %v1642
        %1715 = vst.msk [vmem:[#allocation3 + $0x124] sm:$0xf] %vm728, %v1644
        %1716 = vst.msk [vmem:[#allocation3 + $0x130] sm:$0xf] %vm728, %v1646
        %1717 = vst.msk [vmem:[#allocation3 + $0x13c] sm:$0xf] %vm728, %v1648
        %1718 = vst.msk [vmem:[#allocation3 + $0x148] sm:$0xf] %vm728, %v1650
        %1719 = vst.msk [vmem:[#allocation3 + $0x154] sm:$0xf] %vm728, %v1652
        %1720 = vst.msk [vmem:[#allocation3 + $0x160] sm:$0xf] %vm728, %v1654
        %1721 = vst.msk [vmem:[#allocation3 + $0x16c] sm:$0xf] %vm728, %v1656
        %1722 = vst.msk [vmem:[#allocation3 + $0x178] sm:$0xf] %vm728, %v1658
        %s1723 = scalar_lea.vmem [#allocation2], 48
        %v1724 = vld [vmem:[%s1723] sm:$0xff]
        %v1725 = vld [vmem:[%s1723 + $0x8] sm:$0xff]
        %v1726 = vld [vmem:[%s1723 + $0x18] sm:$0xff]
        %v1727 = vld [vmem:[%s1723 + $0x20] sm:$0xff]
        %v1728 = vld [vmem:[%s1723 + $0x30] sm:$0xff]
        %v1729 = vld [vmem:[%s1723 + $0x38] sm:$0xff]
        %v1730 = vld [vmem:[%s1723 + $0x48] sm:$0xff]
        %v1731 = vld [vmem:[%s1723 + $0x50] sm:$0xff]
        %v1732 = vld [vmem:[%s1723 + $0x60] sm:$0xff]
        %v1733 = vld [vmem:[%s1723 + $0x68] sm:$0xff]
        %v1734 = vld [vmem:[%s1723 + $0x78] sm:$0xff]
        %v1735 = vld [vmem:[%s1723 + $0x80] sm:$0xff]
        %v1736 = vld [vmem:[%s1723 + $0x90] sm:$0xff]
        %v1737 = vld [vmem:[%s1723 + $0x98] sm:$0xff]
        %v1738 = vld [vmem:[%s1723 + $0xa8] sm:$0xff]
        %v1739 = vld [vmem:[%s1723 + $0xb0] sm:$0xff]
        %v1740 = vld [vmem:[%s1723 + $0xc0] sm:$0xff]
        %v1741 = vld [vmem:[%s1723 + $0xc8] sm:$0xff]
        %v1742 = vld [vmem:[%s1723 + $0xd8] sm:$0xff]
        %v1743 = vld [vmem:[%s1723 + $0xe0] sm:$0xff]
        %v1744 = vld [vmem:[%s1723 + $0xf0] sm:$0xff]
        %v1745 = vld [vmem:[%s1723 + $0xf8] sm:$0xff]
        %v1746 = vld [vmem:[%s1723 + $0x108] sm:$0xff]
        %v1747 = vld [vmem:[%s1723 + $0x110] sm:$0xff]
        %v1748 = vld [vmem:[%s1723 + $0x120] sm:$0xff]
        %v1749 = vld [vmem:[%s1723 + $0x128] sm:$0xff]
        %v1750 = vld [vmem:[%s1723 + $0x138] sm:$0xff]
        %v1751 = vld [vmem:[%s1723 + $0x140] sm:$0xff]
        %v1752 = vld [vmem:[%s1723 + $0x150] sm:$0xff]
        %v1753 = vld [vmem:[%s1723 + $0x158] sm:$0xff]
        %v1754 = vld [vmem:[%s1723 + $0x168] sm:$0xff]
        %v1755 = vld [vmem:[%s1723 + $0x170] sm:$0xff]
        %v1756 = vpack.c.bf16 %v1725, %v1724
        %v1757 = vpack.c.bf16 %v1727, %v1726
        %v1758 = vpack.c.bf16 %v1729, %v1728
        %v1759 = vpack.c.bf16 %v1731, %v1730
        %v1760 = vpack.c.bf16 %v1733, %v1732
        %v1761 = vpack.c.bf16 %v1735, %v1734
        %v1762 = vpack.c.bf16 %v1737, %v1736
        %v1763 = vpack.c.bf16 %v1739, %v1738
        %v1764 = vpack.c.bf16 %v1741, %v1740
        %v1765 = vpack.c.bf16 %v1743, %v1742
        %v1766 = vpack.c.bf16 %v1745, %v1744
        %v1767 = vpack.c.bf16 %v1747, %v1746
        %v1768 = vpack.c.bf16 %v1749, %v1748
        %v1769 = vpack.c.bf16 %v1751, %v1750
        %v1770 = vpack.c.bf16 %v1753, %v1752
        %v1771 = vpack.c.bf16 %v1755, %v1754
        %v1788 = vunpack.c.l.b16 %v1756
        %v1789 = vunpack.c.h.b16 %v1756
        %v1790 = vunpack.c.l.b16 %v1757
        %v1791 = vunpack.c.h.b16 %v1757
        %v1792 = vunpack.c.l.b16 %v1758
        %v1793 = vunpack.c.h.b16 %v1758
        %v1794 = vunpack.c.l.b16 %v1759
        %v1795 = vunpack.c.h.b16 %v1759
        %v1796 = vunpack.c.l.b16 %v1760
        %v1797 = vunpack.c.h.b16 %v1760
        %v1798 = vunpack.c.l.b16 %v1761
        %v1799 = vunpack.c.h.b16 %v1761
        %v1800 = vunpack.c.l.b16 %v1762
        %v1801 = vunpack.c.h.b16 %v1762
        %v1802 = vunpack.c.l.b16 %v1763
        %v1803 = vunpack.c.h.b16 %v1763
        %v1804 = vunpack.c.l.b16 %v1764
        %v1805 = vunpack.c.h.b16 %v1764
        %v1806 = vunpack.c.l.b16 %v1765
        %v1807 = vunpack.c.h.b16 %v1765
        %v1808 = vunpack.c.l.b16 %v1766
        %v1809 = vunpack.c.h.b16 %v1766
        %v1810 = vunpack.c.l.b16 %v1767
        %v1811 = vunpack.c.h.b16 %v1767
        %v1812 = vunpack.c.l.b16 %v1768
        %v1813 = vunpack.c.h.b16 %v1768
        %v1814 = vunpack.c.l.b16 %v1769
        %v1815 = vunpack.c.h.b16 %v1769
        %v1816 = vunpack.c.l.b16 %v1770
        %v1817 = vunpack.c.h.b16 %v1770
        %v1818 = vunpack.c.l.b16 %v1771
        %v1819 = vunpack.c.h.b16 %v1771
        %v1820 = vpack.c.b16 %v1788, %v1788
        %v1821 = vpack.c.b16 %v1789, %v1789
        %v1822 = vpack.c.b16 %v1790, %v1790
        %v1823 = vpack.c.b16 %v1791, %v1791
        %v1824 = vpack.c.b16 %v1792, %v1792
        %v1825 = vpack.c.b16 %v1793, %v1793
        %v1826 = vpack.c.b16 %v1794, %v1794
        %v1827 = vpack.c.b16 %v1795, %v1795
        %v1828 = vpack.c.b16 %v1796, %v1796
        %v1829 = vpack.c.b16 %v1797, %v1797
        %v1830 = vpack.c.b16 %v1798, %v1798
        %v1831 = vpack.c.b16 %v1799, %v1799
        %v1832 = vpack.c.b16 %v1800, %v1800
        %v1833 = vpack.c.b16 %v1801, %v1801
        %v1834 = vpack.c.b16 %v1802, %v1802
        %v1835 = vpack.c.b16 %v1803, %v1803
        %v1836 = vpack.c.b16 %v1804, %v1804
        %v1837 = vpack.c.b16 %v1805, %v1805
        %v1838 = vpack.c.b16 %v1806, %v1806
        %v1839 = vpack.c.b16 %v1807, %v1807
        %v1840 = vpack.c.b16 %v1808, %v1808
        %v1841 = vpack.c.b16 %v1809, %v1809
        %v1842 = vpack.c.b16 %v1810, %v1810
        %v1843 = vpack.c.b16 %v1811, %v1811
        %v1844 = vpack.c.b16 %v1812, %v1812
        %v1845 = vpack.c.b16 %v1813, %v1813
        %v1846 = vpack.c.b16 %v1814, %v1814
        %v1847 = vpack.c.b16 %v1815, %v1815
        %v1848 = vpack.c.b16 %v1816, %v1816
        %v1849 = vpack.c.b16 %v1817, %v1817
        %v1850 = vpack.c.b16 %v1818, %v1818
        %v1851 = vpack.c.b16 %v1819, %v1819
        %1852 = vrot.lane.b32.xlu0 %v1820, 64
        %v1853 = vpop.permute.xlu0 %1852
        %1854 = vrot.lane.b32.xlu0 %v1821, 64
        %v1855 = vpop.permute.xlu0 %1854
        %1856 = vrot.lane.b32.xlu0 %v1822, 64
        %v1857 = vpop.permute.xlu0 %1856
        %1858 = vrot.lane.b32.xlu0 %v1823, 64
        %v1859 = vpop.permute.xlu0 %1858
        %1860 = vrot.lane.b32.xlu0 %v1824, 64
        %v1861 = vpop.permute.xlu0 %1860
        %1862 = vrot.lane.b32.xlu0 %v1825, 64
        %v1863 = vpop.permute.xlu0 %1862
        %1864 = vrot.lane.b32.xlu0 %v1826, 64
        %v1865 = vpop.permute.xlu0 %1864
        %1866 = vrot.lane.b32.xlu0 %v1827, 64
        %v1867 = vpop.permute.xlu0 %1866
        %1868 = vrot.lane.b32.xlu0 %v1828, 64
        %v1869 = vpop.permute.xlu0 %1868
        %1870 = vrot.lane.b32.xlu0 %v1829, 64
        %v1871 = vpop.permute.xlu0 %1870
        %1872 = vrot.lane.b32.xlu0 %v1830, 64
        %v1873 = vpop.permute.xlu0 %1872
        %1874 = vrot.lane.b32.xlu0 %v1831, 64
        %v1875 = vpop.permute.xlu0 %1874
        %1876 = vrot.lane.b32.xlu0 %v1832, 64
        %v1877 = vpop.permute.xlu0 %1876
        %1878 = vrot.lane.b32.xlu0 %v1833, 64
        %v1879 = vpop.permute.xlu0 %1878
        %1880 = vrot.lane.b32.xlu0 %v1834, 64
        %v1881 = vpop.permute.xlu0 %1880
        %1882 = vrot.lane.b32.xlu0 %v1835, 64
        %v1883 = vpop.permute.xlu0 %1882
        %1884 = vrot.lane.b32.xlu0 %v1836, 64
        %v1885 = vpop.permute.xlu0 %1884
        %1886 = vrot.lane.b32.xlu0 %v1837, 64
        %v1887 = vpop.permute.xlu0 %1886
        %1888 = vrot.lane.b32.xlu0 %v1838, 64
        %v1889 = vpop.permute.xlu0 %1888
        %1890 = vrot.lane.b32.xlu0 %v1839, 64
        %v1891 = vpop.permute.xlu0 %1890
        %1892 = vrot.lane.b32.xlu0 %v1840, 64
        %v1893 = vpop.permute.xlu0 %1892
        %1894 = vrot.lane.b32.xlu0 %v1841, 64
        %v1895 = vpop.permute.xlu0 %1894
        %1896 = vrot.lane.b32.xlu0 %v1842, 64
        %v1897 = vpop.permute.xlu0 %1896
        %1898 = vrot.lane.b32.xlu0 %v1843, 64
        %v1899 = vpop.permute.xlu0 %1898
        %1900 = vrot.lane.b32.xlu0 %v1844, 64
        %v1901 = vpop.permute.xlu0 %1900
        %1902 = vrot.lane.b32.xlu0 %v1845, 64
        %v1903 = vpop.permute.xlu0 %1902
        %1904 = vrot.lane.b32.xlu0 %v1846, 64
        %v1905 = vpop.permute.xlu0 %1904
        %1906 = vrot.lane.b32.xlu0 %v1847, 64
        %v1907 = vpop.permute.xlu0 %1906
        %1908 = vrot.lane.b32.xlu0 %v1848, 64
        %v1909 = vpop.permute.xlu0 %1908
        %1910 = vrot.lane.b32.xlu0 %v1849, 64
        %v1911 = vpop.permute.xlu0 %1910
        %1912 = vrot.lane.b32.xlu0 %v1850, 64
        %v1913 = vpop.permute.xlu0 %1912
        %1914 = vrot.lane.b32.xlu0 %v1851, 64
        %v1915 = vpop.permute.xlu0 %1914
        %1948 = vst.msk [vmem:[#allocation3 + $0x4] sm:$0xf] %vm985, %v1853
        %1949 = vst.msk [vmem:[#allocation3 + $0x10] sm:$0xf] %vm985, %v1855
        %1950 = vst.msk [vmem:[#allocation3 + $0x1c] sm:$0xf] %vm985, %v1857
        %1951 = vst.msk [vmem:[#allocation3 + $0x28] sm:$0xf] %vm985, %v1859
        %1952 = vst.msk [vmem:[#allocation3 + $0x34] sm:$0xf] %vm985, %v1861
        %1953 = vst.msk [vmem:[#allocation3 + $0x40] sm:$0xf] %vm985, %v1863
        %1954 = vst.msk [vmem:[#allocation3 + $0x4c] sm:$0xf] %vm985, %v1865
        %1955 = vst.msk [vmem:[#allocation3 + $0x58] sm:$0xf] %vm985, %v1867
        %1956 = vst.msk [vmem:[#allocation3 + $0x64] sm:$0xf] %vm985, %v1869
        %1957 = vst.msk [vmem:[#allocation3 + $0x70] sm:$0xf] %vm985, %v1871
        %1958 = vst.msk [vmem:[#allocation3 + $0x7c] sm:$0xf] %vm985, %v1873
        %1959 = vst.msk [vmem:[#allocation3 + $0x88] sm:$0xf] %vm985, %v1875
        %1960 = vst.msk [vmem:[#allocation3 + $0x94] sm:$0xf] %vm985, %v1877
        %1961 = vst.msk [vmem:[#allocation3 + $0xa0] sm:$0xf] %vm985, %v1879
        %1962 = vst.msk [vmem:[#allocation3 + $0xac] sm:$0xf] %vm985, %v1881
        %1963 = vst.msk [vmem:[#allocation3 + $0xb8] sm:$0xf] %vm985, %v1883
        %1964 = vst.msk [vmem:[#allocation3 + $0xc4] sm:$0xf] %vm985, %v1885
        %1965 = vst.msk [vmem:[#allocation3 + $0xd0] sm:$0xf] %vm985, %v1887
        %1966 = vst.msk [vmem:[#allocation3 + $0xdc] sm:$0xf] %vm985, %v1889
        %1967 = vst.msk [vmem:[#allocation3 + $0xe8] sm:$0xf] %vm985, %v1891
        %1968 = vst.msk [vmem:[#allocation3 + $0xf4] sm:$0xf] %vm985, %v1893
        %1969 = vst.msk [vmem:[#allocation3 + $0x100] sm:$0xf] %vm985, %v1895
        %1970 = vst.msk [vmem:[#allocation3 + $0x10c] sm:$0xf] %vm985, %v1897
        %1971 = vst.msk [vmem:[#allocation3 + $0x118] sm:$0xf] %vm985, %v1899
        %1972 = vst.msk [vmem:[#allocation3 + $0x124] sm:$0xf] %vm985, %v1901
        %1973 = vst.msk [vmem:[#allocation3 + $0x130] sm:$0xf] %vm985, %v1903
        %1974 = vst.msk [vmem:[#allocation3 + $0x13c] sm:$0xf] %vm985, %v1905
        %1975 = vst.msk [vmem:[#allocation3 + $0x148] sm:$0xf] %vm985, %v1907
        %1976 = vst.msk [vmem:[#allocation3 + $0x154] sm:$0xf] %vm985, %v1909
        %1977 = vst.msk [vmem:[#allocation3 + $0x160] sm:$0xf] %vm985, %v1911
        %1978 = vst.msk [vmem:[#allocation3 + $0x16c] sm:$0xf] %vm985, %v1913
        %1979 = vst.msk [vmem:[#allocation3 + $0x178] sm:$0xf] %vm985, %v1915
        %v1980 = vld [vmem:[%s1723 + $0x1] sm:$0xff]
        %v1981 = vld [vmem:[%s1723 + $0x9] sm:$0xff]
        %v1982 = vld [vmem:[%s1723 + $0x19] sm:$0xff]
        %v1983 = vld [vmem:[%s1723 + $0x21] sm:$0xff]
        %v1984 = vld [vmem:[%s1723 + $0x31] sm:$0xff]
        %v1985 = vld [vmem:[%s1723 + $0x39] sm:$0xff]
        %v1986 = vld [vmem:[%s1723 + $0x49] sm:$0xff]
        %v1987 = vld [vmem:[%s1723 + $0x51] sm:$0xff]
        %v1988 = vld [vmem:[%s1723 + $0x61] sm:$0xff]
        %v1989 = vld [vmem:[%s1723 + $0x69] sm:$0xff]
        %v1990 = vld [vmem:[%s1723 + $0x79] sm:$0xff]
        %v1991 = vld [vmem:[%s1723 + $0x81] sm:$0xff]
        %v1992 = vld [vmem:[%s1723 + $0x91] sm:$0xff]
        %v1993 = vld [vmem:[%s1723 + $0x99] sm:$0xff]
        %v1994 = vld [vmem:[%s1723 + $0xa9] sm:$0xff]
        %v1995 = vld [vmem:[%s1723 + $0xb1] sm:$0xff]
        %v1996 = vld [vmem:[%s1723 + $0xc1] sm:$0xff]
        %v1997 = vld [vmem:[%s1723 + $0xc9] sm:$0xff]
        %v1998 = vld [vmem:[%s1723 + $0xd9] sm:$0xff]
        %v1999 = vld [vmem:[%s1723 + $0xe1] sm:$0xff]
        %v2000 = vld [vmem:[%s1723 + $0xf1] sm:$0xff]
        %v2001 = vld [vmem:[%s1723 + $0xf9] sm:$0xff]
        %v2002 = vld [vmem:[%s1723 + $0x109] sm:$0xff]
        %v2003 = vld [vmem:[%s1723 + $0x111] sm:$0xff]
        %v2004 = vld [vmem:[%s1723 + $0x121] sm:$0xff]
        %v2005 = vld [vmem:[%s1723 + $0x129] sm:$0xff]
        %v2006 = vld [vmem:[%s1723 + $0x139] sm:$0xff]
        %v2007 = vld [vmem:[%s1723 + $0x141] sm:$0xff]
        %v2008 = vld [vmem:[%s1723 + $0x151] sm:$0xff]
        %v2009 = vld [vmem:[%s1723 + $0x159] sm:$0xff]
        %v2010 = vld [vmem:[%s1723 + $0x169] sm:$0xff]
        %v2011 = vld [vmem:[%s1723 + $0x171] sm:$0xff]
        %v2012 = vpack.c.bf16 %v1981, %v1980
        %v2013 = vpack.c.bf16 %v1983, %v1982
        %v2014 = vpack.c.bf16 %v1985, %v1984
        %v2015 = vpack.c.bf16 %v1987, %v1986
        %v2016 = vpack.c.bf16 %v1989, %v1988
        %v2017 = vpack.c.bf16 %v1991, %v1990
        %v2018 = vpack.c.bf16 %v1993, %v1992
        %v2019 = vpack.c.bf16 %v1995, %v1994
        %v2020 = vpack.c.bf16 %v1997, %v1996
        %v2021 = vpack.c.bf16 %v1999, %v1998
        %v2022 = vpack.c.bf16 %v2001, %v2000
        %v2023 = vpack.c.bf16 %v2003, %v2002
        %v2024 = vpack.c.bf16 %v2005, %v2004
        %v2025 = vpack.c.bf16 %v2007, %v2006
        %v2026 = vpack.c.bf16 %v2009, %v2008
        %v2027 = vpack.c.bf16 %v2011, %v2010
        %v2044 = vunpack.c.l.b16 %v2012
        %v2045 = vunpack.c.h.b16 %v2012
        %v2046 = vunpack.c.l.b16 %v2013
        %v2047 = vunpack.c.h.b16 %v2013
        %v2048 = vunpack.c.l.b16 %v2014
        %v2049 = vunpack.c.h.b16 %v2014
        %v2050 = vunpack.c.l.b16 %v2015
        %v2051 = vunpack.c.h.b16 %v2015
        %v2052 = vunpack.c.l.b16 %v2016
        %v2053 = vunpack.c.h.b16 %v2016
        %v2054 = vunpack.c.l.b16 %v2017
        %v2055 = vunpack.c.h.b16 %v2017
        %v2056 = vunpack.c.l.b16 %v2018
        %v2057 = vunpack.c.h.b16 %v2018
        %v2058 = vunpack.c.l.b16 %v2019
        %v2059 = vunpack.c.h.b16 %v2019
        %v2060 = vunpack.c.l.b16 %v2020
        %v2061 = vunpack.c.h.b16 %v2020
        %v2062 = vunpack.c.l.b16 %v2021
        %v2063 = vunpack.c.h.b16 %v2021
        %v2064 = vunpack.c.l.b16 %v2022
        %v2065 = vunpack.c.h.b16 %v2022
        %v2066 = vunpack.c.l.b16 %v2023
        %v2067 = vunpack.c.h.b16 %v2023
        %v2068 = vunpack.c.l.b16 %v2024
        %v2069 = vunpack.c.h.b16 %v2024
        %v2070 = vunpack.c.l.b16 %v2025
        %v2071 = vunpack.c.h.b16 %v2025
        %v2072 = vunpack.c.l.b16 %v2026
        %v2073 = vunpack.c.h.b16 %v2026
        %v2074 = vunpack.c.l.b16 %v2027
        %v2075 = vunpack.c.h.b16 %v2027
        %v2076 = vpack.c.b16 %v2044, %v2044
        %v2077 = vpack.c.b16 %v2045, %v2045
        %v2078 = vpack.c.b16 %v2046, %v2046
        %v2079 = vpack.c.b16 %v2047, %v2047
        %v2080 = vpack.c.b16 %v2048, %v2048
        %v2081 = vpack.c.b16 %v2049, %v2049
        %v2082 = vpack.c.b16 %v2050, %v2050
        %v2083 = vpack.c.b16 %v2051, %v2051
        %v2084 = vpack.c.b16 %v2052, %v2052
        %v2085 = vpack.c.b16 %v2053, %v2053
        %v2086 = vpack.c.b16 %v2054, %v2054
        %v2087 = vpack.c.b16 %v2055, %v2055
        %v2088 = vpack.c.b16 %v2056, %v2056
        %v2089 = vpack.c.b16 %v2057, %v2057
        %v2090 = vpack.c.b16 %v2058, %v2058
        %v2091 = vpack.c.b16 %v2059, %v2059
        %v2092 = vpack.c.b16 %v2060, %v2060
        %v2093 = vpack.c.b16 %v2061, %v2061
        %v2094 = vpack.c.b16 %v2062, %v2062
        %v2095 = vpack.c.b16 %v2063, %v2063
        %v2096 = vpack.c.b16 %v2064, %v2064
        %v2097 = vpack.c.b16 %v2065, %v2065
        %v2098 = vpack.c.b16 %v2066, %v2066
        %v2099 = vpack.c.b16 %v2067, %v2067
        %v2100 = vpack.c.b16 %v2068, %v2068
        %v2101 = vpack.c.b16 %v2069, %v2069
        %v2102 = vpack.c.b16 %v2070, %v2070
        %v2103 = vpack.c.b16 %v2071, %v2071
        %v2104 = vpack.c.b16 %v2072, %v2072
        %v2105 = vpack.c.b16 %v2073, %v2073
        %v2106 = vpack.c.b16 %v2074, %v2074
        %v2107 = vpack.c.b16 %v2075, %v2075
        %2108 = vrot.lane.b32.xlu0 %v2076, 96
        %v2109 = vpop.permute.xlu0 %2108
        %2110 = vrot.lane.b32.xlu0 %v2077, 96
        %v2111 = vpop.permute.xlu0 %2110
        %2112 = vrot.lane.b32.xlu0 %v2078, 96
        %v2113 = vpop.permute.xlu0 %2112
        %2114 = vrot.lane.b32.xlu0 %v2079, 96
        %v2115 = vpop.permute.xlu0 %2114
        %2116 = vrot.lane.b32.xlu0 %v2080, 96
        %v2117 = vpop.permute.xlu0 %2116
        %2118 = vrot.lane.b32.xlu0 %v2081, 96
        %v2119 = vpop.permute.xlu0 %2118
        %2120 = vrot.lane.b32.xlu0 %v2082, 96
        %v2121 = vpop.permute.xlu0 %2120
        %2122 = vrot.lane.b32.xlu0 %v2083, 96
        %v2123 = vpop.permute.xlu0 %2122
        %2124 = vrot.lane.b32.xlu0 %v2084, 96
        %v2125 = vpop.permute.xlu0 %2124
        %2126 = vrot.lane.b32.xlu0 %v2085, 96
        %v2127 = vpop.permute.xlu0 %2126
        %2128 = vrot.lane.b32.xlu0 %v2086, 96
        %v2129 = vpop.permute.xlu0 %2128
        %2130 = vrot.lane.b32.xlu0 %v2087, 96
        %v2131 = vpop.permute.xlu0 %2130
        %2132 = vrot.lane.b32.xlu0 %v2088, 96
        %v2133 = vpop.permute.xlu0 %2132
        %2134 = vrot.lane.b32.xlu0 %v2089, 96
        %v2135 = vpop.permute.xlu0 %2134
        %2136 = vrot.lane.b32.xlu0 %v2090, 96
        %v2137 = vpop.permute.xlu0 %2136
        %2138 = vrot.lane.b32.xlu0 %v2091, 96
        %v2139 = vpop.permute.xlu0 %2138
        %2140 = vrot.lane.b32.xlu0 %v2092, 96
        %v2141 = vpop.permute.xlu0 %2140
        %2142 = vrot.lane.b32.xlu0 %v2093, 96
        %v2143 = vpop.permute.xlu0 %2142
        %2144 = vrot.lane.b32.xlu0 %v2094, 96
        %v2145 = vpop.permute.xlu0 %2144
        %2146 = vrot.lane.b32.xlu0 %v2095, 96
        %v2147 = vpop.permute.xlu0 %2146
        %2148 = vrot.lane.b32.xlu0 %v2096, 96
        %v2149 = vpop.permute.xlu0 %2148
        %2150 = vrot.lane.b32.xlu0 %v2097, 96
        %v2151 = vpop.permute.xlu0 %2150
        %2152 = vrot.lane.b32.xlu0 %v2098, 96
        %v2153 = vpop.permute.xlu0 %2152
        %2154 = vrot.lane.b32.xlu0 %v2099, 96
        %v2155 = vpop.permute.xlu0 %2154
        %2156 = vrot.lane.b32.xlu0 %v2100, 96
        %v2157 = vpop.permute.xlu0 %2156
        %2158 = vrot.lane.b32.xlu0 %v2101, 96
        %v2159 = vpop.permute.xlu0 %2158
        %2160 = vrot.lane.b32.xlu0 %v2102, 96
        %v2161 = vpop.permute.xlu0 %2160
        %2162 = vrot.lane.b32.xlu0 %v2103, 96
        %v2163 = vpop.permute.xlu0 %2162
        %2164 = vrot.lane.b32.xlu0 %v2104, 96
        %v2165 = vpop.permute.xlu0 %2164
        %2166 = vrot.lane.b32.xlu0 %v2105, 96
        %v2167 = vpop.permute.xlu0 %2166
        %2168 = vrot.lane.b32.xlu0 %v2106, 96
        %v2169 = vpop.permute.xlu0 %2168
        %2170 = vrot.lane.b32.xlu0 %v2107, 96
        %v2171 = vpop.permute.xlu0 %2170
        %2204 = vst.msk [vmem:[#allocation3 + $0x4] sm:$0xf] %vm1242, %v2109
        %2205 = vst.msk [vmem:[#allocation3 + $0x10] sm:$0xf] %vm1242, %v2111
        %2206 = vst.msk [vmem:[#allocation3 + $0x1c] sm:$0xf] %vm1242, %v2113
        %2207 = vst.msk [vmem:[#allocation3 + $0x28] sm:$0xf] %vm1242, %v2115
        %2208 = vst.msk [vmem:[#allocation3 + $0x34] sm:$0xf] %vm1242, %v2117
        %2209 = vst.msk [vmem:[#allocation3 + $0x40] sm:$0xf] %vm1242, %v2119
        %2210 = vst.msk [vmem:[#allocation3 + $0x4c] sm:$0xf] %vm1242, %v2121
        %2211 = vst.msk [vmem:[#allocation3 + $0x58] sm:$0xf] %vm1242, %v2123
        %2212 = vst.msk [vmem:[#allocation3 + $0x64] sm:$0xf] %vm1242, %v2125
        %2213 = vst.msk [vmem:[#allocation3 + $0x70] sm:$0xf] %vm1242, %v2127
        %2214 = vst.msk [vmem:[#allocation3 + $0x7c] sm:$0xf] %vm1242, %v2129
        %2215 = vst.msk [vmem:[#allocation3 + $0x88] sm:$0xf] %vm1242, %v2131
        %2216 = vst.msk [vmem:[#allocation3 + $0x94] sm:$0xf] %vm1242, %v2133
        %2217 = vst.msk [vmem:[#allocation3 + $0xa0] sm:$0xf] %vm1242, %v2135
        %2218 = vst.msk [vmem:[#allocation3 + $0xac] sm:$0xf] %vm1242, %v2137
        %2219 = vst.msk [vmem:[#allocation3 + $0xb8] sm:$0xf] %vm1242, %v2139
        %2220 = vst.msk [vmem:[#allocation3 + $0xc4] sm:$0xf] %vm1242, %v2141
        %2221 = vst.msk [vmem:[#allocation3 + $0xd0] sm:$0xf] %vm1242, %v2143
        %2222 = vst.msk [vmem:[#allocation3 + $0xdc] sm:$0xf] %vm1242, %v2145
        %2223 = vst.msk [vmem:[#allocation3 + $0xe8] sm:$0xf] %vm1242, %v2147
        %2224 = vst.msk [vmem:[#allocation3 + $0xf4] sm:$0xf] %vm1242, %v2149
        %2225 = vst.msk [vmem:[#allocation3 + $0x100] sm:$0xf] %vm1242, %v2151
        %2226 = vst.msk [vmem:[#allocation3 + $0x10c] sm:$0xf] %vm1242, %v2153
        %2227 = vst.msk [vmem:[#allocation3 + $0x118] sm:$0xf] %vm1242, %v2155
        %2228 = vst.msk [vmem:[#allocation3 + $0x124] sm:$0xf] %vm1242, %v2157
        %2229 = vst.msk [vmem:[#allocation3 + $0x130] sm:$0xf] %vm1242, %v2159
        %2230 = vst.msk [vmem:[#allocation3 + $0x13c] sm:$0xf] %vm1242, %v2161
        %2231 = vst.msk [vmem:[#allocation3 + $0x148] sm:$0xf] %vm1242, %v2163
        %2232 = vst.msk [vmem:[#allocation3 + $0x154] sm:$0xf] %vm1242, %v2165
        %2233 = vst.msk [vmem:[#allocation3 + $0x160] sm:$0xf] %vm1242, %v2167
        %2234 = vst.msk [vmem:[#allocation3 + $0x16c] sm:$0xf] %vm1242, %v2169
        %2235 = vst.msk [vmem:[#allocation3 + $0x178] sm:$0xf] %vm1242, %v2171
        %v2236 = vld [vmem:[%s1723 + $0x2] sm:$0xff]
        %v2237 = vld [vmem:[%s1723 + $0xa] sm:$0xff]
        %v2238 = vld [vmem:[%s1723 + $0x1a] sm:$0xff]
        %v2239 = vld [vmem:[%s1723 + $0x22] sm:$0xff]
        %v2240 = vld [vmem:[%s1723 + $0x32] sm:$0xff]
        %v2241 = vld [vmem:[%s1723 + $0x3a] sm:$0xff]
        %v2242 = vld [vmem:[%s1723 + $0x4a] sm:$0xff]
        %v2243 = vld [vmem:[%s1723 + $0x52] sm:$0xff]
        %v2244 = vld [vmem:[%s1723 + $0x62] sm:$0xff]
        %v2245 = vld [vmem:[%s1723 + $0x6a] sm:$0xff]
        %v2246 = vld [vmem:[%s1723 + $0x7a] sm:$0xff]
        %v2247 = vld [vmem:[%s1723 + $0x82] sm:$0xff]
        %v2248 = vld [vmem:[%s1723 + $0x92] sm:$0xff]
        %v2249 = vld [vmem:[%s1723 + $0x9a] sm:$0xff]
        %v2250 = vld [vmem:[%s1723 + $0xaa] sm:$0xff]
        %v2251 = vld [vmem:[%s1723 + $0xb2] sm:$0xff]
        %v2252 = vld [vmem:[%s1723 + $0xc2] sm:$0xff]
        %v2253 = vld [vmem:[%s1723 + $0xca] sm:$0xff]
        %v2254 = vld [vmem:[%s1723 + $0xda] sm:$0xff]
        %v2255 = vld [vmem:[%s1723 + $0xe2] sm:$0xff]
        %v2256 = vld [vmem:[%s1723 + $0xf2] sm:$0xff]
        %v2257 = vld [vmem:[%s1723 + $0xfa] sm:$0xff]
        %v2258 = vld [vmem:[%s1723 + $0x10a] sm:$0xff]
        %v2259 = vld [vmem:[%s1723 + $0x112] sm:$0xff]
        %v2260 = vld [vmem:[%s1723 + $0x122] sm:$0xff]
        %v2261 = vld [vmem:[%s1723 + $0x12a] sm:$0xff]
        %v2262 = vld [vmem:[%s1723 + $0x13a] sm:$0xff]
        %v2263 = vld [vmem:[%s1723 + $0x142] sm:$0xff]
        %v2264 = vld [vmem:[%s1723 + $0x152] sm:$0xff]
        %v2265 = vld [vmem:[%s1723 + $0x15a] sm:$0xff]
        %v2266 = vld [vmem:[%s1723 + $0x16a] sm:$0xff]
        %v2267 = vld [vmem:[%s1723 + $0x172] sm:$0xff]
        %v2268 = vpack.c.bf16 %v2237, %v2236
        %v2269 = vpack.c.bf16 %v2239, %v2238
        %v2270 = vpack.c.bf16 %v2241, %v2240
        %v2271 = vpack.c.bf16 %v2243, %v2242
        %v2272 = vpack.c.bf16 %v2245, %v2244
        %v2273 = vpack.c.bf16 %v2247, %v2246
        %v2274 = vpack.c.bf16 %v2249, %v2248
        %v2275 = vpack.c.bf16 %v2251, %v2250
        %v2276 = vpack.c.bf16 %v2253, %v2252
        %v2277 = vpack.c.bf16 %v2255, %v2254
        %v2278 = vpack.c.bf16 %v2257, %v2256
        %v2279 = vpack.c.bf16 %v2259, %v2258
        %v2280 = vpack.c.bf16 %v2261, %v2260
        %v2281 = vpack.c.bf16 %v2263, %v2262
        %v2282 = vpack.c.bf16 %v2265, %v2264
        %v2283 = vpack.c.bf16 %v2267, %v2266
        %v2300 = vunpack.c.l.b16 %v2268
        %v2301 = vunpack.c.h.b16 %v2268
        %v2302 = vunpack.c.l.b16 %v2269
        %v2303 = vunpack.c.h.b16 %v2269
        %v2304 = vunpack.c.l.b16 %v2270
        %v2305 = vunpack.c.h.b16 %v2270
        %v2306 = vunpack.c.l.b16 %v2271
        %v2307 = vunpack.c.h.b16 %v2271
        %v2308 = vunpack.c.l.b16 %v2272
        %v2309 = vunpack.c.h.b16 %v2272
        %v2310 = vunpack.c.l.b16 %v2273
        %v2311 = vunpack.c.h.b16 %v2273
        %v2312 = vunpack.c.l.b16 %v2274
        %v2313 = vunpack.c.h.b16 %v2274
        %v2314 = vunpack.c.l.b16 %v2275
        %v2315 = vunpack.c.h.b16 %v2275
        %v2316 = vunpack.c.l.b16 %v2276
        %v2317 = vunpack.c.h.b16 %v2276
        %v2318 = vunpack.c.l.b16 %v2277
        %v2319 = vunpack.c.h.b16 %v2277
        %v2320 = vunpack.c.l.b16 %v2278
        %v2321 = vunpack.c.h.b16 %v2278
        %v2322 = vunpack.c.l.b16 %v2279
        %v2323 = vunpack.c.h.b16 %v2279
        %v2324 = vunpack.c.l.b16 %v2280
        %v2325 = vunpack.c.h.b16 %v2280
        %v2326 = vunpack.c.l.b16 %v2281
        %v2327 = vunpack.c.h.b16 %v2281
        %v2328 = vunpack.c.l.b16 %v2282
        %v2329 = vunpack.c.h.b16 %v2282
        %v2330 = vunpack.c.l.b16 %v2283
        %v2331 = vunpack.c.h.b16 %v2283
        %v2332 = vpack.c.b16 %v2300, %v2300
        %v2333 = vpack.c.b16 %v2301, %v2301
        %v2334 = vpack.c.b16 %v2302, %v2302
        %v2335 = vpack.c.b16 %v2303, %v2303
        %v2336 = vpack.c.b16 %v2304, %v2304
        %v2337 = vpack.c.b16 %v2305, %v2305
        %v2338 = vpack.c.b16 %v2306, %v2306
        %v2339 = vpack.c.b16 %v2307, %v2307
        %v2340 = vpack.c.b16 %v2308, %v2308
        %v2341 = vpack.c.b16 %v2309, %v2309
        %v2342 = vpack.c.b16 %v2310, %v2310
        %v2343 = vpack.c.b16 %v2311, %v2311
        %v2344 = vpack.c.b16 %v2312, %v2312
        %v2345 = vpack.c.b16 %v2313, %v2313
        %v2346 = vpack.c.b16 %v2314, %v2314
        %v2347 = vpack.c.b16 %v2315, %v2315
        %v2348 = vpack.c.b16 %v2316, %v2316
        %v2349 = vpack.c.b16 %v2317, %v2317
        %v2350 = vpack.c.b16 %v2318, %v2318
        %v2351 = vpack.c.b16 %v2319, %v2319
        %v2352 = vpack.c.b16 %v2320, %v2320
        %v2353 = vpack.c.b16 %v2321, %v2321
        %v2354 = vpack.c.b16 %v2322, %v2322
        %v2355 = vpack.c.b16 %v2323, %v2323
        %v2356 = vpack.c.b16 %v2324, %v2324
        %v2357 = vpack.c.b16 %v2325, %v2325
        %v2358 = vpack.c.b16 %v2326, %v2326
        %v2359 = vpack.c.b16 %v2327, %v2327
        %v2360 = vpack.c.b16 %v2328, %v2328
        %v2361 = vpack.c.b16 %v2329, %v2329
        %v2362 = vpack.c.b16 %v2330, %v2330
        %v2363 = vpack.c.b16 %v2331, %v2331
        %2396 = vst.msk [vmem:[#allocation3 + $0x8] sm:$0xf] %vm471, %v2332
        %2397 = vst.msk [vmem:[#allocation3 + $0x14] sm:$0xf] %vm471, %v2333
        %2398 = vst.msk [vmem:[#allocation3 + $0x20] sm:$0xf] %vm471, %v2334
        %2399 = vst.msk [vmem:[#allocation3 + $0x2c] sm:$0xf] %vm471, %v2335
        %2400 = vst.msk [vmem:[#allocation3 + $0x38] sm:$0xf] %vm471, %v2336
        %2401 = vst.msk [vmem:[#allocation3 + $0x44] sm:$0xf] %vm471, %v2337
        %2402 = vst.msk [vmem:[#allocation3 + $0x50] sm:$0xf] %vm471, %v2338
        %2403 = vst.msk [vmem:[#allocation3 + $0x5c] sm:$0xf] %vm471, %v2339
        %2404 = vst.msk [vmem:[#allocation3 + $0x68] sm:$0xf] %vm471, %v2340
        %2405 = vst.msk [vmem:[#allocation3 + $0x74] sm:$0xf] %vm471, %v2341
        %2406 = vst.msk [vmem:[#allocation3 + $0x80] sm:$0xf] %vm471, %v2342
        %2407 = vst.msk [vmem:[#allocation3 + $0x8c] sm:$0xf] %vm471, %v2343
        %2408 = vst.msk [vmem:[#allocation3 + $0x98] sm:$0xf] %vm471, %v2344
        %2409 = vst.msk [vmem:[#allocation3 + $0xa4] sm:$0xf] %vm471, %v2345
        %2410 = vst.msk [vmem:[#allocation3 + $0xb0] sm:$0xf] %vm471, %v2346
        %2411 = vst.msk [vmem:[#allocation3 + $0xbc] sm:$0xf] %vm471, %v2347
        %2412 = vst.msk [vmem:[#allocation3 + $0xc8] sm:$0xf] %vm471, %v2348
        %2413 = vst.msk [vmem:[#allocation3 + $0xd4] sm:$0xf] %vm471, %v2349
        %2414 = vst.msk [vmem:[#allocation3 + $0xe0] sm:$0xf] %vm471, %v2350
        %2415 = vst.msk [vmem:[#allocation3 + $0xec] sm:$0xf] %vm471, %v2351
        %2416 = vst.msk [vmem:[#allocation3 + $0xf8] sm:$0xf] %vm471, %v2352
        %2417 = vst.msk [vmem:[#allocation3 + $0x104] sm:$0xf] %vm471, %v2353
        %2418 = vst.msk [vmem:[#allocation3 + $0x110] sm:$0xf] %vm471, %v2354
        %2419 = vst.msk [vmem:[#allocation3 + $0x11c] sm:$0xf] %vm471, %v2355
        %2420 = vst.msk [vmem:[#allocation3 + $0x128] sm:$0xf] %vm471, %v2356
        %2421 = vst.msk [vmem:[#allocation3 + $0x134] sm:$0xf] %vm471, %v2357
        %2422 = vst.msk [vmem:[#allocation3 + $0x140] sm:$0xf] %vm471, %v2358
        %2423 = vst.msk [vmem:[#allocation3 + $0x14c] sm:$0xf] %vm471, %v2359
        %2424 = vst.msk [vmem:[#allocation3 + $0x158] sm:$0xf] %vm471, %v2360
        %2425 = vst.msk [vmem:[#allocation3 + $0x164] sm:$0xf] %vm471, %v2361
        %2426 = vst.msk [vmem:[#allocation3 + $0x170] sm:$0xf] %vm471, %v2362
        %2427 = vst.msk [vmem:[#allocation3 + $0x17c] sm:$0xf] %vm471, %v2363
        %v2428 = vld [vmem:[#allocation3] sm:$0xff]
        %v2429 = vld [vmem:[#allocation3 + $0x8] sm:$0xf]
        %v2430 = vld [vmem:[#allocation3 + $0xc] sm:$0xff]
        %v2431 = vld [vmem:[#allocation3 + $0x14] sm:$0xf]
        %v2432 = vld [vmem:[#allocation3 + $0x18] sm:$0xff]
        %v2433 = vld [vmem:[#allocation3 + $0x20] sm:$0xf]
        %v2434 = vld [vmem:[#allocation3 + $0x24] sm:$0xff]
        %v2435 = vld [vmem:[#allocation3 + $0x2c] sm:$0xf]
        %v2436 = vld [vmem:[#allocation3 + $0x30] sm:$0xff]
        %v2437 = vld [vmem:[#allocation3 + $0x38] sm:$0xf]
        %v2438 = vld [vmem:[#allocation3 + $0x3c] sm:$0xff]
        %v2439 = vld [vmem:[#allocation3 + $0x44] sm:$0xf]
        %v2440 = vld [vmem:[#allocation3 + $0x48] sm:$0xff]
        %v2441 = vld [vmem:[#allocation3 + $0x50] sm:$0xf]
        %v2442 = vld [vmem:[#allocation3 + $0x54] sm:$0xff]
        %v2443 = vld [vmem:[#allocation3 + $0x5c] sm:$0xf]
        %v2444 = vld [vmem:[#allocation3 + $0x60] sm:$0xff]
        %v2445 = vld [vmem:[#allocation3 + $0x68] sm:$0xf]
        %v2446 = vld [vmem:[#allocation3 + $0x6c] sm:$0xff]
        %v2447 = vld [vmem:[#allocation3 + $0x74] sm:$0xf]
        %v2448 = vld [vmem:[#allocation3 + $0x78] sm:$0xff]
        %v2449 = vld [vmem:[#allocation3 + $0x80] sm:$0xf]
        %v2450 = vld [vmem:[#allocation3 + $0x84] sm:$0xff]
        %v2451 = vld [vmem:[#allocation3 + $0x8c] sm:$0xf]
        %v2452 = vld [vmem:[#allocation3 + $0x90] sm:$0xff]
        %v2453 = vld [vmem:[#allocation3 + $0x98] sm:$0xf]
        %v2454 = vld [vmem:[#allocation3 + $0x9c] sm:$0xff]
        %v2455 = vld [vmem:[#allocation3 + $0xa4] sm:$0xf]
        %v2456 = vld [vmem:[#allocation3 + $0xa8] sm:$0xff]
        %v2457 = vld [vmem:[#allocation3 + $0xb0] sm:$0xf]
        %v2458 = vld [vmem:[#allocation3 + $0xb4] sm:$0xff]
        %v2459 = vld [vmem:[#allocation3 + $0xbc] sm:$0xf]
        %v2460 = vld [vmem:[#allocation3 + $0xc0] sm:$0xff]
        %v2461 = vld [vmem:[#allocation3 + $0xc8] sm:$0xf]
        %v2462 = vld [vmem:[#allocation3 + $0xcc] sm:$0xff]
        %v2463 = vld [vmem:[#allocation3 + $0xd4] sm:$0xf]
        %v2464 = vld [vmem:[#allocation3 + $0xd8] sm:$0xff]
        %v2465 = vld [vmem:[#allocation3 + $0xe0] sm:$0xf]
        %v2466 = vld [vmem:[#allocation3 + $0xe4] sm:$0xff]
        %v2467 = vld [vmem:[#allocation3 + $0xec] sm:$0xf]
        %v2468 = vld [vmem:[#allocation3 + $0xf0] sm:$0xff]
        %v2469 = vld [vmem:[#allocation3 + $0xf8] sm:$0xf]
        %v2470 = vld [vmem:[#allocation3 + $0xfc] sm:$0xff]
        %v2471 = vld [vmem:[#allocation3 + $0x104] sm:$0xf]
        %v2472 = vld [vmem:[#allocation3 + $0x108] sm:$0xff]
        %v2473 = vld [vmem:[#allocation3 + $0x110] sm:$0xf]
        %v2474 = vld [vmem:[#allocation3 + $0x114] sm:$0xff]
        %v2475 = vld [vmem:[#allocation3 + $0x11c] sm:$0xf]
        %v2476 = vld [vmem:[#allocation3 + $0x120] sm:$0xff]
        %v2477 = vld [vmem:[#allocation3 + $0x128] sm:$0xf]
        %v2478 = vld [vmem:[#allocation3 + $0x12c] sm:$0xff]
        %v2479 = vld [vmem:[#allocation3 + $0x134] sm:$0xf]
        %v2480 = vld [vmem:[#allocation3 + $0x138] sm:$0xff]
        %v2481 = vld [vmem:[#allocation3 + $0x140] sm:$0xf]
        %v2482 = vld [vmem:[#allocation3 + $0x144] sm:$0xff]
        %v2483 = vld [vmem:[#allocation3 + $0x14c] sm:$0xf]
        %v2484 = vld [vmem:[#allocation3 + $0x150] sm:$0xff]
        %v2485 = vld [vmem:[#allocation3 + $0x158] sm:$0xf]
        %v2486 = vld [vmem:[#allocation3 + $0x15c] sm:$0xff]
        %v2487 = vld [vmem:[#allocation3 + $0x164] sm:$0xf]
        %v2488 = vld [vmem:[#allocation3 + $0x168] sm:$0xff]
        %v2489 = vld [vmem:[#allocation3 + $0x170] sm:$0xf]
        %v2490 = vld [vmem:[#allocation3 + $0x174] sm:$0xff]
        %v2491 = vld [vmem:[#allocation3 + $0x17c] sm:$0xf]
        %v2492 = vld [vmem:[%s1] sm:$0xf]
        %v2493 = vld [vmem:[%s1 + $0x4] sm:$0xf]
        %v2494 = vld [vmem:[%s1 + $0x8] sm:$0xf]
        %v2495 = vld [vmem:[%s1 + $0xc] sm:$0xf]
        %v2496 = vld [vmem:[%s1 + $0x10] sm:$0xf]
        %v2497 = vld [vmem:[%s1 + $0x14] sm:$0xf]
        %v2498 = vld [vmem:[%s1 + $0x18] sm:$0xf]
        %v2499 = vld [vmem:[%s1 + $0x1c] sm:$0xf]
        %v2500 = vld [vmem:[%s1 + $0x20] sm:$0xf]
        %v2501 = vld [vmem:[%s1 + $0x24] sm:$0xf]
        %v2502 = vld [vmem:[%s1 + $0x28] sm:$0xf]
        %v2503 = vld [vmem:[%s1 + $0x2c] sm:$0xf]
        %v2504 = vld [vmem:[%s1 + $0x30] sm:$0xf]
        %v2505 = vld [vmem:[%s1 + $0x34] sm:$0xf]
        %v2506 = vld [vmem:[%s1 + $0x38] sm:$0xf]
        %v2507 = vld [vmem:[%s1 + $0x3c] sm:$0xf]
        %v2508 = vld [vmem:[%s1 + $0x40] sm:$0xf]
        %v2509 = vld [vmem:[%s1 + $0x44] sm:$0xf]
        %v2510 = vld [vmem:[%s1 + $0x48] sm:$0xf]
        %v2511 = vld [vmem:[%s1 + $0x4c] sm:$0xf]
        %v2512 = vld [vmem:[%s1 + $0x50] sm:$0xf]
        %v2513 = vld [vmem:[%s1 + $0x54] sm:$0xf]
        %v2514 = vld [vmem:[%s1 + $0x58] sm:$0xf]
        %v2515 = vld [vmem:[%s1 + $0x5c] sm:$0xf]
        %v2516 = vld [vmem:[%s1 + $0x60] sm:$0xf]
        %v2517 = vld [vmem:[%s1 + $0x64] sm:$0xf]
        %v2518 = vld [vmem:[%s1 + $0x68] sm:$0xf]
        %v2519 = vld [vmem:[%s1 + $0x6c] sm:$0xf]
        %v2520 = vld [vmem:[%s1 + $0x70] sm:$0xf]
        %v2521 = vld [vmem:[%s1 + $0x74] sm:$0xf]
        %v2522 = vld [vmem:[%s1 + $0x78] sm:$0xf]
        %v2523 = vld [vmem:[%s1 + $0x7c] sm:$0xf]
        %v2524 = vld [vmem:[%s1 + $0x80] sm:$0xf]
        %v2525 = vld [vmem:[%s1 + $0x84] sm:$0xf]
        %v2526 = vld [vmem:[%s1 + $0x88] sm:$0xf]
        %v2527 = vld [vmem:[%s1 + $0x8c] sm:$0xf]
        %v2528 = vld [vmem:[%s2] sm:$0x7]
        %v2529 = vlaneseq
        %v2530 = vshrl.u32 %v2529, 7
        %v2531 = vsub.s32 0, %v2530
        %v2532 = vrot.slane %v2528, %v2531
        %v2597 = vunpack.c.l.b16 %v2428
        %v2598 = vunpack.c.h.b16 %v2428
        %v2599 = vunpack.c.l.b16 %v2429
        %v2600 = vunpack.c.l.b16 %v2430
        %v2601 = vunpack.c.h.b16 %v2430
        %v2602 = vunpack.c.l.b16 %v2431
        %v2603 = vunpack.c.l.b16 %v2432
        %v2604 = vunpack.c.h.b16 %v2432
        %v2605 = vunpack.c.l.b16 %v2433
        %v2606 = vunpack.c.l.b16 %v2434
        %v2607 = vunpack.c.h.b16 %v2434
        %v2608 = vunpack.c.l.b16 %v2435
        %v2609 = vunpack.c.l.b16 %v2436
        %v2610 = vunpack.c.h.b16 %v2436
        %v2611 = vunpack.c.l.b16 %v2437
        %v2612 = vunpack.c.l.b16 %v2438
        %v2613 = vunpack.c.h.b16 %v2438
        %v2614 = vunpack.c.l.b16 %v2439
        %v2615 = vunpack.c.l.b16 %v2440
        %v2616 = vunpack.c.h.b16 %v2440
        %v2617 = vunpack.c.l.b16 %v2441
        %v2618 = vunpack.c.l.b16 %v2442
        %v2619 = vunpack.c.h.b16 %v2442
        %v2620 = vunpack.c.l.b16 %v2443
        %v2621 = vunpack.c.l.b16 %v2444
        %v2622 = vunpack.c.h.b16 %v2444
        %v2623 = vunpack.c.l.b16 %v2445
        %v2624 = vunpack.c.l.b16 %v2446
        %v2625 = vunpack.c.h.b16 %v2446
        %v2626 = vunpack.c.l.b16 %v2447
        %v2627 = vunpack.c.l.b16 %v2448
        %v2628 = vunpack.c.h.b16 %v2448
        %v2629 = vunpack.c.l.b16 %v2449
        %v2630 = vunpack.c.l.b16 %v2450
        %v2631 = vunpack.c.h.b16 %v2450
        %v2632 = vunpack.c.l.b16 %v2451
        %v2633 = vunpack.c.l.b16 %v2452
        %v2634 = vunpack.c.h.b16 %v2452
        %v2635 = vunpack.c.l.b16 %v2453
        %v2636 = vunpack.c.l.b16 %v2454
        %v2637 = vunpack.c.h.b16 %v2454
        %v2638 = vunpack.c.l.b16 %v2455
        %v2639 = vunpack.c.l.b16 %v2456
        %v2640 = vunpack.c.h.b16 %v2456
        %v2641 = vunpack.c.l.b16 %v2457
        %v2642 = vunpack.c.l.b16 %v2458
        %v2643 = vunpack.c.h.b16 %v2458
        %v2644 = vunpack.c.l.b16 %v2459
        %v2645 = vunpack.c.l.b16 %v2460
        %v2646 = vunpack.c.h.b16 %v2460
        %v2647 = vunpack.c.l.b16 %v2461
        %v2648 = vunpack.c.l.b16 %v2462
        %v2649 = vunpack.c.h.b16 %v2462
        %v2650 = vunpack.c.l.b16 %v2463
        %v2651 = vunpack.c.l.b16 %v2464
        %v2652 = vunpack.c.h.b16 %v2464
        %v2653 = vunpack.c.l.b16 %v2465
        %v2654 = vunpack.c.l.b16 %v2466
        %v2655 = vunpack.c.h.b16 %v2466
        %v2656 = vunpack.c.l.b16 %v2467
        %v2657 = vunpack.c.l.b16 %v2468
        %v2658 = vunpack.c.h.b16 %v2468
        %v2659 = vunpack.c.l.b16 %v2469
        %v2660 = vunpack.c.l.b16 %v2470
        %v2661 = vunpack.c.h.b16 %v2470
        %v2662 = vunpack.c.l.b16 %v2471
        %v2663 = vunpack.c.l.b16 %v2472
        %v2664 = vunpack.c.h.b16 %v2472
        %v2665 = vunpack.c.l.b16 %v2473
        %v2666 = vunpack.c.l.b16 %v2474
        %v2667 = vunpack.c.h.b16 %v2474
        %v2668 = vunpack.c.l.b16 %v2475
        %v2669 = vunpack.c.l.b16 %v2476
        %v2670 = vunpack.c.h.b16 %v2476
        %v2671 = vunpack.c.l.b16 %v2477
        %v2672 = vunpack.c.l.b16 %v2478
        %v2673 = vunpack.c.h.b16 %v2478
        %v2674 = vunpack.c.l.b16 %v2479
        %v2675 = vunpack.c.l.b16 %v2480
        %v2676 = vunpack.c.h.b16 %v2480
        %v2677 = vunpack.c.l.b16 %v2481
        %v2678 = vunpack.c.l.b16 %v2482
        %v2679 = vunpack.c.h.b16 %v2482
        %v2680 = vunpack.c.l.b16 %v2483
        %v2681 = vunpack.c.l.b16 %v2484
        %v2682 = vunpack.c.h.b16 %v2484
        %v2683 = vunpack.c.l.b16 %v2485
        %v2684 = vunpack.c.l.b16 %v2486
        %v2685 = vunpack.c.h.b16 %v2486
        %v2686 = vunpack.c.l.b16 %v2487
        %v2687 = vunpack.c.l.b16 %v2488
        %v2688 = vunpack.c.h.b16 %v2488
        %v2689 = vunpack.c.l.b16 %v2489
        %v2690 = vunpack.c.l.b16 %v2490
        %v2691 = vunpack.c.h.b16 %v2490
        %v2692 = vunpack.c.l.b16 %v2491
        %v2693 = vpack.c.b16 %v2600, %v2597
        %v2694 = vpack.c.b16 %v2601, %v2598
        %v2695 = vpack.c.b16 %v2602, %v2599
        %v2696 = vpack.c.b16 %v2606, %v2603
        %v2697 = vpack.c.b16 %v2607, %v2604
        %v2698 = vpack.c.b16 %v2608, %v2605
        %v2699 = vpack.c.b16 %v2612, %v2609
        %v2700 = vpack.c.b16 %v2613, %v2610
        %v2701 = vpack.c.b16 %v2614, %v2611
        %v2702 = vpack.c.b16 %v2618, %v2615
        %v2703 = vpack.c.b16 %v2619, %v2616
        %v2704 = vpack.c.b16 %v2620, %v2617
        %v2705 = vpack.c.b16 %v2624, %v2621
        %v2706 = vpack.c.b16 %v2625, %v2622
        %v2707 = vpack.c.b16 %v2626, %v2623
        %v2708 = vpack.c.b16 %v2630, %v2627
        %v2709 = vpack.c.b16 %v2631, %v2628
        %v2710 = vpack.c.b16 %v2632, %v2629
        %v2711 = vpack.c.b16 %v2636, %v2633
        %v2712 = vpack.c.b16 %v2637, %v2634
        %v2713 = vpack.c.b16 %v2638, %v2635
        %v2714 = vpack.c.b16 %v2642, %v2639
        %v2715 = vpack.c.b16 %v2643, %v2640
        %v2716 = vpack.c.b16 %v2644, %v2641
        %v2717 = vpack.c.b16 %v2648, %v2645
        %v2718 = vpack.c.b16 %v2649, %v2646
        %v2719 = vpack.c.b16 %v2650, %v2647
        %v2720 = vpack.c.b16 %v2654, %v2651
        %v2721 = vpack.c.b16 %v2655, %v2652
        %v2722 = vpack.c.b16 %v2656, %v2653
        %v2723 = vpack.c.b16 %v2660, %v2657
        %v2724 = vpack.c.b16 %v2661, %v2658
        %v2725 = vpack.c.b16 %v2662, %v2659
        %v2726 = vpack.c.b16 %v2666, %v2663
        %v2727 = vpack.c.b16 %v2667, %v2664
        %v2728 = vpack.c.b16 %v2668, %v2665
        %v2729 = vpack.c.b16 %v2672, %v2669
        %v2730 = vpack.c.b16 %v2673, %v2670
        %v2731 = vpack.c.b16 %v2674, %v2671
        %v2732 = vpack.c.b16 %v2678, %v2675
        %v2733 = vpack.c.b16 %v2679, %v2676
        %v2734 = vpack.c.b16 %v2680, %v2677
        %v2735 = vpack.c.b16 %v2684, %v2681
        %v2736 = vpack.c.b16 %v2685, %v2682
        %v2737 = vpack.c.b16 %v2686, %v2683
        %v2738 = vpack.c.b16 %v2690, %v2687
        %v2739 = vpack.c.b16 %v2691, %v2688
        %v2740 = vpack.c.b16 %v2692, %v2689
        %v2809 = vunpack.c.l.b16 %v2492
        %v2810 = vunpack.c.l.b16 %v2493
        %v2811 = vunpack.c.l.b16 %v2494
        %v2812 = vunpack.c.l.b16 %v2495
        %v2813 = vunpack.c.l.b16 %v2496
        %v2814 = vunpack.c.l.b16 %v2497
        %v2815 = vunpack.c.l.b16 %v2498
        %v2816 = vunpack.c.l.b16 %v2499
        %v2817 = vunpack.c.l.b16 %v2500
        %v2818 = vunpack.c.l.b16 %v2501
        %v2819 = vunpack.c.l.b16 %v2502
        %v2820 = vunpack.c.l.b16 %v2503
        %v2821 = vunpack.c.l.b16 %v2504
        %v2822 = vunpack.c.l.b16 %v2505
        %v2823 = vunpack.c.l.b16 %v2506
        %v2824 = vunpack.c.l.b16 %v2507
        %v2825 = vunpack.c.l.b16 %v2508
        %v2826 = vunpack.c.l.b16 %v2509
        %v2827 = vunpack.c.l.b16 %v2510
        %v2828 = vunpack.c.l.b16 %v2511
        %v2829 = vunpack.c.l.b16 %v2512
        %v2830 = vunpack.c.l.b16 %v2513
        %v2831 = vunpack.c.l.b16 %v2514
        %v2832 = vunpack.c.l.b16 %v2515
        %v2833 = vunpack.c.l.b16 %v2516
        %v2834 = vunpack.c.l.b16 %v2517
        %v2835 = vunpack.c.l.b16 %v2518
        %v2836 = vunpack.c.l.b16 %v2519
        %v2837 = vunpack.c.l.b16 %v2520
        %v2838 = vunpack.c.l.b16 %v2521
        %v2839 = vunpack.c.l.b16 %v2522
        %v2840 = vunpack.c.l.b16 %v2523
        %v2841 = vunpack.c.l.b16 %v2524
        %v2842 = vunpack.c.l.b16 %v2525
        %v2843 = vunpack.c.l.b16 %v2526
        %v2844 = vunpack.c.l.b16 %v2527
        %v2845 = vpack.c.b16 %v2810, %v2809
        %v2846 = vpack.c.b16 %v2812, %v2811
        %v2847 = vpack.c.b16 %v2814, %v2813
        %v2848 = vpack.c.b16 %v2816, %v2815
        %v2849 = vpack.c.b16 %v2818, %v2817
        %v2850 = vpack.c.b16 %v2820, %v2819
        %v2851 = vpack.c.b16 %v2822, %v2821
        %v2852 = vpack.c.b16 %v2824, %v2823
        %v2853 = vpack.c.b16 %v2826, %v2825
        %v2854 = vpack.c.b16 %v2828, %v2827
        %v2855 = vpack.c.b16 %v2830, %v2829
        %v2856 = vpack.c.b16 %v2832, %v2831
        %v2857 = vpack.c.b16 %v2834, %v2833
        %v2858 = vpack.c.b16 %v2836, %v2835
        %v2859 = vpack.c.b16 %v2838, %v2837
        %v2860 = vpack.c.b16 %v2840, %v2839
        %v2861 = vpack.c.b16 %v2842, %v2841
        %v2862 = vpack.c.b16 %v2844, %v2843
        %v2882 = vsel %vm190, %v2695, 0
        %v2885 = vsel %vm190, %v2698, 0
        %v2888 = vsel %vm190, %v2701, 0
        %v2891 = vsel %vm190, %v2704, 0
        %v2894 = vsel %vm190, %v2707, 0
        %v2897 = vsel %vm190, %v2710, 0
        %v2900 = vsel %vm190, %v2713, 0
        %v2903 = vsel %vm190, %v2716, 0
        %v2906 = vsel %vm190, %v2719, 0
        %v2909 = vsel %vm190, %v2722, 0
        %v2912 = vsel %vm190, %v2725, 0
        %v2915 = vsel %vm190, %v2728, 0
        %v2918 = vsel %vm190, %v2731, 0
        %v2921 = vsel %vm190, %v2734, 0
        %v2924 = vsel %vm190, %v2737, 0
        %v2927 = vsel %vm190, %v2740, 0
        %2929 = vmatprep.subr.bf16.mxu0 0
        %2930 = vmatpush1.bf16.msra.mxu0 %v2852
        %2931 = vmatprep.subr.bf16.mxu0 0
        %2932 = vmatpush1.bf16.msra.mxu0 %v2851
        %2933 = vmatprep.subr.bf16.mxu0 0
        %2934 = vmatpush1.bf16.msra.mxu0 %v2850
        %2935 = vmatprep.subr.bf16.mxu0 0
        %2936 = vmatpush1.bf16.msra.mxu0 %v2849
        %2937 = vmatprep.subr.bf16.mxu0 0
        %2938 = vmatpush1.bf16.msra.mxu0 %v2848
        %2939 = vmatprep.subr.bf16.mxu0 0
        %2940 = vmatpush1.bf16.msra.mxu0 %v2847
        %2941 = vmatprep.subr.bf16.mxu0 0
        %2942 = vmatpush1.bf16.msra.mxu0 %v2846
        %2943 = vmatprep.subr.bf16.mxu0 0
        %2944 = vmatpush1.bf16.msra.mxu0 %v2845
        %2945 = vmatprep.subr.bf16.mxu0 0
        %2946 = vmatpush2.bf16.msra.mxu0 %v2860
        %2947 = vmatprep.subr.bf16.mxu0 0
        %2948 = vmatpush2.bf16.msra.mxu0 %v2859
        %2949 = vmatprep.subr.bf16.mxu0 0
        %2950 = vmatpush2.bf16.msra.mxu0 %v2858
        %2951 = vmatprep.subr.bf16.mxu0 0
        %2952 = vmatpush2.bf16.msra.mxu0 %v2857
        %2953 = vmatprep.subr.bf16.mxu0 0
        %2954 = vmatpush2.bf16.msra.mxu0 %v2856
        %2955 = vmatprep.subr.bf16.mxu0 0
        %2956 = vmatpush2.bf16.msra.mxu0 %v2855
        %2957 = vmatprep.subr.bf16.mxu0 0
        %2958 = vmatpush2.bf16.msra.mxu0 %v2854
        %2959 = vmatprep.subr.bf16.mxu0 0
        %2960 = vmatpush2.bf16.msra.mxu0 %v2853
        %2961 = vmatprep.mubr.bf16.mxu0 %v2694
        %2962 = vmatmul.mubr.bf16.gmra.mxu0 %v2693
        %v2963 = vpop.f32.mrf.mxu0
        %v2964 = vadd.f32 %v2532, %v2963
        %v2965 = vpop.f32.mrf.mxu0
        %v2966 = vpop.f32.mrf.mxu0
        %v2967 = vadd.f32 %v2532, %v2966
        %v2968 = vpop.f32.mrf.mxu0
        %2969 = vmatprep.mubr.bf16.mxu0 %v2697
        %2970 = vmatmul.mubr.bf16.gmra.mxu0 %v2696
        %v2971 = vpop.f32.mrf.mxu0
        %v2972 = vadd.f32 %v2532, %v2971
        %v2973 = vpop.f32.mrf.mxu0
        %v2974 = vpop.f32.mrf.mxu0
        %v2975 = vadd.f32 %v2532, %v2974
        %v2976 = vpop.f32.mrf.mxu0
        %2977 = vmatprep.mubr.bf16.mxu0 %v2700
        %2978 = vmatmul.mubr.bf16.gmra.mxu0 %v2699
        %v2979 = vpop.f32.mrf.mxu0
        %v2980 = vadd.f32 %v2532, %v2979
        %v2981 = vpop.f32.mrf.mxu0
        %v2982 = vpop.f32.mrf.mxu0
        %v2983 = vadd.f32 %v2532, %v2982
        %v2984 = vpop.f32.mrf.mxu0
        %2985 = vmatprep.mubr.bf16.mxu0 %v2703
        %2986 = vmatmul.mubr.bf16.gmra.mxu0 %v2702
        %v2987 = vpop.f32.mrf.mxu0
        %v2988 = vadd.f32 %v2532, %v2987
        %v2989 = vpop.f32.mrf.mxu0
        %v2990 = vpop.f32.mrf.mxu0
        %v2991 = vadd.f32 %v2532, %v2990
        %v2992 = vpop.f32.mrf.mxu0
        %2993 = vmatprep.mubr.bf16.mxu0 %v2706
        %2994 = vmatmul.mubr.bf16.gmra.mxu0 %v2705
        %v2995 = vpop.f32.mrf.mxu0
        %v2996 = vadd.f32 %v2532, %v2995
        %v2997 = vpop.f32.mrf.mxu0
        %v2998 = vpop.f32.mrf.mxu0
        %v2999 = vadd.f32 %v2532, %v2998
        %v3000 = vpop.f32.mrf.mxu0
        %3001 = vmatprep.mubr.bf16.mxu0 %v2709
        %3002 = vmatmul.mubr.bf16.gmra.mxu0 %v2708
        %v3003 = vpop.f32.mrf.mxu0
        %v3004 = vadd.f32 %v2532, %v3003
        %v3005 = vpop.f32.mrf.mxu0
        %v3006 = vpop.f32.mrf.mxu0
        %v3007 = vadd.f32 %v2532, %v3006
        %v3008 = vpop.f32.mrf.mxu0
        %3009 = vmatprep.mubr.bf16.mxu0 %v2712
        %3010 = vmatmul.mubr.bf16.gmra.mxu0 %v2711
        %v3011 = vpop.f32.mrf.mxu0
        %v3012 = vadd.f32 %v2532, %v3011
        %v3013 = vpop.f32.mrf.mxu0
        %v3014 = vpop.f32.mrf.mxu0
        %v3015 = vadd.f32 %v2532, %v3014
        %v3016 = vpop.f32.mrf.mxu0
        %3017 = vmatprep.mubr.bf16.mxu0 %v2715
        %3018 = vmatmul.mubr.bf16.gmra.mxu0 %v2714
        %v3019 = vpop.f32.mrf.mxu0
        %v3020 = vadd.f32 %v2532, %v3019
        %v3021 = vpop.f32.mrf.mxu0
        %v3022 = vpop.f32.mrf.mxu0
        %v3023 = vadd.f32 %v2532, %v3022
        %v3024 = vpop.f32.mrf.mxu0
        %3025 = vmatprep.mubr.bf16.mxu0 %v2718
        %3026 = vmatmul.mubr.bf16.gmra.mxu0 %v2717
        %v3027 = vpop.f32.mrf.mxu0
        %v3028 = vadd.f32 %v2532, %v3027
        %v3029 = vpop.f32.mrf.mxu0
        %v3030 = vpop.f32.mrf.mxu0
        %v3031 = vadd.f32 %v2532, %v3030
        %v3032 = vpop.f32.mrf.mxu0
        %3033 = vmatprep.mubr.bf16.mxu0 %v2721
        %3034 = vmatmul.mubr.bf16.gmra.mxu0 %v2720
        %v3035 = vpop.f32.mrf.mxu0
        %v3036 = vadd.f32 %v2532, %v3035
        %v3037 = vpop.f32.mrf.mxu0
        %v3038 = vpop.f32.mrf.mxu0
        %v3039 = vadd.f32 %v2532, %v3038
        %v3040 = vpop.f32.mrf.mxu0
        %3041 = vmatprep.mubr.bf16.mxu0 %v2724
        %3042 = vmatmul.mubr.bf16.gmra.mxu0 %v2723
        %v3043 = vpop.f32.mrf.mxu0
        %v3044 = vadd.f32 %v2532, %v3043
        %v3045 = vpop.f32.mrf.mxu0
        %v3046 = vpop.f32.mrf.mxu0
        %v3047 = vadd.f32 %v2532, %v3046
        %v3048 = vpop.f32.mrf.mxu0
        %3049 = vmatprep.mubr.bf16.mxu0 %v2727
        %3050 = vmatmul.mubr.bf16.gmra.mxu0 %v2726
        %v3051 = vpop.f32.mrf.mxu0
        %v3052 = vadd.f32 %v2532, %v3051
        %v3053 = vpop.f32.mrf.mxu0
        %v3054 = vpop.f32.mrf.mxu0
        %v3055 = vadd.f32 %v2532, %v3054
        %v3056 = vpop.f32.mrf.mxu0
        %3057 = vmatprep.mubr.bf16.mxu0 %v2730
        %3058 = vmatmul.mubr.bf16.gmra.mxu0 %v2729
        %v3059 = vpop.f32.mrf.mxu0
        %v3060 = vadd.f32 %v2532, %v3059
        %v3061 = vpop.f32.mrf.mxu0
        %v3062 = vpop.f32.mrf.mxu0
        %v3063 = vadd.f32 %v2532, %v3062
        %v3064 = vpop.f32.mrf.mxu0
        %3065 = vmatprep.mubr.bf16.mxu0 %v2733
        %3066 = vmatmul.mubr.bf16.gmra.mxu0 %v2732
        %v3067 = vpop.f32.mrf.mxu0
        %v3068 = vadd.f32 %v2532, %v3067
        %v3069 = vpop.f32.mrf.mxu0
        %v3070 = vpop.f32.mrf.mxu0
        %v3071 = vadd.f32 %v2532, %v3070
        %v3072 = vpop.f32.mrf.mxu0
        %3073 = vmatprep.mubr.bf16.mxu0 %v2736
        %3074 = vmatmul.mubr.bf16.gmra.mxu0 %v2735
        %v3075 = vpop.f32.mrf.mxu0
        %v3076 = vadd.f32 %v2532, %v3075
        %v3077 = vpop.f32.mrf.mxu0
        %v3078 = vpop.f32.mrf.mxu0
        %v3079 = vadd.f32 %v2532, %v3078
        %v3080 = vpop.f32.mrf.mxu0
        %3081 = vmatprep.mubr.bf16.mxu0 %v2739
        %3082 = vmatmul.mubr.bf16.gmra.mxu0 %v2738
        %v3083 = vpop.f32.mrf.mxu0
        %v3084 = vadd.f32 %v2532, %v3083
        %v3085 = vpop.f32.mrf.mxu0
        %v3086 = vpop.f32.mrf.mxu0
        %v3087 = vadd.f32 %v2532, %v3086
        %v3088 = vpop.f32.mrf.mxu0
        %3089 = vdwg.mxu0
        %3090 = vmatprep.subr.bf16.mxu0 0
        %3091 = vmatpush1.bf16.msra.mxu0 0
        %3092 = vmatprep.subr.bf16.mxu0 0
        %3093 = vmatpush1.bf16.msra.mxu0 0
        %3094 = vmatprep.subr.bf16.mxu0 0
        %3095 = vmatpush1.bf16.msra.mxu0 0
        %3096 = vmatprep.subr.bf16.mxu0 0
        %3097 = vmatpush1.bf16.msra.mxu0 0
        %3098 = vmatprep.subr.bf16.mxu0 0
        %3099 = vmatpush1.bf16.msra.mxu0 0
        %3100 = vmatprep.subr.bf16.mxu0 0
        %3101 = vmatpush1.bf16.msra.mxu0 0
        %3102 = vmatprep.subr.bf16.mxu0 0
        %3103 = vmatpush1.bf16.msra.mxu0 %v2862
        %3104 = vmatprep.subr.bf16.mxu0 0
        %3105 = vmatpush1.bf16.msra.mxu0 %v2861
        %3106 = vmatprep.subr.bf16.mxu0 0
        %3107 = vmatpush2.bf16.msra.mxu0 0
        %3108 = vmatprep.subr.bf16.mxu0 0
        %3109 = vmatpush2.bf16.msra.mxu0 0
        %3110 = vmatprep.subr.bf16.mxu0 0
        %3111 = vmatpush2.bf16.msra.mxu0 0
        %3112 = vmatprep.subr.bf16.mxu0 0
        %3113 = vmatpush2.bf16.msra.mxu0 0
        %3114 = vmatprep.subr.bf16.mxu0 0
        %3115 = vmatpush2.bf16.msra.mxu0 0
        %3116 = vmatprep.subr.bf16.mxu0 0
        %3117 = vmatpush2.bf16.msra.mxu0 0
        %3118 = vmatprep.subr.bf16.mxu0 0
        %3119 = vmatpush2.bf16.msra.mxu0 0
        %3120 = vmatprep.subr.bf16.mxu0 0
        %3121 = vmatpush2.bf16.msra.mxu0 0
        %3122 = vmatprep.mubr.bf16.mxu0 0
        %3123 = vmatmul.mubr.bf16.gmra.mxu0 %v2882
        %v3124 = vpop.f32.mrf.mxu0
        %v3125 = vadd.f32 %v2964, %v3124
        %v3126 = vpop.f32.mrf.mxu0
        %v3127 = vpop.f32.mrf.mxu0
        %v3128 = vadd.f32 %v2967, %v3127
        %v3129 = vpop.f32.mrf.mxu0
        %3130 = vmatprep.mubr.bf16.mxu0 0
        %3131 = vmatmul.mubr.bf16.gmra.mxu0 %v2885
        %v3132 = vpop.f32.mrf.mxu0
        %v3133 = vadd.f32 %v2972, %v3132
        %v3134 = vpop.f32.mrf.mxu0
        %v3135 = vpop.f32.mrf.mxu0
        %v3136 = vadd.f32 %v2975, %v3135
        %v3137 = vpop.f32.mrf.mxu0
        %3138 = vmatprep.mubr.bf16.mxu0 0
        %3139 = vmatmul.mubr.bf16.gmra.mxu0 %v2888
        %v3140 = vpop.f32.mrf.mxu0
        %v3141 = vadd.f32 %v2980, %v3140
        %v3142 = vpop.f32.mrf.mxu0
        %v3143 = vpop.f32.mrf.mxu0
        %v3144 = vadd.f32 %v2983, %v3143
        %v3145 = vpop.f32.mrf.mxu0
        %3146 = vmatprep.mubr.bf16.mxu0 0
        %3147 = vmatmul.mubr.bf16.gmra.mxu0 %v2891
        %v3148 = vpop.f32.mrf.mxu0
        %v3149 = vadd.f32 %v2988, %v3148
        %v3150 = vpop.f32.mrf.mxu0
        %v3151 = vpop.f32.mrf.mxu0
        %v3152 = vadd.f32 %v2991, %v3151
        %v3153 = vpop.f32.mrf.mxu0
        %3154 = vmatprep.mubr.bf16.mxu0 0
        %3155 = vmatmul.mubr.bf16.gmra.mxu0 %v2894
        %v3156 = vpop.f32.mrf.mxu0
        %v3157 = vadd.f32 %v2996, %v3156
        %v3158 = vpop.f32.mrf.mxu0
        %v3159 = vpop.f32.mrf.mxu0
        %v3160 = vadd.f32 %v2999, %v3159
        %v3161 = vpop.f32.mrf.mxu0
        %3162 = vmatprep.mubr.bf16.mxu0 0
        %3163 = vmatmul.mubr.bf16.gmra.mxu0 %v2897
        %v3164 = vpop.f32.mrf.mxu0
        %v3165 = vadd.f32 %v3004, %v3164
        %v3166 = vpop.f32.mrf.mxu0
        %v3167 = vpop.f32.mrf.mxu0
        %v3168 = vadd.f32 %v3007, %v3167
        %v3169 = vpop.f32.mrf.mxu0
        %3170 = vmatprep.mubr.bf16.mxu0 0
        %3171 = vmatmul.mubr.bf16.gmra.mxu0 %v2900
        %v3172 = vpop.f32.mrf.mxu0
        %v3173 = vadd.f32 %v3012, %v3172
        %v3174 = vpop.f32.mrf.mxu0
        %v3175 = vpop.f32.mrf.mxu0
        %v3176 = vadd.f32 %v3015, %v3175
        %v3177 = vpop.f32.mrf.mxu0
        %3178 = vmatprep.mubr.bf16.mxu0 0
        %3179 = vmatmul.mubr.bf16.gmra.mxu0 %v2903
        %v3180 = vpop.f32.mrf.mxu0
        %v3181 = vadd.f32 %v3020, %v3180
        %v3182 = vpop.f32.mrf.mxu0
        %v3183 = vpop.f32.mrf.mxu0
        %v3184 = vadd.f32 %v3023, %v3183
        %v3185 = vpop.f32.mrf.mxu0
        %3186 = vmatprep.mubr.bf16.mxu0 0
        %3187 = vmatmul.mubr.bf16.gmra.mxu0 %v2906
        %v3188 = vpop.f32.mrf.mxu0
        %v3189 = vadd.f32 %v3028, %v3188
        %v3190 = vpop.f32.mrf.mxu0
        %v3191 = vpop.f32.mrf.mxu0
        %v3192 = vadd.f32 %v3031, %v3191
        %v3193 = vpop.f32.mrf.mxu0
        %3194 = vmatprep.mubr.bf16.mxu0 0
        %3195 = vmatmul.mubr.bf16.gmra.mxu0 %v2909
        %v3196 = vpop.f32.mrf.mxu0
        %v3197 = vadd.f32 %v3036, %v3196
        %v3198 = vpop.f32.mrf.mxu0
        %v3199 = vpop.f32.mrf.mxu0
        %v3200 = vadd.f32 %v3039, %v3199
        %v3201 = vpop.f32.mrf.mxu0
        %3202 = vmatprep.mubr.bf16.mxu0 0
        %3203 = vmatmul.mubr.bf16.gmra.mxu0 %v2912
        %v3204 = vpop.f32.mrf.mxu0
        %v3205 = vadd.f32 %v3044, %v3204
        %v3206 = vpop.f32.mrf.mxu0
        %v3207 = vpop.f32.mrf.mxu0
        %v3208 = vadd.f32 %v3047, %v3207
        %v3209 = vpop.f32.mrf.mxu0
        %3210 = vmatprep.mubr.bf16.mxu0 0
        %3211 = vmatmul.mubr.bf16.gmra.mxu0 %v2915
        %v3212 = vpop.f32.mrf.mxu0
        %v3213 = vadd.f32 %v3052, %v3212
        %v3214 = vpop.f32.mrf.mxu0
        %v3215 = vpop.f32.mrf.mxu0
        %v3216 = vadd.f32 %v3055, %v3215
        %v3217 = vpop.f32.mrf.mxu0
        %3218 = vmatprep.mubr.bf16.mxu0 0
        %3219 = vmatmul.mubr.bf16.gmra.mxu0 %v2918
        %v3220 = vpop.f32.mrf.mxu0
        %v3221 = vadd.f32 %v3060, %v3220
        %v3222 = vpop.f32.mrf.mxu0
        %v3223 = vpop.f32.mrf.mxu0
        %v3224 = vadd.f32 %v3063, %v3223
        %v3225 = vpop.f32.mrf.mxu0
        %3226 = vmatprep.mubr.bf16.mxu0 0
        %3227 = vmatmul.mubr.bf16.gmra.mxu0 %v2921
        %v3228 = vpop.f32.mrf.mxu0
        %v3229 = vadd.f32 %v3068, %v3228
        %v3230 = vpop.f32.mrf.mxu0
        %v3231 = vpop.f32.mrf.mxu0
        %v3232 = vadd.f32 %v3071, %v3231
        %v3233 = vpop.f32.mrf.mxu0
        %3234 = vmatprep.mubr.bf16.mxu0 0
        %3235 = vmatmul.mubr.bf16.gmra.mxu0 %v2924
        %v3236 = vpop.f32.mrf.mxu0
        %v3237 = vadd.f32 %v3076, %v3236
        %v3238 = vpop.f32.mrf.mxu0
        %v3239 = vpop.f32.mrf.mxu0
        %v3240 = vadd.f32 %v3079, %v3239
        %v3241 = vpop.f32.mrf.mxu0
        %3242 = vmatprep.mubr.bf16.mxu0 0
        %3243 = vmatmul.mubr.bf16.gmra.mxu0 %v2927
        %v3244 = vpop.f32.mrf.mxu0
        %v3245 = vadd.f32 %v3084, %v3244
        %v3246 = vpop.f32.mrf.mxu0
        %v3247 = vpop.f32.mrf.mxu0
        %v3248 = vadd.f32 %v3087, %v3247
        %v3249 = vpop.f32.mrf.mxu0
        %3250 = vdwg.mxu0
        %v3251 = vmax.f32 %v3125, 0.0
        %v3252 = vmax.f32 %v3128, 0.0
        %v3253 = vmax.f32 %v3133, 0.0
        %v3254 = vmax.f32 %v3136, 0.0
        %v3255 = vmax.f32 %v3141, 0.0
        %v3256 = vmax.f32 %v3144, 0.0
        %v3257 = vmax.f32 %v3149, 0.0
        %v3258 = vmax.f32 %v3152, 0.0
        %v3259 = vmax.f32 %v3157, 0.0
        %v3260 = vmax.f32 %v3160, 0.0
        %v3261 = vmax.f32 %v3165, 0.0
        %v3262 = vmax.f32 %v3168, 0.0
        %v3263 = vmax.f32 %v3173, 0.0
        %v3264 = vmax.f32 %v3176, 0.0
        %v3265 = vmax.f32 %v3181, 0.0
        %v3266 = vmax.f32 %v3184, 0.0
        %v3267 = vmax.f32 %v3189, 0.0
        %v3268 = vmax.f32 %v3192, 0.0
        %v3269 = vmax.f32 %v3197, 0.0
        %v3270 = vmax.f32 %v3200, 0.0
        %v3271 = vmax.f32 %v3205, 0.0
        %v3272 = vmax.f32 %v3208, 0.0
        %v3273 = vmax.f32 %v3213, 0.0
        %v3274 = vmax.f32 %v3216, 0.0
        %v3275 = vmax.f32 %v3221, 0.0
        %v3276 = vmax.f32 %v3224, 0.0
        %v3277 = vmax.f32 %v3229, 0.0
        %v3278 = vmax.f32 %v3232, 0.0
        %v3279 = vmax.f32 %v3237, 0.0
        %v3280 = vmax.f32 %v3240, 0.0
        %v3281 = vmax.f32 %v3245, 0.0
        %v3282 = vmax.f32 %v3248, 0.0
        %v3283 = vlaneseq
        %v3284 = vshrl.u32 %v3283, 7
        %v3285 = vsub.s32 1, %v3284
        %v3286 = vrot.slane %v2528, %v3285
        %v3287 = vmul.f32 %v3251, %v3286
        %v3288 = vmul.f32 %v3252, %v3286
        %v3289 = vmul.f32 %v3253, %v3286
        %v3290 = vmul.f32 %v3254, %v3286
        %v3291 = vmul.f32 %v3255, %v3286
        %v3292 = vmul.f32 %v3256, %v3286
        %v3293 = vmul.f32 %v3257, %v3286
        %v3294 = vmul.f32 %v3258, %v3286
        %v3295 = vmul.f32 %v3259, %v3286
        %v3296 = vmul.f32 %v3260, %v3286
        %v3297 = vmul.f32 %v3261, %v3286
        %v3298 = vmul.f32 %v3262, %v3286
        %v3299 = vmul.f32 %v3263, %v3286
        %v3300 = vmul.f32 %v3264, %v3286
        %v3301 = vmul.f32 %v3265, %v3286
        %v3302 = vmul.f32 %v3266, %v3286
        %v3303 = vmul.f32 %v3267, %v3286
        %v3304 = vmul.f32 %v3268, %v3286
        %v3305 = vmul.f32 %v3269, %v3286
        %v3306 = vmul.f32 %v3270, %v3286
        %v3307 = vmul.f32 %v3271, %v3286
        %v3308 = vmul.f32 %v3272, %v3286
        %v3309 = vmul.f32 %v3273, %v3286
        %v3310 = vmul.f32 %v3274, %v3286
        %v3311 = vmul.f32 %v3275, %v3286
        %v3312 = vmul.f32 %v3276, %v3286
        %v3313 = vmul.f32 %v3277, %v3286
        %v3314 = vmul.f32 %v3278, %v3286
        %v3315 = vmul.f32 %v3279, %v3286
        %v3316 = vmul.f32 %v3280, %v3286
        %v3317 = vmul.f32 %v3281, %v3286
        %v3318 = vmul.f32 %v3282, %v3286
        %v3319 = vlaneseq
        %v3320 = vshrl.u32 %v3319, 7
        %v3321 = vsub.s32 2, %v3320
        %v3322 = vrot.slane %v2528, %v3321
        %v3323 = vadd.f32 %v3287, %v3322
        %v3324 = vadd.f32 %v3288, %v3322
        %v3325 = vadd.f32 %v3289, %v3322
        %v3326 = vadd.f32 %v3290, %v3322
        %v3327 = vadd.f32 %v3291, %v3322
        %v3328 = vadd.f32 %v3292, %v3322
        %v3329 = vadd.f32 %v3293, %v3322
        %v3330 = vadd.f32 %v3294, %v3322
        %v3331 = vadd.f32 %v3295, %v3322
        %v3332 = vadd.f32 %v3296, %v3322
        %v3333 = vadd.f32 %v3297, %v3322
        %v3334 = vadd.f32 %v3298, %v3322
        %v3335 = vadd.f32 %v3299, %v3322
        %v3336 = vadd.f32 %v3300, %v3322
        %v3337 = vadd.f32 %v3301, %v3322
        %v3338 = vadd.f32 %v3302, %v3322
        %v3339 = vadd.f32 %v3303, %v3322
        %v3340 = vadd.f32 %v3304, %v3322
        %v3341 = vadd.f32 %v3305, %v3322
        %v3342 = vadd.f32 %v3306, %v3322
        %v3343 = vadd.f32 %v3307, %v3322
        %v3344 = vadd.f32 %v3308, %v3322
        %v3345 = vadd.f32 %v3309, %v3322
        %v3346 = vadd.f32 %v3310, %v3322
        %v3347 = vadd.f32 %v3311, %v3322
        %v3348 = vadd.f32 %v3312, %v3322
        %v3349 = vadd.f32 %v3313, %v3322
        %v3350 = vadd.f32 %v3314, %v3322
        %v3351 = vadd.f32 %v3315, %v3322
        %v3352 = vadd.f32 %v3316, %v3322
        %v3353 = vadd.f32 %v3317, %v3322
        %v3354 = vadd.f32 %v3318, %v3322
        %3355 = vst.msk [vmem:[%s278 + $0x1] sm:$0xff] %vm190, %v3323
        %3356 = vst.msk [vmem:[%s278 + $0x9] sm:$0xff] %vm190, %v3324
        %3357 = vst.msk [vmem:[%s278 + $0x19] sm:$0xff] %vm190, %v3325
        %3358 = vst.msk [vmem:[%s278 + $0x21] sm:$0xff] %vm190, %v3326
        %3359 = vst.msk [vmem:[%s278 + $0x31] sm:$0xff] %vm190, %v3327
        %3360 = vst.msk [vmem:[%s278 + $0x39] sm:$0xff] %vm190, %v3328
        %3361 = vst.msk [vmem:[%s278 + $0x49] sm:$0xff] %vm190, %v3329
        %3362 = vst.msk [vmem:[%s278 + $0x51] sm:$0xff] %vm190, %v3330
        %3363 = vst.msk [vmem:[%s278 + $0x61] sm:$0xff] %vm190, %v3331
        %3364 = vst.msk [vmem:[%s278 + $0x69] sm:$0xff] %vm190, %v3332
        %3365 = vst.msk [vmem:[%s278 + $0x79] sm:$0xff] %vm190, %v3333
        %3366 = vst.msk [vmem:[%s278 + $0x81] sm:$0xff] %vm190, %v3334
        %3367 = vst.msk [vmem:[%s278 + $0x91] sm:$0xff] %vm190, %v3335
        %3368 = vst.msk [vmem:[%s278 + $0x99] sm:$0xff] %vm190, %v3336
        %3369 = vst.msk [vmem:[%s278 + $0xa9] sm:$0xff] %vm190, %v3337
        %3370 = vst.msk [vmem:[%s278 + $0xb1] sm:$0xff] %vm190, %v3338
        %3371 = vst.msk [vmem:[%s278 + $0xc1] sm:$0xff] %vm190, %v3339
        %3372 = vst.msk [vmem:[%s278 + $0xc9] sm:$0xff] %vm190, %v3340
        %3373 = vst.msk [vmem:[%s278 + $0xd9] sm:$0xff] %vm190, %v3341
        %3374 = vst.msk [vmem:[%s278 + $0xe1] sm:$0xff] %vm190, %v3342
        %3375 = vst.msk [vmem:[%s278 + $0xf1] sm:$0xff] %vm190, %v3343
        %3376 = vst.msk [vmem:[%s278 + $0xf9] sm:$0xff] %vm190, %v3344
        %3377 = vst.msk [vmem:[%s278 + $0x109] sm:$0xff] %vm190, %v3345
        %3378 = vst.msk [vmem:[%s278 + $0x111] sm:$0xff] %vm190, %v3346
        %3379 = vst.msk [vmem:[%s278 + $0x121] sm:$0xff] %vm190, %v3347
        %3380 = vst.msk [vmem:[%s278 + $0x129] sm:$0xff] %vm190, %v3348
        %3381 = vst.msk [vmem:[%s278 + $0x139] sm:$0xff] %vm190, %v3349
        %3382 = vst.msk [vmem:[%s278 + $0x141] sm:$0xff] %vm190, %v3350
        %3383 = vst.msk [vmem:[%s278 + $0x151] sm:$0xff] %vm190, %v3351
        %3384 = vst.msk [vmem:[%s278 + $0x159] sm:$0xff] %vm190, %v3352
        %3385 = vst.msk [vmem:[%s278 + $0x169] sm:$0xff] %vm190, %v3353
        %3386 = vst.msk [vmem:[%s278 + $0x171] sm:$0xff] %vm190, %v3354
        %v3387 = vld [vmem:[#allocation2] sm:$0xff]
        %v3388 = vld [vmem:[#allocation2 + $0x8] sm:$0xff]
        %v3389 = vld [vmem:[#allocation2 + $0x18] sm:$0xff]
        %v3390 = vld [vmem:[#allocation2 + $0x20] sm:$0xff]
        %v3391 = vld [vmem:[#allocation2 + $0x30] sm:$0xff]
        %v3392 = vld [vmem:[#allocation2 + $0x38] sm:$0xff]
        %v3393 = vld [vmem:[#allocation2 + $0x48] sm:$0xff]
        %v3394 = vld [vmem:[#allocation2 + $0x50] sm:$0xff]
        %v3395 = vld [vmem:[#allocation2 + $0x60] sm:$0xff]
        %v3396 = vld [vmem:[#allocation2 + $0x68] sm:$0xff]
        %v3397 = vld [vmem:[#allocation2 + $0x78] sm:$0xff]
        %v3398 = vld [vmem:[#allocation2 + $0x80] sm:$0xff]
        %v3399 = vld [vmem:[#allocation2 + $0x90] sm:$0xff]
        %v3400 = vld [vmem:[#allocation2 + $0x98] sm:$0xff]
        %v3401 = vld [vmem:[#allocation2 + $0xa8] sm:$0xff]
        %v3402 = vld [vmem:[#allocation2 + $0xb0] sm:$0xff]
        %v3403 = vld [vmem:[#allocation2 + $0xc0] sm:$0xff]
        %v3404 = vld [vmem:[#allocation2 + $0xc8] sm:$0xff]
        %v3405 = vld [vmem:[#allocation2 + $0xd8] sm:$0xff]
        %v3406 = vld [vmem:[#allocation2 + $0xe0] sm:$0xff]
        %v3407 = vld [vmem:[#allocation2 + $0xf0] sm:$0xff]
        %v3408 = vld [vmem:[#allocation2 + $0xf8] sm:$0xff]
        %v3409 = vld [vmem:[#allocation2 + $0x108] sm:$0xff]
        %v3410 = vld [vmem:[#allocation2 + $0x110] sm:$0xff]
        %v3411 = vld [vmem:[#allocation2 + $0x120] sm:$0xff]
        %v3412 = vld [vmem:[#allocation2 + $0x128] sm:$0xff]
        %v3413 = vld [vmem:[#allocation2 + $0x138] sm:$0xff]
        %v3414 = vld [vmem:[#allocation2 + $0x140] sm:$0xff]
        %v3415 = vld [vmem:[#allocation2 + $0x150] sm:$0xff]
        %v3416 = vld [vmem:[#allocation2 + $0x158] sm:$0xff]
        %v3417 = vld [vmem:[#allocation2 + $0x168] sm:$0xff]
        %v3418 = vld [vmem:[#allocation2 + $0x170] sm:$0xff]
        %v3419 = vpack.c.bf16 %v3388, %v3387
        %v3420 = vpack.c.bf16 %v3390, %v3389
        %v3421 = vpack.c.bf16 %v3392, %v3391
        %v3422 = vpack.c.bf16 %v3394, %v3393
        %v3423 = vpack.c.bf16 %v3396, %v3395
        %v3424 = vpack.c.bf16 %v3398, %v3397
        %v3425 = vpack.c.bf16 %v3400, %v3399
        %v3426 = vpack.c.bf16 %v3402, %v3401
        %v3427 = vpack.c.bf16 %v3404, %v3403
        %v3428 = vpack.c.bf16 %v3406, %v3405
        %v3429 = vpack.c.bf16 %v3408, %v3407
        %v3430 = vpack.c.bf16 %v3410, %v3409
        %v3431 = vpack.c.bf16 %v3412, %v3411
        %v3432 = vpack.c.bf16 %v3414, %v3413
        %v3433 = vpack.c.bf16 %v3416, %v3415
        %v3434 = vpack.c.bf16 %v3418, %v3417
        %v3451 = vunpack.c.l.b16 %v3419
        %v3452 = vunpack.c.h.b16 %v3419
        %v3453 = vunpack.c.l.b16 %v3420
        %v3454 = vunpack.c.h.b16 %v3420
        %v3455 = vunpack.c.l.b16 %v3421
        %v3456 = vunpack.c.h.b16 %v3421
        %v3457 = vunpack.c.l.b16 %v3422
        %v3458 = vunpack.c.h.b16 %v3422
        %v3459 = vunpack.c.l.b16 %v3423
        %v3460 = vunpack.c.h.b16 %v3423
        %v3461 = vunpack.c.l.b16 %v3424
        %v3462 = vunpack.c.h.b16 %v3424
        %v3463 = vunpack.c.l.b16 %v3425
        %v3464 = vunpack.c.h.b16 %v3425
        %v3465 = vunpack.c.l.b16 %v3426
        %v3466 = vunpack.c.h.b16 %v3426
        %v3467 = vunpack.c.l.b16 %v3427
        %v3468 = vunpack.c.h.b16 %v3427
        %v3469 = vunpack.c.l.b16 %v3428
        %v3470 = vunpack.c.h.b16 %v3428
        %v3471 = vunpack.c.l.b16 %v3429
        %v3472 = vunpack.c.h.b16 %v3429
        %v3473 = vunpack.c.l.b16 %v3430
        %v3474 = vunpack.c.h.b16 %v3430
        %v3475 = vunpack.c.l.b16 %v3431
        %v3476 = vunpack.c.h.b16 %v3431
        %v3477 = vunpack.c.l.b16 %v3432
        %v3478 = vunpack.c.h.b16 %v3432
        %v3479 = vunpack.c.l.b16 %v3433
        %v3480 = vunpack.c.h.b16 %v3433
        %v3481 = vunpack.c.l.b16 %v3434
        %v3482 = vunpack.c.h.b16 %v3434
        %v3483 = vpack.c.b16 %v3451, %v3451
        %v3484 = vpack.c.b16 %v3452, %v3452
        %v3485 = vpack.c.b16 %v3453, %v3453
        %v3486 = vpack.c.b16 %v3454, %v3454
        %v3487 = vpack.c.b16 %v3455, %v3455
        %v3488 = vpack.c.b16 %v3456, %v3456
        %v3489 = vpack.c.b16 %v3457, %v3457
        %v3490 = vpack.c.b16 %v3458, %v3458
        %v3491 = vpack.c.b16 %v3459, %v3459
        %v3492 = vpack.c.b16 %v3460, %v3460
        %v3493 = vpack.c.b16 %v3461, %v3461
        %v3494 = vpack.c.b16 %v3462, %v3462
        %v3495 = vpack.c.b16 %v3463, %v3463
        %v3496 = vpack.c.b16 %v3464, %v3464
        %v3497 = vpack.c.b16 %v3465, %v3465
        %v3498 = vpack.c.b16 %v3466, %v3466
        %v3499 = vpack.c.b16 %v3467, %v3467
        %v3500 = vpack.c.b16 %v3468, %v3468
        %v3501 = vpack.c.b16 %v3469, %v3469
        %v3502 = vpack.c.b16 %v3470, %v3470
        %v3503 = vpack.c.b16 %v3471, %v3471
        %v3504 = vpack.c.b16 %v3472, %v3472
        %v3505 = vpack.c.b16 %v3473, %v3473
        %v3506 = vpack.c.b16 %v3474, %v3474
        %v3507 = vpack.c.b16 %v3475, %v3475
        %v3508 = vpack.c.b16 %v3476, %v3476
        %v3509 = vpack.c.b16 %v3477, %v3477
        %v3510 = vpack.c.b16 %v3478, %v3478
        %v3511 = vpack.c.b16 %v3479, %v3479
        %v3512 = vpack.c.b16 %v3480, %v3480
        %v3513 = vpack.c.b16 %v3481, %v3481
        %v3514 = vpack.c.b16 %v3482, %v3482
        %3547 = vst.msk [vmem:[#allocation3] sm:$0xf] %vm471, %v3483
        %3548 = vst.msk [vmem:[#allocation3 + $0xc] sm:$0xf] %vm471, %v3484
        %3549 = vst.msk [vmem:[#allocation3 + $0x18] sm:$0xf] %vm471, %v3485
        %3550 = vst.msk [vmem:[#allocation3 + $0x24] sm:$0xf] %vm471, %v3486
        %3551 = vst.msk [vmem:[#allocation3 + $0x30] sm:$0xf] %vm471, %v3487
        %3552 = vst.msk [vmem:[#allocation3 + $0x3c] sm:$0xf] %vm471, %v3488
        %3553 = vst.msk [vmem:[#allocation3 + $0x48] sm:$0xf] %vm471, %v3489
        %3554 = vst.msk [vmem:[#allocation3 + $0x54] sm:$0xf] %vm471, %v3490
        %3555 = vst.msk [vmem:[#allocation3 + $0x60] sm:$0xf] %vm471, %v3491
        %3556 = vst.msk [vmem:[#allocation3 + $0x6c] sm:$0xf] %vm471, %v3492
        %3557 = vst.msk [vmem:[#allocation3 + $0x78] sm:$0xf] %vm471, %v3493
        %3558 = vst.msk [vmem:[#allocation3 + $0x84] sm:$0xf] %vm471, %v3494
        %3559 = vst.msk [vmem:[#allocation3 + $0x90] sm:$0xf] %vm471, %v3495
        %3560 = vst.msk [vmem:[#allocation3 + $0x9c] sm:$0xf] %vm471, %v3496
        %3561 = vst.msk [vmem:[#allocation3 + $0xa8] sm:$0xf] %vm471, %v3497
        %3562 = vst.msk [vmem:[#allocation3 + $0xb4] sm:$0xf] %vm471, %v3498
        %3563 = vst.msk [vmem:[#allocation3 + $0xc0] sm:$0xf] %vm471, %v3499
        %3564 = vst.msk [vmem:[#allocation3 + $0xcc] sm:$0xf] %vm471, %v3500
        %3565 = vst.msk [vmem:[#allocation3 + $0xd8] sm:$0xf] %vm471, %v3501
        %3566 = vst.msk [vmem:[#allocation3 + $0xe4] sm:$0xf] %vm471, %v3502
        %3567 = vst.msk [vmem:[#allocation3 + $0xf0] sm:$0xf] %vm471, %v3503
        %3568 = vst.msk [vmem:[#allocation3 + $0xfc] sm:$0xf] %vm471, %v3504
        %3569 = vst.msk [vmem:[#allocation3 + $0x108] sm:$0xf] %vm471, %v3505
        %3570 = vst.msk [vmem:[#allocation3 + $0x114] sm:$0xf] %vm471, %v3506
        %3571 = vst.msk [vmem:[#allocation3 + $0x120] sm:$0xf] %vm471, %v3507
        %3572 = vst.msk [vmem:[#allocation3 + $0x12c] sm:$0xf] %vm471, %v3508
        %3573 = vst.msk [vmem:[#allocation3 + $0x138] sm:$0xf] %vm471, %v3509
        %3574 = vst.msk [vmem:[#allocation3 + $0x144] sm:$0xf] %vm471, %v3510
        %3575 = vst.msk [vmem:[#allocation3 + $0x150] sm:$0xf] %vm471, %v3511
        %3576 = vst.msk [vmem:[#allocation3 + $0x15c] sm:$0xf] %vm471, %v3512
        %3577 = vst.msk [vmem:[#allocation3 + $0x168] sm:$0xf] %vm471, %v3513
        %3578 = vst.msk [vmem:[#allocation3 + $0x174] sm:$0xf] %vm471, %v3514
        %v3579 = vld [vmem:[#allocation2 + $0x1] sm:$0xff]
        %v3580 = vld [vmem:[#allocation2 + $0x9] sm:$0xff]
        %v3581 = vld [vmem:[#allocation2 + $0x19] sm:$0xff]
        %v3582 = vld [vmem:[#allocation2 + $0x21] sm:$0xff]
        %v3583 = vld [vmem:[#allocation2 + $0x31] sm:$0xff]
        %v3584 = vld [vmem:[#allocation2 + $0x39] sm:$0xff]
        %v3585 = vld [vmem:[#allocation2 + $0x49] sm:$0xff]
        %v3586 = vld [vmem:[#allocation2 + $0x51] sm:$0xff]
        %v3587 = vld [vmem:[#allocation2 + $0x61] sm:$0xff]
        %v3588 = vld [vmem:[#allocation2 + $0x69] sm:$0xff]
        %v3589 = vld [vmem:[#allocation2 + $0x79] sm:$0xff]
        %v3590 = vld [vmem:[#allocation2 + $0x81] sm:$0xff]
        %v3591 = vld [vmem:[#allocation2 + $0x91] sm:$0xff]
        %v3592 = vld [vmem:[#allocation2 + $0x99] sm:$0xff]
        %v3593 = vld [vmem:[#allocation2 + $0xa9] sm:$0xff]
        %v3594 = vld [vmem:[#allocation2 + $0xb1] sm:$0xff]
        %v3595 = vld [vmem:[#allocation2 + $0xc1] sm:$0xff]
        %v3596 = vld [vmem:[#allocation2 + $0xc9] sm:$0xff]
        %v3597 = vld [vmem:[#allocation2 + $0xd9] sm:$0xff]
        %v3598 = vld [vmem:[#allocation2 + $0xe1] sm:$0xff]
        %v3599 = vld [vmem:[#allocation2 + $0xf1] sm:$0xff]
        %v3600 = vld [vmem:[#allocation2 + $0xf9] sm:$0xff]
        %v3601 = vld [vmem:[#allocation2 + $0x109] sm:$0xff]
        %v3602 = vld [vmem:[#allocation2 + $0x111] sm:$0xff]
        %v3603 = vld [vmem:[#allocation2 + $0x121] sm:$0xff]
        %v3604 = vld [vmem:[#allocation2 + $0x129] sm:$0xff]
        %v3605 = vld [vmem:[#allocation2 + $0x139] sm:$0xff]
        %v3606 = vld [vmem:[#allocation2 + $0x141] sm:$0xff]
        %v3607 = vld [vmem:[#allocation2 + $0x151] sm:$0xff]
        %v3608 = vld [vmem:[#allocation2 + $0x159] sm:$0xff]
        %v3609 = vld [vmem:[#allocation2 + $0x169] sm:$0xff]
        %v3610 = vld [vmem:[#allocation2 + $0x171] sm:$0xff]
        %v3611 = vpack.c.bf16 %v3580, %v3579
        %v3612 = vpack.c.bf16 %v3582, %v3581
        %v3613 = vpack.c.bf16 %v3584, %v3583
        %v3614 = vpack.c.bf16 %v3586, %v3585
        %v3615 = vpack.c.bf16 %v3588, %v3587
        %v3616 = vpack.c.bf16 %v3590, %v3589
        %v3617 = vpack.c.bf16 %v3592, %v3591
        %v3618 = vpack.c.bf16 %v3594, %v3593
        %v3619 = vpack.c.bf16 %v3596, %v3595
        %v3620 = vpack.c.bf16 %v3598, %v3597
        %v3621 = vpack.c.bf16 %v3600, %v3599
        %v3622 = vpack.c.bf16 %v3602, %v3601
        %v3623 = vpack.c.bf16 %v3604, %v3603
        %v3624 = vpack.c.bf16 %v3606, %v3605
        %v3625 = vpack.c.bf16 %v3608, %v3607
        %v3626 = vpack.c.bf16 %v3610, %v3609
        %v3643 = vunpack.c.l.b16 %v3611
        %v3644 = vunpack.c.h.b16 %v3611
        %v3645 = vunpack.c.l.b16 %v3612
        %v3646 = vunpack.c.h.b16 %v3612
        %v3647 = vunpack.c.l.b16 %v3613
        %v3648 = vunpack.c.h.b16 %v3613
        %v3649 = vunpack.c.l.b16 %v3614
        %v3650 = vunpack.c.h.b16 %v3614
        %v3651 = vunpack.c.l.b16 %v3615
        %v3652 = vunpack.c.h.b16 %v3615
        %v3653 = vunpack.c.l.b16 %v3616
        %v3654 = vunpack.c.h.b16 %v3616
        %v3655 = vunpack.c.l.b16 %v3617
        %v3656 = vunpack.c.h.b16 %v3617
        %v3657 = vunpack.c.l.b16 %v3618
        %v3658 = vunpack.c.h.b16 %v3618
        %v3659 = vunpack.c.l.b16 %v3619
        %v3660 = vunpack.c.h.b16 %v3619
        %v3661 = vunpack.c.l.b16 %v3620
        %v3662 = vunpack.c.h.b16 %v3620
        %v3663 = vunpack.c.l.b16 %v3621
        %v3664 = vunpack.c.h.b16 %v3621
        %v3665 = vunpack.c.l.b16 %v3622
        %v3666 = vunpack.c.h.b16 %v3622
        %v3667 = vunpack.c.l.b16 %v3623
        %v3668 = vunpack.c.h.b16 %v3623
        %v3669 = vunpack.c.l.b16 %v3624
        %v3670 = vunpack.c.h.b16 %v3624
        %v3671 = vunpack.c.l.b16 %v3625
        %v3672 = vunpack.c.h.b16 %v3625
        %v3673 = vunpack.c.l.b16 %v3626
        %v3674 = vunpack.c.h.b16 %v3626
        %v3675 = vpack.c.b16 %v3643, %v3643
        %v3676 = vpack.c.b16 %v3644, %v3644
        %v3677 = vpack.c.b16 %v3645, %v3645
        %v3678 = vpack.c.b16 %v3646, %v3646
        %v3679 = vpack.c.b16 %v3647, %v3647
        %v3680 = vpack.c.b16 %v3648, %v3648
        %v3681 = vpack.c.b16 %v3649, %v3649
        %v3682 = vpack.c.b16 %v3650, %v3650
        %v3683 = vpack.c.b16 %v3651, %v3651
        %v3684 = vpack.c.b16 %v3652, %v3652
        %v3685 = vpack.c.b16 %v3653, %v3653
        %v3686 = vpack.c.b16 %v3654, %v3654
        %v3687 = vpack.c.b16 %v3655, %v3655
        %v3688 = vpack.c.b16 %v3656, %v3656
        %v3689 = vpack.c.b16 %v3657, %v3657
        %v3690 = vpack.c.b16 %v3658, %v3658
        %v3691 = vpack.c.b16 %v3659, %v3659
        %v3692 = vpack.c.b16 %v3660, %v3660
        %v3693 = vpack.c.b16 %v3661, %v3661
        %v3694 = vpack.c.b16 %v3662, %v3662
        %v3695 = vpack.c.b16 %v3663, %v3663
        %v3696 = vpack.c.b16 %v3664, %v3664
        %v3697 = vpack.c.b16 %v3665, %v3665
        %v3698 = vpack.c.b16 %v3666, %v3666
        %v3699 = vpack.c.b16 %v3667, %v3667
        %v3700 = vpack.c.b16 %v3668, %v3668
        %v3701 = vpack.c.b16 %v3669, %v3669
        %v3702 = vpack.c.b16 %v3670, %v3670
        %v3703 = vpack.c.b16 %v3671, %v3671
        %v3704 = vpack.c.b16 %v3672, %v3672
        %v3705 = vpack.c.b16 %v3673, %v3673
        %v3706 = vpack.c.b16 %v3674, %v3674
        %3707 = vrot.lane.b32.xlu0 %v3675, 32
        %v3708 = vpop.permute.xlu0 %3707
        %3709 = vrot.lane.b32.xlu0 %v3676, 32
        %v3710 = vpop.permute.xlu0 %3709
        %3711 = vrot.lane.b32.xlu0 %v3677, 32
        %v3712 = vpop.permute.xlu0 %3711
        %3713 = vrot.lane.b32.xlu0 %v3678, 32
        %v3714 = vpop.permute.xlu0 %3713
        %3715 = vrot.lane.b32.xlu0 %v3679, 32
        %v3716 = vpop.permute.xlu0 %3715
        %3717 = vrot.lane.b32.xlu0 %v3680, 32
        %v3718 = vpop.permute.xlu0 %3717
        %3719 = vrot.lane.b32.xlu0 %v3681, 32
        %v3720 = vpop.permute.xlu0 %3719
        %3721 = vrot.lane.b32.xlu0 %v3682, 32
        %v3722 = vpop.permute.xlu0 %3721
        %3723 = vrot.lane.b32.xlu0 %v3683, 32
        %v3724 = vpop.permute.xlu0 %3723
        %3725 = vrot.lane.b32.xlu0 %v3684, 32
        %v3726 = vpop.permute.xlu0 %3725
        %3727 = vrot.lane.b32.xlu0 %v3685, 32
        %v3728 = vpop.permute.xlu0 %3727
        %3729 = vrot.lane.b32.xlu0 %v3686, 32
        %v3730 = vpop.permute.xlu0 %3729
        %3731 = vrot.lane.b32.xlu0 %v3687, 32
        %v3732 = vpop.permute.xlu0 %3731
        %3733 = vrot.lane.b32.xlu0 %v3688, 32
        %v3734 = vpop.permute.xlu0 %3733
        %3735 = vrot.lane.b32.xlu0 %v3689, 32
        %v3736 = vpop.permute.xlu0 %3735
        %3737 = vrot.lane.b32.xlu0 %v3690, 32
        %v3738 = vpop.permute.xlu0 %3737
        %3739 = vrot.lane.b32.xlu0 %v3691, 32
        %v3740 = vpop.permute.xlu0 %3739
        %3741 = vrot.lane.b32.xlu0 %v3692, 32
        %v3742 = vpop.permute.xlu0 %3741
        %3743 = vrot.lane.b32.xlu0 %v3693, 32
        %v3744 = vpop.permute.xlu0 %3743
        %3745 = vrot.lane.b32.xlu0 %v3694, 32
        %v3746 = vpop.permute.xlu0 %3745
        %3747 = vrot.lane.b32.xlu0 %v3695, 32
        %v3748 = vpop.permute.xlu0 %3747
        %3749 = vrot.lane.b32.xlu0 %v3696, 32
        %v3750 = vpop.permute.xlu0 %3749
        %3751 = vrot.lane.b32.xlu0 %v3697, 32
        %v3752 = vpop.permute.xlu0 %3751
        %3753 = vrot.lane.b32.xlu0 %v3698, 32
        %v3754 = vpop.permute.xlu0 %3753
        %3755 = vrot.lane.b32.xlu0 %v3699, 32
        %v3756 = vpop.permute.xlu0 %3755
        %3757 = vrot.lane.b32.xlu0 %v3700, 32
        %v3758 = vpop.permute.xlu0 %3757
        %3759 = vrot.lane.b32.xlu0 %v3701, 32
        %v3760 = vpop.permute.xlu0 %3759
        %3761 = vrot.lane.b32.xlu0 %v3702, 32
        %v3762 = vpop.permute.xlu0 %3761
        %3763 = vrot.lane.b32.xlu0 %v3703, 32
        %v3764 = vpop.permute.xlu0 %3763
        %3765 = vrot.lane.b32.xlu0 %v3704, 32
        %v3766 = vpop.permute.xlu0 %3765
        %3767 = vrot.lane.b32.xlu0 %v3705, 32
        %v3768 = vpop.permute.xlu0 %3767
        %3769 = vrot.lane.b32.xlu0 %v3706, 32
        %v3770 = vpop.permute.xlu0 %3769
        %3803 = vst.msk [vmem:[#allocation3] sm:$0xf] %vm728, %v3708
        %3804 = vst.msk [vmem:[#allocation3 + $0xc] sm:$0xf] %vm728, %v3710
        %3805 = vst.msk [vmem:[#allocation3 + $0x18] sm:$0xf] %vm728, %v3712
        %3806 = vst.msk [vmem:[#allocation3 + $0x24] sm:$0xf] %vm728, %v3714
        %3807 = vst.msk [vmem:[#allocation3 + $0x30] sm:$0xf] %vm728, %v3716
        %3808 = vst.msk [vmem:[#allocation3 + $0x3c] sm:$0xf] %vm728, %v3718
        %3809 = vst.msk [vmem:[#allocation3 + $0x48] sm:$0xf] %vm728, %v3720
        %3810 = vst.msk [vmem:[#allocation3 + $0x54] sm:$0xf] %vm728, %v3722
        %3811 = vst.msk [vmem:[#allocation3 + $0x60] sm:$0xf] %vm728, %v3724
        %3812 = vst.msk [vmem:[#allocation3 + $0x6c] sm:$0xf] %vm728, %v3726
        %3813 = vst.msk [vmem:[#allocation3 + $0x78] sm:$0xf] %vm728, %v3728
        %3814 = vst.msk [vmem:[#allocation3 + $0x84] sm:$0xf] %vm728, %v3730
        %3815 = vst.msk [vmem:[#allocation3 + $0x90] sm:$0xf] %vm728, %v3732
        %3816 = vst.msk [vmem:[#allocation3 + $0x9c] sm:$0xf] %vm728, %v3734
        %3817 = vst.msk [vmem:[#allocation3 + $0xa8] sm:$0xf] %vm728, %v3736
        %3818 = vst.msk [vmem:[#allocation3 + $0xb4] sm:$0xf] %vm728, %v3738
        %3819 = vst.msk [vmem:[#allocation3 + $0xc0] sm:$0xf] %vm728, %v3740
        %3820 = vst.msk [vmem:[#allocation3 + $0xcc] sm:$0xf] %vm728, %v3742
        %3821 = vst.msk [vmem:[#allocation3 + $0xd8] sm:$0xf] %vm728, %v3744
        %3822 = vst.msk [vmem:[#allocation3 + $0xe4] sm:$0xf] %vm728, %v3746
        %3823 = vst.msk [vmem:[#allocation3 + $0xf0] sm:$0xf] %vm728, %v3748
        %3824 = vst.msk [vmem:[#allocation3 + $0xfc] sm:$0xf] %vm728, %v3750
        %3825 = vst.msk [vmem:[#allocation3 + $0x108] sm:$0xf] %vm728, %v3752
        %3826 = vst.msk [vmem:[#allocation3 + $0x114] sm:$0xf] %vm728, %v3754
        %3827 = vst.msk [vmem:[#allocation3 + $0x120] sm:$0xf] %vm728, %v3756
        %3828 = vst.msk [vmem:[#allocation3 + $0x12c] sm:$0xf] %vm728, %v3758
        %3829 = vst.msk [vmem:[#allocation3 + $0x138] sm:$0xf] %vm728, %v3760
        %3830 = vst.msk [vmem:[#allocation3 + $0x144] sm:$0xf] %vm728, %v3762
        %3831 = vst.msk [vmem:[#allocation3 + $0x150] sm:$0xf] %vm728, %v3764
        %3832 = vst.msk [vmem:[#allocation3 + $0x15c] sm:$0xf] %vm728, %v3766
        %3833 = vst.msk [vmem:[#allocation3 + $0x168] sm:$0xf] %vm728, %v3768
        %3834 = vst.msk [vmem:[#allocation3 + $0x174] sm:$0xf] %vm728, %v3770
        %v3835 = vld [vmem:[#allocation2 + $0x2] sm:$0xff]
        %v3836 = vld [vmem:[#allocation2 + $0xa] sm:$0xff]
        %v3837 = vld [vmem:[#allocation2 + $0x1a] sm:$0xff]
        %v3838 = vld [vmem:[#allocation2 + $0x22] sm:$0xff]
        %v3839 = vld [vmem:[#allocation2 + $0x32] sm:$0xff]
        %v3840 = vld [vmem:[#allocation2 + $0x3a] sm:$0xff]
        %v3841 = vld [vmem:[#allocation2 + $0x4a] sm:$0xff]
        %v3842 = vld [vmem:[#allocation2 + $0x52] sm:$0xff]
        %v3843 = vld [vmem:[#allocation2 + $0x62] sm:$0xff]
        %v3844 = vld [vmem:[#allocation2 + $0x6a] sm:$0xff]
        %v3845 = vld [vmem:[#allocation2 + $0x7a] sm:$0xff]
        %v3846 = vld [vmem:[#allocation2 + $0x82] sm:$0xff]
        %v3847 = vld [vmem:[#allocation2 + $0x92] sm:$0xff]
        %v3848 = vld [vmem:[#allocation2 + $0x9a] sm:$0xff]
        %v3849 = vld [vmem:[#allocation2 + $0xaa] sm:$0xff]
        %v3850 = vld [vmem:[#allocation2 + $0xb2] sm:$0xff]
        %v3851 = vld [vmem:[#allocation2 + $0xc2] sm:$0xff]
        %v3852 = vld [vmem:[#allocation2 + $0xca] sm:$0xff]
        %v3853 = vld [vmem:[#allocation2 + $0xda] sm:$0xff]
        %v3854 = vld [vmem:[#allocation2 + $0xe2] sm:$0xff]
        %v3855 = vld [vmem:[#allocation2 + $0xf2] sm:$0xff]
        %v3856 = vld [vmem:[#allocation2 + $0xfa] sm:$0xff]
        %v3857 = vld [vmem:[#allocation2 + $0x10a] sm:$0xff]
        %v3858 = vld [vmem:[#allocation2 + $0x112] sm:$0xff]
        %v3859 = vld [vmem:[#allocation2 + $0x122] sm:$0xff]
        %v3860 = vld [vmem:[#allocation2 + $0x12a] sm:$0xff]
        %v3861 = vld [vmem:[#allocation2 + $0x13a] sm:$0xff]
        %v3862 = vld [vmem:[#allocation2 + $0x142] sm:$0xff]
        %v3863 = vld [vmem:[#allocation2 + $0x152] sm:$0xff]
        %v3864 = vld [vmem:[#allocation2 + $0x15a] sm:$0xff]
        %v3865 = vld [vmem:[#allocation2 + $0x16a] sm:$0xff]
        %v3866 = vld [vmem:[#allocation2 + $0x172] sm:$0xff]
        %v3867 = vpack.c.bf16 %v3836, %v3835
        %v3868 = vpack.c.bf16 %v3838, %v3837
        %v3869 = vpack.c.bf16 %v3840, %v3839
        %v3870 = vpack.c.bf16 %v3842, %v3841
        %v3871 = vpack.c.bf16 %v3844, %v3843
        %v3872 = vpack.c.bf16 %v3846, %v3845
        %v3873 = vpack.c.bf16 %v3848, %v3847
        %v3874 = vpack.c.bf16 %v3850, %v3849
        %v3875 = vpack.c.bf16 %v3852, %v3851
        %v3876 = vpack.c.bf16 %v3854, %v3853
        %v3877 = vpack.c.bf16 %v3856, %v3855
        %v3878 = vpack.c.bf16 %v3858, %v3857
        %v3879 = vpack.c.bf16 %v3860, %v3859
        %v3880 = vpack.c.bf16 %v3862, %v3861
        %v3881 = vpack.c.bf16 %v3864, %v3863
        %v3882 = vpack.c.bf16 %v3866, %v3865
        %v3899 = vunpack.c.l.b16 %v3867
        %v3900 = vunpack.c.h.b16 %v3867
        %v3901 = vunpack.c.l.b16 %v3868
        %v3902 = vunpack.c.h.b16 %v3868
        %v3903 = vunpack.c.l.b16 %v3869
        %v3904 = vunpack.c.h.b16 %v3869
        %v3905 = vunpack.c.l.b16 %v3870
        %v3906 = vunpack.c.h.b16 %v3870
        %v3907 = vunpack.c.l.b16 %v3871
        %v3908 = vunpack.c.h.b16 %v3871
        %v3909 = vunpack.c.l.b16 %v3872
        %v3910 = vunpack.c.h.b16 %v3872
        %v3911 = vunpack.c.l.b16 %v3873
        %v3912 = vunpack.c.h.b16 %v3873
        %v3913 = vunpack.c.l.b16 %v3874
        %v3914 = vunpack.c.h.b16 %v3874
        %v3915 = vunpack.c.l.b16 %v3875
        %v3916 = vunpack.c.h.b16 %v3875
        %v3917 = vunpack.c.l.b16 %v3876
        %v3918 = vunpack.c.h.b16 %v3876
        %v3919 = vunpack.c.l.b16 %v3877
        %v3920 = vunpack.c.h.b16 %v3877
        %v3921 = vunpack.c.l.b16 %v3878
        %v3922 = vunpack.c.h.b16 %v3878
        %v3923 = vunpack.c.l.b16 %v3879
        %v3924 = vunpack.c.h.b16 %v3879
        %v3925 = vunpack.c.l.b16 %v3880
        %v3926 = vunpack.c.h.b16 %v3880
        %v3927 = vunpack.c.l.b16 %v3881
        %v3928 = vunpack.c.h.b16 %v3881
        %v3929 = vunpack.c.l.b16 %v3882
        %v3930 = vunpack.c.h.b16 %v3882
        %v3931 = vpack.c.b16 %v3899, %v3899
        %v3932 = vpack.c.b16 %v3900, %v3900
        %v3933 = vpack.c.b16 %v3901, %v3901
        %v3934 = vpack.c.b16 %v3902, %v3902
        %v3935 = vpack.c.b16 %v3903, %v3903
        %v3936 = vpack.c.b16 %v3904, %v3904
        %v3937 = vpack.c.b16 %v3905, %v3905
        %v3938 = vpack.c.b16 %v3906, %v3906
        %v3939 = vpack.c.b16 %v3907, %v3907
        %v3940 = vpack.c.b16 %v3908, %v3908
        %v3941 = vpack.c.b16 %v3909, %v3909
        %v3942 = vpack.c.b16 %v3910, %v3910
        %v3943 = vpack.c.b16 %v3911, %v3911
        %v3944 = vpack.c.b16 %v3912, %v3912
        %v3945 = vpack.c.b16 %v3913, %v3913
        %v3946 = vpack.c.b16 %v3914, %v3914
        %v3947 = vpack.c.b16 %v3915, %v3915
        %v3948 = vpack.c.b16 %v3916, %v3916
        %v3949 = vpack.c.b16 %v3917, %v3917
        %v3950 = vpack.c.b16 %v3918, %v3918
        %v3951 = vpack.c.b16 %v3919, %v3919
        %v3952 = vpack.c.b16 %v3920, %v3920
        %v3953 = vpack.c.b16 %v3921, %v3921
        %v3954 = vpack.c.b16 %v3922, %v3922
        %v3955 = vpack.c.b16 %v3923, %v3923
        %v3956 = vpack.c.b16 %v3924, %v3924
        %v3957 = vpack.c.b16 %v3925, %v3925
        %v3958 = vpack.c.b16 %v3926, %v3926
        %v3959 = vpack.c.b16 %v3927, %v3927
        %v3960 = vpack.c.b16 %v3928, %v3928
        %v3961 = vpack.c.b16 %v3929, %v3929
        %v3962 = vpack.c.b16 %v3930, %v3930
        %3963 = vrot.lane.b32.xlu0 %v3931, 64
        %v3964 = vpop.permute.xlu0 %3963
        %3965 = vrot.lane.b32.xlu0 %v3932, 64
        %v3966 = vpop.permute.xlu0 %3965
        %3967 = vrot.lane.b32.xlu0 %v3933, 64
        %v3968 = vpop.permute.xlu0 %3967
        %3969 = vrot.lane.b32.xlu0 %v3934, 64
        %v3970 = vpop.permute.xlu0 %3969
        %3971 = vrot.lane.b32.xlu0 %v3935, 64
        %v3972 = vpop.permute.xlu0 %3971
        %3973 = vrot.lane.b32.xlu0 %v3936, 64
        %v3974 = vpop.permute.xlu0 %3973
        %3975 = vrot.lane.b32.xlu0 %v3937, 64
        %v3976 = vpop.permute.xlu0 %3975
        %3977 = vrot.lane.b32.xlu0 %v3938, 64
        %v3978 = vpop.permute.xlu0 %3977
        %3979 = vrot.lane.b32.xlu0 %v3939, 64
        %v3980 = vpop.permute.xlu0 %3979
        %3981 = vrot.lane.b32.xlu0 %v3940, 64
        %v3982 = vpop.permute.xlu0 %3981
        %3983 = vrot.lane.b32.xlu0 %v3941, 64
        %v3984 = vpop.permute.xlu0 %3983
        %3985 = vrot.lane.b32.xlu0 %v3942, 64
        %v3986 = vpop.permute.xlu0 %3985
        %3987 = vrot.lane.b32.xlu0 %v3943, 64
        %v3988 = vpop.permute.xlu0 %3987
        %3989 = vrot.lane.b32.xlu0 %v3944, 64
        %v3990 = vpop.permute.xlu0 %3989
        %3991 = vrot.lane.b32.xlu0 %v3945, 64
        %v3992 = vpop.permute.xlu0 %3991
        %3993 = vrot.lane.b32.xlu0 %v3946, 64
        %v3994 = vpop.permute.xlu0 %3993
        %3995 = vrot.lane.b32.xlu0 %v3947, 64
        %v3996 = vpop.permute.xlu0 %3995
        %3997 = vrot.lane.b32.xlu0 %v3948, 64
        %v3998 = vpop.permute.xlu0 %3997
        %3999 = vrot.lane.b32.xlu0 %v3949, 64
        %v4000 = vpop.permute.xlu0 %3999
        %4001 = vrot.lane.b32.xlu0 %v3950, 64
        %v4002 = vpop.permute.xlu0 %4001
        %4003 = vrot.lane.b32.xlu0 %v3951, 64
        %v4004 = vpop.permute.xlu0 %4003
        %4005 = vrot.lane.b32.xlu0 %v3952, 64
        %v4006 = vpop.permute.xlu0 %4005
        %4007 = vrot.lane.b32.xlu0 %v3953, 64
        %v4008 = vpop.permute.xlu0 %4007
        %4009 = vrot.lane.b32.xlu0 %v3954, 64
        %v4010 = vpop.permute.xlu0 %4009
        %4011 = vrot.lane.b32.xlu0 %v3955, 64
        %v4012 = vpop.permute.xlu0 %4011
        %4013 = vrot.lane.b32.xlu0 %v3956, 64
        %v4014 = vpop.permute.xlu0 %4013
        %4015 = vrot.lane.b32.xlu0 %v3957, 64
        %v4016 = vpop.permute.xlu0 %4015
        %4017 = vrot.lane.b32.xlu0 %v3958, 64
        %v4018 = vpop.permute.xlu0 %4017
        %4019 = vrot.lane.b32.xlu0 %v3959, 64
        %v4020 = vpop.permute.xlu0 %4019
        %4021 = vrot.lane.b32.xlu0 %v3960, 64
        %v4022 = vpop.permute.xlu0 %4021
        %4023 = vrot.lane.b32.xlu0 %v3961, 64
        %v4024 = vpop.permute.xlu0 %4023
        %4025 = vrot.lane.b32.xlu0 %v3962, 64
        %v4026 = vpop.permute.xlu0 %4025
        %4059 = vst.msk [vmem:[#allocation3] sm:$0xf] %vm985, %v3964
        %4060 = vst.msk [vmem:[#allocation3 + $0xc] sm:$0xf] %vm985, %v3966
        %4061 = vst.msk [vmem:[#allocation3 + $0x18] sm:$0xf] %vm985, %v3968
        %4062 = vst.msk [vmem:[#allocation3 + $0x24] sm:$0xf] %vm985, %v3970
        %4063 = vst.msk [vmem:[#allocation3 + $0x30] sm:$0xf] %vm985, %v3972
        %4064 = vst.msk [vmem:[#allocation3 + $0x3c] sm:$0xf] %vm985, %v3974
        %4065 = vst.msk [vmem:[#allocation3 + $0x48] sm:$0xf] %vm985, %v3976
        %4066 = vst.msk [vmem:[#allocation3 + $0x54] sm:$0xf] %vm985, %v3978
        %4067 = vst.msk [vmem:[#allocation3 + $0x60] sm:$0xf] %vm985, %v3980
        %4068 = vst.msk [vmem:[#allocation3 + $0x6c] sm:$0xf] %vm985, %v3982
        %4069 = vst.msk [vmem:[#allocation3 + $0x78] sm:$0xf] %vm985, %v3984
        %4070 = vst.msk [vmem:[#allocation3 + $0x84] sm:$0xf] %vm985, %v3986
        %4071 = vst.msk [vmem:[#allocation3 + $0x90] sm:$0xf] %vm985, %v3988
        %4072 = vst.msk [vmem:[#allocation3 + $0x9c] sm:$0xf] %vm985, %v3990
        %4073 = vst.msk [vmem:[#allocation3 + $0xa8] sm:$0xf] %vm985, %v3992
        %4074 = vst.msk [vmem:[#allocation3 + $0xb4] sm:$0xf] %vm985, %v3994
        %4075 = vst.msk [vmem:[#allocation3 + $0xc0] sm:$0xf] %vm985, %v3996
        %4076 = vst.msk [vmem:[#allocation3 + $0xcc] sm:$0xf] %vm985, %v3998
        %4077 = vst.msk [vmem:[#allocation3 + $0xd8] sm:$0xf] %vm985, %v4000
        %4078 = vst.msk [vmem:[#allocation3 + $0xe4] sm:$0xf] %vm985, %v4002
        %4079 = vst.msk [vmem:[#allocation3 + $0xf0] sm:$0xf] %vm985, %v4004
        %4080 = vst.msk [vmem:[#allocation3 + $0xfc] sm:$0xf] %vm985, %v4006
        %4081 = vst.msk [vmem:[#allocation3 + $0x108] sm:$0xf] %vm985, %v4008
        %4082 = vst.msk [vmem:[#allocation3 + $0x114] sm:$0xf] %vm985, %v4010
        %4083 = vst.msk [vmem:[#allocation3 + $0x120] sm:$0xf] %vm985, %v4012
        %4084 = vst.msk [vmem:[#allocation3 + $0x12c] sm:$0xf] %vm985, %v4014
        %4085 = vst.msk [vmem:[#allocation3 + $0x138] sm:$0xf] %vm985, %v4016
        %4086 = vst.msk [vmem:[#allocation3 + $0x144] sm:$0xf] %vm985, %v4018
        %4087 = vst.msk [vmem:[#allocation3 + $0x150] sm:$0xf] %vm985, %v4020
        %4088 = vst.msk [vmem:[#allocation3 + $0x15c] sm:$0xf] %vm985, %v4022
        %4089 = vst.msk [vmem:[#allocation3 + $0x168] sm:$0xf] %vm985, %v4024
        %4090 = vst.msk [vmem:[#allocation3 + $0x174] sm:$0xf] %vm985, %v4026
        %v4091 = vld [vmem:[%s278] sm:$0xff]
        %v4092 = vld [vmem:[%s278 + $0x8] sm:$0xff]
        %v4093 = vld [vmem:[%s278 + $0x18] sm:$0xff]
        %v4094 = vld [vmem:[%s278 + $0x20] sm:$0xff]
        %v4095 = vld [vmem:[%s278 + $0x30] sm:$0xff]
        %v4096 = vld [vmem:[%s278 + $0x38] sm:$0xff]
        %v4097 = vld [vmem:[%s278 + $0x48] sm:$0xff]
        %v4098 = vld [vmem:[%s278 + $0x50] sm:$0xff]
        %v4099 = vld [vmem:[%s278 + $0x60] sm:$0xff]
        %v4100 = vld [vmem:[%s278 + $0x68] sm:$0xff]
        %v4101 = vld [vmem:[%s278 + $0x78] sm:$0xff]
        %v4102 = vld [vmem:[%s278 + $0x80] sm:$0xff]
        %v4103 = vld [vmem:[%s278 + $0x90] sm:$0xff]
        %v4104 = vld [vmem:[%s278 + $0x98] sm:$0xff]
        %v4105 = vld [vmem:[%s278 + $0xa8] sm:$0xff]
        %v4106 = vld [vmem:[%s278 + $0xb0] sm:$0xff]
        %v4107 = vld [vmem:[%s278 + $0xc0] sm:$0xff]
        %v4108 = vld [vmem:[%s278 + $0xc8] sm:$0xff]
        %v4109 = vld [vmem:[%s278 + $0xd8] sm:$0xff]
        %v4110 = vld [vmem:[%s278 + $0xe0] sm:$0xff]
        %v4111 = vld [vmem:[%s278 + $0xf0] sm:$0xff]
        %v4112 = vld [vmem:[%s278 + $0xf8] sm:$0xff]
        %v4113 = vld [vmem:[%s278 + $0x108] sm:$0xff]
        %v4114 = vld [vmem:[%s278 + $0x110] sm:$0xff]
        %v4115 = vld [vmem:[%s278 + $0x120] sm:$0xff]
        %v4116 = vld [vmem:[%s278 + $0x128] sm:$0xff]
        %v4117 = vld [vmem:[%s278 + $0x138] sm:$0xff]
        %v4118 = vld [vmem:[%s278 + $0x140] sm:$0xff]
        %v4119 = vld [vmem:[%s278 + $0x150] sm:$0xff]
        %v4120 = vld [vmem:[%s278 + $0x158] sm:$0xff]
        %v4121 = vld [vmem:[%s278 + $0x168] sm:$0xff]
        %v4122 = vld [vmem:[%s278 + $0x170] sm:$0xff]
        %v4123 = vpack.c.bf16 %v4092, %v4091
        %v4124 = vpack.c.bf16 %v4094, %v4093
        %v4125 = vpack.c.bf16 %v4096, %v4095
        %v4126 = vpack.c.bf16 %v4098, %v4097
        %v4127 = vpack.c.bf16 %v4100, %v4099
        %v4128 = vpack.c.bf16 %v4102, %v4101
        %v4129 = vpack.c.bf16 %v4104, %v4103
        %v4130 = vpack.c.bf16 %v4106, %v4105
        %v4131 = vpack.c.bf16 %v4108, %v4107
        %v4132 = vpack.c.bf16 %v4110, %v4109
        %v4133 = vpack.c.bf16 %v4112, %v4111
        %v4134 = vpack.c.bf16 %v4114, %v4113
        %v4135 = vpack.c.bf16 %v4116, %v4115
        %v4136 = vpack.c.bf16 %v4118, %v4117
        %v4137 = vpack.c.bf16 %v4120, %v4119
        %v4138 = vpack.c.bf16 %v4122, %v4121
        %v4155 = vunpack.c.l.b16 %v4123
        %v4156 = vunpack.c.h.b16 %v4123
        %v4157 = vunpack.c.l.b16 %v4124
        %v4158 = vunpack.c.h.b16 %v4124
        %v4159 = vunpack.c.l.b16 %v4125
        %v4160 = vunpack.c.h.b16 %v4125
        %v4161 = vunpack.c.l.b16 %v4126
        %v4162 = vunpack.c.h.b16 %v4126
        %v4163 = vunpack.c.l.b16 %v4127
        %v4164 = vunpack.c.h.b16 %v4127
        %v4165 = vunpack.c.l.b16 %v4128
        %v4166 = vunpack.c.h.b16 %v4128
        %v4167 = vunpack.c.l.b16 %v4129
        %v4168 = vunpack.c.h.b16 %v4129
        %v4169 = vunpack.c.l.b16 %v4130
        %v4170 = vunpack.c.h.b16 %v4130
        %v4171 = vunpack.c.l.b16 %v4131
        %v4172 = vunpack.c.h.b16 %v4131
        %v4173 = vunpack.c.l.b16 %v4132
        %v4174 = vunpack.c.h.b16 %v4132
        %v4175 = vunpack.c.l.b16 %v4133
        %v4176 = vunpack.c.h.b16 %v4133
        %v4177 = vunpack.c.l.b16 %v4134
        %v4178 = vunpack.c.h.b16 %v4134
        %v4179 = vunpack.c.l.b16 %v4135
        %v4180 = vunpack.c.h.b16 %v4135
        %v4181 = vunpack.c.l.b16 %v4136
        %v4182 = vunpack.c.h.b16 %v4136
        %v4183 = vunpack.c.l.b16 %v4137
        %v4184 = vunpack.c.h.b16 %v4137
        %v4185 = vunpack.c.l.b16 %v4138
        %v4186 = vunpack.c.h.b16 %v4138
        %v4187 = vpack.c.b16 %v4155, %v4155
        %v4188 = vpack.c.b16 %v4156, %v4156
        %v4189 = vpack.c.b16 %v4157, %v4157
        %v4190 = vpack.c.b16 %v4158, %v4158
        %v4191 = vpack.c.b16 %v4159, %v4159
        %v4192 = vpack.c.b16 %v4160, %v4160
        %v4193 = vpack.c.b16 %v4161, %v4161
        %v4194 = vpack.c.b16 %v4162, %v4162
        %v4195 = vpack.c.b16 %v4163, %v4163
        %v4196 = vpack.c.b16 %v4164, %v4164
        %v4197 = vpack.c.b16 %v4165, %v4165
        %v4198 = vpack.c.b16 %v4166, %v4166
        %v4199 = vpack.c.b16 %v4167, %v4167
        %v4200 = vpack.c.b16 %v4168, %v4168
        %v4201 = vpack.c.b16 %v4169, %v4169
        %v4202 = vpack.c.b16 %v4170, %v4170
        %v4203 = vpack.c.b16 %v4171, %v4171
        %v4204 = vpack.c.b16 %v4172, %v4172
        %v4205 = vpack.c.b16 %v4173, %v4173
        %v4206 = vpack.c.b16 %v4174, %v4174
        %v4207 = vpack.c.b16 %v4175, %v4175
        %v4208 = vpack.c.b16 %v4176, %v4176
        %v4209 = vpack.c.b16 %v4177, %v4177
        %v4210 = vpack.c.b16 %v4178, %v4178
        %v4211 = vpack.c.b16 %v4179, %v4179
        %v4212 = vpack.c.b16 %v4180, %v4180
        %v4213 = vpack.c.b16 %v4181, %v4181
        %v4214 = vpack.c.b16 %v4182, %v4182
        %v4215 = vpack.c.b16 %v4183, %v4183
        %v4216 = vpack.c.b16 %v4184, %v4184
        %v4217 = vpack.c.b16 %v4185, %v4185
        %v4218 = vpack.c.b16 %v4186, %v4186
        %4219 = vrot.lane.b32.xlu0 %v4187, 96
        %v4220 = vpop.permute.xlu0 %4219
        %4221 = vrot.lane.b32.xlu0 %v4188, 96
        %v4222 = vpop.permute.xlu0 %4221
        %4223 = vrot.lane.b32.xlu0 %v4189, 96
        %v4224 = vpop.permute.xlu0 %4223
        %4225 = vrot.lane.b32.xlu0 %v4190, 96
        %v4226 = vpop.permute.xlu0 %4225
        %4227 = vrot.lane.b32.xlu0 %v4191, 96
        %v4228 = vpop.permute.xlu0 %4227
        %4229 = vrot.lane.b32.xlu0 %v4192, 96
        %v4230 = vpop.permute.xlu0 %4229
        %4231 = vrot.lane.b32.xlu0 %v4193, 96
        %v4232 = vpop.permute.xlu0 %4231
        %4233 = vrot.lane.b32.xlu0 %v4194, 96
        %v4234 = vpop.permute.xlu0 %4233
        %4235 = vrot.lane.b32.xlu0 %v4195, 96
        %v4236 = vpop.permute.xlu0 %4235
        %4237 = vrot.lane.b32.xlu0 %v4196, 96
        %v4238 = vpop.permute.xlu0 %4237
        %4239 = vrot.lane.b32.xlu0 %v4197, 96
        %v4240 = vpop.permute.xlu0 %4239
        %4241 = vrot.lane.b32.xlu0 %v4198, 96
        %v4242 = vpop.permute.xlu0 %4241
        %4243 = vrot.lane.b32.xlu0 %v4199, 96
        %v4244 = vpop.permute.xlu0 %4243
        %4245 = vrot.lane.b32.xlu0 %v4200, 96
        %v4246 = vpop.permute.xlu0 %4245
        %4247 = vrot.lane.b32.xlu0 %v4201, 96
        %v4248 = vpop.permute.xlu0 %4247
        %4249 = vrot.lane.b32.xlu0 %v4202, 96
        %v4250 = vpop.permute.xlu0 %4249
        %4251 = vrot.lane.b32.xlu0 %v4203, 96
        %v4252 = vpop.permute.xlu0 %4251
        %4253 = vrot.lane.b32.xlu0 %v4204, 96
        %v4254 = vpop.permute.xlu0 %4253
        %4255 = vrot.lane.b32.xlu0 %v4205, 96
        %v4256 = vpop.permute.xlu0 %4255
        %4257 = vrot.lane.b32.xlu0 %v4206, 96
        %v4258 = vpop.permute.xlu0 %4257
        %4259 = vrot.lane.b32.xlu0 %v4207, 96
        %v4260 = vpop.permute.xlu0 %4259
        %4261 = vrot.lane.b32.xlu0 %v4208, 96
        %v4262 = vpop.permute.xlu0 %4261
        %4263 = vrot.lane.b32.xlu0 %v4209, 96
        %v4264 = vpop.permute.xlu0 %4263
        %4265 = vrot.lane.b32.xlu0 %v4210, 96
        %v4266 = vpop.permute.xlu0 %4265
        %4267 = vrot.lane.b32.xlu0 %v4211, 96
        %v4268 = vpop.permute.xlu0 %4267
        %4269 = vrot.lane.b32.xlu0 %v4212, 96
        %v4270 = vpop.permute.xlu0 %4269
        %4271 = vrot.lane.b32.xlu0 %v4213, 96
        %v4272 = vpop.permute.xlu0 %4271
        %4273 = vrot.lane.b32.xlu0 %v4214, 96
        %v4274 = vpop.permute.xlu0 %4273
        %4275 = vrot.lane.b32.xlu0 %v4215, 96
        %v4276 = vpop.permute.xlu0 %4275
        %4277 = vrot.lane.b32.xlu0 %v4216, 96
        %v4278 = vpop.permute.xlu0 %4277
        %4279 = vrot.lane.b32.xlu0 %v4217, 96
        %v4280 = vpop.permute.xlu0 %4279
        %4281 = vrot.lane.b32.xlu0 %v4218, 96
        %v4282 = vpop.permute.xlu0 %4281
        %4315 = vst.msk [vmem:[#allocation3] sm:$0xf] %vm1242, %v4220
        %4316 = vst.msk [vmem:[#allocation3 + $0xc] sm:$0xf] %vm1242, %v4222
        %4317 = vst.msk [vmem:[#allocation3 + $0x18] sm:$0xf] %vm1242, %v4224
        %4318 = vst.msk [vmem:[#allocation3 + $0x24] sm:$0xf] %vm1242, %v4226
        %4319 = vst.msk [vmem:[#allocation3 + $0x30] sm:$0xf] %vm1242, %v4228
        %4320 = vst.msk [vmem:[#allocation3 + $0x3c] sm:$0xf] %vm1242, %v4230
        %4321 = vst.msk [vmem:[#allocation3 + $0x48] sm:$0xf] %vm1242, %v4232
        %4322 = vst.msk [vmem:[#allocation3 + $0x54] sm:$0xf] %vm1242, %v4234
        %4323 = vst.msk [vmem:[#allocation3 + $0x60] sm:$0xf] %vm1242, %v4236
        %4324 = vst.msk [vmem:[#allocation3 + $0x6c] sm:$0xf] %vm1242, %v4238
        %4325 = vst.msk [vmem:[#allocation3 + $0x78] sm:$0xf] %vm1242, %v4240
        %4326 = vst.msk [vmem:[#allocation3 + $0x84] sm:$0xf] %vm1242, %v4242
        %4327 = vst.msk [vmem:[#allocation3 + $0x90] sm:$0xf] %vm1242, %v4244
        %4328 = vst.msk [vmem:[#allocation3 + $0x9c] sm:$0xf] %vm1242, %v4246
        %4329 = vst.msk [vmem:[#allocation3 + $0xa8] sm:$0xf] %vm1242, %v4248
        %4330 = vst.msk [vmem:[#allocation3 + $0xb4] sm:$0xf] %vm1242, %v4250
        %4331 = vst.msk [vmem:[#allocation3 + $0xc0] sm:$0xf] %vm1242, %v4252
        %4332 = vst.msk [vmem:[#allocation3 + $0xcc] sm:$0xf] %vm1242, %v4254
        %4333 = vst.msk [vmem:[#allocation3 + $0xd8] sm:$0xf] %vm1242, %v4256
        %4334 = vst.msk [vmem:[#allocation3 + $0xe4] sm:$0xf] %vm1242, %v4258
        %4335 = vst.msk [vmem:[#allocation3 + $0xf0] sm:$0xf] %vm1242, %v4260
        %4336 = vst.msk [vmem:[#allocation3 + $0xfc] sm:$0xf] %vm1242, %v4262
        %4337 = vst.msk [vmem:[#allocation3 + $0x108] sm:$0xf] %vm1242, %v4264
        %4338 = vst.msk [vmem:[#allocation3 + $0x114] sm:$0xf] %vm1242, %v4266
        %4339 = vst.msk [vmem:[#allocation3 + $0x120] sm:$0xf] %vm1242, %v4268
        %4340 = vst.msk [vmem:[#allocation3 + $0x12c] sm:$0xf] %vm1242, %v4270
        %4341 = vst.msk [vmem:[#allocation3 + $0x138] sm:$0xf] %vm1242, %v4272
        %4342 = vst.msk [vmem:[#allocation3 + $0x144] sm:$0xf] %vm1242, %v4274
        %4343 = vst.msk [vmem:[#allocation3 + $0x150] sm:$0xf] %vm1242, %v4276
        %4344 = vst.msk [vmem:[#allocation3 + $0x15c] sm:$0xf] %vm1242, %v4278
        %4345 = vst.msk [vmem:[#allocation3 + $0x168] sm:$0xf] %vm1242, %v4280
        %4346 = vst.msk [vmem:[#allocation3 + $0x174] sm:$0xf] %vm1242, %v4282
        %v4347 = vld [vmem:[%s278 + $0x1] sm:$0xff]
        %v4348 = vld [vmem:[%s278 + $0x9] sm:$0xff]
        %v4349 = vld [vmem:[%s278 + $0x19] sm:$0xff]
        %v4350 = vld [vmem:[%s278 + $0x21] sm:$0xff]
        %v4351 = vld [vmem:[%s278 + $0x31] sm:$0xff]
        %v4352 = vld [vmem:[%s278 + $0x39] sm:$0xff]
        %v4353 = vld [vmem:[%s278 + $0x49] sm:$0xff]
        %v4354 = vld [vmem:[%s278 + $0x51] sm:$0xff]
        %v4355 = vld [vmem:[%s278 + $0x61] sm:$0xff]
        %v4356 = vld [vmem:[%s278 + $0x69] sm:$0xff]
        %v4357 = vld [vmem:[%s278 + $0x79] sm:$0xff]
        %v4358 = vld [vmem:[%s278 + $0x81] sm:$0xff]
        %v4359 = vld [vmem:[%s278 + $0x91] sm:$0xff]
        %v4360 = vld [vmem:[%s278 + $0x99] sm:$0xff]
        %v4361 = vld [vmem:[%s278 + $0xa9] sm:$0xff]
        %v4362 = vld [vmem:[%s278 + $0xb1] sm:$0xff]
        %v4363 = vld [vmem:[%s278 + $0xc1] sm:$0xff]
        %v4364 = vld [vmem:[%s278 + $0xc9] sm:$0xff]
        %v4365 = vld [vmem:[%s278 + $0xd9] sm:$0xff]
        %v4366 = vld [vmem:[%s278 + $0xe1] sm:$0xff]
        %v4367 = vld [vmem:[%s278 + $0xf1] sm:$0xff]
        %v4368 = vld [vmem:[%s278 + $0xf9] sm:$0xff]
        %v4369 = vld [vmem:[%s278 + $0x109] sm:$0xff]
        %v4370 = vld [vmem:[%s278 + $0x111] sm:$0xff]
        %v4371 = vld [vmem:[%s278 + $0x121] sm:$0xff]
        %v4372 = vld [vmem:[%s278 + $0x129] sm:$0xff]
        %v4373 = vld [vmem:[%s278 + $0x139] sm:$0xff]
        %v4374 = vld [vmem:[%s278 + $0x141] sm:$0xff]
        %v4375 = vld [vmem:[%s278 + $0x151] sm:$0xff]
        %v4376 = vld [vmem:[%s278 + $0x159] sm:$0xff]
        %v4377 = vld [vmem:[%s278 + $0x169] sm:$0xff]
        %v4378 = vld [vmem:[%s278 + $0x171] sm:$0xff]
        %v4379 = vpack.c.bf16 %v4348, %v4347
        %v4380 = vpack.c.bf16 %v4350, %v4349
        %v4381 = vpack.c.bf16 %v4352, %v4351
        %v4382 = vpack.c.bf16 %v4354, %v4353
        %v4383 = vpack.c.bf16 %v4356, %v4355
        %v4384 = vpack.c.bf16 %v4358, %v4357
        %v4385 = vpack.c.bf16 %v4360, %v4359
        %v4386 = vpack.c.bf16 %v4362, %v4361
        %v4387 = vpack.c.bf16 %v4364, %v4363
        %v4388 = vpack.c.bf16 %v4366, %v4365
        %v4389 = vpack.c.bf16 %v4368, %v4367
        %v4390 = vpack.c.bf16 %v4370, %v4369
        %v4391 = vpack.c.bf16 %v4372, %v4371
        %v4392 = vpack.c.bf16 %v4374, %v4373
        %v4393 = vpack.c.bf16 %v4376, %v4375
        %v4394 = vpack.c.bf16 %v4378, %v4377
        %v4411 = vunpack.c.l.b16 %v4379
        %v4412 = vunpack.c.h.b16 %v4379
        %v4413 = vunpack.c.l.b16 %v4380
        %v4414 = vunpack.c.h.b16 %v4380
        %v4415 = vunpack.c.l.b16 %v4381
        %v4416 = vunpack.c.h.b16 %v4381
        %v4417 = vunpack.c.l.b16 %v4382
        %v4418 = vunpack.c.h.b16 %v4382
        %v4419 = vunpack.c.l.b16 %v4383
        %v4420 = vunpack.c.h.b16 %v4383
        %v4421 = vunpack.c.l.b16 %v4384
        %v4422 = vunpack.c.h.b16 %v4384
        %v4423 = vunpack.c.l.b16 %v4385
        %v4424 = vunpack.c.h.b16 %v4385
        %v4425 = vunpack.c.l.b16 %v4386
        %v4426 = vunpack.c.h.b16 %v4386
        %v4427 = vunpack.c.l.b16 %v4387
        %v4428 = vunpack.c.h.b16 %v4387
        %v4429 = vunpack.c.l.b16 %v4388
        %v4430 = vunpack.c.h.b16 %v4388
        %v4431 = vunpack.c.l.b16 %v4389
        %v4432 = vunpack.c.h.b16 %v4389
        %v4433 = vunpack.c.l.b16 %v4390
        %v4434 = vunpack.c.h.b16 %v4390
        %v4435 = vunpack.c.l.b16 %v4391
        %v4436 = vunpack.c.h.b16 %v4391
        %v4437 = vunpack.c.l.b16 %v4392
        %v4438 = vunpack.c.h.b16 %v4392
        %v4439 = vunpack.c.l.b16 %v4393
        %v4440 = vunpack.c.h.b16 %v4393
        %v4441 = vunpack.c.l.b16 %v4394
        %v4442 = vunpack.c.h.b16 %v4394
        %v4443 = vpack.c.b16 %v4411, %v4411
        %v4444 = vpack.c.b16 %v4412, %v4412
        %v4445 = vpack.c.b16 %v4413, %v4413
        %v4446 = vpack.c.b16 %v4414, %v4414
        %v4447 = vpack.c.b16 %v4415, %v4415
        %v4448 = vpack.c.b16 %v4416, %v4416
        %v4449 = vpack.c.b16 %v4417, %v4417
        %v4450 = vpack.c.b16 %v4418, %v4418
        %v4451 = vpack.c.b16 %v4419, %v4419
        %v4452 = vpack.c.b16 %v4420, %v4420
        %v4453 = vpack.c.b16 %v4421, %v4421
        %v4454 = vpack.c.b16 %v4422, %v4422
        %v4455 = vpack.c.b16 %v4423, %v4423
        %v4456 = vpack.c.b16 %v4424, %v4424
        %v4457 = vpack.c.b16 %v4425, %v4425
        %v4458 = vpack.c.b16 %v4426, %v4426
        %v4459 = vpack.c.b16 %v4427, %v4427
        %v4460 = vpack.c.b16 %v4428, %v4428
        %v4461 = vpack.c.b16 %v4429, %v4429
        %v4462 = vpack.c.b16 %v4430, %v4430
        %v4463 = vpack.c.b16 %v4431, %v4431
        %v4464 = vpack.c.b16 %v4432, %v4432
        %v4465 = vpack.c.b16 %v4433, %v4433
        %v4466 = vpack.c.b16 %v4434, %v4434
        %v4467 = vpack.c.b16 %v4435, %v4435
        %v4468 = vpack.c.b16 %v4436, %v4436
        %v4469 = vpack.c.b16 %v4437, %v4437
        %v4470 = vpack.c.b16 %v4438, %v4438
        %v4471 = vpack.c.b16 %v4439, %v4439
        %v4472 = vpack.c.b16 %v4440, %v4440
        %v4473 = vpack.c.b16 %v4441, %v4441
        %v4474 = vpack.c.b16 %v4442, %v4442
        %4507 = vst.msk [vmem:[#allocation3 + $0x4] sm:$0xf] %vm471, %v4443
        %4508 = vst.msk [vmem:[#allocation3 + $0x10] sm:$0xf] %vm471, %v4444
        %4509 = vst.msk [vmem:[#allocation3 + $0x1c] sm:$0xf] %vm471, %v4445
        %4510 = vst.msk [vmem:[#allocation3 + $0x28] sm:$0xf] %vm471, %v4446
        %4511 = vst.msk [vmem:[#allocation3 + $0x34] sm:$0xf] %vm471, %v4447
        %4512 = vst.msk [vmem:[#allocation3 + $0x40] sm:$0xf] %vm471, %v4448
        %4513 = vst.msk [vmem:[#allocation3 + $0x4c] sm:$0xf] %vm471, %v4449
        %4514 = vst.msk [vmem:[#allocation3 + $0x58] sm:$0xf] %vm471, %v4450
        %4515 = vst.msk [vmem:[#allocation3 + $0x64] sm:$0xf] %vm471, %v4451
        %4516 = vst.msk [vmem:[#allocation3 + $0x70] sm:$0xf] %vm471, %v4452
        %4517 = vst.msk [vmem:[#allocation3 + $0x7c] sm:$0xf] %vm471, %v4453
        %4518 = vst.msk [vmem:[#allocation3 + $0x88] sm:$0xf] %vm471, %v4454
        %4519 = vst.msk [vmem:[#allocation3 + $0x94] sm:$0xf] %vm471, %v4455
        %4520 = vst.msk [vmem:[#allocation3 + $0xa0] sm:$0xf] %vm471, %v4456
        %4521 = vst.msk [vmem:[#allocation3 + $0xac] sm:$0xf] %vm471, %v4457
        %4522 = vst.msk [vmem:[#allocation3 + $0xb8] sm:$0xf] %vm471, %v4458
        %4523 = vst.msk [vmem:[#allocation3 + $0xc4] sm:$0xf] %vm471, %v4459
        %4524 = vst.msk [vmem:[#allocation3 + $0xd0] sm:$0xf] %vm471, %v4460
        %4525 = vst.msk [vmem:[#allocation3 + $0xdc] sm:$0xf] %vm471, %v4461
        %4526 = vst.msk [vmem:[#allocation3 + $0xe8] sm:$0xf] %vm471, %v4462
        %4527 = vst.msk [vmem:[#allocation3 + $0xf4] sm:$0xf] %vm471, %v4463
        %4528 = vst.msk [vmem:[#allocation3 + $0x100] sm:$0xf] %vm471, %v4464
        %4529 = vst.msk [vmem:[#allocation3 + $0x10c] sm:$0xf] %vm471, %v4465
        %4530 = vst.msk [vmem:[#allocation3 + $0x118] sm:$0xf] %vm471, %v4466
        %4531 = vst.msk [vmem:[#allocation3 + $0x124] sm:$0xf] %vm471, %v4467
        %4532 = vst.msk [vmem:[#allocation3 + $0x130] sm:$0xf] %vm471, %v4468
        %4533 = vst.msk [vmem:[#allocation3 + $0x13c] sm:$0xf] %vm471, %v4469
        %4534 = vst.msk [vmem:[#allocation3 + $0x148] sm:$0xf] %vm471, %v4470
        %4535 = vst.msk [vmem:[#allocation3 + $0x154] sm:$0xf] %vm471, %v4471
        %4536 = vst.msk [vmem:[#allocation3 + $0x160] sm:$0xf] %vm471, %v4472
        %4537 = vst.msk [vmem:[#allocation3 + $0x16c] sm:$0xf] %vm471, %v4473
        %4538 = vst.msk [vmem:[#allocation3 + $0x178] sm:$0xf] %vm471, %v4474
        %v4539 = vld [vmem:[%s278 + $0x2] sm:$0xff]
        %v4540 = vld [vmem:[%s278 + $0xa] sm:$0xff]
        %v4541 = vld [vmem:[%s278 + $0x1a] sm:$0xff]
        %v4542 = vld [vmem:[%s278 + $0x22] sm:$0xff]
        %v4543 = vld [vmem:[%s278 + $0x32] sm:$0xff]
        %v4544 = vld [vmem:[%s278 + $0x3a] sm:$0xff]
        %v4545 = vld [vmem:[%s278 + $0x4a] sm:$0xff]
        %v4546 = vld [vmem:[%s278 + $0x52] sm:$0xff]
        %v4547 = vld [vmem:[%s278 + $0x62] sm:$0xff]
        %v4548 = vld [vmem:[%s278 + $0x6a] sm:$0xff]
        %v4549 = vld [vmem:[%s278 + $0x7a] sm:$0xff]
        %v4550 = vld [vmem:[%s278 + $0x82] sm:$0xff]
        %v4551 = vld [vmem:[%s278 + $0x92] sm:$0xff]
        %v4552 = vld [vmem:[%s278 + $0x9a] sm:$0xff]
        %v4553 = vld [vmem:[%s278 + $0xaa] sm:$0xff]
        %v4554 = vld [vmem:[%s278 + $0xb2] sm:$0xff]
        %v4555 = vld [vmem:[%s278 + $0xc2] sm:$0xff]
        %v4556 = vld [vmem:[%s278 + $0xca] sm:$0xff]
        %v4557 = vld [vmem:[%s278 + $0xda] sm:$0xff]
        %v4558 = vld [vmem:[%s278 + $0xe2] sm:$0xff]
        %v4559 = vld [vmem:[%s278 + $0xf2] sm:$0xff]
        %v4560 = vld [vmem:[%s278 + $0xfa] sm:$0xff]
        %v4561 = vld [vmem:[%s278 + $0x10a] sm:$0xff]
        %v4562 = vld [vmem:[%s278 + $0x112] sm:$0xff]
        %v4563 = vld [vmem:[%s278 + $0x122] sm:$0xff]
        %v4564 = vld [vmem:[%s278 + $0x12a] sm:$0xff]
        %v4565 = vld [vmem:[%s278 + $0x13a] sm:$0xff]
        %v4566 = vld [vmem:[%s278 + $0x142] sm:$0xff]
        %v4567 = vld [vmem:[%s278 + $0x152] sm:$0xff]
        %v4568 = vld [vmem:[%s278 + $0x15a] sm:$0xff]
        %v4569 = vld [vmem:[%s278 + $0x16a] sm:$0xff]
        %v4570 = vld [vmem:[%s278 + $0x172] sm:$0xff]
        %v4571 = vpack.c.bf16 %v4540, %v4539
        %v4572 = vpack.c.bf16 %v4542, %v4541
        %v4573 = vpack.c.bf16 %v4544, %v4543
        %v4574 = vpack.c.bf16 %v4546, %v4545
        %v4575 = vpack.c.bf16 %v4548, %v4547
        %v4576 = vpack.c.bf16 %v4550, %v4549
        %v4577 = vpack.c.bf16 %v4552, %v4551
        %v4578 = vpack.c.bf16 %v4554, %v4553
        %v4579 = vpack.c.bf16 %v4556, %v4555
        %v4580 = vpack.c.bf16 %v4558, %v4557
        %v4581 = vpack.c.bf16 %v4560, %v4559
        %v4582 = vpack.c.bf16 %v4562, %v4561
        %v4583 = vpack.c.bf16 %v4564, %v4563
        %v4584 = vpack.c.bf16 %v4566, %v4565
        %v4585 = vpack.c.bf16 %v4568, %v4567
        %v4586 = vpack.c.bf16 %v4570, %v4569
        %v4603 = vunpack.c.l.b16 %v4571
        %v4604 = vunpack.c.h.b16 %v4571
        %v4605 = vunpack.c.l.b16 %v4572
        %v4606 = vunpack.c.h.b16 %v4572
        %v4607 = vunpack.c.l.b16 %v4573
        %v4608 = vunpack.c.h.b16 %v4573
        %v4609 = vunpack.c.l.b16 %v4574
        %v4610 = vunpack.c.h.b16 %v4574
        %v4611 = vunpack.c.l.b16 %v4575
        %v4612 = vunpack.c.h.b16 %v4575
        %v4613 = vunpack.c.l.b16 %v4576
        %v4614 = vunpack.c.h.b16 %v4576
        %v4615 = vunpack.c.l.b16 %v4577
        %v4616 = vunpack.c.h.b16 %v4577
        %v4617 = vunpack.c.l.b16 %v4578
        %v4618 = vunpack.c.h.b16 %v4578
        %v4619 = vunpack.c.l.b16 %v4579
        %v4620 = vunpack.c.h.b16 %v4579
        %v4621 = vunpack.c.l.b16 %v4580
        %v4622 = vunpack.c.h.b16 %v4580
        %v4623 = vunpack.c.l.b16 %v4581
        %v4624 = vunpack.c.h.b16 %v4581
        %v4625 = vunpack.c.l.b16 %v4582
        %v4626 = vunpack.c.h.b16 %v4582
        %v4627 = vunpack.c.l.b16 %v4583
        %v4628 = vunpack.c.h.b16 %v4583
        %v4629 = vunpack.c.l.b16 %v4584
        %v4630 = vunpack.c.h.b16 %v4584
        %v4631 = vunpack.c.l.b16 %v4585
        %v4632 = vunpack.c.h.b16 %v4585
        %v4633 = vunpack.c.l.b16 %v4586
        %v4634 = vunpack.c.h.b16 %v4586
        %v4635 = vpack.c.b16 %v4603, %v4603
        %v4636 = vpack.c.b16 %v4604, %v4604
        %v4637 = vpack.c.b16 %v4605, %v4605
        %v4638 = vpack.c.b16 %v4606, %v4606
        %v4639 = vpack.c.b16 %v4607, %v4607
        %v4640 = vpack.c.b16 %v4608, %v4608
        %v4641 = vpack.c.b16 %v4609, %v4609
        %v4642 = vpack.c.b16 %v4610, %v4610
        %v4643 = vpack.c.b16 %v4611, %v4611
        %v4644 = vpack.c.b16 %v4612, %v4612
        %v4645 = vpack.c.b16 %v4613, %v4613
        %v4646 = vpack.c.b16 %v4614, %v4614
        %v4647 = vpack.c.b16 %v4615, %v4615
        %v4648 = vpack.c.b16 %v4616, %v4616
        %v4649 = vpack.c.b16 %v4617, %v4617
        %v4650 = vpack.c.b16 %v4618, %v4618
        %v4651 = vpack.c.b16 %v4619, %v4619
        %v4652 = vpack.c.b16 %v4620, %v4620
        %v4653 = vpack.c.b16 %v4621, %v4621
        %v4654 = vpack.c.b16 %v4622, %v4622
        %v4655 = vpack.c.b16 %v4623, %v4623
        %v4656 = vpack.c.b16 %v4624, %v4624
        %v4657 = vpack.c.b16 %v4625, %v4625
        %v4658 = vpack.c.b16 %v4626, %v4626
        %v4659 = vpack.c.b16 %v4627, %v4627
        %v4660 = vpack.c.b16 %v4628, %v4628
        %v4661 = vpack.c.b16 %v4629, %v4629
        %v4662 = vpack.c.b16 %v4630, %v4630
        %v4663 = vpack.c.b16 %v4631, %v4631
        %v4664 = vpack.c.b16 %v4632, %v4632
        %v4665 = vpack.c.b16 %v4633, %v4633
        %v4666 = vpack.c.b16 %v4634, %v4634
        %4667 = vrot.lane.b32.xlu0 %v4635, 32
        %v4668 = vpop.permute.xlu0 %4667
        %4669 = vrot.lane.b32.xlu0 %v4636, 32
        %v4670 = vpop.permute.xlu0 %4669
        %4671 = vrot.lane.b32.xlu0 %v4637, 32
        %v4672 = vpop.permute.xlu0 %4671
        %4673 = vrot.lane.b32.xlu0 %v4638, 32
        %v4674 = vpop.permute.xlu0 %4673
        %4675 = vrot.lane.b32.xlu0 %v4639, 32
        %v4676 = vpop.permute.xlu0 %4675
        %4677 = vrot.lane.b32.xlu0 %v4640, 32
        %v4678 = vpop.permute.xlu0 %4677
        %4679 = vrot.lane.b32.xlu0 %v4641, 32
        %v4680 = vpop.permute.xlu0 %4679
        %4681 = vrot.lane.b32.xlu0 %v4642, 32
        %v4682 = vpop.permute.xlu0 %4681
        %4683 = vrot.lane.b32.xlu0 %v4643, 32
        %v4684 = vpop.permute.xlu0 %4683
        %4685 = vrot.lane.b32.xlu0 %v4644, 32
        %v4686 = vpop.permute.xlu0 %4685
        %4687 = vrot.lane.b32.xlu0 %v4645, 32
        %v4688 = vpop.permute.xlu0 %4687
        %4689 = vrot.lane.b32.xlu0 %v4646, 32
        %v4690 = vpop.permute.xlu0 %4689
        %4691 = vrot.lane.b32.xlu0 %v4647, 32
        %v4692 = vpop.permute.xlu0 %4691
        %4693 = vrot.lane.b32.xlu0 %v4648, 32
        %v4694 = vpop.permute.xlu0 %4693
        %4695 = vrot.lane.b32.xlu0 %v4649, 32
        %v4696 = vpop.permute.xlu0 %4695
        %4697 = vrot.lane.b32.xlu0 %v4650, 32
        %v4698 = vpop.permute.xlu0 %4697
        %4699 = vrot.lane.b32.xlu0 %v4651, 32
        %v4700 = vpop.permute.xlu0 %4699
        %4701 = vrot.lane.b32.xlu0 %v4652, 32
        %v4702 = vpop.permute.xlu0 %4701
        %4703 = vrot.lane.b32.xlu0 %v4653, 32
        %v4704 = vpop.permute.xlu0 %4703
        %4705 = vrot.lane.b32.xlu0 %v4654, 32
        %v4706 = vpop.permute.xlu0 %4705
        %4707 = vrot.lane.b32.xlu0 %v4655, 32
        %v4708 = vpop.permute.xlu0 %4707
        %4709 = vrot.lane.b32.xlu0 %v4656, 32
        %v4710 = vpop.permute.xlu0 %4709
        %4711 = vrot.lane.b32.xlu0 %v4657, 32
        %v4712 = vpop.permute.xlu0 %4711
        %4713 = vrot.lane.b32.xlu0 %v4658, 32
        %v4714 = vpop.permute.xlu0 %4713
        %4715 = vrot.lane.b32.xlu0 %v4659, 32
        %v4716 = vpop.permute.xlu0 %4715
        %4717 = vrot.lane.b32.xlu0 %v4660, 32
        %v4718 = vpop.permute.xlu0 %4717
        %4719 = vrot.lane.b32.xlu0 %v4661, 32
        %v4720 = vpop.permute.xlu0 %4719
        %4721 = vrot.lane.b32.xlu0 %v4662, 32
        %v4722 = vpop.permute.xlu0 %4721
        %4723 = vrot.lane.b32.xlu0 %v4663, 32
        %v4724 = vpop.permute.xlu0 %4723
        %4725 = vrot.lane.b32.xlu0 %v4664, 32
        %v4726 = vpop.permute.xlu0 %4725
        %4727 = vrot.lane.b32.xlu0 %v4665, 32
        %v4728 = vpop.permute.xlu0 %4727
        %4729 = vrot.lane.b32.xlu0 %v4666, 32
        %v4730 = vpop.permute.xlu0 %4729
        %4763 = vst.msk [vmem:[#allocation3 + $0x4] sm:$0xf] %vm728, %v4668
        %4764 = vst.msk [vmem:[#allocation3 + $0x10] sm:$0xf] %vm728, %v4670
        %4765 = vst.msk [vmem:[#allocation3 + $0x1c] sm:$0xf] %vm728, %v4672
        %4766 = vst.msk [vmem:[#allocation3 + $0x28] sm:$0xf] %vm728, %v4674
        %4767 = vst.msk [vmem:[#allocation3 + $0x34] sm:$0xf] %vm728, %v4676
        %4768 = vst.msk [vmem:[#allocation3 + $0x40] sm:$0xf] %vm728, %v4678
        %4769 = vst.msk [vmem:[#allocation3 + $0x4c] sm:$0xf] %vm728, %v4680
        %4770 = vst.msk [vmem:[#allocation3 + $0x58] sm:$0xf] %vm728, %v4682
        %4771 = vst.msk [vmem:[#allocation3 + $0x64] sm:$0xf] %vm728, %v4684
        %4772 = vst.msk [vmem:[#allocation3 + $0x70] sm:$0xf] %vm728, %v4686
        %4773 = vst.msk [vmem:[#allocation3 + $0x7c] sm:$0xf] %vm728, %v4688
        %4774 = vst.msk [vmem:[#allocation3 + $0x88] sm:$0xf] %vm728, %v4690
        %4775 = vst.msk [vmem:[#allocation3 + $0x94] sm:$0xf] %vm728, %v4692
        %4776 = vst.msk [vmem:[#allocation3 + $0xa0] sm:$0xf] %vm728, %v4694
        %4777 = vst.msk [vmem:[#allocation3 + $0xac] sm:$0xf] %vm728, %v4696
        %4778 = vst.msk [vmem:[#allocation3 + $0xb8] sm:$0xf] %vm728, %v4698
        %4779 = vst.msk [vmem:[#allocation3 + $0xc4] sm:$0xf] %vm728, %v4700
        %4780 = vst.msk [vmem:[#allocation3 + $0xd0] sm:$0xf] %vm728, %v4702
        %4781 = vst.msk [vmem:[#allocation3 + $0xdc] sm:$0xf] %vm728, %v4704
        %4782 = vst.msk [vmem:[#allocation3 + $0xe8] sm:$0xf] %vm728, %v4706
        %4783 = vst.msk [vmem:[#allocation3 + $0xf4] sm:$0xf] %vm728, %v4708
        %4784 = vst.msk [vmem:[#allocation3 + $0x100] sm:$0xf] %vm728, %v4710
        %4785 = vst.msk [vmem:[#allocation3 + $0x10c] sm:$0xf] %vm728, %v4712
        %4786 = vst.msk [vmem:[#allocation3 + $0x118] sm:$0xf] %vm728, %v4714
        %4787 = vst.msk [vmem:[#allocation3 + $0x124] sm:$0xf] %vm728, %v4716
        %4788 = vst.msk [vmem:[#allocation3 + $0x130] sm:$0xf] %vm728, %v4718
        %4789 = vst.msk [vmem:[#allocation3 + $0x13c] sm:$0xf] %vm728, %v4720
        %4790 = vst.msk [vmem:[#allocation3 + $0x148] sm:$0xf] %vm728, %v4722
        %4791 = vst.msk [vmem:[#allocation3 + $0x154] sm:$0xf] %vm728, %v4724
        %4792 = vst.msk [vmem:[#allocation3 + $0x160] sm:$0xf] %vm728, %v4726
        %4793 = vst.msk [vmem:[#allocation3 + $0x16c] sm:$0xf] %vm728, %v4728
        %4794 = vst.msk [vmem:[#allocation3 + $0x178] sm:$0xf] %vm728, %v4730
        %v4795 = vld [vmem:[%s1723] sm:$0xff]
        %v4796 = vld [vmem:[%s1723 + $0x8] sm:$0xff]
        %v4797 = vld [vmem:[%s1723 + $0x18] sm:$0xff]
        %v4798 = vld [vmem:[%s1723 + $0x20] sm:$0xff]
        %v4799 = vld [vmem:[%s1723 + $0x30] sm:$0xff]
        %v4800 = vld [vmem:[%s1723 + $0x38] sm:$0xff]
        %v4801 = vld [vmem:[%s1723 + $0x48] sm:$0xff]
        %v4802 = vld [vmem:[%s1723 + $0x50] sm:$0xff]
        %v4803 = vld [vmem:[%s1723 + $0x60] sm:$0xff]
        %v4804 = vld [vmem:[%s1723 + $0x68] sm:$0xff]
        %v4805 = vld [vmem:[%s1723 + $0x78] sm:$0xff]
        %v4806 = vld [vmem:[%s1723 + $0x80] sm:$0xff]
        %v4807 = vld [vmem:[%s1723 + $0x90] sm:$0xff]
        %v4808 = vld [vmem:[%s1723 + $0x98] sm:$0xff]
        %v4809 = vld [vmem:[%s1723 + $0xa8] sm:$0xff]
        %v4810 = vld [vmem:[%s1723 + $0xb0] sm:$0xff]
        %v4811 = vld [vmem:[%s1723 + $0xc0] sm:$0xff]
        %v4812 = vld [vmem:[%s1723 + $0xc8] sm:$0xff]
        %v4813 = vld [vmem:[%s1723 + $0xd8] sm:$0xff]
        %v4814 = vld [vmem:[%s1723 + $0xe0] sm:$0xff]
        %v4815 = vld [vmem:[%s1723 + $0xf0] sm:$0xff]
        %v4816 = vld [vmem:[%s1723 + $0xf8] sm:$0xff]
        %v4817 = vld [vmem:[%s1723 + $0x108] sm:$0xff]
        %v4818 = vld [vmem:[%s1723 + $0x110] sm:$0xff]
        %v4819 = vld [vmem:[%s1723 + $0x120] sm:$0xff]
        %v4820 = vld [vmem:[%s1723 + $0x128] sm:$0xff]
        %v4821 = vld [vmem:[%s1723 + $0x138] sm:$0xff]
        %v4822 = vld [vmem:[%s1723 + $0x140] sm:$0xff]
        %v4823 = vld [vmem:[%s1723 + $0x150] sm:$0xff]
        %v4824 = vld [vmem:[%s1723 + $0x158] sm:$0xff]
        %v4825 = vld [vmem:[%s1723 + $0x168] sm:$0xff]
        %v4826 = vld [vmem:[%s1723 + $0x170] sm:$0xff]
        %v4827 = vpack.c.bf16 %v4796, %v4795
        %v4828 = vpack.c.bf16 %v4798, %v4797
        %v4829 = vpack.c.bf16 %v4800, %v4799
        %v4830 = vpack.c.bf16 %v4802, %v4801
        %v4831 = vpack.c.bf16 %v4804, %v4803
        %v4832 = vpack.c.bf16 %v4806, %v4805
        %v4833 = vpack.c.bf16 %v4808, %v4807
        %v4834 = vpack.c.bf16 %v4810, %v4809
        %v4835 = vpack.c.bf16 %v4812, %v4811
        %v4836 = vpack.c.bf16 %v4814, %v4813
        %v4837 = vpack.c.bf16 %v4816, %v4815
        %v4838 = vpack.c.bf16 %v4818, %v4817
        %v4839 = vpack.c.bf16 %v4820, %v4819
        %v4840 = vpack.c.bf16 %v4822, %v4821
        %v4841 = vpack.c.bf16 %v4824, %v4823
        %v4842 = vpack.c.bf16 %v4826, %v4825
        %v4859 = vunpack.c.l.b16 %v4827
        %v4860 = vunpack.c.h.b16 %v4827
        %v4861 = vunpack.c.l.b16 %v4828
        %v4862 = vunpack.c.h.b16 %v4828
        %v4863 = vunpack.c.l.b16 %v4829
        %v4864 = vunpack.c.h.b16 %v4829
        %v4865 = vunpack.c.l.b16 %v4830
        %v4866 = vunpack.c.h.b16 %v4830
        %v4867 = vunpack.c.l.b16 %v4831
        %v4868 = vunpack.c.h.b16 %v4831
        %v4869 = vunpack.c.l.b16 %v4832
        %v4870 = vunpack.c.h.b16 %v4832
        %v4871 = vunpack.c.l.b16 %v4833
        %v4872 = vunpack.c.h.b16 %v4833
        %v4873 = vunpack.c.l.b16 %v4834
        %v4874 = vunpack.c.h.b16 %v4834
        %v4875 = vunpack.c.l.b16 %v4835
        %v4876 = vunpack.c.h.b16 %v4835
        %v4877 = vunpack.c.l.b16 %v4836
        %v4878 = vunpack.c.h.b16 %v4836
        %v4879 = vunpack.c.l.b16 %v4837
        %v4880 = vunpack.c.h.b16 %v4837
        %v4881 = vunpack.c.l.b16 %v4838
        %v4882 = vunpack.c.h.b16 %v4838
        %v4883 = vunpack.c.l.b16 %v4839
        %v4884 = vunpack.c.h.b16 %v4839
        %v4885 = vunpack.c.l.b16 %v4840
        %v4886 = vunpack.c.h.b16 %v4840
        %v4887 = vunpack.c.l.b16 %v4841
        %v4888 = vunpack.c.h.b16 %v4841
        %v4889 = vunpack.c.l.b16 %v4842
        %v4890 = vunpack.c.h.b16 %v4842
        %v4891 = vpack.c.b16 %v4859, %v4859
        %v4892 = vpack.c.b16 %v4860, %v4860
        %v4893 = vpack.c.b16 %v4861, %v4861
        %v4894 = vpack.c.b16 %v4862, %v4862
        %v4895 = vpack.c.b16 %v4863, %v4863
        %v4896 = vpack.c.b16 %v4864, %v4864
        %v4897 = vpack.c.b16 %v4865, %v4865
        %v4898 = vpack.c.b16 %v4866, %v4866
        %v4899 = vpack.c.b16 %v4867, %v4867
        %v4900 = vpack.c.b16 %v4868, %v4868
        %v4901 = vpack.c.b16 %v4869, %v4869
        %v4902 = vpack.c.b16 %v4870, %v4870
        %v4903 = vpack.c.b16 %v4871, %v4871
        %v4904 = vpack.c.b16 %v4872, %v4872
        %v4905 = vpack.c.b16 %v4873, %v4873
        %v4906 = vpack.c.b16 %v4874, %v4874
        %v4907 = vpack.c.b16 %v4875, %v4875
        %v4908 = vpack.c.b16 %v4876, %v4876
        %v4909 = vpack.c.b16 %v4877, %v4877
        %v4910 = vpack.c.b16 %v4878, %v4878
        %v4911 = vpack.c.b16 %v4879, %v4879
        %v4912 = vpack.c.b16 %v4880, %v4880
        %v4913 = vpack.c.b16 %v4881, %v4881
        %v4914 = vpack.c.b16 %v4882, %v4882
        %v4915 = vpack.c.b16 %v4883, %v4883
        %v4916 = vpack.c.b16 %v4884, %v4884
        %v4917 = vpack.c.b16 %v4885, %v4885
        %v4918 = vpack.c.b16 %v4886, %v4886
        %v4919 = vpack.c.b16 %v4887, %v4887
        %v4920 = vpack.c.b16 %v4888, %v4888
        %v4921 = vpack.c.b16 %v4889, %v4889
        %v4922 = vpack.c.b16 %v4890, %v4890
        %4923 = vrot.lane.b32.xlu0 %v4891, 64
        %v4924 = vpop.permute.xlu0 %4923
        %4925 = vrot.lane.b32.xlu0 %v4892, 64
        %v4926 = vpop.permute.xlu0 %4925
        %4927 = vrot.lane.b32.xlu0 %v4893, 64
        %v4928 = vpop.permute.xlu0 %4927
        %4929 = vrot.lane.b32.xlu0 %v4894, 64
        %v4930 = vpop.permute.xlu0 %4929
        %4931 = vrot.lane.b32.xlu0 %v4895, 64
        %v4932 = vpop.permute.xlu0 %4931
        %4933 = vrot.lane.b32.xlu0 %v4896, 64
        %v4934 = vpop.permute.xlu0 %4933
        %4935 = vrot.lane.b32.xlu0 %v4897, 64
        %v4936 = vpop.permute.xlu0 %4935
        %4937 = vrot.lane.b32.xlu0 %v4898, 64
        %v4938 = vpop.permute.xlu0 %4937
        %4939 = vrot.lane.b32.xlu0 %v4899, 64
        %v4940 = vpop.permute.xlu0 %4939
        %4941 = vrot.lane.b32.xlu0 %v4900, 64
        %v4942 = vpop.permute.xlu0 %4941
        %4943 = vrot.lane.b32.xlu0 %v4901, 64
        %v4944 = vpop.permute.xlu0 %4943
        %4945 = vrot.lane.b32.xlu0 %v4902, 64
        %v4946 = vpop.permute.xlu0 %4945
        %4947 = vrot.lane.b32.xlu0 %v4903, 64
        %v4948 = vpop.permute.xlu0 %4947
        %4949 = vrot.lane.b32.xlu0 %v4904, 64
        %v4950 = vpop.permute.xlu0 %4949
        %4951 = vrot.lane.b32.xlu0 %v4905, 64
        %v4952 = vpop.permute.xlu0 %4951
        %4953 = vrot.lane.b32.xlu0 %v4906, 64
        %v4954 = vpop.permute.xlu0 %4953
        %4955 = vrot.lane.b32.xlu0 %v4907, 64
        %v4956 = vpop.permute.xlu0 %4955
        %4957 = vrot.lane.b32.xlu0 %v4908, 64
        %v4958 = vpop.permute.xlu0 %4957
        %4959 = vrot.lane.b32.xlu0 %v4909, 64
        %v4960 = vpop.permute.xlu0 %4959
        %4961 = vrot.lane.b32.xlu0 %v4910, 64
        %v4962 = vpop.permute.xlu0 %4961
        %4963 = vrot.lane.b32.xlu0 %v4911, 64
        %v4964 = vpop.permute.xlu0 %4963
        %4965 = vrot.lane.b32.xlu0 %v4912, 64
        %v4966 = vpop.permute.xlu0 %4965
        %4967 = vrot.lane.b32.xlu0 %v4913, 64
        %v4968 = vpop.permute.xlu0 %4967
        %4969 = vrot.lane.b32.xlu0 %v4914, 64
        %v4970 = vpop.permute.xlu0 %4969
        %4971 = vrot.lane.b32.xlu0 %v4915, 64
        %v4972 = vpop.permute.xlu0 %4971
        %4973 = vrot.lane.b32.xlu0 %v4916, 64
        %v4974 = vpop.permute.xlu0 %4973
        %4975 = vrot.lane.b32.xlu0 %v4917, 64
        %v4976 = vpop.permute.xlu0 %4975
        %4977 = vrot.lane.b32.xlu0 %v4918, 64
        %v4978 = vpop.permute.xlu0 %4977
        %4979 = vrot.lane.b32.xlu0 %v4919, 64
        %v4980 = vpop.permute.xlu0 %4979
        %4981 = vrot.lane.b32.xlu0 %v4920, 64
        %v4982 = vpop.permute.xlu0 %4981
        %4983 = vrot.lane.b32.xlu0 %v4921, 64
        %v4984 = vpop.permute.xlu0 %4983
        %4985 = vrot.lane.b32.xlu0 %v4922, 64
        %v4986 = vpop.permute.xlu0 %4985
        %5019 = vst.msk [vmem:[#allocation3 + $0x4] sm:$0xf] %vm985, %v4924
        %5020 = vst.msk [vmem:[#allocation3 + $0x10] sm:$0xf] %vm985, %v4926
        %5021 = vst.msk [vmem:[#allocation3 + $0x1c] sm:$0xf] %vm985, %v4928
        %5022 = vst.msk [vmem:[#allocation3 + $0x28] sm:$0xf] %vm985, %v4930
        %5023 = vst.msk [vmem:[#allocation3 + $0x34] sm:$0xf] %vm985, %v4932
        %5024 = vst.msk [vmem:[#allocation3 + $0x40] sm:$0xf] %vm985, %v4934
        %5025 = vst.msk [vmem:[#allocation3 + $0x4c] sm:$0xf] %vm985, %v4936
        %5026 = vst.msk [vmem:[#allocation3 + $0x58] sm:$0xf] %vm985, %v4938
        %5027 = vst.msk [vmem:[#allocation3 + $0x64] sm:$0xf] %vm985, %v4940
        %5028 = vst.msk [vmem:[#allocation3 + $0x70] sm:$0xf] %vm985, %v4942
        %5029 = vst.msk [vmem:[#allocation3 + $0x7c] sm:$0xf] %vm985, %v4944
        %5030 = vst.msk [vmem:[#allocation3 + $0x88] sm:$0xf] %vm985, %v4946
        %5031 = vst.msk [vmem:[#allocation3 + $0x94] sm:$0xf] %vm985, %v4948
        %5032 = vst.msk [vmem:[#allocation3 + $0xa0] sm:$0xf] %vm985, %v4950
        %5033 = vst.msk [vmem:[#allocation3 + $0xac] sm:$0xf] %vm985, %v4952
        %5034 = vst.msk [vmem:[#allocation3 + $0xb8] sm:$0xf] %vm985, %v4954
        %5035 = vst.msk [vmem:[#allocation3 + $0xc4] sm:$0xf] %vm985, %v4956
        %5036 = vst.msk [vmem:[#allocation3 + $0xd0] sm:$0xf] %vm985, %v4958
        %5037 = vst.msk [vmem:[#allocation3 + $0xdc] sm:$0xf] %vm985, %v4960
        %5038 = vst.msk [vmem:[#allocation3 + $0xe8] sm:$0xf] %vm985, %v4962
        %5039 = vst.msk [vmem:[#allocation3 + $0xf4] sm:$0xf] %vm985, %v4964
        %5040 = vst.msk [vmem:[#allocation3 + $0x100] sm:$0xf] %vm985, %v4966
        %5041 = vst.msk [vmem:[#allocation3 + $0x10c] sm:$0xf] %vm985, %v4968
        %5042 = vst.msk [vmem:[#allocation3 + $0x118] sm:$0xf] %vm985, %v4970
        %5043 = vst.msk [vmem:[#allocation3 + $0x124] sm:$0xf] %vm985, %v4972
        %5044 = vst.msk [vmem:[#allocation3 + $0x130] sm:$0xf] %vm985, %v4974
        %5045 = vst.msk [vmem:[#allocation3 + $0x13c] sm:$0xf] %vm985, %v4976
        %5046 = vst.msk [vmem:[#allocation3 + $0x148] sm:$0xf] %vm985, %v4978
        %5047 = vst.msk [vmem:[#allocation3 + $0x154] sm:$0xf] %vm985, %v4980
        %5048 = vst.msk [vmem:[#allocation3 + $0x160] sm:$0xf] %vm985, %v4982
        %5049 = vst.msk [vmem:[#allocation3 + $0x16c] sm:$0xf] %vm985, %v4984
        %5050 = vst.msk [vmem:[#allocation3 + $0x178] sm:$0xf] %vm985, %v4986
        %v5051 = vld [vmem:[%s1723 + $0x1] sm:$0xff]
        %v5052 = vld [vmem:[%s1723 + $0x9] sm:$0xff]
        %v5053 = vld [vmem:[%s1723 + $0x19] sm:$0xff]
        %v5054 = vld [vmem:[%s1723 + $0x21] sm:$0xff]
        %v5055 = vld [vmem:[%s1723 + $0x31] sm:$0xff]
        %v5056 = vld [vmem:[%s1723 + $0x39] sm:$0xff]
        %v5057 = vld [vmem:[%s1723 + $0x49] sm:$0xff]
        %v5058 = vld [vmem:[%s1723 + $0x51] sm:$0xff]
        %v5059 = vld [vmem:[%s1723 + $0x61] sm:$0xff]
        %v5060 = vld [vmem:[%s1723 + $0x69] sm:$0xff]
        %v5061 = vld [vmem:[%s1723 + $0x79] sm:$0xff]
        %v5062 = vld [vmem:[%s1723 + $0x81] sm:$0xff]
        %v5063 = vld [vmem:[%s1723 + $0x91] sm:$0xff]
        %v5064 = vld [vmem:[%s1723 + $0x99] sm:$0xff]
        %v5065 = vld [vmem:[%s1723 + $0xa9] sm:$0xff]
        %v5066 = vld [vmem:[%s1723 + $0xb1] sm:$0xff]
        %v5067 = vld [vmem:[%s1723 + $0xc1] sm:$0xff]
        %v5068 = vld [vmem:[%s1723 + $0xc9] sm:$0xff]
        %v5069 = vld [vmem:[%s1723 + $0xd9] sm:$0xff]
        %v5070 = vld [vmem:[%s1723 + $0xe1] sm:$0xff]
        %v5071 = vld [vmem:[%s1723 + $0xf1] sm:$0xff]
        %v5072 = vld [vmem:[%s1723 + $0xf9] sm:$0xff]
        %v5073 = vld [vmem:[%s1723 + $0x109] sm:$0xff]
        %v5074 = vld [vmem:[%s1723 + $0x111] sm:$0xff]
        %v5075 = vld [vmem:[%s1723 + $0x121] sm:$0xff]
        %v5076 = vld [vmem:[%s1723 + $0x129] sm:$0xff]
        %v5077 = vld [vmem:[%s1723 + $0x139] sm:$0xff]
        %v5078 = vld [vmem:[%s1723 + $0x141] sm:$0xff]
        %v5079 = vld [vmem:[%s1723 + $0x151] sm:$0xff]
        %v5080 = vld [vmem:[%s1723 + $0x159] sm:$0xff]
        %v5081 = vld [vmem:[%s1723 + $0x169] sm:$0xff]
        %v5082 = vld [vmem:[%s1723 + $0x171] sm:$0xff]
        %v5083 = vpack.c.bf16 %v5052, %v5051
        %v5084 = vpack.c.bf16 %v5054, %v5053
        %v5085 = vpack.c.bf16 %v5056, %v5055
        %v5086 = vpack.c.bf16 %v5058, %v5057
        %v5087 = vpack.c.bf16 %v5060, %v5059
        %v5088 = vpack.c.bf16 %v5062, %v5061
        %v5089 = vpack.c.bf16 %v5064, %v5063
        %v5090 = vpack.c.bf16 %v5066, %v5065
        %v5091 = vpack.c.bf16 %v5068, %v5067
        %v5092 = vpack.c.bf16 %v5070, %v5069
        %v5093 = vpack.c.bf16 %v5072, %v5071
        %v5094 = vpack.c.bf16 %v5074, %v5073
        %v5095 = vpack.c.bf16 %v5076, %v5075
        %v5096 = vpack.c.bf16 %v5078, %v5077
        %v5097 = vpack.c.bf16 %v5080, %v5079
        %v5098 = vpack.c.bf16 %v5082, %v5081
        %v5115 = vunpack.c.l.b16 %v5083
        %v5116 = vunpack.c.h.b16 %v5083
        %v5117 = vunpack.c.l.b16 %v5084
        %v5118 = vunpack.c.h.b16 %v5084
        %v5119 = vunpack.c.l.b16 %v5085
        %v5120 = vunpack.c.h.b16 %v5085
        %v5121 = vunpack.c.l.b16 %v5086
        %v5122 = vunpack.c.h.b16 %v5086
        %v5123 = vunpack.c.l.b16 %v5087
        %v5124 = vunpack.c.h.b16 %v5087
        %v5125 = vunpack.c.l.b16 %v5088
        %v5126 = vunpack.c.h.b16 %v5088
        %v5127 = vunpack.c.l.b16 %v5089
        %v5128 = vunpack.c.h.b16 %v5089
        %v5129 = vunpack.c.l.b16 %v5090
        %v5130 = vunpack.c.h.b16 %v5090
        %v5131 = vunpack.c.l.b16 %v5091
        %v5132 = vunpack.c.h.b16 %v5091
        %v5133 = vunpack.c.l.b16 %v5092
        %v5134 = vunpack.c.h.b16 %v5092
        %v5135 = vunpack.c.l.b16 %v5093
        %v5136 = vunpack.c.h.b16 %v5093
        %v5137 = vunpack.c.l.b16 %v5094
        %v5138 = vunpack.c.h.b16 %v5094
        %v5139 = vunpack.c.l.b16 %v5095
        %v5140 = vunpack.c.h.b16 %v5095
        %v5141 = vunpack.c.l.b16 %v5096
        %v5142 = vunpack.c.h.b16 %v5096
        %v5143 = vunpack.c.l.b16 %v5097
        %v5144 = vunpack.c.h.b16 %v5097
        %v5145 = vunpack.c.l.b16 %v5098
        %v5146 = vunpack.c.h.b16 %v5098
        %v5147 = vpack.c.b16 %v5115, %v5115
        %v5148 = vpack.c.b16 %v5116, %v5116
        %v5149 = vpack.c.b16 %v5117, %v5117
        %v5150 = vpack.c.b16 %v5118, %v5118
        %v5151 = vpack.c.b16 %v5119, %v5119
        %v5152 = vpack.c.b16 %v5120, %v5120
        %v5153 = vpack.c.b16 %v5121, %v5121
        %v5154 = vpack.c.b16 %v5122, %v5122
        %v5155 = vpack.c.b16 %v5123, %v5123
        %v5156 = vpack.c.b16 %v5124, %v5124
        %v5157 = vpack.c.b16 %v5125, %v5125
        %v5158 = vpack.c.b16 %v5126, %v5126
        %v5159 = vpack.c.b16 %v5127, %v5127
        %v5160 = vpack.c.b16 %v5128, %v5128
        %v5161 = vpack.c.b16 %v5129, %v5129
        %v5162 = vpack.c.b16 %v5130, %v5130
        %v5163 = vpack.c.b16 %v5131, %v5131
        %v5164 = vpack.c.b16 %v5132, %v5132
        %v5165 = vpack.c.b16 %v5133, %v5133
        %v5166 = vpack.c.b16 %v5134, %v5134
        %v5167 = vpack.c.b16 %v5135, %v5135
        %v5168 = vpack.c.b16 %v5136, %v5136
        %v5169 = vpack.c.b16 %v5137, %v5137
        %v5170 = vpack.c.b16 %v5138, %v5138
        %v5171 = vpack.c.b16 %v5139, %v5139
        %v5172 = vpack.c.b16 %v5140, %v5140
        %v5173 = vpack.c.b16 %v5141, %v5141
        %v5174 = vpack.c.b16 %v5142, %v5142
        %v5175 = vpack.c.b16 %v5143, %v5143
        %v5176 = vpack.c.b16 %v5144, %v5144
        %v5177 = vpack.c.b16 %v5145, %v5145
        %v5178 = vpack.c.b16 %v5146, %v5146
        %5179 = vrot.lane.b32.xlu0 %v5147, 96
        %v5180 = vpop.permute.xlu0 %5179
        %5181 = vrot.lane.b32.xlu0 %v5148, 96
        %v5182 = vpop.permute.xlu0 %5181
        %5183 = vrot.lane.b32.xlu0 %v5149, 96
        %v5184 = vpop.permute.xlu0 %5183
        %5185 = vrot.lane.b32.xlu0 %v5150, 96
        %v5186 = vpop.permute.xlu0 %5185
        %5187 = vrot.lane.b32.xlu0 %v5151, 96
        %v5188 = vpop.permute.xlu0 %5187
        %5189 = vrot.lane.b32.xlu0 %v5152, 96
        %v5190 = vpop.permute.xlu0 %5189
        %5191 = vrot.lane.b32.xlu0 %v5153, 96
        %v5192 = vpop.permute.xlu0 %5191
        %5193 = vrot.lane.b32.xlu0 %v5154, 96
        %v5194 = vpop.permute.xlu0 %5193
        %5195 = vrot.lane.b32.xlu0 %v5155, 96
        %v5196 = vpop.permute.xlu0 %5195
        %5197 = vrot.lane.b32.xlu0 %v5156, 96
        %v5198 = vpop.permute.xlu0 %5197
        %5199 = vrot.lane.b32.xlu0 %v5157, 96
        %v5200 = vpop.permute.xlu0 %5199
        %5201 = vrot.lane.b32.xlu0 %v5158, 96
        %v5202 = vpop.permute.xlu0 %5201
        %5203 = vrot.lane.b32.xlu0 %v5159, 96
        %v5204 = vpop.permute.xlu0 %5203
        %5205 = vrot.lane.b32.xlu0 %v5160, 96
        %v5206 = vpop.permute.xlu0 %5205
        %5207 = vrot.lane.b32.xlu0 %v5161, 96
        %v5208 = vpop.permute.xlu0 %5207
        %5209 = vrot.lane.b32.xlu0 %v5162, 96
        %v5210 = vpop.permute.xlu0 %5209
        %5211 = vrot.lane.b32.xlu0 %v5163, 96
        %v5212 = vpop.permute.xlu0 %5211
        %5213 = vrot.lane.b32.xlu0 %v5164, 96
        %v5214 = vpop.permute.xlu0 %5213
        %5215 = vrot.lane.b32.xlu0 %v5165, 96
        %v5216 = vpop.permute.xlu0 %5215
        %5217 = vrot.lane.b32.xlu0 %v5166, 96
        %v5218 = vpop.permute.xlu0 %5217
        %5219 = vrot.lane.b32.xlu0 %v5167, 96
        %v5220 = vpop.permute.xlu0 %5219
        %5221 = vrot.lane.b32.xlu0 %v5168, 96
        %v5222 = vpop.permute.xlu0 %5221
        %5223 = vrot.lane.b32.xlu0 %v5169, 96
        %v5224 = vpop.permute.xlu0 %5223
        %5225 = vrot.lane.b32.xlu0 %v5170, 96
        %v5226 = vpop.permute.xlu0 %5225
        %5227 = vrot.lane.b32.xlu0 %v5171, 96
        %v5228 = vpop.permute.xlu0 %5227
        %5229 = vrot.lane.b32.xlu0 %v5172, 96
        %v5230 = vpop.permute.xlu0 %5229
        %5231 = vrot.lane.b32.xlu0 %v5173, 96
        %v5232 = vpop.permute.xlu0 %5231
        %5233 = vrot.lane.b32.xlu0 %v5174, 96
        %v5234 = vpop.permute.xlu0 %5233
        %5235 = vrot.lane.b32.xlu0 %v5175, 96
        %v5236 = vpop.permute.xlu0 %5235
        %5237 = vrot.lane.b32.xlu0 %v5176, 96
        %v5238 = vpop.permute.xlu0 %5237
        %5239 = vrot.lane.b32.xlu0 %v5177, 96
        %v5240 = vpop.permute.xlu0 %5239
        %5241 = vrot.lane.b32.xlu0 %v5178, 96
        %v5242 = vpop.permute.xlu0 %5241
        %5275 = vst.msk [vmem:[#allocation3 + $0x4] sm:$0xf] %vm1242, %v5180
        %5276 = vst.msk [vmem:[#allocation3 + $0x10] sm:$0xf] %vm1242, %v5182
        %5277 = vst.msk [vmem:[#allocation3 + $0x1c] sm:$0xf] %vm1242, %v5184
        %5278 = vst.msk [vmem:[#allocation3 + $0x28] sm:$0xf] %vm1242, %v5186
        %5279 = vst.msk [vmem:[#allocation3 + $0x34] sm:$0xf] %vm1242, %v5188
        %5280 = vst.msk [vmem:[#allocation3 + $0x40] sm:$0xf] %vm1242, %v5190
        %5281 = vst.msk [vmem:[#allocation3 + $0x4c] sm:$0xf] %vm1242, %v5192
        %5282 = vst.msk [vmem:[#allocation3 + $0x58] sm:$0xf] %vm1242, %v5194
        %5283 = vst.msk [vmem:[#allocation3 + $0x64] sm:$0xf] %vm1242, %v5196
        %5284 = vst.msk [vmem:[#allocation3 + $0x70] sm:$0xf] %vm1242, %v5198
        %5285 = vst.msk [vmem:[#allocation3 + $0x7c] sm:$0xf] %vm1242, %v5200
        %5286 = vst.msk [vmem:[#allocation3 + $0x88] sm:$0xf] %vm1242, %v5202
        %5287 = vst.msk [vmem:[#allocation3 + $0x94] sm:$0xf] %vm1242, %v5204
        %5288 = vst.msk [vmem:[#allocation3 + $0xa0] sm:$0xf] %vm1242, %v5206
        %5289 = vst.msk [vmem:[#allocation3 + $0xac] sm:$0xf] %vm1242, %v5208
        %5290 = vst.msk [vmem:[#allocation3 + $0xb8] sm:$0xf] %vm1242, %v5210
        %5291 = vst.msk [vmem:[#allocation3 + $0xc4] sm:$0xf] %vm1242, %v5212
        %5292 = vst.msk [vmem:[#allocation3 + $0xd0] sm:$0xf] %vm1242, %v5214
        %5293 = vst.msk [vmem:[#allocation3 + $0xdc] sm:$0xf] %vm1242, %v5216
        %5294 = vst.msk [vmem:[#allocation3 + $0xe8] sm:$0xf] %vm1242, %v5218
        %5295 = vst.msk [vmem:[#allocation3 + $0xf4] sm:$0xf] %vm1242, %v5220
        %5296 = vst.msk [vmem:[#allocation3 + $0x100] sm:$0xf] %vm1242, %v5222
        %5297 = vst.msk [vmem:[#allocation3 + $0x10c] sm:$0xf] %vm1242, %v5224
        %5298 = vst.msk [vmem:[#allocation3 + $0x118] sm:$0xf] %vm1242, %v5226
        %5299 = vst.msk [vmem:[#allocation3 + $0x124] sm:$0xf] %vm1242, %v5228
        %5300 = vst.msk [vmem:[#allocation3 + $0x130] sm:$0xf] %vm1242, %v5230
        %5301 = vst.msk [vmem:[#allocation3 + $0x13c] sm:$0xf] %vm1242, %v5232
        %5302 = vst.msk [vmem:[#allocation3 + $0x148] sm:$0xf] %vm1242, %v5234
        %5303 = vst.msk [vmem:[#allocation3 + $0x154] sm:$0xf] %vm1242, %v5236
        %5304 = vst.msk [vmem:[#allocation3 + $0x160] sm:$0xf] %vm1242, %v5238
        %5305 = vst.msk [vmem:[#allocation3 + $0x16c] sm:$0xf] %vm1242, %v5240
        %5306 = vst.msk [vmem:[#allocation3 + $0x178] sm:$0xf] %vm1242, %v5242
        %v5307 = vld [vmem:[%s1723 + $0x2] sm:$0xff]
        %v5308 = vld [vmem:[%s1723 + $0xa] sm:$0xff]
        %v5309 = vld [vmem:[%s1723 + $0x1a] sm:$0xff]
        %v5310 = vld [vmem:[%s1723 + $0x22] sm:$0xff]
        %v5311 = vld [vmem:[%s1723 + $0x32] sm:$0xff]
        %v5312 = vld [vmem:[%s1723 + $0x3a] sm:$0xff]
        %v5313 = vld [vmem:[%s1723 + $0x4a] sm:$0xff]
        %v5314 = vld [vmem:[%s1723 + $0x52] sm:$0xff]
        %v5315 = vld [vmem:[%s1723 + $0x62] sm:$0xff]
        %v5316 = vld [vmem:[%s1723 + $0x6a] sm:$0xff]
        %v5317 = vld [vmem:[%s1723 + $0x7a] sm:$0xff]
        %v5318 = vld [vmem:[%s1723 + $0x82] sm:$0xff]
        %v5319 = vld [vmem:[%s1723 + $0x92] sm:$0xff]
        %v5320 = vld [vmem:[%s1723 + $0x9a] sm:$0xff]
        %v5321 = vld [vmem:[%s1723 + $0xaa] sm:$0xff]
        %v5322 = vld [vmem:[%s1723 + $0xb2] sm:$0xff]
        %v5323 = vld [vmem:[%s1723 + $0xc2] sm:$0xff]
        %v5324 = vld [vmem:[%s1723 + $0xca] sm:$0xff]
        %v5325 = vld [vmem:[%s1723 + $0xda] sm:$0xff]
        %v5326 = vld [vmem:[%s1723 + $0xe2] sm:$0xff]
        %v5327 = vld [vmem:[%s1723 + $0xf2] sm:$0xff]
        %v5328 = vld [vmem:[%s1723 + $0xfa] sm:$0xff]
        %v5329 = vld [vmem:[%s1723 + $0x10a] sm:$0xff]
        %v5330 = vld [vmem:[%s1723 + $0x112] sm:$0xff]
        %v5331 = vld [vmem:[%s1723 + $0x122] sm:$0xff]
        %v5332 = vld [vmem:[%s1723 + $0x12a] sm:$0xff]
        %v5333 = vld [vmem:[%s1723 + $0x13a] sm:$0xff]
        %v5334 = vld [vmem:[%s1723 + $0x142] sm:$0xff]
        %v5335 = vld [vmem:[%s1723 + $0x152] sm:$0xff]
        %v5336 = vld [vmem:[%s1723 + $0x15a] sm:$0xff]
        %v5337 = vld [vmem:[%s1723 + $0x16a] sm:$0xff]
        %v5338 = vld [vmem:[%s1723 + $0x172] sm:$0xff]
        %v5339 = vpack.c.bf16 %v5308, %v5307
        %v5340 = vpack.c.bf16 %v5310, %v5309
        %v5341 = vpack.c.bf16 %v5312, %v5311
        %v5342 = vpack.c.bf16 %v5314, %v5313
        %v5343 = vpack.c.bf16 %v5316, %v5315
        %v5344 = vpack.c.bf16 %v5318, %v5317
        %v5345 = vpack.c.bf16 %v5320, %v5319
        %v5346 = vpack.c.bf16 %v5322, %v5321
        %v5347 = vpack.c.bf16 %v5324, %v5323
        %v5348 = vpack.c.bf16 %v5326, %v5325
        %v5349 = vpack.c.bf16 %v5328, %v5327
        %v5350 = vpack.c.bf16 %v5330, %v5329
        %v5351 = vpack.c.bf16 %v5332, %v5331
        %v5352 = vpack.c.bf16 %v5334, %v5333
        %v5353 = vpack.c.bf16 %v5336, %v5335
        %v5354 = vpack.c.bf16 %v5338, %v5337
        %v5371 = vunpack.c.l.b16 %v5339
        %v5372 = vunpack.c.h.b16 %v5339
        %v5373 = vunpack.c.l.b16 %v5340
        %v5374 = vunpack.c.h.b16 %v5340
        %v5375 = vunpack.c.l.b16 %v5341
        %v5376 = vunpack.c.h.b16 %v5341
        %v5377 = vunpack.c.l.b16 %v5342
        %v5378 = vunpack.c.h.b16 %v5342
        %v5379 = vunpack.c.l.b16 %v5343
        %v5380 = vunpack.c.h.b16 %v5343
        %v5381 = vunpack.c.l.b16 %v5344
        %v5382 = vunpack.c.h.b16 %v5344
        %v5383 = vunpack.c.l.b16 %v5345
        %v5384 = vunpack.c.h.b16 %v5345
        %v5385 = vunpack.c.l.b16 %v5346
        %v5386 = vunpack.c.h.b16 %v5346
        %v5387 = vunpack.c.l.b16 %v5347
        %v5388 = vunpack.c.h.b16 %v5347
        %v5389 = vunpack.c.l.b16 %v5348
        %v5390 = vunpack.c.h.b16 %v5348
        %v5391 = vunpack.c.l.b16 %v5349
        %v5392 = vunpack.c.h.b16 %v5349
        %v5393 = vunpack.c.l.b16 %v5350
        %v5394 = vunpack.c.h.b16 %v5350
        %v5395 = vunpack.c.l.b16 %v5351
        %v5396 = vunpack.c.h.b16 %v5351
        %v5397 = vunpack.c.l.b16 %v5352
        %v5398 = vunpack.c.h.b16 %v5352
        %v5399 = vunpack.c.l.b16 %v5353
        %v5400 = vunpack.c.h.b16 %v5353
        %v5401 = vunpack.c.l.b16 %v5354
        %v5402 = vunpack.c.h.b16 %v5354
        %v5403 = vpack.c.b16 %v5371, %v5371
        %v5404 = vpack.c.b16 %v5372, %v5372
        %v5405 = vpack.c.b16 %v5373, %v5373
        %v5406 = vpack.c.b16 %v5374, %v5374
        %v5407 = vpack.c.b16 %v5375, %v5375
        %v5408 = vpack.c.b16 %v5376, %v5376
        %v5409 = vpack.c.b16 %v5377, %v5377
        %v5410 = vpack.c.b16 %v5378, %v5378
        %v5411 = vpack.c.b16 %v5379, %v5379
        %v5412 = vpack.c.b16 %v5380, %v5380
        %v5413 = vpack.c.b16 %v5381, %v5381
        %v5414 = vpack.c.b16 %v5382, %v5382
        %v5415 = vpack.c.b16 %v5383, %v5383
        %v5416 = vpack.c.b16 %v5384, %v5384
        %v5417 = vpack.c.b16 %v5385, %v5385
        %v5418 = vpack.c.b16 %v5386, %v5386
        %v5419 = vpack.c.b16 %v5387, %v5387
        %v5420 = vpack.c.b16 %v5388, %v5388
        %v5421 = vpack.c.b16 %v5389, %v5389
        %v5422 = vpack.c.b16 %v5390, %v5390
        %v5423 = vpack.c.b16 %v5391, %v5391
        %v5424 = vpack.c.b16 %v5392, %v5392
        %v5425 = vpack.c.b16 %v5393, %v5393
        %v5426 = vpack.c.b16 %v5394, %v5394
        %v5427 = vpack.c.b16 %v5395, %v5395
        %v5428 = vpack.c.b16 %v5396, %v5396
        %v5429 = vpack.c.b16 %v5397, %v5397
        %v5430 = vpack.c.b16 %v5398, %v5398
        %v5431 = vpack.c.b16 %v5399, %v5399
        %v5432 = vpack.c.b16 %v5400, %v5400
        %v5433 = vpack.c.b16 %v5401, %v5401
        %v5434 = vpack.c.b16 %v5402, %v5402
        %5467 = vst.msk [vmem:[#allocation3 + $0x8] sm:$0xf] %vm471, %v5403
        %5468 = vst.msk [vmem:[#allocation3 + $0x14] sm:$0xf] %vm471, %v5404
        %5469 = vst.msk [vmem:[#allocation3 + $0x20] sm:$0xf] %vm471, %v5405
        %5470 = vst.msk [vmem:[#allocation3 + $0x2c] sm:$0xf] %vm471, %v5406
        %5471 = vst.msk [vmem:[#allocation3 + $0x38] sm:$0xf] %vm471, %v5407
        %5472 = vst.msk [vmem:[#allocation3 + $0x44] sm:$0xf] %vm471, %v5408
        %5473 = vst.msk [vmem:[#allocation3 + $0x50] sm:$0xf] %vm471, %v5409
        %5474 = vst.msk [vmem:[#allocation3 + $0x5c] sm:$0xf] %vm471, %v5410
        %5475 = vst.msk [vmem:[#allocation3 + $0x68] sm:$0xf] %vm471, %v5411
        %5476 = vst.msk [vmem:[#allocation3 + $0x74] sm:$0xf] %vm471, %v5412
        %5477 = vst.msk [vmem:[#allocation3 + $0x80] sm:$0xf] %vm471, %v5413
        %5478 = vst.msk [vmem:[#allocation3 + $0x8c] sm:$0xf] %vm471, %v5414
        %5479 = vst.msk [vmem:[#allocation3 + $0x98] sm:$0xf] %vm471, %v5415
        %5480 = vst.msk [vmem:[#allocation3 + $0xa4] sm:$0xf] %vm471, %v5416
        %5481 = vst.msk [vmem:[#allocation3 + $0xb0] sm:$0xf] %vm471, %v5417
        %5482 = vst.msk [vmem:[#allocation3 + $0xbc] sm:$0xf] %vm471, %v5418
        %5483 = vst.msk [vmem:[#allocation3 + $0xc8] sm:$0xf] %vm471, %v5419
        %5484 = vst.msk [vmem:[#allocation3 + $0xd4] sm:$0xf] %vm471, %v5420
        %5485 = vst.msk [vmem:[#allocation3 + $0xe0] sm:$0xf] %vm471, %v5421
        %5486 = vst.msk [vmem:[#allocation3 + $0xec] sm:$0xf] %vm471, %v5422
        %5487 = vst.msk [vmem:[#allocation3 + $0xf8] sm:$0xf] %vm471, %v5423
        %5488 = vst.msk [vmem:[#allocation3 + $0x104] sm:$0xf] %vm471, %v5424
        %5489 = vst.msk [vmem:[#allocation3 + $0x110] sm:$0xf] %vm471, %v5425
        %5490 = vst.msk [vmem:[#allocation3 + $0x11c] sm:$0xf] %vm471, %v5426
        %5491 = vst.msk [vmem:[#allocation3 + $0x128] sm:$0xf] %vm471, %v5427
        %5492 = vst.msk [vmem:[#allocation3 + $0x134] sm:$0xf] %vm471, %v5428
        %5493 = vst.msk [vmem:[#allocation3 + $0x140] sm:$0xf] %vm471, %v5429
        %5494 = vst.msk [vmem:[#allocation3 + $0x14c] sm:$0xf] %vm471, %v5430
        %5495 = vst.msk [vmem:[#allocation3 + $0x158] sm:$0xf] %vm471, %v5431
        %5496 = vst.msk [vmem:[#allocation3 + $0x164] sm:$0xf] %vm471, %v5432
        %5497 = vst.msk [vmem:[#allocation3 + $0x170] sm:$0xf] %vm471, %v5433
        %5498 = vst.msk [vmem:[#allocation3 + $0x17c] sm:$0xf] %vm471, %v5434
        %v5499 = vld [vmem:[#allocation3] sm:$0xff]
        %v5500 = vld [vmem:[#allocation3 + $0x8] sm:$0xf]
        %v5501 = vld [vmem:[#allocation3 + $0xc] sm:$0xff]
        %v5502 = vld [vmem:[#allocation3 + $0x14] sm:$0xf]
        %v5503 = vld [vmem:[#allocation3 + $0x18] sm:$0xff]
        %v5504 = vld [vmem:[#allocation3 + $0x20] sm:$0xf]
        %v5505 = vld [vmem:[#allocation3 + $0x24] sm:$0xff]
        %v5506 = vld [vmem:[#allocation3 + $0x2c] sm:$0xf]
        %v5507 = vld [vmem:[#allocation3 + $0x30] sm:$0xff]
        %v5508 = vld [vmem:[#allocation3 + $0x38] sm:$0xf]
        %v5509 = vld [vmem:[#allocation3 + $0x3c] sm:$0xff]
        %v5510 = vld [vmem:[#allocation3 + $0x44] sm:$0xf]
        %v5511 = vld [vmem:[#allocation3 + $0x48] sm:$0xff]
        %v5512 = vld [vmem:[#allocation3 + $0x50] sm:$0xf]
        %v5513 = vld [vmem:[#allocation3 + $0x54] sm:$0xff]
        %v5514 = vld [vmem:[#allocation3 + $0x5c] sm:$0xf]
        %v5515 = vld [vmem:[#allocation3 + $0x60] sm:$0xff]
        %v5516 = vld [vmem:[#allocation3 + $0x68] sm:$0xf]
        %v5517 = vld [vmem:[#allocation3 + $0x6c] sm:$0xff]
        %v5518 = vld [vmem:[#allocation3 + $0x74] sm:$0xf]
        %v5519 = vld [vmem:[#allocation3 + $0x78] sm:$0xff]
        %v5520 = vld [vmem:[#allocation3 + $0x80] sm:$0xf]
        %v5521 = vld [vmem:[#allocation3 + $0x84] sm:$0xff]
        %v5522 = vld [vmem:[#allocation3 + $0x8c] sm:$0xf]
        %v5523 = vld [vmem:[#allocation3 + $0x90] sm:$0xff]
        %v5524 = vld [vmem:[#allocation3 + $0x98] sm:$0xf]
        %v5525 = vld [vmem:[#allocation3 + $0x9c] sm:$0xff]
        %v5526 = vld [vmem:[#allocation3 + $0xa4] sm:$0xf]
        %v5527 = vld [vmem:[#allocation3 + $0xa8] sm:$0xff]
        %v5528 = vld [vmem:[#allocation3 + $0xb0] sm:$0xf]
        %v5529 = vld [vmem:[#allocation3 + $0xb4] sm:$0xff]
        %v5530 = vld [vmem:[#allocation3 + $0xbc] sm:$0xf]
        %v5531 = vld [vmem:[#allocation3 + $0xc0] sm:$0xff]
        %v5532 = vld [vmem:[#allocation3 + $0xc8] sm:$0xf]
        %v5533 = vld [vmem:[#allocation3 + $0xcc] sm:$0xff]
        %v5534 = vld [vmem:[#allocation3 + $0xd4] sm:$0xf]
        %v5535 = vld [vmem:[#allocation3 + $0xd8] sm:$0xff]
        %v5536 = vld [vmem:[#allocation3 + $0xe0] sm:$0xf]
        %v5537 = vld [vmem:[#allocation3 + $0xe4] sm:$0xff]
        %v5538 = vld [vmem:[#allocation3 + $0xec] sm:$0xf]
        %v5539 = vld [vmem:[#allocation3 + $0xf0] sm:$0xff]
        %v5540 = vld [vmem:[#allocation3 + $0xf8] sm:$0xf]
        %v5541 = vld [vmem:[#allocation3 + $0xfc] sm:$0xff]
        %v5542 = vld [vmem:[#allocation3 + $0x104] sm:$0xf]
        %v5543 = vld [vmem:[#allocation3 + $0x108] sm:$0xff]
        %v5544 = vld [vmem:[#allocation3 + $0x110] sm:$0xf]
        %v5545 = vld [vmem:[#allocation3 + $0x114] sm:$0xff]
        %v5546 = vld [vmem:[#allocation3 + $0x11c] sm:$0xf]
        %v5547 = vld [vmem:[#allocation3 + $0x120] sm:$0xff]
        %v5548 = vld [vmem:[#allocation3 + $0x128] sm:$0xf]
        %v5549 = vld [vmem:[#allocation3 + $0x12c] sm:$0xff]
        %v5550 = vld [vmem:[#allocation3 + $0x134] sm:$0xf]
        %v5551 = vld [vmem:[#allocation3 + $0x138] sm:$0xff]
        %v5552 = vld [vmem:[#allocation3 + $0x140] sm:$0xf]
        %v5553 = vld [vmem:[#allocation3 + $0x144] sm:$0xff]
        %v5554 = vld [vmem:[#allocation3 + $0x14c] sm:$0xf]
        %v5555 = vld [vmem:[#allocation3 + $0x150] sm:$0xff]
        %v5556 = vld [vmem:[#allocation3 + $0x158] sm:$0xf]
        %v5557 = vld [vmem:[#allocation3 + $0x15c] sm:$0xff]
        %v5558 = vld [vmem:[#allocation3 + $0x164] sm:$0xf]
        %v5559 = vld [vmem:[#allocation3 + $0x168] sm:$0xff]
        %v5560 = vld [vmem:[#allocation3 + $0x170] sm:$0xf]
        %v5561 = vld [vmem:[#allocation3 + $0x174] sm:$0xff]
        %v5562 = vld [vmem:[#allocation3 + $0x17c] sm:$0xf]
        %s5563 = scalar_lea.vmem %s1, 144
        %v5564 = vld [vmem:[%s5563] sm:$0xf]
        %v5565 = vld [vmem:[%s5563 + $0x4] sm:$0xf]
        %v5566 = vld [vmem:[%s5563 + $0x8] sm:$0xf]
        %v5567 = vld [vmem:[%s5563 + $0xc] sm:$0xf]
        %v5568 = vld [vmem:[%s5563 + $0x10] sm:$0xf]
        %v5569 = vld [vmem:[%s5563 + $0x14] sm:$0xf]
        %v5570 = vld [vmem:[%s5563 + $0x18] sm:$0xf]
        %v5571 = vld [vmem:[%s5563 + $0x1c] sm:$0xf]
        %v5572 = vld [vmem:[%s5563 + $0x20] sm:$0xf]
        %v5573 = vld [vmem:[%s5563 + $0x24] sm:$0xf]
        %v5574 = vld [vmem:[%s5563 + $0x28] sm:$0xf]
        %v5575 = vld [vmem:[%s5563 + $0x2c] sm:$0xf]
        %v5576 = vld [vmem:[%s5563 + $0x30] sm:$0xf]
        %v5577 = vld [vmem:[%s5563 + $0x34] sm:$0xf]
        %v5578 = vld [vmem:[%s5563 + $0x38] sm:$0xf]
        %v5579 = vld [vmem:[%s5563 + $0x3c] sm:$0xf]
        %v5580 = vld [vmem:[%s5563 + $0x40] sm:$0xf]
        %v5581 = vld [vmem:[%s5563 + $0x44] sm:$0xf]
        %v5582 = vld [vmem:[%s5563 + $0x48] sm:$0xf]
        %v5583 = vld [vmem:[%s5563 + $0x4c] sm:$0xf]
        %v5584 = vld [vmem:[%s5563 + $0x50] sm:$0xf]
        %v5585 = vld [vmem:[%s5563 + $0x54] sm:$0xf]
        %v5586 = vld [vmem:[%s5563 + $0x58] sm:$0xf]
        %v5587 = vld [vmem:[%s5563 + $0x5c] sm:$0xf]
        %v5588 = vld [vmem:[%s5563 + $0x60] sm:$0xf]
        %v5589 = vld [vmem:[%s5563 + $0x64] sm:$0xf]
        %v5590 = vld [vmem:[%s5563 + $0x68] sm:$0xf]
        %v5591 = vld [vmem:[%s5563 + $0x6c] sm:$0xf]
        %v5592 = vld [vmem:[%s5563 + $0x70] sm:$0xf]
        %v5593 = vld [vmem:[%s5563 + $0x74] sm:$0xf]
        %v5594 = vld [vmem:[%s5563 + $0x78] sm:$0xf]
        %v5595 = vld [vmem:[%s5563 + $0x7c] sm:$0xf]
        %v5596 = vld [vmem:[%s5563 + $0x80] sm:$0xf]
        %v5597 = vld [vmem:[%s5563 + $0x84] sm:$0xf]
        %v5598 = vld [vmem:[%s5563 + $0x88] sm:$0xf]
        %v5599 = vld [vmem:[%s5563 + $0x8c] sm:$0xf]
        %s5600 = scalar_lea.vmem %s2, 4
        %v5601 = vld [vmem:[%s5600] sm:$0x7]
        %v5602 = vlaneseq
        %v5603 = vshrl.u32 %v5602, 7
        %v5604 = vsub.s32 0, %v5603
        %v5605 = vrot.slane %v5601, %v5604
        %v5670 = vunpack.c.l.b16 %v5499
        %v5671 = vunpack.c.h.b16 %v5499
        %v5672 = vunpack.c.l.b16 %v5500
        %v5673 = vunpack.c.l.b16 %v5501
        %v5674 = vunpack.c.h.b16 %v5501
        %v5675 = vunpack.c.l.b16 %v5502
        %v5676 = vunpack.c.l.b16 %v5503
        %v5677 = vunpack.c.h.b16 %v5503
        %v5678 = vunpack.c.l.b16 %v5504
        %v5679 = vunpack.c.l.b16 %v5505
        %v5680 = vunpack.c.h.b16 %v5505
        %v5681 = vunpack.c.l.b16 %v5506
        %v5682 = vunpack.c.l.b16 %v5507
        %v5683 = vunpack.c.h.b16 %v5507
        %v5684 = vunpack.c.l.b16 %v5508
        %v5685 = vunpack.c.l.b16 %v5509
        %v5686 = vunpack.c.h.b16 %v5509
        %v5687 = vunpack.c.l.b16 %v5510
        %v5688 = vunpack.c.l.b16 %v5511
        %v5689 = vunpack.c.h.b16 %v5511
        %v5690 = vunpack.c.l.b16 %v5512
        %v5691 = vunpack.c.l.b16 %v5513
        %v5692 = vunpack.c.h.b16 %v5513
        %v5693 = vunpack.c.l.b16 %v5514
        %v5694 = vunpack.c.l.b16 %v5515
        %v5695 = vunpack.c.h.b16 %v5515
        %v5696 = vunpack.c.l.b16 %v5516
        %v5697 = vunpack.c.l.b16 %v5517
        %v5698 = vunpack.c.h.b16 %v5517
        %v5699 = vunpack.c.l.b16 %v5518
        %v5700 = vunpack.c.l.b16 %v5519
        %v5701 = vunpack.c.h.b16 %v5519
        %v5702 = vunpack.c.l.b16 %v5520
        %v5703 = vunpack.c.l.b16 %v5521
        %v5704 = vunpack.c.h.b16 %v5521
        %v5705 = vunpack.c.l.b16 %v5522
        %v5706 = vunpack.c.l.b16 %v5523
        %v5707 = vunpack.c.h.b16 %v5523
        %v5708 = vunpack.c.l.b16 %v5524
        %v5709 = vunpack.c.l.b16 %v5525
        %v5710 = vunpack.c.h.b16 %v5525
        %v5711 = vunpack.c.l.b16 %v5526
        %v5712 = vunpack.c.l.b16 %v5527
        %v5713 = vunpack.c.h.b16 %v5527
        %v5714 = vunpack.c.l.b16 %v5528
        %v5715 = vunpack.c.l.b16 %v5529
        %v5716 = vunpack.c.h.b16 %v5529
        %v5717 = vunpack.c.l.b16 %v5530
        %v5718 = vunpack.c.l.b16 %v5531
        %v5719 = vunpack.c.h.b16 %v5531
        %v5720 = vunpack.c.l.b16 %v5532
        %v5721 = vunpack.c.l.b16 %v5533
        %v5722 = vunpack.c.h.b16 %v5533
        %v5723 = vunpack.c.l.b16 %v5534
        %v5724 = vunpack.c.l.b16 %v5535
        %v5725 = vunpack.c.h.b16 %v5535
        %v5726 = vunpack.c.l.b16 %v5536
        %v5727 = vunpack.c.l.b16 %v5537
        %v5728 = vunpack.c.h.b16 %v5537
        %v5729 = vunpack.c.l.b16 %v5538
        %v5730 = vunpack.c.l.b16 %v5539
        %v5731 = vunpack.c.h.b16 %v5539
        %v5732 = vunpack.c.l.b16 %v5540
        %v5733 = vunpack.c.l.b16 %v5541
        %v5734 = vunpack.c.h.b16 %v5541
        %v5735 = vunpack.c.l.b16 %v5542
        %v5736 = vunpack.c.l.b16 %v5543
        %v5737 = vunpack.c.h.b16 %v5543
        %v5738 = vunpack.c.l.b16 %v5544
        %v5739 = vunpack.c.l.b16 %v5545
        %v5740 = vunpack.c.h.b16 %v5545
        %v5741 = vunpack.c.l.b16 %v5546
        %v5742 = vunpack.c.l.b16 %v5547
        %v5743 = vunpack.c.h.b16 %v5547
        %v5744 = vunpack.c.l.b16 %v5548
        %v5745 = vunpack.c.l.b16 %v5549
        %v5746 = vunpack.c.h.b16 %v5549
        %v5747 = vunpack.c.l.b16 %v5550
        %v5748 = vunpack.c.l.b16 %v5551
        %v5749 = vunpack.c.h.b16 %v5551
        %v5750 = vunpack.c.l.b16 %v5552
        %v5751 = vunpack.c.l.b16 %v5553
        %v5752 = vunpack.c.h.b16 %v5553
        %v5753 = vunpack.c.l.b16 %v5554
        %v5754 = vunpack.c.l.b16 %v5555
        %v5755 = vunpack.c.h.b16 %v5555
        %v5756 = vunpack.c.l.b16 %v5556
        %v5757 = vunpack.c.l.b16 %v5557
        %v5758 = vunpack.c.h.b16 %v5557
        %v5759 = vunpack.c.l.b16 %v5558
        %v5760 = vunpack.c.l.b16 %v5559
        %v5761 = vunpack.c.h.b16 %v5559
        %v5762 = vunpack.c.l.b16 %v5560
        %v5763 = vunpack.c.l.b16 %v5561
        %v5764 = vunpack.c.h.b16 %v5561
        %v5765 = vunpack.c.l.b16 %v5562
        %v5766 = vpack.c.b16 %v5673, %v5670
        %v5767 = vpack.c.b16 %v5674, %v5671
        %v5768 = vpack.c.b16 %v5675, %v5672
        %v5769 = vpack.c.b16 %v5679, %v5676
        %v5770 = vpack.c.b16 %v5680, %v5677
        %v5771 = vpack.c.b16 %v5681, %v5678
        %v5772 = vpack.c.b16 %v5685, %v5682
        %v5773 = vpack.c.b16 %v5686, %v5683
        %v5774 = vpack.c.b16 %v5687, %v5684
        %v5775 = vpack.c.b16 %v5691, %v5688
        %v5776 = vpack.c.b16 %v5692, %v5689
        %v5777 = vpack.c.b16 %v5693, %v5690
        %v5778 = vpack.c.b16 %v5697, %v5694
        %v5779 = vpack.c.b16 %v5698, %v5695
        %v5780 = vpack.c.b16 %v5699, %v5696
        %v5781 = vpack.c.b16 %v5703, %v5700
        %v5782 = vpack.c.b16 %v5704, %v5701
        %v5783 = vpack.c.b16 %v5705, %v5702
        %v5784 = vpack.c.b16 %v5709, %v5706
        %v5785 = vpack.c.b16 %v5710, %v5707
        %v5786 = vpack.c.b16 %v5711, %v5708
        %v5787 = vpack.c.b16 %v5715, %v5712
        %v5788 = vpack.c.b16 %v5716, %v5713
        %v5789 = vpack.c.b16 %v5717, %v5714
        %v5790 = vpack.c.b16 %v5721, %v5718
        %v5791 = vpack.c.b16 %v5722, %v5719
        %v5792 = vpack.c.b16 %v5723, %v5720
        %v5793 = vpack.c.b16 %v5727, %v5724
        %v5794 = vpack.c.b16 %v5728, %v5725
        %v5795 = vpack.c.b16 %v5729, %v5726
        %v5796 = vpack.c.b16 %v5733, %v5730
        %v5797 = vpack.c.b16 %v5734, %v5731
        %v5798 = vpack.c.b16 %v5735, %v5732
        %v5799 = vpack.c.b16 %v5739, %v5736
        %v5800 = vpack.c.b16 %v5740, %v5737
        %v5801 = vpack.c.b16 %v5741, %v5738
        %v5802 = vpack.c.b16 %v5745, %v5742
        %v5803 = vpack.c.b16 %v5746, %v5743
        %v5804 = vpack.c.b16 %v5747, %v5744
        %v5805 = vpack.c.b16 %v5751, %v5748
        %v5806 = vpack.c.b16 %v5752, %v5749
        %v5807 = vpack.c.b16 %v5753, %v5750
        %v5808 = vpack.c.b16 %v5757, %v5754
        %v5809 = vpack.c.b16 %v5758, %v5755
        %v5810 = vpack.c.b16 %v5759, %v5756
        %v5811 = vpack.c.b16 %v5763, %v5760
        %v5812 = vpack.c.b16 %v5764, %v5761
        %v5813 = vpack.c.b16 %v5765, %v5762
        %v5882 = vunpack.c.l.b16 %v5564
        %v5883 = vunpack.c.l.b16 %v5565
        %v5884 = vunpack.c.l.b16 %v5566
        %v5885 = vunpack.c.l.b16 %v5567
        %v5886 = vunpack.c.l.b16 %v5568
        %v5887 = vunpack.c.l.b16 %v5569
        %v5888 = vunpack.c.l.b16 %v5570
        %v5889 = vunpack.c.l.b16 %v5571
        %v5890 = vunpack.c.l.b16 %v5572
        %v5891 = vunpack.c.l.b16 %v5573
        %v5892 = vunpack.c.l.b16 %v5574
        %v5893 = vunpack.c.l.b16 %v5575
        %v5894 = vunpack.c.l.b16 %v5576
        %v5895 = vunpack.c.l.b16 %v5577
        %v5896 = vunpack.c.l.b16 %v5578
        %v5897 = vunpack.c.l.b16 %v5579
        %v5898 = vunpack.c.l.b16 %v5580
        %v5899 = vunpack.c.l.b16 %v5581
        %v5900 = vunpack.c.l.b16 %v5582
        %v5901 = vunpack.c.l.b16 %v5583
        %v5902 = vunpack.c.l.b16 %v5584
        %v5903 = vunpack.c.l.b16 %v5585
        %v5904 = vunpack.c.l.b16 %v5586
        %v5905 = vunpack.c.l.b16 %v5587
        %v5906 = vunpack.c.l.b16 %v5588
        %v5907 = vunpack.c.l.b16 %v5589
        %v5908 = vunpack.c.l.b16 %v5590
        %v5909 = vunpack.c.l.b16 %v5591
        %v5910 = vunpack.c.l.b16 %v5592
        %v5911 = vunpack.c.l.b16 %v5593
        %v5912 = vunpack.c.l.b16 %v5594
        %v5913 = vunpack.c.l.b16 %v5595
        %v5914 = vunpack.c.l.b16 %v5596
        %v5915 = vunpack.c.l.b16 %v5597
        %v5916 = vunpack.c.l.b16 %v5598
        %v5917 = vunpack.c.l.b16 %v5599
        %v5918 = vpack.c.b16 %v5883, %v5882
        %v5919 = vpack.c.b16 %v5885, %v5884
        %v5920 = vpack.c.b16 %v5887, %v5886
        %v5921 = vpack.c.b16 %v5889, %v5888
        %v5922 = vpack.c.b16 %v5891, %v5890
        %v5923 = vpack.c.b16 %v5893, %v5892
        %v5924 = vpack.c.b16 %v5895, %v5894
        %v5925 = vpack.c.b16 %v5897, %v5896
        %v5926 = vpack.c.b16 %v5899, %v5898
        %v5927 = vpack.c.b16 %v5901, %v5900
        %v5928 = vpack.c.b16 %v5903, %v5902
        %v5929 = vpack.c.b16 %v5905, %v5904
        %v5930 = vpack.c.b16 %v5907, %v5906
        %v5931 = vpack.c.b16 %v5909, %v5908
        %v5932 = vpack.c.b16 %v5911, %v5910
        %v5933 = vpack.c.b16 %v5913, %v5912
        %v5934 = vpack.c.b16 %v5915, %v5914
        %v5935 = vpack.c.b16 %v5917, %v5916
        %v5955 = vsel %vm190, %v5768, 0
        %v5958 = vsel %vm190, %v5771, 0
        %v5961 = vsel %vm190, %v5774, 0
        %v5964 = vsel %vm190, %v5777, 0
        %v5967 = vsel %vm190, %v5780, 0
        %v5970 = vsel %vm190, %v5783, 0
        %v5973 = vsel %vm190, %v5786, 0
        %v5976 = vsel %vm190, %v5789, 0
        %v5979 = vsel %vm190, %v5792, 0
        %v5982 = vsel %vm190, %v5795, 0
        %v5985 = vsel %vm190, %v5798, 0
        %v5988 = vsel %vm190, %v5801, 0
        %v5991 = vsel %vm190, %v5804, 0
        %v5994 = vsel %vm190, %v5807, 0
        %v5997 = vsel %vm190, %v5810, 0
        %v6000 = vsel %vm190, %v5813, 0
        %6002 = vmatprep.subr.bf16.mxu0 0
        %6003 = vmatpush1.bf16.msra.mxu0 %v5925
        %6004 = vmatprep.subr.bf16.mxu0 0
        %6005 = vmatpush1.bf16.msra.mxu0 %v5924
        %6006 = vmatprep.subr.bf16.mxu0 0
        %6007 = vmatpush1.bf16.msra.mxu0 %v5923
        %6008 = vmatprep.subr.bf16.mxu0 0
        %6009 = vmatpush1.bf16.msra.mxu0 %v5922
        %6010 = vmatprep.subr.bf16.mxu0 0
        %6011 = vmatpush1.bf16.msra.mxu0 %v5921
        %6012 = vmatprep.subr.bf16.mxu0 0
        %6013 = vmatpush1.bf16.msra.mxu0 %v5920
        %6014 = vmatprep.subr.bf16.mxu0 0
        %6015 = vmatpush1.bf16.msra.mxu0 %v5919
        %6016 = vmatprep.subr.bf16.mxu0 0
        %6017 = vmatpush1.bf16.msra.mxu0 %v5918
        %6018 = vmatprep.subr.bf16.mxu0 0
        %6019 = vmatpush2.bf16.msra.mxu0 %v5933
        %6020 = vmatprep.subr.bf16.mxu0 0
        %6021 = vmatpush2.bf16.msra.mxu0 %v5932
        %6022 = vmatprep.subr.bf16.mxu0 0
        %6023 = vmatpush2.bf16.msra.mxu0 %v5931
        %6024 = vmatprep.subr.bf16.mxu0 0
        %6025 = vmatpush2.bf16.msra.mxu0 %v5930
        %6026 = vmatprep.subr.bf16.mxu0 0
        %6027 = vmatpush2.bf16.msra.mxu0 %v5929
        %6028 = vmatprep.subr.bf16.mxu0 0
        %6029 = vmatpush2.bf16.msra.mxu0 %v5928
        %6030 = vmatprep.subr.bf16.mxu0 0
        %6031 = vmatpush2.bf16.msra.mxu0 %v5927
        %6032 = vmatprep.subr.bf16.mxu0 0
        %6033 = vmatpush2.bf16.msra.mxu0 %v5926
        %6034 = vmatprep.mubr.bf16.mxu0 %v5767
        %6035 = vmatmul.mubr.bf16.gmra.mxu0 %v5766
        %v6036 = vpop.f32.mrf.mxu0
        %v6037 = vadd.f32 %v5605, %v6036
        %v6038 = vpop.f32.mrf.mxu0
        %v6039 = vpop.f32.mrf.mxu0
        %v6040 = vadd.f32 %v5605, %v6039
        %v6041 = vpop.f32.mrf.mxu0
        %6042 = vmatprep.mubr.bf16.mxu0 %v5770
        %6043 = vmatmul.mubr.bf16.gmra.mxu0 %v5769
        %v6044 = vpop.f32.mrf.mxu0
        %v6045 = vadd.f32 %v5605, %v6044
        %v6046 = vpop.f32.mrf.mxu0
        %v6047 = vpop.f32.mrf.mxu0
        %v6048 = vadd.f32 %v5605, %v6047
        %v6049 = vpop.f32.mrf.mxu0
        %6050 = vmatprep.mubr.bf16.mxu0 %v5773
        %6051 = vmatmul.mubr.bf16.gmra.mxu0 %v5772
        %v6052 = vpop.f32.mrf.mxu0
        %v6053 = vadd.f32 %v5605, %v6052
        %v6054 = vpop.f32.mrf.mxu0
        %v6055 = vpop.f32.mrf.mxu0
        %v6056 = vadd.f32 %v5605, %v6055
        %v6057 = vpop.f32.mrf.mxu0
        %6058 = vmatprep.mubr.bf16.mxu0 %v5776
        %6059 = vmatmul.mubr.bf16.gmra.mxu0 %v5775
        %v6060 = vpop.f32.mrf.mxu0
        %v6061 = vadd.f32 %v5605, %v6060
        %v6062 = vpop.f32.mrf.mxu0
        %v6063 = vpop.f32.mrf.mxu0
        %v6064 = vadd.f32 %v5605, %v6063
        %v6065 = vpop.f32.mrf.mxu0
        %6066 = vmatprep.mubr.bf16.mxu0 %v5779
        %6067 = vmatmul.mubr.bf16.gmra.mxu0 %v5778
        %v6068 = vpop.f32.mrf.mxu0
        %v6069 = vadd.f32 %v5605, %v6068
        %v6070 = vpop.f32.mrf.mxu0
        %v6071 = vpop.f32.mrf.mxu0
        %v6072 = vadd.f32 %v5605, %v6071
        %v6073 = vpop.f32.mrf.mxu0
        %6074 = vmatprep.mubr.bf16.mxu0 %v5782
        %6075 = vmatmul.mubr.bf16.gmra.mxu0 %v5781
        %v6076 = vpop.f32.mrf.mxu0
        %v6077 = vadd.f32 %v5605, %v6076
        %v6078 = vpop.f32.mrf.mxu0
        %v6079 = vpop.f32.mrf.mxu0
        %v6080 = vadd.f32 %v5605, %v6079
        %v6081 = vpop.f32.mrf.mxu0
        %6082 = vmatprep.mubr.bf16.mxu0 %v5785
        %6083 = vmatmul.mubr.bf16.gmra.mxu0 %v5784
        %v6084 = vpop.f32.mrf.mxu0
        %v6085 = vadd.f32 %v5605, %v6084
        %v6086 = vpop.f32.mrf.mxu0
        %v6087 = vpop.f32.mrf.mxu0
        %v6088 = vadd.f32 %v5605, %v6087
        %v6089 = vpop.f32.mrf.mxu0
        %6090 = vmatprep.mubr.bf16.mxu0 %v5788
        %6091 = vmatmul.mubr.bf16.gmra.mxu0 %v5787
        %v6092 = vpop.f32.mrf.mxu0
        %v6093 = vadd.f32 %v5605, %v6092
        %v6094 = vpop.f32.mrf.mxu0
        %v6095 = vpop.f32.mrf.mxu0
        %v6096 = vadd.f32 %v5605, %v6095
        %v6097 = vpop.f32.mrf.mxu0
        %6098 = vmatprep.mubr.bf16.mxu0 %v5791
        %6099 = vmatmul.mubr.bf16.gmra.mxu0 %v5790
        %v6100 = vpop.f32.mrf.mxu0
        %v6101 = vadd.f32 %v5605, %v6100
        %v6102 = vpop.f32.mrf.mxu0
        %v6103 = vpop.f32.mrf.mxu0
        %v6104 = vadd.f32 %v5605, %v6103
        %v6105 = vpop.f32.mrf.mxu0
        %6106 = vmatprep.mubr.bf16.mxu0 %v5794
        %6107 = vmatmul.mubr.bf16.gmra.mxu0 %v5793
        %v6108 = vpop.f32.mrf.mxu0
        %v6109 = vadd.f32 %v5605, %v6108
        %v6110 = vpop.f32.mrf.mxu0
        %v6111 = vpop.f32.mrf.mxu0
        %v6112 = vadd.f32 %v5605, %v6111
        %v6113 = vpop.f32.mrf.mxu0
        %6114 = vmatprep.mubr.bf16.mxu0 %v5797
        %6115 = vmatmul.mubr.bf16.gmra.mxu0 %v5796
        %v6116 = vpop.f32.mrf.mxu0
        %v6117 = vadd.f32 %v5605, %v6116
        %v6118 = vpop.f32.mrf.mxu0
        %v6119 = vpop.f32.mrf.mxu0
        %v6120 = vadd.f32 %v5605, %v6119
        %v6121 = vpop.f32.mrf.mxu0
        %6122 = vmatprep.mubr.bf16.mxu0 %v5800
        %6123 = vmatmul.mubr.bf16.gmra.mxu0 %v5799
        %v6124 = vpop.f32.mrf.mxu0
        %v6125 = vadd.f32 %v5605, %v6124
        %v6126 = vpop.f32.mrf.mxu0
        %v6127 = vpop.f32.mrf.mxu0
        %v6128 = vadd.f32 %v5605, %v6127
        %v6129 = vpop.f32.mrf.mxu0
        %6130 = vmatprep.mubr.bf16.mxu0 %v5803
        %6131 = vmatmul.mubr.bf16.gmra.mxu0 %v5802
        %v6132 = vpop.f32.mrf.mxu0
        %v6133 = vadd.f32 %v5605, %v6132
        %v6134 = vpop.f32.mrf.mxu0
        %v6135 = vpop.f32.mrf.mxu0
        %v6136 = vadd.f32 %v5605, %v6135
        %v6137 = vpop.f32.mrf.mxu0
        %6138 = vmatprep.mubr.bf16.mxu0 %v5806
        %6139 = vmatmul.mubr.bf16.gmra.mxu0 %v5805
        %v6140 = vpop.f32.mrf.mxu0
        %v6141 = vadd.f32 %v5605, %v6140
        %v6142 = vpop.f32.mrf.mxu0
        %v6143 = vpop.f32.mrf.mxu0
        %v6144 = vadd.f32 %v5605, %v6143
        %v6145 = vpop.f32.mrf.mxu0
        %6146 = vmatprep.mubr.bf16.mxu0 %v5809
        %6147 = vmatmul.mubr.bf16.gmra.mxu0 %v5808
        %v6148 = vpop.f32.mrf.mxu0
        %v6149 = vadd.f32 %v5605, %v6148
        %v6150 = vpop.f32.mrf.mxu0
        %v6151 = vpop.f32.mrf.mxu0
        %v6152 = vadd.f32 %v5605, %v6151
        %v6153 = vpop.f32.mrf.mxu0
        %6154 = vmatprep.mubr.bf16.mxu0 %v5812
        %6155 = vmatmul.mubr.bf16.gmra.mxu0 %v5811
        %v6156 = vpop.f32.mrf.mxu0
        %v6157 = vadd.f32 %v5605, %v6156
        %v6158 = vpop.f32.mrf.mxu0
        %v6159 = vpop.f32.mrf.mxu0
        %v6160 = vadd.f32 %v5605, %v6159
        %v6161 = vpop.f32.mrf.mxu0
        %6162 = vdwg.mxu0
        %6163 = vmatprep.subr.bf16.mxu0 0
        %6164 = vmatpush1.bf16.msra.mxu0 0
        %6165 = vmatprep.subr.bf16.mxu0 0
        %6166 = vmatpush1.bf16.msra.mxu0 0
        %6167 = vmatprep.subr.bf16.mxu0 0
        %6168 = vmatpush1.bf16.msra.mxu0 0
        %6169 = vmatprep.subr.bf16.mxu0 0
        %6170 = vmatpush1.bf16.msra.mxu0 0
        %6171 = vmatprep.subr.bf16.mxu0 0
        %6172 = vmatpush1.bf16.msra.mxu0 0
        %6173 = vmatprep.subr.bf16.mxu0 0
        %6174 = vmatpush1.bf16.msra.mxu0 0
        %6175 = vmatprep.subr.bf16.mxu0 0
        %6176 = vmatpush1.bf16.msra.mxu0 %v5935
        %6177 = vmatprep.subr.bf16.mxu0 0
        %6178 = vmatpush1.bf16.msra.mxu0 %v5934
        %6179 = vmatprep.subr.bf16.mxu0 0
        %6180 = vmatpush2.bf16.msra.mxu0 0
        %6181 = vmatprep.subr.bf16.mxu0 0
        %6182 = vmatpush2.bf16.msra.mxu0 0
        %6183 = vmatprep.subr.bf16.mxu0 0
        %6184 = vmatpush2.bf16.msra.mxu0 0
        %6185 = vmatprep.subr.bf16.mxu0 0
        %6186 = vmatpush2.bf16.msra.mxu0 0
        %6187 = vmatprep.subr.bf16.mxu0 0
        %6188 = vmatpush2.bf16.msra.mxu0 0
        %6189 = vmatprep.subr.bf16.mxu0 0
        %6190 = vmatpush2.bf16.msra.mxu0 0
        %6191 = vmatprep.subr.bf16.mxu0 0
        %6192 = vmatpush2.bf16.msra.mxu0 0
        %6193 = vmatprep.subr.bf16.mxu0 0
        %6194 = vmatpush2.bf16.msra.mxu0 0
        %6195 = vmatprep.mubr.bf16.mxu0 0
        %6196 = vmatmul.mubr.bf16.gmra.mxu0 %v5955
        %v6197 = vpop.f32.mrf.mxu0
        %v6198 = vadd.f32 %v6037, %v6197
        %v6199 = vpop.f32.mrf.mxu0
        %v6200 = vpop.f32.mrf.mxu0
        %v6201 = vadd.f32 %v6040, %v6200
        %v6202 = vpop.f32.mrf.mxu0
        %6203 = vmatprep.mubr.bf16.mxu0 0
        %6204 = vmatmul.mubr.bf16.gmra.mxu0 %v5958
        %v6205 = vpop.f32.mrf.mxu0
        %v6206 = vadd.f32 %v6045, %v6205
        %v6207 = vpop.f32.mrf.mxu0
        %v6208 = vpop.f32.mrf.mxu0
        %v6209 = vadd.f32 %v6048, %v6208
        %v6210 = vpop.f32.mrf.mxu0
        %6211 = vmatprep.mubr.bf16.mxu0 0
        %6212 = vmatmul.mubr.bf16.gmra.mxu0 %v5961
        %v6213 = vpop.f32.mrf.mxu0
        %v6214 = vadd.f32 %v6053, %v6213
        %v6215 = vpop.f32.mrf.mxu0
        %v6216 = vpop.f32.mrf.mxu0
        %v6217 = vadd.f32 %v6056, %v6216
        %v6218 = vpop.f32.mrf.mxu0
        %6219 = vmatprep.mubr.bf16.mxu0 0
        %6220 = vmatmul.mubr.bf16.gmra.mxu0 %v5964
        %v6221 = vpop.f32.mrf.mxu0
        %v6222 = vadd.f32 %v6061, %v6221
        %v6223 = vpop.f32.mrf.mxu0
        %v6224 = vpop.f32.mrf.mxu0
        %v6225 = vadd.f32 %v6064, %v6224
        %v6226 = vpop.f32.mrf.mxu0
        %6227 = vmatprep.mubr.bf16.mxu0 0
        %6228 = vmatmul.mubr.bf16.gmra.mxu0 %v5967
        %v6229 = vpop.f32.mrf.mxu0
        %v6230 = vadd.f32 %v6069, %v6229
        %v6231 = vpop.f32.mrf.mxu0
        %v6232 = vpop.f32.mrf.mxu0
        %v6233 = vadd.f32 %v6072, %v6232
        %v6234 = vpop.f32.mrf.mxu0
        %6235 = vmatprep.mubr.bf16.mxu0 0
        %6236 = vmatmul.mubr.bf16.gmra.mxu0 %v5970
        %v6237 = vpop.f32.mrf.mxu0
        %v6238 = vadd.f32 %v6077, %v6237
        %v6239 = vpop.f32.mrf.mxu0
        %v6240 = vpop.f32.mrf.mxu0
        %v6241 = vadd.f32 %v6080, %v6240
        %v6242 = vpop.f32.mrf.mxu0
        %6243 = vmatprep.mubr.bf16.mxu0 0
        %6244 = vmatmul.mubr.bf16.gmra.mxu0 %v5973
        %v6245 = vpop.f32.mrf.mxu0
        %v6246 = vadd.f32 %v6085, %v6245
        %v6247 = vpop.f32.mrf.mxu0
        %v6248 = vpop.f32.mrf.mxu0
        %v6249 = vadd.f32 %v6088, %v6248
        %v6250 = vpop.f32.mrf.mxu0
        %6251 = vmatprep.mubr.bf16.mxu0 0
        %6252 = vmatmul.mubr.bf16.gmra.mxu0 %v5976
        %v6253 = vpop.f32.mrf.mxu0
        %v6254 = vadd.f32 %v6093, %v6253
        %v6255 = vpop.f32.mrf.mxu0
        %v6256 = vpop.f32.mrf.mxu0
        %v6257 = vadd.f32 %v6096, %v6256
        %v6258 = vpop.f32.mrf.mxu0
        %6259 = vmatprep.mubr.bf16.mxu0 0
        %6260 = vmatmul.mubr.bf16.gmra.mxu0 %v5979
        %v6261 = vpop.f32.mrf.mxu0
        %v6262 = vadd.f32 %v6101, %v6261
        %v6263 = vpop.f32.mrf.mxu0
        %v6264 = vpop.f32.mrf.mxu0
        %v6265 = vadd.f32 %v6104, %v6264
        %v6266 = vpop.f32.mrf.mxu0
        %6267 = vmatprep.mubr.bf16.mxu0 0
        %6268 = vmatmul.mubr.bf16.gmra.mxu0 %v5982
        %v6269 = vpop.f32.mrf.mxu0
        %v6270 = vadd.f32 %v6109, %v6269
        %v6271 = vpop.f32.mrf.mxu0
        %v6272 = vpop.f32.mrf.mxu0
        %v6273 = vadd.f32 %v6112, %v6272
        %v6274 = vpop.f32.mrf.mxu0
        %6275 = vmatprep.mubr.bf16.mxu0 0
        %6276 = vmatmul.mubr.bf16.gmra.mxu0 %v5985
        %v6277 = vpop.f32.mrf.mxu0
        %v6278 = vadd.f32 %v6117, %v6277
        %v6279 = vpop.f32.mrf.mxu0
        %v6280 = vpop.f32.mrf.mxu0
        %v6281 = vadd.f32 %v6120, %v6280
        %v6282 = vpop.f32.mrf.mxu0
        %6283 = vmatprep.mubr.bf16.mxu0 0
        %6284 = vmatmul.mubr.bf16.gmra.mxu0 %v5988
        %v6285 = vpop.f32.mrf.mxu0
        %v6286 = vadd.f32 %v6125, %v6285
        %v6287 = vpop.f32.mrf.mxu0
        %v6288 = vpop.f32.mrf.mxu0
        %v6289 = vadd.f32 %v6128, %v6288
        %v6290 = vpop.f32.mrf.mxu0
        %6291 = vmatprep.mubr.bf16.mxu0 0
        %6292 = vmatmul.mubr.bf16.gmra.mxu0 %v5991
        %v6293 = vpop.f32.mrf.mxu0
        %v6294 = vadd.f32 %v6133, %v6293
        %v6295 = vpop.f32.mrf.mxu0
        %v6296 = vpop.f32.mrf.mxu0
        %v6297 = vadd.f32 %v6136, %v6296
        %v6298 = vpop.f32.mrf.mxu0
        %6299 = vmatprep.mubr.bf16.mxu0 0
        %6300 = vmatmul.mubr.bf16.gmra.mxu0 %v5994
        %v6301 = vpop.f32.mrf.mxu0
        %v6302 = vadd.f32 %v6141, %v6301
        %v6303 = vpop.f32.mrf.mxu0
        %v6304 = vpop.f32.mrf.mxu0
        %v6305 = vadd.f32 %v6144, %v6304
        %v6306 = vpop.f32.mrf.mxu0
        %6307 = vmatprep.mubr.bf16.mxu0 0
        %6308 = vmatmul.mubr.bf16.gmra.mxu0 %v5997
        %v6309 = vpop.f32.mrf.mxu0
        %v6310 = vadd.f32 %v6149, %v6309
        %v6311 = vpop.f32.mrf.mxu0
        %v6312 = vpop.f32.mrf.mxu0
        %v6313 = vadd.f32 %v6152, %v6312
        %v6314 = vpop.f32.mrf.mxu0
        %6315 = vmatprep.mubr.bf16.mxu0 0
        %6316 = vmatmul.mubr.bf16.gmra.mxu0 %v6000
        %v6317 = vpop.f32.mrf.mxu0
        %v6318 = vadd.f32 %v6157, %v6317
        %v6319 = vpop.f32.mrf.mxu0
        %v6320 = vpop.f32.mrf.mxu0
        %v6321 = vadd.f32 %v6160, %v6320
        %v6322 = vpop.f32.mrf.mxu0
        %6323 = vdwg.mxu0
        %v6324 = vmax.f32 %v6198, 0.0
        %v6325 = vmax.f32 %v6201, 0.0
        %v6326 = vmax.f32 %v6206, 0.0
        %v6327 = vmax.f32 %v6209, 0.0
        %v6328 = vmax.f32 %v6214, 0.0
        %v6329 = vmax.f32 %v6217, 0.0
        %v6330 = vmax.f32 %v6222, 0.0
        %v6331 = vmax.f32 %v6225, 0.0
        %v6332 = vmax.f32 %v6230, 0.0
        %v6333 = vmax.f32 %v6233, 0.0
        %v6334 = vmax.f32 %v6238, 0.0
        %v6335 = vmax.f32 %v6241, 0.0
        %v6336 = vmax.f32 %v6246, 0.0
        %v6337 = vmax.f32 %v6249, 0.0
        %v6338 = vmax.f32 %v6254, 0.0
        %v6339 = vmax.f32 %v6257, 0.0
        %v6340 = vmax.f32 %v6262, 0.0
        %v6341 = vmax.f32 %v6265, 0.0
        %v6342 = vmax.f32 %v6270, 0.0
        %v6343 = vmax.f32 %v6273, 0.0
        %v6344 = vmax.f32 %v6278, 0.0
        %v6345 = vmax.f32 %v6281, 0.0
        %v6346 = vmax.f32 %v6286, 0.0
        %v6347 = vmax.f32 %v6289, 0.0
        %v6348 = vmax.f32 %v6294, 0.0
        %v6349 = vmax.f32 %v6297, 0.0
        %v6350 = vmax.f32 %v6302, 0.0
        %v6351 = vmax.f32 %v6305, 0.0
        %v6352 = vmax.f32 %v6310, 0.0
        %v6353 = vmax.f32 %v6313, 0.0
        %v6354 = vmax.f32 %v6318, 0.0
        %v6355 = vmax.f32 %v6321, 0.0
        %v6356 = vlaneseq
        %v6357 = vshrl.u32 %v6356, 7
        %v6358 = vsub.s32 1, %v6357
        %v6359 = vrot.slane %v5601, %v6358
        %v6360 = vmul.f32 %v6324, %v6359
        %v6361 = vmul.f32 %v6325, %v6359
        %v6362 = vmul.f32 %v6326, %v6359
        %v6363 = vmul.f32 %v6327, %v6359
        %v6364 = vmul.f32 %v6328, %v6359
        %v6365 = vmul.f32 %v6329, %v6359
        %v6366 = vmul.f32 %v6330, %v6359
        %v6367 = vmul.f32 %v6331, %v6359
        %v6368 = vmul.f32 %v6332, %v6359
        %v6369 = vmul.f32 %v6333, %v6359
        %v6370 = vmul.f32 %v6334, %v6359
        %v6371 = vmul.f32 %v6335, %v6359
        %v6372 = vmul.f32 %v6336, %v6359
        %v6373 = vmul.f32 %v6337, %v6359
        %v6374 = vmul.f32 %v6338, %v6359
        %v6375 = vmul.f32 %v6339, %v6359
        %v6376 = vmul.f32 %v6340, %v6359
        %v6377 = vmul.f32 %v6341, %v6359
        %v6378 = vmul.f32 %v6342, %v6359
        %v6379 = vmul.f32 %v6343, %v6359
        %v6380 = vmul.f32 %v6344, %v6359
        %v6381 = vmul.f32 %v6345, %v6359
        %v6382 = vmul.f32 %v6346, %v6359
        %v6383 = vmul.f32 %v6347, %v6359
        %v6384 = vmul.f32 %v6348, %v6359
        %v6385 = vmul.f32 %v6349, %v6359
        %v6386 = vmul.f32 %v6350, %v6359
        %v6387 = vmul.f32 %v6351, %v6359
        %v6388 = vmul.f32 %v6352, %v6359
        %v6389 = vmul.f32 %v6353, %v6359
        %v6390 = vmul.f32 %v6354, %v6359
        %v6391 = vmul.f32 %v6355, %v6359
        %v6392 = vlaneseq
        %v6393 = vshrl.u32 %v6392, 7
        %v6394 = vsub.s32 2, %v6393
        %v6395 = vrot.slane %v5601, %v6394
        %v6396 = vadd.f32 %v6360, %v6395
        %v6397 = vadd.f32 %v6361, %v6395
        %v6398 = vadd.f32 %v6362, %v6395
        %v6399 = vadd.f32 %v6363, %v6395
        %v6400 = vadd.f32 %v6364, %v6395
        %v6401 = vadd.f32 %v6365, %v6395
        %v6402 = vadd.f32 %v6366, %v6395
        %v6403 = vadd.f32 %v6367, %v6395
        %v6404 = vadd.f32 %v6368, %v6395
        %v6405 = vadd.f32 %v6369, %v6395
        %v6406 = vadd.f32 %v6370, %v6395
        %v6407 = vadd.f32 %v6371, %v6395
        %v6408 = vadd.f32 %v6372, %v6395
        %v6409 = vadd.f32 %v6373, %v6395
        %v6410 = vadd.f32 %v6374, %v6395
        %v6411 = vadd.f32 %v6375, %v6395
        %v6412 = vadd.f32 %v6376, %v6395
        %v6413 = vadd.f32 %v6377, %v6395
        %v6414 = vadd.f32 %v6378, %v6395
        %v6415 = vadd.f32 %v6379, %v6395
        %v6416 = vadd.f32 %v6380, %v6395
        %v6417 = vadd.f32 %v6381, %v6395
        %v6418 = vadd.f32 %v6382, %v6395
        %v6419 = vadd.f32 %v6383, %v6395
        %v6420 = vadd.f32 %v6384, %v6395
        %v6421 = vadd.f32 %v6385, %v6395
        %v6422 = vadd.f32 %v6386, %v6395
        %v6423 = vadd.f32 %v6387, %v6395
        %v6424 = vadd.f32 %v6388, %v6395
        %v6425 = vadd.f32 %v6389, %v6395
        %v6426 = vadd.f32 %v6390, %v6395
        %v6427 = vadd.f32 %v6391, %v6395
        %6428 = vst.msk [vmem:[%s188] sm:$0xff] %vm190, %v6396
        %6429 = vst.msk [vmem:[%s188 + $0x8] sm:$0xff] %vm190, %v6397
        %6430 = vst.msk [vmem:[%s188 + $0x10] sm:$0xff] %vm190, %v6398
        %6431 = vst.msk [vmem:[%s188 + $0x18] sm:$0xff] %vm190, %v6399
        %6432 = vst.msk [vmem:[%s188 + $0x20] sm:$0xff] %vm190, %v6400
        %6433 = vst.msk [vmem:[%s188 + $0x28] sm:$0xff] %vm190, %v6401
        %6434 = vst.msk [vmem:[%s188 + $0x30] sm:$0xff] %vm190, %v6402
        %6435 = vst.msk [vmem:[%s188 + $0x38] sm:$0xff] %vm190, %v6403
        %6436 = vst.msk [vmem:[%s188 + $0x40] sm:$0xff] %vm190, %v6404
        %6437 = vst.msk [vmem:[%s188 + $0x48] sm:$0xff] %vm190, %v6405
        %6438 = vst.msk [vmem:[%s188 + $0x50] sm:$0xff] %vm190, %v6406
        %6439 = vst.msk [vmem:[%s188 + $0x58] sm:$0xff] %vm190, %v6407
        %6440 = vst.msk [vmem:[%s188 + $0x60] sm:$0xff] %vm190, %v6408
        %6441 = vst.msk [vmem:[%s188 + $0x68] sm:$0xff] %vm190, %v6409
        %6442 = vst.msk [vmem:[%s188 + $0x70] sm:$0xff] %vm190, %v6410
        %6443 = vst.msk [vmem:[%s188 + $0x78] sm:$0xff] %vm190, %v6411
        %6444 = vst.msk [vmem:[%s188 + $0x80] sm:$0xff] %vm190, %v6412
        %6445 = vst.msk [vmem:[%s188 + $0x88] sm:$0xff] %vm190, %v6413
        %6446 = vst.msk [vmem:[%s188 + $0x90] sm:$0xff] %vm190, %v6414
        %6447 = vst.msk [vmem:[%s188 + $0x98] sm:$0xff] %vm190, %v6415
        %6448 = vst.msk [vmem:[%s188 + $0xa0] sm:$0xff] %vm190, %v6416
        %6449 = vst.msk [vmem:[%s188 + $0xa8] sm:$0xff] %vm190, %v6417
        %6450 = vst.msk [vmem:[%s188 + $0xb0] sm:$0xff] %vm190, %v6418
        %6451 = vst.msk [vmem:[%s188 + $0xb8] sm:$0xff] %vm190, %v6419
        %6452 = vst.msk [vmem:[%s188 + $0xc0] sm:$0xff] %vm190, %v6420
        %6453 = vst.msk [vmem:[%s188 + $0xc8] sm:$0xff] %vm190, %v6421
        %6454 = vst.msk [vmem:[%s188 + $0xd0] sm:$0xff] %vm190, %v6422
        %6455 = vst.msk [vmem:[%s188 + $0xd8] sm:$0xff] %vm190, %v6423
        %6456 = vst.msk [vmem:[%s188 + $0xe0] sm:$0xff] %vm190, %v6424
        %6457 = vst.msk [vmem:[%s188 + $0xe8] sm:$0xff] %vm190, %v6425
        %6458 = vst.msk [vmem:[%s188 + $0xf0] sm:$0xff] %vm190, %v6426
        %6459 = vst.msk [vmem:[%s188 + $0xf8] sm:$0xff] %vm190, %v6427
        %s6460 = sand.u32 %s96, 1
        %s6461 = scalar_lea.sflag [#allocation6], %s6460
        %s6462 = sand.u32 %s96, 1
        %s6463 = smul.addr %s6462, 256
        %s6464 = scalar_lea.vmem [#allocation7], %s6463
        // Predicated region
        $region37: #{convblock_forward.1} parent=31 // pred_check
          %p6465 = pneg %p106
        $region38: #{convblock_forward.1} parent=31 // pred_check_branch
          %6467 = sbr.rel (%p6465) target = $region40
        $region39: #{convblock_forward.1} parent=31 // pred_region
          %s6469 = ssub.s32 4096, 4096
          %6470 = vsyncadd %s6461, %s6469
          %s6471 = smul.addr %s20, 32
          %s6472 = smul.addr %s6471, 128
          %s6473 = scalar_lea.hbm %s3, %s6472
          %s6474 = sshll.u32 %s6464, 4
          %s6475 = int_to_ptr.vmem [resolvable:$true] %s6474
          %6480 = dma.vmem_to_hbm [thread:$0]  %s6475, 4096, %s6473, %s6461, 128, 128, 8
        $region40: #{convblock_forward.1} parent=31 // pred_fallthru
          _
      $region32: #{convblock_forward.1} parent=5 // pred_fallthru
        _
      %p6481 = scmp.le.s32.totalorder 2, %s15
      // Predicated region
      $region41: #{convblock_forward.1} parent=5 // pred_check
        %p6482 = pneg %p6481
      $region42: #{convblock_forward.1} parent=5 // pred_check_branch
        %6484 = sbr.rel (%p6482) target = $region44
      $region43: #{convblock_forward.1} parent=5 // pred_region
        %s6485 = ssub.s32 %s15, 2
        // Predicated region
        $region45: #{convblock_forward.1} parent=43 // pred_check
          %p6486 = pneg %p112
        $region46: #{convblock_forward.1} parent=43 // pred_check_branch
          %6488 = sbr.rel (%p6486) target = $region48
        $region47: #{convblock_forward.1} parent=43 // pred_region
          %s6489 = sand.u32 %s97, 1
          %s6490 = scalar_lea.sflag [#allocation6], %s6489
          %s6491 = sand.u32 %s97, 1
          %s6492 = smul.addr %s6491, 256
          %s6493 = scalar_lea.vmem [#allocation7], %s6492
          %6494 = dma.done %s6490, 4096
        $region48: #{convblock_forward.1} parent=43 // pred_fallthru
          _
      $region44: #{convblock_forward.1} parent=5 // pred_fallthru
        _
    $region6: #{convblock_forward.1} parent=1 // loop_footer
      %s19 = sadd.s32 1, %s15
    $region7: #{convblock_forward.1} parent=1 // loop_footer_branch
      %14 = sbr.rel target = $region3
    $region8: #{convblock_forward.1} parent=1 // loop_exit
      _
    %6495 = vsyncpa [#allocation5], 1
    %s6496 = scalar_lea.sflag [#allocation5], 1
    %6497 = vsyncpa %s6496, 1
    %6498 = vsyncpa [#allocation6], 1
    %s6499 = scalar_lea.sflag [#allocation6], 1
    %6500 = vsyncpa %s6499, 1

</llo_original>
